<compile_context>
chip_gen: v7x
topology: tpu7x:2x2x1
jax: 0.10.0
libtpu: 0.0.40
codegen_flags: <defaults>
</compile_context>

<pallas_src>
import functools

import jax
import jax.numpy as jnp
from jax.experimental import pallas as pl
from jax.experimental.pallas import tpu as pltpu

DIM = 64
NUM_HEADS = 4
MLP_RATIO = 2

_BLOCK_PARAM_ORDER = ("n1w", "n1b", "wq", "bq", "wk", "bk", "wv", "bv",
                      "wproj", "bproj", "n2w", "n2b", "wfc1", "bfc1", "wfc2", "bfc2")
_N_BLK = len(_BLOCK_PARAM_ORDER)   # 16


# ----------------------------- in-kernel helpers -----------------------------
def _ln(x, w, b, eps):
    mu = jnp.mean(x, axis=-1, keepdims=True)
    var = jnp.mean((x - mu) ** 2, axis=-1, keepdims=True)
    return (x - mu) * jax.lax.rsqrt(var + eps) * w + b


def _gelu_exact(x):
    # nn.GELU() default: exact erf formulation.
    return 0.5 * x * (1.0 + jax.lax.erf(x * 0.7071067811865476))


def _block(x, p, num_heads, ln_eps):
    """One transformer Block (LN -> MHA -> residual -> LN -> MLP -> residual).

    x: (N, D) value; p: tuple of 16 param refs in _BLOCK_PARAM_ORDER.
    """
    (n1w, n1b, wq, bq, wk, bk, wv, bv, wproj, bproj,
     n2w, n2b, wfc1, bfc1, wfc2, bfc2) = p

    D = x.shape[-1]
    hd = D // num_heads
    scale = float(hd) ** -0.5

    # --- attention branch ---
    h = _ln(x, n1w[0], n1b[0], ln_eps)
    q = jnp.dot(h, wq[...], preferred_element_type=jnp.float32) + bq[0]   # (N, D)
    k = jnp.dot(h, wk[...], preferred_element_type=jnp.float32) + bk[0]   # (N, D)
    v = jnp.dot(h, wv[...], preferred_element_type=jnp.float32) + bv[0]   # (N, D)

    wp = wproj[...]                                                        # (D, D)
    acc = None
    for hh in range(num_heads):
        lo, hi = hh * hd, (hh + 1) * hd
        qh = q[:, lo:hi]
        kh = k[:, lo:hi]
        vh = v[:, lo:hi]
        # scores: contract last dims of q/k (no explicit transpose).
        s = jax.lax.dot_general(qh, kh, (((1,), (1,)), ((), ())),
                                preferred_element_type=jnp.float32) * scale   # (N, N)
        s = s - jnp.max(s, axis=-1, keepdims=True)
        pexp = jnp.exp(s)
        pexp = pexp * pl.reciprocal(jnp.sum(pexp, axis=-1, keepdims=True), approx=True)
        oh = jnp.dot(pexp, vh, preferred_element_type=jnp.float32)            # (N, hd)
        # fold the head-concat into the projection: o_h @ wproj[rows of this head]
        contrib = jnp.dot(oh, wp[lo:hi, :], preferred_element_type=jnp.float32)
        acc = contrib if acc is None else acc + contrib
    x = x + acc + bproj[0]

    # --- MLP branch ---
    h2 = _ln(x, n2w[0], n2b[0], ln_eps)
    m = jnp.dot(h2, wfc1[...], preferred_element_type=jnp.float32) + bfc1[0]
    m = _gelu_exact(m)
    m = jnp.dot(m, wfc2[...], preferred_element_type=jnp.float32) + bfc2[0]
    return x + m


# ------------------------------- fused kernel --------------------------------
def fused_kernel(*refs, num_heads, ln_eps):
    img_ref, cli_ref, img_tok_ref, cli_tok_ref, fus_tok_ref = refs[0:5]
    cf_p = refs[5: 5 + _N_BLK]
    if_p = refs[5 + _N_BLK: 5 + 2 * _N_BLK]
    cf1_p = refs[5 + 2 * _N_BLK: 5 + 3 * _N_BLK]
    (inw, inb, ihw, ihb, cnw, cnb, chw, chb) = refs[5 + 3 * _N_BLK: 5 + 3 * _N_BLK + 8]
    out_ref = refs[5 + 3 * _N_BLK + 8]

    img = img_ref[0]                 # (N_img, D)
    cli = cli_ref[0]                 # (N_cli, D)
    img_tok = img_tok_ref[...]       # (1, D)
    cli_tok = cli_tok_ref[...]       # (1, D)
    fus_tok = fus_tok_ref[...]       # (2, D)

    # --- clinic_fusion ---
    c_seq = jnp.concatenate([cli_tok, cli, fus_tok], axis=0)        # (1+Ncli+2, D)
    c_seq = _block(c_seq, cf_p, num_heads, ln_eps)

    # --- image_fusion ---
    fus = c_seq[-2:, :]
    i_seq = jnp.concatenate([img_tok, img, fus], axis=0)            # (1+Nimg+2, D)
    i_seq = _block(i_seq, if_p, num_heads, ln_eps)

    # --- clinic_fusion1 ---
    fus = i_seq[-2:, :]
    c_seq = jnp.concatenate([c_seq[:-2, :], fus], axis=0)           # (1+Ncli+2, D)
    c_seq = _block(c_seq, cf1_p, num_heads, ln_eps)

    # --- heads (LN eps=1e-6 per module spec) + sigmoid + average ---
    icls = i_seq[0:1, :]                                            # (1, D)
    ccls = c_seq[0:1, :]                                            # (1, D)
    ip = jax.nn.sigmoid(
        jnp.dot(_ln(icls, inw[0], inb[0], 1e-6), ihw[...],
                preferred_element_type=jnp.float32) + ihb[0])
    cp = jax.nn.sigmoid(
        jnp.dot(_ln(ccls, cnw[0], cnb[0], 1e-6), chw[...],
                preferred_element_type=jnp.float32) + chb[0])
    pred = 0.5 * (ip + cp)                                          # (1, 1)
    # lane-dense output slab; the wrapper slices lane 0.
    out_ref[0] = jnp.broadcast_to(pred, (1, out_ref.shape[2]))


def _param_spec(a):
    zero = (0,) * a.ndim
    return pl.BlockSpec(a.shape, lambda b, _z=zero: _z)


# --------------------------------- forward ------------------------------------
def bottleneck_fusion_forward(image_feat, clinic_feat, params):
    B, N_img, D = image_feat.shape
    _, N_cli, _ = clinic_feat.shape

    args = [image_feat, clinic_feat,
            params["image_token"], params["clinic_token"], params["fusion_token"]]
    for name in ("clinic_fusion", "image_fusion", "clinic_fusion1"):
        args += [params[name][k] for k in _BLOCK_PARAM_ORDER]
    args += [params["image_norm_w"], params["image_norm_b"],
             params["image_head_w"], params["image_head_b"],
             params["clinic_norm_w"], params["clinic_norm_b"],
             params["clinic_head_w"], params["clinic_head_b"]]

    in_specs = [pl.BlockSpec((1, N_img, D), lambda b: (b, 0, 0)),
                pl.BlockSpec((1, N_cli, D), lambda b: (b, 0, 0))]
    in_specs += [_param_spec(a) for a in args[2:]]

    kernel = functools.partial(fused_kernel, num_heads=NUM_HEADS, ln_eps=1e-5)
    out = pl.pallas_call(
        kernel,
        out_shape=jax.ShapeDtypeStruct((B, 1, 128), jnp.float32),
        grid_spec=pltpu.PrefetchScalarGridSpec(
            num_scalar_prefetch=0,
            grid=(B,),
            in_specs=in_specs,
            out_specs=pl.BlockSpec((1, 1, 128), lambda b: (b, 0, 0)),
        ),
        compiler_params=pltpu.CompilerParams(
            dimension_semantics=("parallel",)),   # v7x: batch -> 2 TCs; no-op on v5e/v6e
    )(*args)
    return out[:, 0, :1]                          # (B, 1)


# ------------------------------ parameter setup -------------------------------
def init_block_params(key, dim, mlp_ratio):
    h = dim * mlp_ratio
    ks = jax.random.split(key, 12)

    def w(k, fan_in, fan_out):
        # stored transposed (fan_in, fan_out) so kernel computes x @ W
        return 0.02 * jax.random.normal(k, (fan_in, fan_out), jnp.float32)

    def b(k, n):
        return 0.02 * jax.random.normal(k, (1, n), jnp.float32)

    # qkv linear stored pre-split into q/k/v (mathematically identical to a fused qkv).
    return dict(
        n1w=jnp.ones((1, dim), jnp.float32), n1b=jnp.zeros((1, dim), jnp.float32),
        wq=w(ks[0], dim, dim), bq=b(ks[1], dim),
        wk=w(ks[2], dim, dim), bk=b(ks[3], dim),
        wv=w(ks[4], dim, dim), bv=b(ks[5], dim),
        wproj=w(ks[6], dim, dim), bproj=b(ks[7], dim),
        n2w=jnp.ones((1, dim), jnp.float32), n2b=jnp.zeros((1, dim), jnp.float32),
        wfc1=w(ks[8], dim, h), bfc1=b(ks[9], h),
        wfc2=w(ks[10], h, dim), bfc2=b(ks[11], dim),
    )


def init_params(key, dim=DIM, mlp_ratio=MLP_RATIO, num_classes=1):
    keys = jax.random.split(key, 10)
    return dict(
        fusion_token=jax.random.normal(keys[0], (2, dim), jnp.float32),
        image_token=jax.random.normal(keys[1], (1, dim), jnp.float32),
        clinic_token=jax.random.normal(keys[2], (1, dim), jnp.float32),
        image_fusion=init_block_params(keys[3], dim, mlp_ratio),
        clinic_fusion=init_block_params(keys[4], dim, mlp_ratio),
        clinic_fusion1=init_block_params(keys[5], dim, mlp_ratio),
        image_norm_w=jnp.ones((1, dim), jnp.float32),
        image_norm_b=jnp.zeros((1, dim), jnp.float32),
        image_head_w=0.02 * jax.random.normal(keys[6], (dim, num_classes), jnp.float32),
        image_head_b=0.02 * jax.random.normal(keys[7], (1, num_classes), jnp.float32),
        clinic_norm_w=jnp.ones((1, dim), jnp.float32),
        clinic_norm_b=jnp.zeros((1, dim), jnp.float32),
        clinic_head_w=0.02 * jax.random.normal(keys[8], (dim, num_classes), jnp.float32),
        clinic_head_b=0.02 * jax.random.normal(keys[9], (1, num_classes), jnp.float32),
    )


# ----------------------------------- main --------------------------------------
if __name__ == "__main__":
    key = jax.random.PRNGKey(0)
    k_img, k_cli, k_par = jax.random.split(key, 3)

    B, N_IMG, N_CLI = 2, 9, 5
    image_feat = jax.random.normal(k_img, (B, N_IMG, DIM), jnp.float32)
    clinic_feat = jax.random.normal(k_cli, (B, N_CLI, DIM), jnp.float32)
    params = init_params(k_par)

    pred = bottleneck_fusion_forward(image_feat, clinic_feat, params)
    pred = jax.block_until_ready(pred)
    assert pred.shape == (B, 1)
    assert bool(jnp.all(jnp.isfinite(pred)))
    print("KERNEL_OK")
</pallas_src>

<mosaic_0001>
module attributes {stable_mosaic.version = 11 : i64} {
  func.func @fused_kernel(%arg0: i32, %arg1: memref<1x9x64xf32, #tpu.memory_space<vmem>>, %arg2: memref<1x5x64xf32, #tpu.memory_space<vmem>>, %arg3: memref<1x64xf32, #tpu.memory_space<vmem>>, %arg4: memref<1x64xf32, #tpu.memory_space<vmem>>, %arg5: memref<2x64xf32, #tpu.memory_space<vmem>>, %arg6: memref<1x64xf32, #tpu.memory_space<vmem>>, %arg7: memref<1x64xf32, #tpu.memory_space<vmem>>, %arg8: memref<64x64xf32, #tpu.memory_space<vmem>>, %arg9: memref<1x64xf32, #tpu.memory_space<vmem>>, %arg10: memref<64x64xf32, #tpu.memory_space<vmem>>, %arg11: memref<1x64xf32, #tpu.memory_space<vmem>>, %arg12: memref<64x64xf32, #tpu.memory_space<vmem>>, %arg13: memref<1x64xf32, #tpu.memory_space<vmem>>, %arg14: memref<64x64xf32, #tpu.memory_space<vmem>>, %arg15: memref<1x64xf32, #tpu.memory_space<vmem>>, %arg16: memref<1x64xf32, #tpu.memory_space<vmem>>, %arg17: memref<1x64xf32, #tpu.memory_space<vmem>>, %arg18: memref<64x128xf32, #tpu.memory_space<vmem>>, %arg19: memref<1x128xf32, #tpu.memory_space<vmem>>, %arg20: memref<128x64xf32, #tpu.memory_space<vmem>>, %arg21: memref<1x64xf32, #tpu.memory_space<vmem>>, %arg22: memref<1x64xf32, #tpu.memory_space<vmem>>, %arg23: memref<1x64xf32, #tpu.memory_space<vmem>>, %arg24: memref<64x64xf32, #tpu.memory_space<vmem>>, %arg25: memref<1x64xf32, #tpu.memory_space<vmem>>, %arg26: memref<64x64xf32, #tpu.memory_space<vmem>>, %arg27: memref<1x64xf32, #tpu.memory_space<vmem>>, %arg28: memref<64x64xf32, #tpu.memory_space<vmem>>, %arg29: memref<1x64xf32, #tpu.memory_space<vmem>>, %arg30: memref<64x64xf32, #tpu.memory_space<vmem>>, %arg31: memref<1x64xf32, #tpu.memory_space<vmem>>, %arg32: memref<1x64xf32, #tpu.memory_space<vmem>>, %arg33: memref<1x64xf32, #tpu.memory_space<vmem>>, %arg34: memref<64x128xf32, #tpu.memory_space<vmem>>, %arg35: memref<1x128xf32, #tpu.memory_space<vmem>>, %arg36: memref<128x64xf32, #tpu.memory_space<vmem>>, %arg37: memref<1x64xf32, #tpu.memory_space<vmem>>, %arg38: memref<1x64xf32, #tpu.memory_space<vmem>>, %arg39: memref<1x64xf32, #tpu.memory_space<vmem>>, %arg40: memref<64x64xf32, #tpu.memory_space<vmem>>, %arg41: memref<1x64xf32, #tpu.memory_space<vmem>>, %arg42: memref<64x64xf32, #tpu.memory_space<vmem>>, %arg43: memref<1x64xf32, #tpu.memory_space<vmem>>, %arg44: memref<64x64xf32, #tpu.memory_space<vmem>>, %arg45: memref<1x64xf32, #tpu.memory_space<vmem>>, %arg46: memref<64x64xf32, #tpu.memory_space<vmem>>, %arg47: memref<1x64xf32, #tpu.memory_space<vmem>>, %arg48: memref<1x64xf32, #tpu.memory_space<vmem>>, %arg49: memref<1x64xf32, #tpu.memory_space<vmem>>, %arg50: memref<64x128xf32, #tpu.memory_space<vmem>>, %arg51: memref<1x128xf32, #tpu.memory_space<vmem>>, %arg52: memref<128x64xf32, #tpu.memory_space<vmem>>, %arg53: memref<1x64xf32, #tpu.memory_space<vmem>>, %arg54: memref<1x64xf32, #tpu.memory_space<vmem>>, %arg55: memref<1x64xf32, #tpu.memory_space<vmem>>, %arg56: memref<64x1xf32, #tpu.memory_space<vmem>>, %arg57: memref<1x1xf32, #tpu.memory_space<vmem>>, %arg58: memref<1x64xf32, #tpu.memory_space<vmem>>, %arg59: memref<1x64xf32, #tpu.memory_space<vmem>>, %arg60: memref<64x1xf32, #tpu.memory_space<vmem>>, %arg61: memref<1x1xf32, #tpu.memory_space<vmem>>, %arg62: memref<1x1x128xf32, #tpu.memory_space<vmem>>) attributes {dimension_semantics = [#tpu.dimension_semantics<parallel>], iteration_bounds = array<i64: 2>, scalar_prefetch = 0 : i64, scratch_operands = 0 : i64, tpu.core_type = #tpu.core_type<tc>, window_params = [{transform_indices = @transform_0, window_bounds = array<i64: 1, 9, 64>}, {transform_indices = @transform_1, window_bounds = array<i64: 1, 5, 64>}, {pipeline_mode = #tpu.pipeline_mode<synchronous>, transform_indices = @transform_2, window_bounds = array<i64: 1, 64>}, {pipeline_mode = #tpu.pipeline_mode<synchronous>, transform_indices = @transform_3, window_bounds = array<i64: 1, 64>}, {pipeline_mode = #tpu.pipeline_mode<synchronous>, transform_indices = @transform_4, window_bounds = array<i64: 2, 64>}, {pipeline_mode = #tpu.pipeline_mode<synchronous>, transform_indices = @transform_5, window_bounds = array<i64: 1, 64>}, {pipeline_mode = #tpu.pipeline_mode<synchronous>, transform_indices = @transform_6, window_bounds = array<i64: 1, 64>}, {pipeline_mode = #tpu.pipeline_mode<synchronous>, transform_indices = @transform_7, window_bounds = array<i64: 64, 64>}, {pipeline_mode = #tpu.pipeline_mode<synchronous>, transform_indices = @transform_8, window_bounds = array<i64: 1, 64>}, {pipeline_mode = #tpu.pipeline_mode<synchronous>, transform_indices = @transform_9, window_bounds = array<i64: 64, 64>}, {pipeline_mode = #tpu.pipeline_mode<synchronous>, transform_indices = @transform_10, window_bounds = array<i64: 1, 64>}, {pipeline_mode = #tpu.pipeline_mode<synchronous>, transform_indices = @transform_11, window_bounds = array<i64: 64, 64>}, {pipeline_mode = #tpu.pipeline_mode<synchronous>, transform_indices = @transform_12, window_bounds = array<i64: 1, 64>}, {pipeline_mode = #tpu.pipeline_mode<synchronous>, transform_indices = @transform_13, window_bounds = array<i64: 64, 64>}, {pipeline_mode = #tpu.pipeline_mode<synchronous>, transform_indices = @transform_14, window_bounds = array<i64: 1, 64>}, {pipeline_mode = #tpu.pipeline_mode<synchronous>, transform_indices = @transform_15, window_bounds = array<i64: 1, 64>}, {pipeline_mode = #tpu.pipeline_mode<synchronous>, transform_indices = @transform_16, window_bounds = array<i64: 1, 64>}, {pipeline_mode = #tpu.pipeline_mode<synchronous>, transform_indices = @transform_17, window_bounds = array<i64: 64, 128>}, {pipeline_mode = #tpu.pipeline_mode<synchronous>, transform_indices = @transform_18, window_bounds = array<i64: 1, 128>}, {pipeline_mode = #tpu.pipeline_mode<synchronous>, transform_indices = @transform_19, window_bounds = array<i64: 128, 64>}, {pipeline_mode = #tpu.pipeline_mode<synchronous>, transform_indices = @transform_20, window_bounds = array<i64: 1, 64>}, {pipeline_mode = #tpu.pipeline_mode<synchronous>, transform_indices = @transform_21, window_bounds = array<i64: 1, 64>}, {pipeline_mode = #tpu.pipeline_mode<synchronous>, transform_indices = @transform_22, window_bounds = array<i64: 1, 64>}, {pipeline_mode = #tpu.pipeline_mode<synchronous>, transform_indices = @transform_23, window_bounds = array<i64: 64, 64>}, {pipeline_mode = #tpu.pipeline_mode<synchronous>, transform_indices = @transform_24, window_bounds = array<i64: 1, 64>}, {pipeline_mode = #tpu.pipeline_mode<synchronous>, transform_indices = @transform_25, window_bounds = array<i64: 64, 64>}, {pipeline_mode = #tpu.pipeline_mode<synchronous>, transform_indices = @transform_26, window_bounds = array<i64: 1, 64>}, {pipeline_mode = #tpu.pipeline_mode<synchronous>, transform_indices = @transform_27, window_bounds = array<i64: 64, 64>}, {pipeline_mode = #tpu.pipeline_mode<synchronous>, transform_indices = @transform_28, window_bounds = array<i64: 1, 64>}, {pipeline_mode = #tpu.pipeline_mode<synchronous>, transform_indices = @transform_29, window_bounds = array<i64: 64, 64>}, {pipeline_mode = #tpu.pipeline_mode<synchronous>, transform_indices = @transform_30, window_bounds = array<i64: 1, 64>}, {pipeline_mode = #tpu.pipeline_mode<synchronous>, transform_indices = @transform_31, window_bounds = array<i64: 1, 64>}, {pipeline_mode = #tpu.pipeline_mode<synchronous>, transform_indices = @transform_32, window_bounds = array<i64: 1, 64>}, {pipeline_mode = #tpu.pipeline_mode<synchronous>, transform_indices = @transform_33, window_bounds = array<i64: 64, 128>}, {pipeline_mode = #tpu.pipeline_mode<synchronous>, transform_indices = @transform_34, window_bounds = array<i64: 1, 128>}, {pipeline_mode = #tpu.pipeline_mode<synchronous>, transform_indices = @transform_35, window_bounds = array<i64: 128, 64>}, {pipeline_mode = #tpu.pipeline_mode<synchronous>, transform_indices = @transform_36, window_bounds = array<i64: 1, 64>}, {pipeline_mode = #tpu.pipeline_mode<synchronous>, transform_indices = @transform_37, window_bounds = array<i64: 1, 64>}, {pipeline_mode = #tpu.pipeline_mode<synchronous>, transform_indices = @transform_38, window_bounds = array<i64: 1, 64>}, {pipeline_mode = #tpu.pipeline_mode<synchronous>, transform_indices = @transform_39, window_bounds = array<i64: 64, 64>}, {pipeline_mode = #tpu.pipeline_mode<synchronous>, transform_indices = @transform_40, window_bounds = array<i64: 1, 64>}, {pipeline_mode = #tpu.pipeline_mode<synchronous>, transform_indices = @transform_41, window_bounds = array<i64: 64, 64>}, {pipeline_mode = #tpu.pipeline_mode<synchronous>, transform_indices = @transform_42, window_bounds = array<i64: 1, 64>}, {pipeline_mode = #tpu.pipeline_mode<synchronous>, transform_indices = @transform_43, window_bounds = array<i64: 64, 64>}, {pipeline_mode = #tpu.pipeline_mode<synchronous>, transform_indices = @transform_44, window_bounds = array<i64: 1, 64>}, {pipeline_mode = #tpu.pipeline_mode<synchronous>, transform_indices = @transform_45, window_bounds = array<i64: 64, 64>}, {pipeline_mode = #tpu.pipeline_mode<synchronous>, transform_indices = @transform_46, window_bounds = array<i64: 1, 64>}, {pipeline_mode = #tpu.pipeline_mode<synchronous>, transform_indices = @transform_47, window_bounds = array<i64: 1, 64>}, {pipeline_mode = #tpu.pipeline_mode<synchronous>, transform_indices = @transform_48, window_bounds = array<i64: 1, 64>}, {pipeline_mode = #tpu.pipeline_mode<synchronous>, transform_indices = @transform_49, window_bounds = array<i64: 64, 128>}, {pipeline_mode = #tpu.pipeline_mode<synchronous>, transform_indices = @transform_50, window_bounds = array<i64: 1, 128>}, {pipeline_mode = #tpu.pipeline_mode<synchronous>, transform_indices = @transform_51, window_bounds = array<i64: 128, 64>}, {pipeline_mode = #tpu.pipeline_mode<synchronous>, transform_indices = @transform_52, window_bounds = array<i64: 1, 64>}, {pipeline_mode = #tpu.pipeline_mode<synchronous>, transform_indices = @transform_53, window_bounds = array<i64: 1, 64>}, {pipeline_mode = #tpu.pipeline_mode<synchronous>, transform_indices = @transform_54, window_bounds = array<i64: 1, 64>}, {pipeline_mode = #tpu.pipeline_mode<synchronous>, transform_indices = @transform_55, window_bounds = array<i64: 64, 1>}, {pipeline_mode = #tpu.pipeline_mode<synchronous>, transform_indices = @transform_56, window_bounds = array<i64: 1, 1>}, {pipeline_mode = #tpu.pipeline_mode<synchronous>, transform_indices = @transform_57, window_bounds = array<i64: 1, 64>}, {pipeline_mode = #tpu.pipeline_mode<synchronous>, transform_indices = @transform_58, window_bounds = array<i64: 1, 64>}, {pipeline_mode = #tpu.pipeline_mode<synchronous>, transform_indices = @transform_59, window_bounds = array<i64: 64, 1>}, {pipeline_mode = #tpu.pipeline_mode<synchronous>, transform_indices = @transform_60, window_bounds = array<i64: 1, 1>}, {transform_indices = @transform_61, window_bounds = array<i64: 1, 1, 128>}]} {
    %c0 = arith.constant 0 : index
    %c0_0 = arith.constant 0 : index
    %c0_1 = arith.constant 0 : index
    %0 = vector.load %arg1[%c0, %c0_0, %c0_1] : memref<1x9x64xf32, #tpu.memory_space<vmem>>, vector<1x9x64xf32>
    %1 = vector.shape_cast %0 : vector<1x9x64xf32> to vector<9x64xf32>
    %c0_2 = arith.constant 0 : index
    %c0_3 = arith.constant 0 : index
    %c0_4 = arith.constant 0 : index
    %2 = vector.load %arg2[%c0_2, %c0_3, %c0_4] : memref<1x5x64xf32, #tpu.memory_space<vmem>>, vector<1x5x64xf32>
    %3 = vector.shape_cast %2 : vector<1x5x64xf32> to vector<5x64xf32>
    %c0_5 = arith.constant 0 : index
    %c0_6 = arith.constant 0 : index
    %4 = vector.load %arg3[%c0_5, %c0_6] : memref<1x64xf32, #tpu.memory_space<vmem>>, vector<1x64xf32>
    %c0_7 = arith.constant 0 : index
    %c0_8 = arith.constant 0 : index
    %5 = vector.load %arg4[%c0_7, %c0_8] : memref<1x64xf32, #tpu.memory_space<vmem>>, vector<1x64xf32>
    %c0_9 = arith.constant 0 : index
    %c0_10 = arith.constant 0 : index
    %6 = vector.load %arg5[%c0_9, %c0_10] : memref<2x64xf32, #tpu.memory_space<vmem>>, vector<2x64xf32>
    %7 = tpu.concatenate %5, %3, %6 in 0 : vector<1x64xf32>, vector<5x64xf32>, vector<2x64xf32> -> vector<8x64xf32>
    %c0_11 = arith.constant 0 : index
    %c0_12 = arith.constant 0 : index
    %8 = vector.load %arg6[%c0_11, %c0_12] : memref<1x64xf32, #tpu.memory_space<vmem>>, vector<1x64xf32>
    %9 = vector.shape_cast %8 : vector<1x64xf32> to vector<64xf32>
    %c0_13 = arith.constant 0 : index
    %c0_14 = arith.constant 0 : index
    %10 = vector.load %arg7[%c0_13, %c0_14] : memref<1x64xf32, #tpu.memory_space<vmem>>, vector<1x64xf32>
    %11 = vector.shape_cast %10 : vector<1x64xf32> to vector<64xf32>
    %cst = arith.constant dense<0.000000e+00> : vector<8xf32>
    %12 = vector.multi_reduction <add>, %7, %cst [1] : vector<8x64xf32> to vector<8xf32>
    %13 = vector.shape_cast %12 : vector<8xf32> to vector<8x1xf32>
    %cst_15 = arith.constant 6.400000e+01 : f32
    %14 = vector.broadcast %cst_15 : f32 to vector<8x1xf32>
    %15 = arith.divf %13, %14 : vector<8x1xf32>
    %16 = vector.broadcast %15 : vector<8x1xf32> to vector<8x64xf32>
    %17 = arith.subf %7, %16 : vector<8x64xf32>
    %18 = arith.mulf %17, %17 : vector<8x64xf32>
    %cst_16 = arith.constant dense<0.000000e+00> : vector<8xf32>
    %19 = vector.multi_reduction <add>, %18, %cst_16 [1] : vector<8x64xf32> to vector<8xf32>
    %20 = vector.shape_cast %19 : vector<8xf32> to vector<8x1xf32>
    %cst_17 = arith.constant 6.400000e+01 : f32
    %21 = vector.broadcast %cst_17 : f32 to vector<8x1xf32>
    %22 = arith.divf %20, %21 : vector<8x1xf32>
    %23 = vector.broadcast %15 : vector<8x1xf32> to vector<8x64xf32>
    %24 = arith.subf %7, %23 : vector<8x64xf32>
    %cst_18 = arith.constant 9.99999974E-6 : f32
    %25 = vector.broadcast %cst_18 : f32 to vector<8x1xf32>
    %26 = arith.addf %22, %25 : vector<8x1xf32>
    %27 = math.rsqrt %26 : vector<8x1xf32>
    %28 = vector.broadcast %27 : vector<8x1xf32> to vector<8x64xf32>
    %29 = arith.mulf %24, %28 : vector<8x64xf32>
    %30 = vector.shape_cast %9 : vector<64xf32> to vector<1x64xf32>
    %31 = vector.broadcast %30 : vector<1x64xf32> to vector<8x64xf32>
    %32 = arith.mulf %29, %31 : vector<8x64xf32>
    %33 = vector.shape_cast %11 : vector<64xf32> to vector<1x64xf32>
    %34 = vector.broadcast %33 : vector<1x64xf32> to vector<8x64xf32>
    %35 = arith.addf %32, %34 : vector<8x64xf32>
    %c0_19 = arith.constant 0 : index
    %c0_20 = arith.constant 0 : index
    %36 = vector.load %arg8[%c0_19, %c0_20] : memref<64x64xf32, #tpu.memory_space<vmem>>, vector<64x64xf32>
    %cst_21 = arith.constant dense<0.000000e+00> : vector<8x64xf32>
    %37 = tpu.matmul %35, %36, %cst_21 {dimension_numbers = #tpu.dot_dimension_numbers<[1], [0], [0], [1], [0, 0, 1, 1], [], []>} : vector<8x64xf32>, vector<64x64xf32>, vector<8x64xf32> -> vector<8x64xf32>
    %c0_22 = arith.constant 0 : index
    %c0_23 = arith.constant 0 : index
    %38 = vector.load %arg9[%c0_22, %c0_23] : memref<1x64xf32, #tpu.memory_space<vmem>>, vector<1x64xf32>
    %39 = vector.shape_cast %38 : vector<1x64xf32> to vector<64xf32>
    %40 = vector.shape_cast %39 : vector<64xf32> to vector<1x64xf32>
    %41 = vector.broadcast %40 : vector<1x64xf32> to vector<8x64xf32>
    %42 = arith.addf %37, %41 : vector<8x64xf32>
    %c0_24 = arith.constant 0 : index
    %c0_25 = arith.constant 0 : index
    %43 = vector.load %arg10[%c0_24, %c0_25] : memref<64x64xf32, #tpu.memory_space<vmem>>, vector<64x64xf32>
    %cst_26 = arith.constant dense<0.000000e+00> : vector<8x64xf32>
    %44 = tpu.matmul %35, %43, %cst_26 {dimension_numbers = #tpu.dot_dimension_numbers<[1], [0], [0], [1], [0, 0, 1, 1], [], []>} : vector<8x64xf32>, vector<64x64xf32>, vector<8x64xf32> -> vector<8x64xf32>
    %c0_27 = arith.constant 0 : index
    %c0_28 = arith.constant 0 : index
    %45 = vector.load %arg11[%c0_27, %c0_28] : memref<1x64xf32, #tpu.memory_space<vmem>>, vector<1x64xf32>
    %46 = vector.shape_cast %45 : vector<1x64xf32> to vector<64xf32>
    %47 = vector.shape_cast %46 : vector<64xf32> to vector<1x64xf32>
    %48 = vector.broadcast %47 : vector<1x64xf32> to vector<8x64xf32>
    %49 = arith.addf %44, %48 : vector<8x64xf32>
    %c0_29 = arith.constant 0 : index
    %c0_30 = arith.constant 0 : index
    %50 = vector.load %arg12[%c0_29, %c0_30] : memref<64x64xf32, #tpu.memory_space<vmem>>, vector<64x64xf32>
    %cst_31 = arith.constant dense<0.000000e+00> : vector<8x64xf32>
    %51 = tpu.matmul %35, %50, %cst_31 {dimension_numbers = #tpu.dot_dimension_numbers<[1], [0], [0], [1], [0, 0, 1, 1], [], []>} : vector<8x64xf32>, vector<64x64xf32>, vector<8x64xf32> -> vector<8x64xf32>
    %c0_32 = arith.constant 0 : index
    %c0_33 = arith.constant 0 : index
    %52 = vector.load %arg13[%c0_32, %c0_33] : memref<1x64xf32, #tpu.memory_space<vmem>>, vector<1x64xf32>
    %53 = vector.shape_cast %52 : vector<1x64xf32> to vector<64xf32>
    %54 = vector.shape_cast %53 : vector<64xf32> to vector<1x64xf32>
    %55 = vector.broadcast %54 : vector<1x64xf32> to vector<8x64xf32>
    %56 = arith.addf %51, %55 : vector<8x64xf32>
    %c0_34 = arith.constant 0 : index
    %c0_35 = arith.constant 0 : index
    %57 = vector.load %arg14[%c0_34, %c0_35] : memref<64x64xf32, #tpu.memory_space<vmem>>, vector<64x64xf32>
    %58 = vector.extract_strided_slice %42 {offsets = [0, 0], sizes = [8, 16], strides = [1, 1]} : vector<8x64xf32> to vector<8x16xf32>
    %59 = vector.extract_strided_slice %49 {offsets = [0, 0], sizes = [8, 16], strides = [1, 1]} : vector<8x64xf32> to vector<8x16xf32>
    %60 = vector.extract_strided_slice %56 {offsets = [0, 0], sizes = [8, 16], strides = [1, 1]} : vector<8x64xf32> to vector<8x16xf32>
    %cst_36 = arith.constant dense<0.000000e+00> : vector<8x8xf32>
    %61 = tpu.matmul %58, %59, %cst_36 {dimension_numbers = #tpu.dot_dimension_numbers<[1], [1], [0], [0], [0, 0, 1, 0], [], []>} : vector<8x16xf32>, vector<8x16xf32>, vector<8x8xf32> -> vector<8x8xf32>
    %cst_37 = arith.constant 2.500000e-01 : f32
    %62 = vector.broadcast %cst_37 : f32 to vector<8x8xf32>
    %63 = arith.mulf %61, %62 : vector<8x8xf32>
    %cst_38 = arith.constant dense<0xFF800000> : vector<8xf32>
    %64 = vector.multi_reduction <maximumf>, %63, %cst_38 [1] : vector<8x8xf32> to vector<8xf32>
    %65 = vector.shape_cast %64 : vector<8xf32> to vector<8x1xf32>
    %66 = vector.broadcast %65 : vector<8x1xf32> to vector<8x8xf32>
    %67 = arith.subf %63, %66 : vector<8x8xf32>
    %68 = math.exp %67 : vector<8x8xf32>
    %cst_39 = arith.constant dense<0.000000e+00> : vector<8xf32>
    %69 = vector.multi_reduction <add>, %68, %cst_39 [1] : vector<8x8xf32> to vector<8xf32>
    %70 = vector.shape_cast %69 : vector<8xf32> to vector<8x1xf32>
    %71 = tpu.reciprocal %70 {approx = true} : vector<8x1xf32> -> vector<8x1xf32>
    %72 = vector.broadcast %71 : vector<8x1xf32> to vector<8x8xf32>
    %73 = arith.mulf %68, %72 : vector<8x8xf32>
    %cst_40 = arith.constant dense<0.000000e+00> : vector<8x16xf32>
    %74 = tpu.matmul %73, %60, %cst_40 {dimension_numbers = #tpu.dot_dimension_numbers<[1], [0], [0], [1], [0, 0, 1, 1], [], []>} : vector<8x8xf32>, vector<8x16xf32>, vector<8x16xf32> -> vector<8x16xf32>
    %75 = vector.extract_strided_slice %57 {offsets = [0, 0], sizes = [16, 64], strides = [1, 1]} : vector<64x64xf32> to vector<16x64xf32>
    %cst_41 = arith.constant dense<0.000000e+00> : vector<8x64xf32>
    %76 = tpu.matmul %74, %75, %cst_41 {dimension_numbers = #tpu.dot_dimension_numbers<[1], [0], [0], [1], [0, 0, 1, 1], [], []>} : vector<8x16xf32>, vector<16x64xf32>, vector<8x64xf32> -> vector<8x64xf32>
    %77 = vector.extract_strided_slice %42 {offsets = [0, 16], sizes = [8, 16], strides = [1, 1]} : vector<8x64xf32> to vector<8x16xf32>
    %78 = vector.extract_strided_slice %49 {offsets = [0, 16], sizes = [8, 16], strides = [1, 1]} : vector<8x64xf32> to vector<8x16xf32>
    %79 = vector.extract_strided_slice %56 {offsets = [0, 16], sizes = [8, 16], strides = [1, 1]} : vector<8x64xf32> to vector<8x16xf32>
    %cst_42 = arith.constant dense<0.000000e+00> : vector<8x8xf32>
    %80 = tpu.matmul %77, %78, %cst_42 {dimension_numbers = #tpu.dot_dimension_numbers<[1], [1], [0], [0], [0, 0, 1, 0], [], []>} : vector<8x16xf32>, vector<8x16xf32>, vector<8x8xf32> -> vector<8x8xf32>
    %cst_43 = arith.constant 2.500000e-01 : f32
    %81 = vector.broadcast %cst_43 : f32 to vector<8x8xf32>
    %82 = arith.mulf %80, %81 : vector<8x8xf32>
    %cst_44 = arith.constant dense<0xFF800000> : vector<8xf32>
    %83 = vector.multi_reduction <maximumf>, %82, %cst_44 [1] : vector<8x8xf32> to vector<8xf32>
    %84 = vector.shape_cast %83 : vector<8xf32> to vector<8x1xf32>
    %85 = vector.broadcast %84 : vector<8x1xf32> to vector<8x8xf32>
    %86 = arith.subf %82, %85 : vector<8x8xf32>
    %87 = math.exp %86 : vector<8x8xf32>
    %cst_45 = arith.constant dense<0.000000e+00> : vector<8xf32>
    %88 = vector.multi_reduction <add>, %87, %cst_45 [1] : vector<8x8xf32> to vector<8xf32>
    %89 = vector.shape_cast %88 : vector<8xf32> to vector<8x1xf32>
    %90 = tpu.reciprocal %89 {approx = true} : vector<8x1xf32> -> vector<8x1xf32>
    %91 = vector.broadcast %90 : vector<8x1xf32> to vector<8x8xf32>
    %92 = arith.mulf %87, %91 : vector<8x8xf32>
    %cst_46 = arith.constant dense<0.000000e+00> : vector<8x16xf32>
    %93 = tpu.matmul %92, %79, %cst_46 {dimension_numbers = #tpu.dot_dimension_numbers<[1], [0], [0], [1], [0, 0, 1, 1], [], []>} : vector<8x8xf32>, vector<8x16xf32>, vector<8x16xf32> -> vector<8x16xf32>
    %94 = vector.extract_strided_slice %57 {offsets = [16, 0], sizes = [16, 64], strides = [1, 1]} : vector<64x64xf32> to vector<16x64xf32>
    %cst_47 = arith.constant dense<0.000000e+00> : vector<8x64xf32>
    %95 = tpu.matmul %93, %94, %cst_47 {dimension_numbers = #tpu.dot_dimension_numbers<[1], [0], [0], [1], [0, 0, 1, 1], [], []>} : vector<8x16xf32>, vector<16x64xf32>, vector<8x64xf32> -> vector<8x64xf32>
    %96 = arith.addf %76, %95 : vector<8x64xf32>
    %97 = vector.extract_strided_slice %42 {offsets = [0, 32], sizes = [8, 16], strides = [1, 1]} : vector<8x64xf32> to vector<8x16xf32>
    %98 = vector.extract_strided_slice %49 {offsets = [0, 32], sizes = [8, 16], strides = [1, 1]} : vector<8x64xf32> to vector<8x16xf32>
    %99 = vector.extract_strided_slice %56 {offsets = [0, 32], sizes = [8, 16], strides = [1, 1]} : vector<8x64xf32> to vector<8x16xf32>
    %cst_48 = arith.constant dense<0.000000e+00> : vector<8x8xf32>
    %100 = tpu.matmul %97, %98, %cst_48 {dimension_numbers = #tpu.dot_dimension_numbers<[1], [1], [0], [0], [0, 0, 1, 0], [], []>} : vector<8x16xf32>, vector<8x16xf32>, vector<8x8xf32> -> vector<8x8xf32>
    %cst_49 = arith.constant 2.500000e-01 : f32
    %101 = vector.broadcast %cst_49 : f32 to vector<8x8xf32>
    %102 = arith.mulf %100, %101 : vector<8x8xf32>
    %cst_50 = arith.constant dense<0xFF800000> : vector<8xf32>
    %103 = vector.multi_reduction <maximumf>, %102, %cst_50 [1] : vector<8x8xf32> to vector<8xf32>
    %104 = vector.shape_cast %103 : vector<8xf32> to vector<8x1xf32>
    %105 = vector.broadcast %104 : vector<8x1xf32> to vector<8x8xf32>
    %106 = arith.subf %102, %105 : vector<8x8xf32>
    %107 = math.exp %106 : vector<8x8xf32>
    %cst_51 = arith.constant dense<0.000000e+00> : vector<8xf32>
    %108 = vector.multi_reduction <add>, %107, %cst_51 [1] : vector<8x8xf32> to vector<8xf32>
    %109 = vector.shape_cast %108 : vector<8xf32> to vector<8x1xf32>
    %110 = tpu.reciprocal %109 {approx = true} : vector<8x1xf32> -> vector<8x1xf32>
    %111 = vector.broadcast %110 : vector<8x1xf32> to vector<8x8xf32>
    %112 = arith.mulf %107, %111 : vector<8x8xf32>
    %cst_52 = arith.constant dense<0.000000e+00> : vector<8x16xf32>
    %113 = tpu.matmul %112, %99, %cst_52 {dimension_numbers = #tpu.dot_dimension_numbers<[1], [0], [0], [1], [0, 0, 1, 1], [], []>} : vector<8x8xf32>, vector<8x16xf32>, vector<8x16xf32> -> vector<8x16xf32>
    %114 = vector.extract_strided_slice %57 {offsets = [32, 0], sizes = [16, 64], strides = [1, 1]} : vector<64x64xf32> to vector<16x64xf32>
    %cst_53 = arith.constant dense<0.000000e+00> : vector<8x64xf32>
    %115 = tpu.matmul %113, %114, %cst_53 {dimension_numbers = #tpu.dot_dimension_numbers<[1], [0], [0], [1], [0, 0, 1, 1], [], []>} : vector<8x16xf32>, vector<16x64xf32>, vector<8x64xf32> -> vector<8x64xf32>
    %116 = arith.addf %96, %115 : vector<8x64xf32>
    %117 = vector.extract_strided_slice %42 {offsets = [0, 48], sizes = [8, 16], strides = [1, 1]} : vector<8x64xf32> to vector<8x16xf32>
    %118 = vector.extract_strided_slice %49 {offsets = [0, 48], sizes = [8, 16], strides = [1, 1]} : vector<8x64xf32> to vector<8x16xf32>
    %119 = vector.extract_strided_slice %56 {offsets = [0, 48], sizes = [8, 16], strides = [1, 1]} : vector<8x64xf32> to vector<8x16xf32>
    %cst_54 = arith.constant dense<0.000000e+00> : vector<8x8xf32>
    %120 = tpu.matmul %117, %118, %cst_54 {dimension_numbers = #tpu.dot_dimension_numbers<[1], [1], [0], [0], [0, 0, 1, 0], [], []>} : vector<8x16xf32>, vector<8x16xf32>, vector<8x8xf32> -> vector<8x8xf32>
    %cst_55 = arith.constant 2.500000e-01 : f32
    %121 = vector.broadcast %cst_55 : f32 to vector<8x8xf32>
    %122 = arith.mulf %120, %121 : vector<8x8xf32>
    %cst_56 = arith.constant dense<0xFF800000> : vector<8xf32>
    %123 = vector.multi_reduction <maximumf>, %122, %cst_56 [1] : vector<8x8xf32> to vector<8xf32>
    %124 = vector.shape_cast %123 : vector<8xf32> to vector<8x1xf32>
    %125 = vector.broadcast %124 : vector<8x1xf32> to vector<8x8xf32>
    %126 = arith.subf %122, %125 : vector<8x8xf32>
    %127 = math.exp %126 : vector<8x8xf32>
    %cst_57 = arith.constant dense<0.000000e+00> : vector<8xf32>
    %128 = vector.multi_reduction <add>, %127, %cst_57 [1] : vector<8x8xf32> to vector<8xf32>
    %129 = vector.shape_cast %128 : vector<8xf32> to vector<8x1xf32>
    %130 = tpu.reciprocal %129 {approx = true} : vector<8x1xf32> -> vector<8x1xf32>
    %131 = vector.broadcast %130 : vector<8x1xf32> to vector<8x8xf32>
    %132 = arith.mulf %127, %131 : vector<8x8xf32>
    %cst_58 = arith.constant dense<0.000000e+00> : vector<8x16xf32>
    %133 = tpu.matmul %132, %119, %cst_58 {dimension_numbers = #tpu.dot_dimension_numbers<[1], [0], [0], [1], [0, 0, 1, 1], [], []>} : vector<8x8xf32>, vector<8x16xf32>, vector<8x16xf32> -> vector<8x16xf32>
    %134 = vector.extract_strided_slice %57 {offsets = [48, 0], sizes = [16, 64], strides = [1, 1]} : vector<64x64xf32> to vector<16x64xf32>
    %cst_59 = arith.constant dense<0.000000e+00> : vector<8x64xf32>
    %135 = tpu.matmul %133, %134, %cst_59 {dimension_numbers = #tpu.dot_dimension_numbers<[1], [0], [0], [1], [0, 0, 1, 1], [], []>} : vector<8x16xf32>, vector<16x64xf32>, vector<8x64xf32> -> vector<8x64xf32>
    %136 = arith.addf %116, %135 : vector<8x64xf32>
    %137 = arith.addf %7, %136 : vector<8x64xf32>
    %c0_60 = arith.constant 0 : index
    %c0_61 = arith.constant 0 : index
    %138 = vector.load %arg15[%c0_60, %c0_61] : memref<1x64xf32, #tpu.memory_space<vmem>>, vector<1x64xf32>
    %139 = vector.shape_cast %138 : vector<1x64xf32> to vector<64xf32>
    %140 = vector.shape_cast %139 : vector<64xf32> to vector<1x64xf32>
    %141 = vector.broadcast %140 : vector<1x64xf32> to vector<8x64xf32>
    %142 = arith.addf %137, %141 : vector<8x64xf32>
    %c0_62 = arith.constant 0 : index
    %c0_63 = arith.constant 0 : index
    %143 = vector.load %arg16[%c0_62, %c0_63] : memref<1x64xf32, #tpu.memory_space<vmem>>, vector<1x64xf32>
    %144 = vector.shape_cast %143 : vector<1x64xf32> to vector<64xf32>
    %c0_64 = arith.constant 0 : index
    %c0_65 = arith.constant 0 : index
    %145 = vector.load %arg17[%c0_64, %c0_65] : memref<1x64xf32, #tpu.memory_space<vmem>>, vector<1x64xf32>
    %146 = vector.shape_cast %145 : vector<1x64xf32> to vector<64xf32>
    %cst_66 = arith.constant dense<0.000000e+00> : vector<8xf32>
    %147 = vector.multi_reduction <add>, %142, %cst_66 [1] : vector<8x64xf32> to vector<8xf32>
    %148 = vector.shape_cast %147 : vector<8xf32> to vector<8x1xf32>
    %cst_67 = arith.constant 6.400000e+01 : f32
    %149 = vector.broadcast %cst_67 : f32 to vector<8x1xf32>
    %150 = arith.divf %148, %149 : vector<8x1xf32>
    %151 = vector.broadcast %150 : vector<8x1xf32> to vector<8x64xf32>
    %152 = arith.subf %142, %151 : vector<8x64xf32>
    %153 = arith.mulf %152, %152 : vector<8x64xf32>
    %cst_68 = arith.constant dense<0.000000e+00> : vector<8xf32>
    %154 = vector.multi_reduction <add>, %153, %cst_68 [1] : vector<8x64xf32> to vector<8xf32>
    %155 = vector.shape_cast %154 : vector<8xf32> to vector<8x1xf32>
    %cst_69 = arith.constant 6.400000e+01 : f32
    %156 = vector.broadcast %cst_69 : f32 to vector<8x1xf32>
    %157 = arith.divf %155, %156 : vector<8x1xf32>
    %158 = vector.broadcast %150 : vector<8x1xf32> to vector<8x64xf32>
    %159 = arith.subf %142, %158 : vector<8x64xf32>
    %cst_70 = arith.constant 9.99999974E-6 : f32
    %160 = vector.broadcast %cst_70 : f32 to vector<8x1xf32>
    %161 = arith.addf %157, %160 : vector<8x1xf32>
    %162 = math.rsqrt %161 : vector<8x1xf32>
    %163 = vector.broadcast %162 : vector<8x1xf32> to vector<8x64xf32>
    %164 = arith.mulf %159, %163 : vector<8x64xf32>
    %165 = vector.shape_cast %144 : vector<64xf32> to vector<1x64xf32>
    %166 = vector.broadcast %165 : vector<1x64xf32> to vector<8x64xf32>
    %167 = arith.mulf %164, %166 : vector<8x64xf32>
    %168 = vector.shape_cast %146 : vector<64xf32> to vector<1x64xf32>
    %169 = vector.broadcast %168 : vector<1x64xf32> to vector<8x64xf32>
    %170 = arith.addf %167, %169 : vector<8x64xf32>
    %c0_71 = arith.constant 0 : index
    %c0_72 = arith.constant 0 : index
    %171 = vector.load %arg18[%c0_71, %c0_72] : memref<64x128xf32, #tpu.memory_space<vmem>>, vector<64x128xf32>
    %cst_73 = arith.constant dense<0.000000e+00> : vector<8x128xf32>
    %172 = tpu.matmul %170, %171, %cst_73 {dimension_numbers = #tpu.dot_dimension_numbers<[1], [0], [0], [1], [0, 0, 1, 1], [], []>} : vector<8x64xf32>, vector<64x128xf32>, vector<8x128xf32> -> vector<8x128xf32>
    %c0_74 = arith.constant 0 : index
    %c0_75 = arith.constant 0 : index
    %173 = vector.load %arg19[%c0_74, %c0_75] : memref<1x128xf32, #tpu.memory_space<vmem>>, vector<1x128xf32>
    %174 = vector.shape_cast %173 : vector<1x128xf32> to vector<128xf32>
    %175 = vector.shape_cast %174 : vector<128xf32> to vector<1x128xf32>
    %176 = vector.broadcast %175 : vector<1x128xf32> to vector<8x128xf32>
    %177 = arith.addf %172, %176 : vector<8x128xf32>
    %cst_76 = arith.constant 5.000000e-01 : f32
    %178 = vector.broadcast %cst_76 : f32 to vector<8x128xf32>
    %179 = arith.mulf %178, %177 : vector<8x128xf32>
    %cst_77 = arith.constant 0.707106769 : f32
    %180 = vector.broadcast %cst_77 : f32 to vector<8x128xf32>
    %181 = arith.mulf %177, %180 : vector<8x128xf32>
    %182 = math.erf %181 : vector<8x128xf32>
    %cst_78 = arith.constant 1.000000e+00 : f32
    %183 = vector.broadcast %cst_78 : f32 to vector<8x128xf32>
    %184 = arith.addf %183, %182 : vector<8x128xf32>
    %185 = arith.mulf %179, %184 : vector<8x128xf32>
    %c0_79 = arith.constant 0 : index
    %c0_80 = arith.constant 0 : index
    %186 = vector.load %arg20[%c0_79, %c0_80] : memref<128x64xf32, #tpu.memory_space<vmem>>, vector<128x64xf32>
    %cst_81 = arith.constant dense<0.000000e+00> : vector<8x64xf32>
    %187 = tpu.matmul %185, %186, %cst_81 {dimension_numbers = #tpu.dot_dimension_numbers<[1], [0], [0], [1], [0, 0, 1, 1], [], []>} : vector<8x128xf32>, vector<128x64xf32>, vector<8x64xf32> -> vector<8x64xf32>
    %c0_82 = arith.constant 0 : index
    %c0_83 = arith.constant 0 : index
    %188 = vector.load %arg21[%c0_82, %c0_83] : memref<1x64xf32, #tpu.memory_space<vmem>>, vector<1x64xf32>
    %189 = vector.shape_cast %188 : vector<1x64xf32> to vector<64xf32>
    %190 = vector.shape_cast %189 : vector<64xf32> to vector<1x64xf32>
    %191 = vector.broadcast %190 : vector<1x64xf32> to vector<8x64xf32>
    %192 = arith.addf %187, %191 : vector<8x64xf32>
    %193 = arith.addf %142, %192 : vector<8x64xf32>
    %194 = vector.extract_strided_slice %193 {offsets = [6, 0], sizes = [2, 64], strides = [1, 1]} : vector<8x64xf32> to vector<2x64xf32>
    %195 = tpu.concatenate %4, %1, %194 in 0 : vector<1x64xf32>, vector<9x64xf32>, vector<2x64xf32> -> vector<12x64xf32>
    %c0_84 = arith.constant 0 : index
    %c0_85 = arith.constant 0 : index
    %196 = vector.load %arg22[%c0_84, %c0_85] : memref<1x64xf32, #tpu.memory_space<vmem>>, vector<1x64xf32>
    %197 = vector.shape_cast %196 : vector<1x64xf32> to vector<64xf32>
    %c0_86 = arith.constant 0 : index
    %c0_87 = arith.constant 0 : index
    %198 = vector.load %arg23[%c0_86, %c0_87] : memref<1x64xf32, #tpu.memory_space<vmem>>, vector<1x64xf32>
    %199 = vector.shape_cast %198 : vector<1x64xf32> to vector<64xf32>
    %cst_88 = arith.constant dense<0.000000e+00> : vector<12xf32>
    %200 = vector.multi_reduction <add>, %195, %cst_88 [1] : vector<12x64xf32> to vector<12xf32>
    %201 = vector.shape_cast %200 : vector<12xf32> to vector<12x1xf32>
    %cst_89 = arith.constant 6.400000e+01 : f32
    %202 = vector.broadcast %cst_89 : f32 to vector<12x1xf32>
    %203 = arith.divf %201, %202 : vector<12x1xf32>
    %204 = vector.broadcast %203 : vector<12x1xf32> to vector<12x64xf32>
    %205 = arith.subf %195, %204 : vector<12x64xf32>
    %206 = arith.mulf %205, %205 : vector<12x64xf32>
    %cst_90 = arith.constant dense<0.000000e+00> : vector<12xf32>
    %207 = vector.multi_reduction <add>, %206, %cst_90 [1] : vector<12x64xf32> to vector<12xf32>
    %208 = vector.shape_cast %207 : vector<12xf32> to vector<12x1xf32>
    %cst_91 = arith.constant 6.400000e+01 : f32
    %209 = vector.broadcast %cst_91 : f32 to vector<12x1xf32>
    %210 = arith.divf %208, %209 : vector<12x1xf32>
    %211 = vector.broadcast %203 : vector<12x1xf32> to vector<12x64xf32>
    %212 = arith.subf %195, %211 : vector<12x64xf32>
    %cst_92 = arith.constant 9.99999974E-6 : f32
    %213 = vector.broadcast %cst_92 : f32 to vector<12x1xf32>
    %214 = arith.addf %210, %213 : vector<12x1xf32>
    %215 = math.rsqrt %214 : vector<12x1xf32>
    %216 = vector.broadcast %215 : vector<12x1xf32> to vector<12x64xf32>
    %217 = arith.mulf %212, %216 : vector<12x64xf32>
    %218 = vector.shape_cast %197 : vector<64xf32> to vector<1x64xf32>
    %219 = vector.broadcast %218 : vector<1x64xf32> to vector<12x64xf32>
    %220 = arith.mulf %217, %219 : vector<12x64xf32>
    %221 = vector.shape_cast %199 : vector<64xf32> to vector<1x64xf32>
    %222 = vector.broadcast %221 : vector<1x64xf32> to vector<12x64xf32>
    %223 = arith.addf %220, %222 : vector<12x64xf32>
    %c0_93 = arith.constant 0 : index
    %c0_94 = arith.constant 0 : index
    %224 = vector.load %arg24[%c0_93, %c0_94] : memref<64x64xf32, #tpu.memory_space<vmem>>, vector<64x64xf32>
    %cst_95 = arith.constant dense<0.000000e+00> : vector<12x64xf32>
    %225 = tpu.matmul %223, %224, %cst_95 {dimension_numbers = #tpu.dot_dimension_numbers<[1], [0], [0], [1], [0, 0, 1, 1], [], []>} : vector<12x64xf32>, vector<64x64xf32>, vector<12x64xf32> -> vector<12x64xf32>
    %c0_96 = arith.constant 0 : index
    %c0_97 = arith.constant 0 : index
    %226 = vector.load %arg25[%c0_96, %c0_97] : memref<1x64xf32, #tpu.memory_space<vmem>>, vector<1x64xf32>
    %227 = vector.shape_cast %226 : vector<1x64xf32> to vector<64xf32>
    %228 = vector.shape_cast %227 : vector<64xf32> to vector<1x64xf32>
    %229 = vector.broadcast %228 : vector<1x64xf32> to vector<12x64xf32>
    %230 = arith.addf %225, %229 : vector<12x64xf32>
    %c0_98 = arith.constant 0 : index
    %c0_99 = arith.constant 0 : index
    %231 = vector.load %arg26[%c0_98, %c0_99] : memref<64x64xf32, #tpu.memory_space<vmem>>, vector<64x64xf32>
    %cst_100 = arith.constant dense<0.000000e+00> : vector<12x64xf32>
    %232 = tpu.matmul %223, %231, %cst_100 {dimension_numbers = #tpu.dot_dimension_numbers<[1], [0], [0], [1], [0, 0, 1, 1], [], []>} : vector<12x64xf32>, vector<64x64xf32>, vector<12x64xf32> -> vector<12x64xf32>
    %c0_101 = arith.constant 0 : index
    %c0_102 = arith.constant 0 : index
    %233 = vector.load %arg27[%c0_101, %c0_102] : memref<1x64xf32, #tpu.memory_space<vmem>>, vector<1x64xf32>
    %234 = vector.shape_cast %233 : vector<1x64xf32> to vector<64xf32>
    %235 = vector.shape_cast %234 : vector<64xf32> to vector<1x64xf32>
    %236 = vector.broadcast %235 : vector<1x64xf32> to vector<12x64xf32>
    %237 = arith.addf %232, %236 : vector<12x64xf32>
    %c0_103 = arith.constant 0 : index
    %c0_104 = arith.constant 0 : index
    %238 = vector.load %arg28[%c0_103, %c0_104] : memref<64x64xf32, #tpu.memory_space<vmem>>, vector<64x64xf32>
    %cst_105 = arith.constant dense<0.000000e+00> : vector<12x64xf32>
    %239 = tpu.matmul %223, %238, %cst_105 {dimension_numbers = #tpu.dot_dimension_numbers<[1], [0], [0], [1], [0, 0, 1, 1], [], []>} : vector<12x64xf32>, vector<64x64xf32>, vector<12x64xf32> -> vector<12x64xf32>
    %c0_106 = arith.constant 0 : index
    %c0_107 = arith.constant 0 : index
    %240 = vector.load %arg29[%c0_106, %c0_107] : memref<1x64xf32, #tpu.memory_space<vmem>>, vector<1x64xf32>
    %241 = vector.shape_cast %240 : vector<1x64xf32> to vector<64xf32>
    %242 = vector.shape_cast %241 : vector<64xf32> to vector<1x64xf32>
    %243 = vector.broadcast %242 : vector<1x64xf32> to vector<12x64xf32>
    %244 = arith.addf %239, %243 : vector<12x64xf32>
    %c0_108 = arith.constant 0 : index
    %c0_109 = arith.constant 0 : index
    %245 = vector.load %arg30[%c0_108, %c0_109] : memref<64x64xf32, #tpu.memory_space<vmem>>, vector<64x64xf32>
    %246 = vector.extract_strided_slice %230 {offsets = [0, 0], sizes = [12, 16], strides = [1, 1]} : vector<12x64xf32> to vector<12x16xf32>
    %247 = vector.extract_strided_slice %237 {offsets = [0, 0], sizes = [12, 16], strides = [1, 1]} : vector<12x64xf32> to vector<12x16xf32>
    %248 = vector.extract_strided_slice %244 {offsets = [0, 0], sizes = [12, 16], strides = [1, 1]} : vector<12x64xf32> to vector<12x16xf32>
    %cst_110 = arith.constant dense<0.000000e+00> : vector<12x12xf32>
    %249 = tpu.matmul %246, %247, %cst_110 {dimension_numbers = #tpu.dot_dimension_numbers<[1], [1], [0], [0], [0, 0, 1, 0], [], []>} : vector<12x16xf32>, vector<12x16xf32>, vector<12x12xf32> -> vector<12x12xf32>
    %cst_111 = arith.constant 2.500000e-01 : f32
    %250 = vector.broadcast %cst_111 : f32 to vector<12x12xf32>
    %251 = arith.mulf %249, %250 : vector<12x12xf32>
    %cst_112 = arith.constant dense<0xFF800000> : vector<12xf32>
    %252 = vector.multi_reduction <maximumf>, %251, %cst_112 [1] : vector<12x12xf32> to vector<12xf32>
    %253 = vector.shape_cast %252 : vector<12xf32> to vector<12x1xf32>
    %254 = vector.broadcast %253 : vector<12x1xf32> to vector<12x12xf32>
    %255 = arith.subf %251, %254 : vector<12x12xf32>
    %256 = math.exp %255 : vector<12x12xf32>
    %cst_113 = arith.constant dense<0.000000e+00> : vector<12xf32>
    %257 = vector.multi_reduction <add>, %256, %cst_113 [1] : vector<12x12xf32> to vector<12xf32>
    %258 = vector.shape_cast %257 : vector<12xf32> to vector<12x1xf32>
    %259 = tpu.reciprocal %258 {approx = true} : vector<12x1xf32> -> vector<12x1xf32>
    %260 = vector.broadcast %259 : vector<12x1xf32> to vector<12x12xf32>
    %261 = arith.mulf %256, %260 : vector<12x12xf32>
    %cst_114 = arith.constant dense<0.000000e+00> : vector<12x16xf32>
    %262 = tpu.matmul %261, %248, %cst_114 {dimension_numbers = #tpu.dot_dimension_numbers<[1], [0], [0], [1], [0, 0, 1, 1], [], []>} : vector<12x12xf32>, vector<12x16xf32>, vector<12x16xf32> -> vector<12x16xf32>
    %263 = vector.extract_strided_slice %245 {offsets = [0, 0], sizes = [16, 64], strides = [1, 1]} : vector<64x64xf32> to vector<16x64xf32>
    %cst_115 = arith.constant dense<0.000000e+00> : vector<12x64xf32>
    %264 = tpu.matmul %262, %263, %cst_115 {dimension_numbers = #tpu.dot_dimension_numbers<[1], [0], [0], [1], [0, 0, 1, 1], [], []>} : vector<12x16xf32>, vector<16x64xf32>, vector<12x64xf32> -> vector<12x64xf32>
    %265 = vector.extract_strided_slice %230 {offsets = [0, 16], sizes = [12, 16], strides = [1, 1]} : vector<12x64xf32> to vector<12x16xf32>
    %266 = vector.extract_strided_slice %237 {offsets = [0, 16], sizes = [12, 16], strides = [1, 1]} : vector<12x64xf32> to vector<12x16xf32>
    %267 = vector.extract_strided_slice %244 {offsets = [0, 16], sizes = [12, 16], strides = [1, 1]} : vector<12x64xf32> to vector<12x16xf32>
    %cst_116 = arith.constant dense<0.000000e+00> : vector<12x12xf32>
    %268 = tpu.matmul %265, %266, %cst_116 {dimension_numbers = #tpu.dot_dimension_numbers<[1], [1], [0], [0], [0, 0, 1, 0], [], []>} : vector<12x16xf32>, vector<12x16xf32>, vector<12x12xf32> -> vector<12x12xf32>
    %cst_117 = arith.constant 2.500000e-01 : f32
    %269 = vector.broadcast %cst_117 : f32 to vector<12x12xf32>
    %270 = arith.mulf %268, %269 : vector<12x12xf32>
    %cst_118 = arith.constant dense<0xFF800000> : vector<12xf32>
    %271 = vector.multi_reduction <maximumf>, %270, %cst_118 [1] : vector<12x12xf32> to vector<12xf32>
    %272 = vector.shape_cast %271 : vector<12xf32> to vector<12x1xf32>
    %273 = vector.broadcast %272 : vector<12x1xf32> to vector<12x12xf32>
    %274 = arith.subf %270, %273 : vector<12x12xf32>
    %275 = math.exp %274 : vector<12x12xf32>
    %cst_119 = arith.constant dense<0.000000e+00> : vector<12xf32>
    %276 = vector.multi_reduction <add>, %275, %cst_119 [1] : vector<12x12xf32> to vector<12xf32>
    %277 = vector.shape_cast %276 : vector<12xf32> to vector<12x1xf32>
    %278 = tpu.reciprocal %277 {approx = true} : vector<12x1xf32> -> vector<12x1xf32>
    %279 = vector.broadcast %278 : vector<12x1xf32> to vector<12x12xf32>
    %280 = arith.mulf %275, %279 : vector<12x12xf32>
    %cst_120 = arith.constant dense<0.000000e+00> : vector<12x16xf32>
    %281 = tpu.matmul %280, %267, %cst_120 {dimension_numbers = #tpu.dot_dimension_numbers<[1], [0], [0], [1], [0, 0, 1, 1], [], []>} : vector<12x12xf32>, vector<12x16xf32>, vector<12x16xf32> -> vector<12x16xf32>
    %282 = vector.extract_strided_slice %245 {offsets = [16, 0], sizes = [16, 64], strides = [1, 1]} : vector<64x64xf32> to vector<16x64xf32>
    %cst_121 = arith.constant dense<0.000000e+00> : vector<12x64xf32>
    %283 = tpu.matmul %281, %282, %cst_121 {dimension_numbers = #tpu.dot_dimension_numbers<[1], [0], [0], [1], [0, 0, 1, 1], [], []>} : vector<12x16xf32>, vector<16x64xf32>, vector<12x64xf32> -> vector<12x64xf32>
    %284 = arith.addf %264, %283 : vector<12x64xf32>
    %285 = vector.extract_strided_slice %230 {offsets = [0, 32], sizes = [12, 16], strides = [1, 1]} : vector<12x64xf32> to vector<12x16xf32>
    %286 = vector.extract_strided_slice %237 {offsets = [0, 32], sizes = [12, 16], strides = [1, 1]} : vector<12x64xf32> to vector<12x16xf32>
    %287 = vector.extract_strided_slice %244 {offsets = [0, 32], sizes = [12, 16], strides = [1, 1]} : vector<12x64xf32> to vector<12x16xf32>
    %cst_122 = arith.constant dense<0.000000e+00> : vector<12x12xf32>
    %288 = tpu.matmul %285, %286, %cst_122 {dimension_numbers = #tpu.dot_dimension_numbers<[1], [1], [0], [0], [0, 0, 1, 0], [], []>} : vector<12x16xf32>, vector<12x16xf32>, vector<12x12xf32> -> vector<12x12xf32>
    %cst_123 = arith.constant 2.500000e-01 : f32
    %289 = vector.broadcast %cst_123 : f32 to vector<12x12xf32>
    %290 = arith.mulf %288, %289 : vector<12x12xf32>
    %cst_124 = arith.constant dense<0xFF800000> : vector<12xf32>
    %291 = vector.multi_reduction <maximumf>, %290, %cst_124 [1] : vector<12x12xf32> to vector<12xf32>
    %292 = vector.shape_cast %291 : vector<12xf32> to vector<12x1xf32>
    %293 = vector.broadcast %292 : vector<12x1xf32> to vector<12x12xf32>
    %294 = arith.subf %290, %293 : vector<12x12xf32>
    %295 = math.exp %294 : vector<12x12xf32>
    %cst_125 = arith.constant dense<0.000000e+00> : vector<12xf32>
    %296 = vector.multi_reduction <add>, %295, %cst_125 [1] : vector<12x12xf32> to vector<12xf32>
    %297 = vector.shape_cast %296 : vector<12xf32> to vector<12x1xf32>
    %298 = tpu.reciprocal %297 {approx = true} : vector<12x1xf32> -> vector<12x1xf32>
    %299 = vector.broadcast %298 : vector<12x1xf32> to vector<12x12xf32>
    %300 = arith.mulf %295, %299 : vector<12x12xf32>
    %cst_126 = arith.constant dense<0.000000e+00> : vector<12x16xf32>
    %301 = tpu.matmul %300, %287, %cst_126 {dimension_numbers = #tpu.dot_dimension_numbers<[1], [0], [0], [1], [0, 0, 1, 1], [], []>} : vector<12x12xf32>, vector<12x16xf32>, vector<12x16xf32> -> vector<12x16xf32>
    %302 = vector.extract_strided_slice %245 {offsets = [32, 0], sizes = [16, 64], strides = [1, 1]} : vector<64x64xf32> to vector<16x64xf32>
    %cst_127 = arith.constant dense<0.000000e+00> : vector<12x64xf32>
    %303 = tpu.matmul %301, %302, %cst_127 {dimension_numbers = #tpu.dot_dimension_numbers<[1], [0], [0], [1], [0, 0, 1, 1], [], []>} : vector<12x16xf32>, vector<16x64xf32>, vector<12x64xf32> -> vector<12x64xf32>
    %304 = arith.addf %284, %303 : vector<12x64xf32>
    %305 = vector.extract_strided_slice %230 {offsets = [0, 48], sizes = [12, 16], strides = [1, 1]} : vector<12x64xf32> to vector<12x16xf32>
    %306 = vector.extract_strided_slice %237 {offsets = [0, 48], sizes = [12, 16], strides = [1, 1]} : vector<12x64xf32> to vector<12x16xf32>
    %307 = vector.extract_strided_slice %244 {offsets = [0, 48], sizes = [12, 16], strides = [1, 1]} : vector<12x64xf32> to vector<12x16xf32>
    %cst_128 = arith.constant dense<0.000000e+00> : vector<12x12xf32>
    %308 = tpu.matmul %305, %306, %cst_128 {dimension_numbers = #tpu.dot_dimension_numbers<[1], [1], [0], [0], [0, 0, 1, 0], [], []>} : vector<12x16xf32>, vector<12x16xf32>, vector<12x12xf32> -> vector<12x12xf32>
    %cst_129 = arith.constant 2.500000e-01 : f32
    %309 = vector.broadcast %cst_129 : f32 to vector<12x12xf32>
    %310 = arith.mulf %308, %309 : vector<12x12xf32>
    %cst_130 = arith.constant dense<0xFF800000> : vector<12xf32>
    %311 = vector.multi_reduction <maximumf>, %310, %cst_130 [1] : vector<12x12xf32> to vector<12xf32>
    %312 = vector.shape_cast %311 : vector<12xf32> to vector<12x1xf32>
    %313 = vector.broadcast %312 : vector<12x1xf32> to vector<12x12xf32>
    %314 = arith.subf %310, %313 : vector<12x12xf32>
    %315 = math.exp %314 : vector<12x12xf32>
    %cst_131 = arith.constant dense<0.000000e+00> : vector<12xf32>
    %316 = vector.multi_reduction <add>, %315, %cst_131 [1] : vector<12x12xf32> to vector<12xf32>
    %317 = vector.shape_cast %316 : vector<12xf32> to vector<12x1xf32>
    %318 = tpu.reciprocal %317 {approx = true} : vector<12x1xf32> -> vector<12x1xf32>
    %319 = vector.broadcast %318 : vector<12x1xf32> to vector<12x12xf32>
    %320 = arith.mulf %315, %319 : vector<12x12xf32>
    %cst_132 = arith.constant dense<0.000000e+00> : vector<12x16xf32>
    %321 = tpu.matmul %320, %307, %cst_132 {dimension_numbers = #tpu.dot_dimension_numbers<[1], [0], [0], [1], [0, 0, 1, 1], [], []>} : vector<12x12xf32>, vector<12x16xf32>, vector<12x16xf32> -> vector<12x16xf32>
    %322 = vector.extract_strided_slice %245 {offsets = [48, 0], sizes = [16, 64], strides = [1, 1]} : vector<64x64xf32> to vector<16x64xf32>
    %cst_133 = arith.constant dense<0.000000e+00> : vector<12x64xf32>
    %323 = tpu.matmul %321, %322, %cst_133 {dimension_numbers = #tpu.dot_dimension_numbers<[1], [0], [0], [1], [0, 0, 1, 1], [], []>} : vector<12x16xf32>, vector<16x64xf32>, vector<12x64xf32> -> vector<12x64xf32>
    %324 = arith.addf %304, %323 : vector<12x64xf32>
    %325 = arith.addf %195, %324 : vector<12x64xf32>
    %c0_134 = arith.constant 0 : index
    %c0_135 = arith.constant 0 : index
    %326 = vector.load %arg31[%c0_134, %c0_135] : memref<1x64xf32, #tpu.memory_space<vmem>>, vector<1x64xf32>
    %327 = vector.shape_cast %326 : vector<1x64xf32> to vector<64xf32>
    %328 = vector.shape_cast %327 : vector<64xf32> to vector<1x64xf32>
    %329 = vector.broadcast %328 : vector<1x64xf32> to vector<12x64xf32>
    %330 = arith.addf %325, %329 : vector<12x64xf32>
    %c0_136 = arith.constant 0 : index
    %c0_137 = arith.constant 0 : index
    %331 = vector.load %arg32[%c0_136, %c0_137] : memref<1x64xf32, #tpu.memory_space<vmem>>, vector<1x64xf32>
    %332 = vector.shape_cast %331 : vector<1x64xf32> to vector<64xf32>
    %c0_138 = arith.constant 0 : index
    %c0_139 = arith.constant 0 : index
    %333 = vector.load %arg33[%c0_138, %c0_139] : memref<1x64xf32, #tpu.memory_space<vmem>>, vector<1x64xf32>
    %334 = vector.shape_cast %333 : vector<1x64xf32> to vector<64xf32>
    %cst_140 = arith.constant dense<0.000000e+00> : vector<12xf32>
    %335 = vector.multi_reduction <add>, %330, %cst_140 [1] : vector<12x64xf32> to vector<12xf32>
    %336 = vector.shape_cast %335 : vector<12xf32> to vector<12x1xf32>
    %cst_141 = arith.constant 6.400000e+01 : f32
    %337 = vector.broadcast %cst_141 : f32 to vector<12x1xf32>
    %338 = arith.divf %336, %337 : vector<12x1xf32>
    %339 = vector.broadcast %338 : vector<12x1xf32> to vector<12x64xf32>
    %340 = arith.subf %330, %339 : vector<12x64xf32>
    %341 = arith.mulf %340, %340 : vector<12x64xf32>
    %cst_142 = arith.constant dense<0.000000e+00> : vector<12xf32>
    %342 = vector.multi_reduction <add>, %341, %cst_142 [1] : vector<12x64xf32> to vector<12xf32>
    %343 = vector.shape_cast %342 : vector<12xf32> to vector<12x1xf32>
    %cst_143 = arith.constant 6.400000e+01 : f32
    %344 = vector.broadcast %cst_143 : f32 to vector<12x1xf32>
    %345 = arith.divf %343, %344 : vector<12x1xf32>
    %346 = vector.broadcast %338 : vector<12x1xf32> to vector<12x64xf32>
    %347 = arith.subf %330, %346 : vector<12x64xf32>
    %cst_144 = arith.constant 9.99999974E-6 : f32
    %348 = vector.broadcast %cst_144 : f32 to vector<12x1xf32>
    %349 = arith.addf %345, %348 : vector<12x1xf32>
    %350 = math.rsqrt %349 : vector<12x1xf32>
    %351 = vector.broadcast %350 : vector<12x1xf32> to vector<12x64xf32>
    %352 = arith.mulf %347, %351 : vector<12x64xf32>
    %353 = vector.shape_cast %332 : vector<64xf32> to vector<1x64xf32>
    %354 = vector.broadcast %353 : vector<1x64xf32> to vector<12x64xf32>
    %355 = arith.mulf %352, %354 : vector<12x64xf32>
    %356 = vector.shape_cast %334 : vector<64xf32> to vector<1x64xf32>
    %357 = vector.broadcast %356 : vector<1x64xf32> to vector<12x64xf32>
    %358 = arith.addf %355, %357 : vector<12x64xf32>
    %c0_145 = arith.constant 0 : index
    %c0_146 = arith.constant 0 : index
    %359 = vector.load %arg34[%c0_145, %c0_146] : memref<64x128xf32, #tpu.memory_space<vmem>>, vector<64x128xf32>
    %cst_147 = arith.constant dense<0.000000e+00> : vector<12x128xf32>
    %360 = tpu.matmul %358, %359, %cst_147 {dimension_numbers = #tpu.dot_dimension_numbers<[1], [0], [0], [1], [0, 0, 1, 1], [], []>} : vector<12x64xf32>, vector<64x128xf32>, vector<12x128xf32> -> vector<12x128xf32>
    %c0_148 = arith.constant 0 : index
    %c0_149 = arith.constant 0 : index
    %361 = vector.load %arg35[%c0_148, %c0_149] : memref<1x128xf32, #tpu.memory_space<vmem>>, vector<1x128xf32>
    %362 = vector.shape_cast %361 : vector<1x128xf32> to vector<128xf32>
    %363 = vector.shape_cast %362 : vector<128xf32> to vector<1x128xf32>
    %364 = vector.broadcast %363 : vector<1x128xf32> to vector<12x128xf32>
    %365 = arith.addf %360, %364 : vector<12x128xf32>
    %cst_150 = arith.constant 5.000000e-01 : f32
    %366 = vector.broadcast %cst_150 : f32 to vector<12x128xf32>
    %367 = arith.mulf %366, %365 : vector<12x128xf32>
    %cst_151 = arith.constant 0.707106769 : f32
    %368 = vector.broadcast %cst_151 : f32 to vector<12x128xf32>
    %369 = arith.mulf %365, %368 : vector<12x128xf32>
    %370 = math.erf %369 : vector<12x128xf32>
    %cst_152 = arith.constant 1.000000e+00 : f32
    %371 = vector.broadcast %cst_152 : f32 to vector<12x128xf32>
    %372 = arith.addf %371, %370 : vector<12x128xf32>
    %373 = arith.mulf %367, %372 : vector<12x128xf32>
    %c0_153 = arith.constant 0 : index
    %c0_154 = arith.constant 0 : index
    %374 = vector.load %arg36[%c0_153, %c0_154] : memref<128x64xf32, #tpu.memory_space<vmem>>, vector<128x64xf32>
    %cst_155 = arith.constant dense<0.000000e+00> : vector<12x64xf32>
    %375 = tpu.matmul %373, %374, %cst_155 {dimension_numbers = #tpu.dot_dimension_numbers<[1], [0], [0], [1], [0, 0, 1, 1], [], []>} : vector<12x128xf32>, vector<128x64xf32>, vector<12x64xf32> -> vector<12x64xf32>
    %c0_156 = arith.constant 0 : index
    %c0_157 = arith.constant 0 : index
    %376 = vector.load %arg37[%c0_156, %c0_157] : memref<1x64xf32, #tpu.memory_space<vmem>>, vector<1x64xf32>
    %377 = vector.shape_cast %376 : vector<1x64xf32> to vector<64xf32>
    %378 = vector.shape_cast %377 : vector<64xf32> to vector<1x64xf32>
    %379 = vector.broadcast %378 : vector<1x64xf32> to vector<12x64xf32>
    %380 = arith.addf %375, %379 : vector<12x64xf32>
    %381 = arith.addf %330, %380 : vector<12x64xf32>
    %382 = vector.extract_strided_slice %381 {offsets = [10, 0], sizes = [2, 64], strides = [1, 1]} : vector<12x64xf32> to vector<2x64xf32>
    %383 = vector.extract_strided_slice %193 {offsets = [0, 0], sizes = [6, 64], strides = [1, 1]} : vector<8x64xf32> to vector<6x64xf32>
    %384 = tpu.concatenate %383, %382 in 0 : vector<6x64xf32>, vector<2x64xf32> -> vector<8x64xf32>
    %c0_158 = arith.constant 0 : index
    %c0_159 = arith.constant 0 : index
    %385 = vector.load %arg38[%c0_158, %c0_159] : memref<1x64xf32, #tpu.memory_space<vmem>>, vector<1x64xf32>
    %386 = vector.shape_cast %385 : vector<1x64xf32> to vector<64xf32>
    %c0_160 = arith.constant 0 : index
    %c0_161 = arith.constant 0 : index
    %387 = vector.load %arg39[%c0_160, %c0_161] : memref<1x64xf32, #tpu.memory_space<vmem>>, vector<1x64xf32>
    %388 = vector.shape_cast %387 : vector<1x64xf32> to vector<64xf32>
    %cst_162 = arith.constant dense<0.000000e+00> : vector<8xf32>
    %389 = vector.multi_reduction <add>, %384, %cst_162 [1] : vector<8x64xf32> to vector<8xf32>
    %390 = vector.shape_cast %389 : vector<8xf32> to vector<8x1xf32>
    %cst_163 = arith.constant 6.400000e+01 : f32
    %391 = vector.broadcast %cst_163 : f32 to vector<8x1xf32>
    %392 = arith.divf %390, %391 : vector<8x1xf32>
    %393 = vector.broadcast %392 : vector<8x1xf32> to vector<8x64xf32>
    %394 = arith.subf %384, %393 : vector<8x64xf32>
    %395 = arith.mulf %394, %394 : vector<8x64xf32>
    %cst_164 = arith.constant dense<0.000000e+00> : vector<8xf32>
    %396 = vector.multi_reduction <add>, %395, %cst_164 [1] : vector<8x64xf32> to vector<8xf32>
    %397 = vector.shape_cast %396 : vector<8xf32> to vector<8x1xf32>
    %cst_165 = arith.constant 6.400000e+01 : f32
    %398 = vector.broadcast %cst_165 : f32 to vector<8x1xf32>
    %399 = arith.divf %397, %398 : vector<8x1xf32>
    %400 = vector.broadcast %392 : vector<8x1xf32> to vector<8x64xf32>
    %401 = arith.subf %384, %400 : vector<8x64xf32>
    %cst_166 = arith.constant 9.99999974E-6 : f32
    %402 = vector.broadcast %cst_166 : f32 to vector<8x1xf32>
    %403 = arith.addf %399, %402 : vector<8x1xf32>
    %404 = math.rsqrt %403 : vector<8x1xf32>
    %405 = vector.broadcast %404 : vector<8x1xf32> to vector<8x64xf32>
    %406 = arith.mulf %401, %405 : vector<8x64xf32>
    %407 = vector.shape_cast %386 : vector<64xf32> to vector<1x64xf32>
    %408 = vector.broadcast %407 : vector<1x64xf32> to vector<8x64xf32>
    %409 = arith.mulf %406, %408 : vector<8x64xf32>
    %410 = vector.shape_cast %388 : vector<64xf32> to vector<1x64xf32>
    %411 = vector.broadcast %410 : vector<1x64xf32> to vector<8x64xf32>
    %412 = arith.addf %409, %411 : vector<8x64xf32>
    %c0_167 = arith.constant 0 : index
    %c0_168 = arith.constant 0 : index
    %413 = vector.load %arg40[%c0_167, %c0_168] : memref<64x64xf32, #tpu.memory_space<vmem>>, vector<64x64xf32>
    %cst_169 = arith.constant dense<0.000000e+00> : vector<8x64xf32>
    %414 = tpu.matmul %412, %413, %cst_169 {dimension_numbers = #tpu.dot_dimension_numbers<[1], [0], [0], [1], [0, 0, 1, 1], [], []>} : vector<8x64xf32>, vector<64x64xf32>, vector<8x64xf32> -> vector<8x64xf32>
    %c0_170 = arith.constant 0 : index
    %c0_171 = arith.constant 0 : index
    %415 = vector.load %arg41[%c0_170, %c0_171] : memref<1x64xf32, #tpu.memory_space<vmem>>, vector<1x64xf32>
    %416 = vector.shape_cast %415 : vector<1x64xf32> to vector<64xf32>
    %417 = vector.shape_cast %416 : vector<64xf32> to vector<1x64xf32>
    %418 = vector.broadcast %417 : vector<1x64xf32> to vector<8x64xf32>
    %419 = arith.addf %414, %418 : vector<8x64xf32>
    %c0_172 = arith.constant 0 : index
    %c0_173 = arith.constant 0 : index
    %420 = vector.load %arg42[%c0_172, %c0_173] : memref<64x64xf32, #tpu.memory_space<vmem>>, vector<64x64xf32>
    %cst_174 = arith.constant dense<0.000000e+00> : vector<8x64xf32>
    %421 = tpu.matmul %412, %420, %cst_174 {dimension_numbers = #tpu.dot_dimension_numbers<[1], [0], [0], [1], [0, 0, 1, 1], [], []>} : vector<8x64xf32>, vector<64x64xf32>, vector<8x64xf32> -> vector<8x64xf32>
    %c0_175 = arith.constant 0 : index
    %c0_176 = arith.constant 0 : index
    %422 = vector.load %arg43[%c0_175, %c0_176] : memref<1x64xf32, #tpu.memory_space<vmem>>, vector<1x64xf32>
    %423 = vector.shape_cast %422 : vector<1x64xf32> to vector<64xf32>
    %424 = vector.shape_cast %423 : vector<64xf32> to vector<1x64xf32>
    %425 = vector.broadcast %424 : vector<1x64xf32> to vector<8x64xf32>
    %426 = arith.addf %421, %425 : vector<8x64xf32>
    %c0_177 = arith.constant 0 : index
    %c0_178 = arith.constant 0 : index
    %427 = vector.load %arg44[%c0_177, %c0_178] : memref<64x64xf32, #tpu.memory_space<vmem>>, vector<64x64xf32>
    %cst_179 = arith.constant dense<0.000000e+00> : vector<8x64xf32>
    %428 = tpu.matmul %412, %427, %cst_179 {dimension_numbers = #tpu.dot_dimension_numbers<[1], [0], [0], [1], [0, 0, 1, 1], [], []>} : vector<8x64xf32>, vector<64x64xf32>, vector<8x64xf32> -> vector<8x64xf32>
    %c0_180 = arith.constant 0 : index
    %c0_181 = arith.constant 0 : index
    %429 = vector.load %arg45[%c0_180, %c0_181] : memref<1x64xf32, #tpu.memory_space<vmem>>, vector<1x64xf32>
    %430 = vector.shape_cast %429 : vector<1x64xf32> to vector<64xf32>
    %431 = vector.shape_cast %430 : vector<64xf32> to vector<1x64xf32>
    %432 = vector.broadcast %431 : vector<1x64xf32> to vector<8x64xf32>
    %433 = arith.addf %428, %432 : vector<8x64xf32>
    %c0_182 = arith.constant 0 : index
    %c0_183 = arith.constant 0 : index
    %434 = vector.load %arg46[%c0_182, %c0_183] : memref<64x64xf32, #tpu.memory_space<vmem>>, vector<64x64xf32>
    %435 = vector.extract_strided_slice %419 {offsets = [0, 0], sizes = [8, 16], strides = [1, 1]} : vector<8x64xf32> to vector<8x16xf32>
    %436 = vector.extract_strided_slice %426 {offsets = [0, 0], sizes = [8, 16], strides = [1, 1]} : vector<8x64xf32> to vector<8x16xf32>
    %437 = vector.extract_strided_slice %433 {offsets = [0, 0], sizes = [8, 16], strides = [1, 1]} : vector<8x64xf32> to vector<8x16xf32>
    %cst_184 = arith.constant dense<0.000000e+00> : vector<8x8xf32>
    %438 = tpu.matmul %435, %436, %cst_184 {dimension_numbers = #tpu.dot_dimension_numbers<[1], [1], [0], [0], [0, 0, 1, 0], [], []>} : vector<8x16xf32>, vector<8x16xf32>, vector<8x8xf32> -> vector<8x8xf32>
    %cst_185 = arith.constant 2.500000e-01 : f32
    %439 = vector.broadcast %cst_185 : f32 to vector<8x8xf32>
    %440 = arith.mulf %438, %439 : vector<8x8xf32>
    %cst_186 = arith.constant dense<0xFF800000> : vector<8xf32>
    %441 = vector.multi_reduction <maximumf>, %440, %cst_186 [1] : vector<8x8xf32> to vector<8xf32>
    %442 = vector.shape_cast %441 : vector<8xf32> to vector<8x1xf32>
    %443 = vector.broadcast %442 : vector<8x1xf32> to vector<8x8xf32>
    %444 = arith.subf %440, %443 : vector<8x8xf32>
    %445 = math.exp %444 : vector<8x8xf32>
    %cst_187 = arith.constant dense<0.000000e+00> : vector<8xf32>
    %446 = vector.multi_reduction <add>, %445, %cst_187 [1] : vector<8x8xf32> to vector<8xf32>
    %447 = vector.shape_cast %446 : vector<8xf32> to vector<8x1xf32>
    %448 = tpu.reciprocal %447 {approx = true} : vector<8x1xf32> -> vector<8x1xf32>
    %449 = vector.broadcast %448 : vector<8x1xf32> to vector<8x8xf32>
    %450 = arith.mulf %445, %449 : vector<8x8xf32>
    %cst_188 = arith.constant dense<0.000000e+00> : vector<8x16xf32>
    %451 = tpu.matmul %450, %437, %cst_188 {dimension_numbers = #tpu.dot_dimension_numbers<[1], [0], [0], [1], [0, 0, 1, 1], [], []>} : vector<8x8xf32>, vector<8x16xf32>, vector<8x16xf32> -> vector<8x16xf32>
    %452 = vector.extract_strided_slice %434 {offsets = [0, 0], sizes = [16, 64], strides = [1, 1]} : vector<64x64xf32> to vector<16x64xf32>
    %cst_189 = arith.constant dense<0.000000e+00> : vector<8x64xf32>
    %453 = tpu.matmul %451, %452, %cst_189 {dimension_numbers = #tpu.dot_dimension_numbers<[1], [0], [0], [1], [0, 0, 1, 1], [], []>} : vector<8x16xf32>, vector<16x64xf32>, vector<8x64xf32> -> vector<8x64xf32>
    %454 = vector.extract_strided_slice %419 {offsets = [0, 16], sizes = [8, 16], strides = [1, 1]} : vector<8x64xf32> to vector<8x16xf32>
    %455 = vector.extract_strided_slice %426 {offsets = [0, 16], sizes = [8, 16], strides = [1, 1]} : vector<8x64xf32> to vector<8x16xf32>
    %456 = vector.extract_strided_slice %433 {offsets = [0, 16], sizes = [8, 16], strides = [1, 1]} : vector<8x64xf32> to vector<8x16xf32>
    %cst_190 = arith.constant dense<0.000000e+00> : vector<8x8xf32>
    %457 = tpu.matmul %454, %455, %cst_190 {dimension_numbers = #tpu.dot_dimension_numbers<[1], [1], [0], [0], [0, 0, 1, 0], [], []>} : vector<8x16xf32>, vector<8x16xf32>, vector<8x8xf32> -> vector<8x8xf32>
    %cst_191 = arith.constant 2.500000e-01 : f32
    %458 = vector.broadcast %cst_191 : f32 to vector<8x8xf32>
    %459 = arith.mulf %457, %458 : vector<8x8xf32>
    %cst_192 = arith.constant dense<0xFF800000> : vector<8xf32>
    %460 = vector.multi_reduction <maximumf>, %459, %cst_192 [1] : vector<8x8xf32> to vector<8xf32>
    %461 = vector.shape_cast %460 : vector<8xf32> to vector<8x1xf32>
    %462 = vector.broadcast %461 : vector<8x1xf32> to vector<8x8xf32>
    %463 = arith.subf %459, %462 : vector<8x8xf32>
    %464 = math.exp %463 : vector<8x8xf32>
    %cst_193 = arith.constant dense<0.000000e+00> : vector<8xf32>
    %465 = vector.multi_reduction <add>, %464, %cst_193 [1] : vector<8x8xf32> to vector<8xf32>
    %466 = vector.shape_cast %465 : vector<8xf32> to vector<8x1xf32>
    %467 = tpu.reciprocal %466 {approx = true} : vector<8x1xf32> -> vector<8x1xf32>
    %468 = vector.broadcast %467 : vector<8x1xf32> to vector<8x8xf32>
    %469 = arith.mulf %464, %468 : vector<8x8xf32>
    %cst_194 = arith.constant dense<0.000000e+00> : vector<8x16xf32>
    %470 = tpu.matmul %469, %456, %cst_194 {dimension_numbers = #tpu.dot_dimension_numbers<[1], [0], [0], [1], [0, 0, 1, 1], [], []>} : vector<8x8xf32>, vector<8x16xf32>, vector<8x16xf32> -> vector<8x16xf32>
    %471 = vector.extract_strided_slice %434 {offsets = [16, 0], sizes = [16, 64], strides = [1, 1]} : vector<64x64xf32> to vector<16x64xf32>
    %cst_195 = arith.constant dense<0.000000e+00> : vector<8x64xf32>
    %472 = tpu.matmul %470, %471, %cst_195 {dimension_numbers = #tpu.dot_dimension_numbers<[1], [0], [0], [1], [0, 0, 1, 1], [], []>} : vector<8x16xf32>, vector<16x64xf32>, vector<8x64xf32> -> vector<8x64xf32>
    %473 = arith.addf %453, %472 : vector<8x64xf32>
    %474 = vector.extract_strided_slice %419 {offsets = [0, 32], sizes = [8, 16], strides = [1, 1]} : vector<8x64xf32> to vector<8x16xf32>
    %475 = vector.extract_strided_slice %426 {offsets = [0, 32], sizes = [8, 16], strides = [1, 1]} : vector<8x64xf32> to vector<8x16xf32>
    %476 = vector.extract_strided_slice %433 {offsets = [0, 32], sizes = [8, 16], strides = [1, 1]} : vector<8x64xf32> to vector<8x16xf32>
    %cst_196 = arith.constant dense<0.000000e+00> : vector<8x8xf32>
    %477 = tpu.matmul %474, %475, %cst_196 {dimension_numbers = #tpu.dot_dimension_numbers<[1], [1], [0], [0], [0, 0, 1, 0], [], []>} : vector<8x16xf32>, vector<8x16xf32>, vector<8x8xf32> -> vector<8x8xf32>
    %cst_197 = arith.constant 2.500000e-01 : f32
    %478 = vector.broadcast %cst_197 : f32 to vector<8x8xf32>
    %479 = arith.mulf %477, %478 : vector<8x8xf32>
    %cst_198 = arith.constant dense<0xFF800000> : vector<8xf32>
    %480 = vector.multi_reduction <maximumf>, %479, %cst_198 [1] : vector<8x8xf32> to vector<8xf32>
    %481 = vector.shape_cast %480 : vector<8xf32> to vector<8x1xf32>
    %482 = vector.broadcast %481 : vector<8x1xf32> to vector<8x8xf32>
    %483 = arith.subf %479, %482 : vector<8x8xf32>
    %484 = math.exp %483 : vector<8x8xf32>
    %cst_199 = arith.constant dense<0.000000e+00> : vector<8xf32>
    %485 = vector.multi_reduction <add>, %484, %cst_199 [1] : vector<8x8xf32> to vector<8xf32>
    %486 = vector.shape_cast %485 : vector<8xf32> to vector<8x1xf32>
    %487 = tpu.reciprocal %486 {approx = true} : vector<8x1xf32> -> vector<8x1xf32>
    %488 = vector.broadcast %487 : vector<8x1xf32> to vector<8x8xf32>
    %489 = arith.mulf %484, %488 : vector<8x8xf32>
    %cst_200 = arith.constant dense<0.000000e+00> : vector<8x16xf32>
    %490 = tpu.matmul %489, %476, %cst_200 {dimension_numbers = #tpu.dot_dimension_numbers<[1], [0], [0], [1], [0, 0, 1, 1], [], []>} : vector<8x8xf32>, vector<8x16xf32>, vector<8x16xf32> -> vector<8x16xf32>
    %491 = vector.extract_strided_slice %434 {offsets = [32, 0], sizes = [16, 64], strides = [1, 1]} : vector<64x64xf32> to vector<16x64xf32>
    %cst_201 = arith.constant dense<0.000000e+00> : vector<8x64xf32>
    %492 = tpu.matmul %490, %491, %cst_201 {dimension_numbers = #tpu.dot_dimension_numbers<[1], [0], [0], [1], [0, 0, 1, 1], [], []>} : vector<8x16xf32>, vector<16x64xf32>, vector<8x64xf32> -> vector<8x64xf32>
    %493 = arith.addf %473, %492 : vector<8x64xf32>
    %494 = vector.extract_strided_slice %419 {offsets = [0, 48], sizes = [8, 16], strides = [1, 1]} : vector<8x64xf32> to vector<8x16xf32>
    %495 = vector.extract_strided_slice %426 {offsets = [0, 48], sizes = [8, 16], strides = [1, 1]} : vector<8x64xf32> to vector<8x16xf32>
    %496 = vector.extract_strided_slice %433 {offsets = [0, 48], sizes = [8, 16], strides = [1, 1]} : vector<8x64xf32> to vector<8x16xf32>
    %cst_202 = arith.constant dense<0.000000e+00> : vector<8x8xf32>
    %497 = tpu.matmul %494, %495, %cst_202 {dimension_numbers = #tpu.dot_dimension_numbers<[1], [1], [0], [0], [0, 0, 1, 0], [], []>} : vector<8x16xf32>, vector<8x16xf32>, vector<8x8xf32> -> vector<8x8xf32>
    %cst_203 = arith.constant 2.500000e-01 : f32
    %498 = vector.broadcast %cst_203 : f32 to vector<8x8xf32>
    %499 = arith.mulf %497, %498 : vector<8x8xf32>
    %cst_204 = arith.constant dense<0xFF800000> : vector<8xf32>
    %500 = vector.multi_reduction <maximumf>, %499, %cst_204 [1] : vector<8x8xf32> to vector<8xf32>
    %501 = vector.shape_cast %500 : vector<8xf32> to vector<8x1xf32>
    %502 = vector.broadcast %501 : vector<8x1xf32> to vector<8x8xf32>
    %503 = arith.subf %499, %502 : vector<8x8xf32>
    %504 = math.exp %503 : vector<8x8xf32>
    %cst_205 = arith.constant dense<0.000000e+00> : vector<8xf32>
    %505 = vector.multi_reduction <add>, %504, %cst_205 [1] : vector<8x8xf32> to vector<8xf32>
    %506 = vector.shape_cast %505 : vector<8xf32> to vector<8x1xf32>
    %507 = tpu.reciprocal %506 {approx = true} : vector<8x1xf32> -> vector<8x1xf32>
    %508 = vector.broadcast %507 : vector<8x1xf32> to vector<8x8xf32>
    %509 = arith.mulf %504, %508 : vector<8x8xf32>
    %cst_206 = arith.constant dense<0.000000e+00> : vector<8x16xf32>
    %510 = tpu.matmul %509, %496, %cst_206 {dimension_numbers = #tpu.dot_dimension_numbers<[1], [0], [0], [1], [0, 0, 1, 1], [], []>} : vector<8x8xf32>, vector<8x16xf32>, vector<8x16xf32> -> vector<8x16xf32>
    %511 = vector.extract_strided_slice %434 {offsets = [48, 0], sizes = [16, 64], strides = [1, 1]} : vector<64x64xf32> to vector<16x64xf32>
    %cst_207 = arith.constant dense<0.000000e+00> : vector<8x64xf32>
    %512 = tpu.matmul %510, %511, %cst_207 {dimension_numbers = #tpu.dot_dimension_numbers<[1], [0], [0], [1], [0, 0, 1, 1], [], []>} : vector<8x16xf32>, vector<16x64xf32>, vector<8x64xf32> -> vector<8x64xf32>
    %513 = arith.addf %493, %512 : vector<8x64xf32>
    %514 = arith.addf %384, %513 : vector<8x64xf32>
    %c0_208 = arith.constant 0 : index
    %c0_209 = arith.constant 0 : index
    %515 = vector.load %arg47[%c0_208, %c0_209] : memref<1x64xf32, #tpu.memory_space<vmem>>, vector<1x64xf32>
    %516 = vector.shape_cast %515 : vector<1x64xf32> to vector<64xf32>
    %517 = vector.shape_cast %516 : vector<64xf32> to vector<1x64xf32>
    %518 = vector.broadcast %517 : vector<1x64xf32> to vector<8x64xf32>
    %519 = arith.addf %514, %518 : vector<8x64xf32>
    %c0_210 = arith.constant 0 : index
    %c0_211 = arith.constant 0 : index
    %520 = vector.load %arg48[%c0_210, %c0_211] : memref<1x64xf32, #tpu.memory_space<vmem>>, vector<1x64xf32>
    %521 = vector.shape_cast %520 : vector<1x64xf32> to vector<64xf32>
    %c0_212 = arith.constant 0 : index
    %c0_213 = arith.constant 0 : index
    %522 = vector.load %arg49[%c0_212, %c0_213] : memref<1x64xf32, #tpu.memory_space<vmem>>, vector<1x64xf32>
    %523 = vector.shape_cast %522 : vector<1x64xf32> to vector<64xf32>
    %cst_214 = arith.constant dense<0.000000e+00> : vector<8xf32>
    %524 = vector.multi_reduction <add>, %519, %cst_214 [1] : vector<8x64xf32> to vector<8xf32>
    %525 = vector.shape_cast %524 : vector<8xf32> to vector<8x1xf32>
    %cst_215 = arith.constant 6.400000e+01 : f32
    %526 = vector.broadcast %cst_215 : f32 to vector<8x1xf32>
    %527 = arith.divf %525, %526 : vector<8x1xf32>
    %528 = vector.broadcast %527 : vector<8x1xf32> to vector<8x64xf32>
    %529 = arith.subf %519, %528 : vector<8x64xf32>
    %530 = arith.mulf %529, %529 : vector<8x64xf32>
    %cst_216 = arith.constant dense<0.000000e+00> : vector<8xf32>
    %531 = vector.multi_reduction <add>, %530, %cst_216 [1] : vector<8x64xf32> to vector<8xf32>
    %532 = vector.shape_cast %531 : vector<8xf32> to vector<8x1xf32>
    %cst_217 = arith.constant 6.400000e+01 : f32
    %533 = vector.broadcast %cst_217 : f32 to vector<8x1xf32>
    %534 = arith.divf %532, %533 : vector<8x1xf32>
    %535 = vector.broadcast %527 : vector<8x1xf32> to vector<8x64xf32>
    %536 = arith.subf %519, %535 : vector<8x64xf32>
    %cst_218 = arith.constant 9.99999974E-6 : f32
    %537 = vector.broadcast %cst_218 : f32 to vector<8x1xf32>
    %538 = arith.addf %534, %537 : vector<8x1xf32>
    %539 = math.rsqrt %538 : vector<8x1xf32>
    %540 = vector.broadcast %539 : vector<8x1xf32> to vector<8x64xf32>
    %541 = arith.mulf %536, %540 : vector<8x64xf32>
    %542 = vector.shape_cast %521 : vector<64xf32> to vector<1x64xf32>
    %543 = vector.broadcast %542 : vector<1x64xf32> to vector<8x64xf32>
    %544 = arith.mulf %541, %543 : vector<8x64xf32>
    %545 = vector.shape_cast %523 : vector<64xf32> to vector<1x64xf32>
    %546 = vector.broadcast %545 : vector<1x64xf32> to vector<8x64xf32>
    %547 = arith.addf %544, %546 : vector<8x64xf32>
    %c0_219 = arith.constant 0 : index
    %c0_220 = arith.constant 0 : index
    %548 = vector.load %arg50[%c0_219, %c0_220] : memref<64x128xf32, #tpu.memory_space<vmem>>, vector<64x128xf32>
    %cst_221 = arith.constant dense<0.000000e+00> : vector<8x128xf32>
    %549 = tpu.matmul %547, %548, %cst_221 {dimension_numbers = #tpu.dot_dimension_numbers<[1], [0], [0], [1], [0, 0, 1, 1], [], []>} : vector<8x64xf32>, vector<64x128xf32>, vector<8x128xf32> -> vector<8x128xf32>
    %c0_222 = arith.constant 0 : index
    %c0_223 = arith.constant 0 : index
    %550 = vector.load %arg51[%c0_222, %c0_223] : memref<1x128xf32, #tpu.memory_space<vmem>>, vector<1x128xf32>
    %551 = vector.shape_cast %550 : vector<1x128xf32> to vector<128xf32>
    %552 = vector.shape_cast %551 : vector<128xf32> to vector<1x128xf32>
    %553 = vector.broadcast %552 : vector<1x128xf32> to vector<8x128xf32>
    %554 = arith.addf %549, %553 : vector<8x128xf32>
    %cst_224 = arith.constant 5.000000e-01 : f32
    %555 = vector.broadcast %cst_224 : f32 to vector<8x128xf32>
    %556 = arith.mulf %555, %554 : vector<8x128xf32>
    %cst_225 = arith.constant 0.707106769 : f32
    %557 = vector.broadcast %cst_225 : f32 to vector<8x128xf32>
    %558 = arith.mulf %554, %557 : vector<8x128xf32>
    %559 = math.erf %558 : vector<8x128xf32>
    %cst_226 = arith.constant 1.000000e+00 : f32
    %560 = vector.broadcast %cst_226 : f32 to vector<8x128xf32>
    %561 = arith.addf %560, %559 : vector<8x128xf32>
    %562 = arith.mulf %556, %561 : vector<8x128xf32>
    %c0_227 = arith.constant 0 : index
    %c0_228 = arith.constant 0 : index
    %563 = vector.load %arg52[%c0_227, %c0_228] : memref<128x64xf32, #tpu.memory_space<vmem>>, vector<128x64xf32>
    %cst_229 = arith.constant dense<0.000000e+00> : vector<8x64xf32>
    %564 = tpu.matmul %562, %563, %cst_229 {dimension_numbers = #tpu.dot_dimension_numbers<[1], [0], [0], [1], [0, 0, 1, 1], [], []>} : vector<8x128xf32>, vector<128x64xf32>, vector<8x64xf32> -> vector<8x64xf32>
    %c0_230 = arith.constant 0 : index
    %c0_231 = arith.constant 0 : index
    %565 = vector.load %arg53[%c0_230, %c0_231] : memref<1x64xf32, #tpu.memory_space<vmem>>, vector<1x64xf32>
    %566 = vector.shape_cast %565 : vector<1x64xf32> to vector<64xf32>
    %567 = vector.shape_cast %566 : vector<64xf32> to vector<1x64xf32>
    %568 = vector.broadcast %567 : vector<1x64xf32> to vector<8x64xf32>
    %569 = arith.addf %564, %568 : vector<8x64xf32>
    %570 = arith.addf %519, %569 : vector<8x64xf32>
    %571 = vector.extract_strided_slice %381 {offsets = [0, 0], sizes = [1, 64], strides = [1, 1]} : vector<12x64xf32> to vector<1x64xf32>
    %572 = vector.extract_strided_slice %570 {offsets = [0, 0], sizes = [1, 64], strides = [1, 1]} : vector<8x64xf32> to vector<1x64xf32>
    %c0_232 = arith.constant 0 : index
    %c0_233 = arith.constant 0 : index
    %573 = vector.load %arg54[%c0_232, %c0_233] : memref<1x64xf32, #tpu.memory_space<vmem>>, vector<1x64xf32>
    %574 = vector.shape_cast %573 : vector<1x64xf32> to vector<64xf32>
    %c0_234 = arith.constant 0 : index
    %c0_235 = arith.constant 0 : index
    %575 = vector.load %arg55[%c0_234, %c0_235] : memref<1x64xf32, #tpu.memory_space<vmem>>, vector<1x64xf32>
    %576 = vector.shape_cast %575 : vector<1x64xf32> to vector<64xf32>
    %cst_236 = arith.constant dense<0.000000e+00> : vector<1xf32>
    %577 = vector.multi_reduction <add>, %571, %cst_236 [1] : vector<1x64xf32> to vector<1xf32>
    %578 = vector.shape_cast %577 : vector<1xf32> to vector<1x1xf32>
    %cst_237 = arith.constant 6.400000e+01 : f32
    %579 = vector.broadcast %cst_237 : f32 to vector<1x1xf32>
    %580 = arith.divf %578, %579 : vector<1x1xf32>
    %581 = vector.broadcast %580 : vector<1x1xf32> to vector<1x64xf32>
    %582 = arith.subf %571, %581 : vector<1x64xf32>
    %583 = arith.mulf %582, %582 : vector<1x64xf32>
    %cst_238 = arith.constant dense<0.000000e+00> : vector<1xf32>
    %584 = vector.multi_reduction <add>, %583, %cst_238 [1] : vector<1x64xf32> to vector<1xf32>
    %585 = vector.shape_cast %584 : vector<1xf32> to vector<1x1xf32>
    %cst_239 = arith.constant 6.400000e+01 : f32
    %586 = vector.broadcast %cst_239 : f32 to vector<1x1xf32>
    %587 = arith.divf %585, %586 : vector<1x1xf32>
    %588 = vector.broadcast %580 : vector<1x1xf32> to vector<1x64xf32>
    %589 = arith.subf %571, %588 : vector<1x64xf32>
    %cst_240 = arith.constant 9.99999997E-7 : f32
    %590 = vector.broadcast %cst_240 : f32 to vector<1x1xf32>
    %591 = arith.addf %587, %590 : vector<1x1xf32>
    %592 = math.rsqrt %591 : vector<1x1xf32>
    %593 = vector.broadcast %592 : vector<1x1xf32> to vector<1x64xf32>
    %594 = arith.mulf %589, %593 : vector<1x64xf32>
    %595 = vector.shape_cast %574 : vector<64xf32> to vector<1x64xf32>
    %596 = arith.mulf %594, %595 : vector<1x64xf32>
    %597 = vector.shape_cast %576 : vector<64xf32> to vector<1x64xf32>
    %598 = arith.addf %596, %597 : vector<1x64xf32>
    %c0_241 = arith.constant 0 : index
    %c0_242 = arith.constant 0 : index
    %599 = vector.load %arg56[%c0_241, %c0_242] : memref<64x1xf32, #tpu.memory_space<vmem>>, vector<64x1xf32>
    %cst_243 = arith.constant dense<0.000000e+00> : vector<1x1xf32>
    %600 = tpu.matmul %598, %599, %cst_243 {dimension_numbers = #tpu.dot_dimension_numbers<[1], [0], [0], [1], [0, 0, 1, 1], [], []>} : vector<1x64xf32>, vector<64x1xf32>, vector<1x1xf32> -> vector<1x1xf32>
    %c0_244 = arith.constant 0 : index
    %c0_245 = arith.constant 0 : index
    %601 = vector.load %arg57[%c0_244, %c0_245] : memref<1x1xf32, #tpu.memory_space<vmem>>, vector<1x1xf32>
    %602 = vector.shape_cast %601 : vector<1x1xf32> to vector<1xf32>
    %603 = vector.shape_cast %602 : vector<1xf32> to vector<1x1xf32>
    %604 = arith.addf %600, %603 : vector<1x1xf32>
    %605 = arith.negf %604 : vector<1x1xf32>
    %606 = math.exp %605 : vector<1x1xf32>
    %cst_246 = arith.constant 1.000000e+00 : f32
    %607 = vector.broadcast %cst_246 : f32 to vector<1x1xf32>
    %608 = arith.addf %607, %606 : vector<1x1xf32>
    %609 = arith.divf %607, %608 : vector<1x1xf32>
    %c0_247 = arith.constant 0 : index
    %c0_248 = arith.constant 0 : index
    %610 = vector.load %arg58[%c0_247, %c0_248] : memref<1x64xf32, #tpu.memory_space<vmem>>, vector<1x64xf32>
    %611 = vector.shape_cast %610 : vector<1x64xf32> to vector<64xf32>
    %c0_249 = arith.constant 0 : index
    %c0_250 = arith.constant 0 : index
    %612 = vector.load %arg59[%c0_249, %c0_250] : memref<1x64xf32, #tpu.memory_space<vmem>>, vector<1x64xf32>
    %613 = vector.shape_cast %612 : vector<1x64xf32> to vector<64xf32>
    %cst_251 = arith.constant dense<0.000000e+00> : vector<1xf32>
    %614 = vector.multi_reduction <add>, %572, %cst_251 [1] : vector<1x64xf32> to vector<1xf32>
    %615 = vector.shape_cast %614 : vector<1xf32> to vector<1x1xf32>
    %cst_252 = arith.constant 6.400000e+01 : f32
    %616 = vector.broadcast %cst_252 : f32 to vector<1x1xf32>
    %617 = arith.divf %615, %616 : vector<1x1xf32>
    %618 = vector.broadcast %617 : vector<1x1xf32> to vector<1x64xf32>
    %619 = arith.subf %572, %618 : vector<1x64xf32>
    %620 = arith.mulf %619, %619 : vector<1x64xf32>
    %cst_253 = arith.constant dense<0.000000e+00> : vector<1xf32>
    %621 = vector.multi_reduction <add>, %620, %cst_253 [1] : vector<1x64xf32> to vector<1xf32>
    %622 = vector.shape_cast %621 : vector<1xf32> to vector<1x1xf32>
    %cst_254 = arith.constant 6.400000e+01 : f32
    %623 = vector.broadcast %cst_254 : f32 to vector<1x1xf32>
    %624 = arith.divf %622, %623 : vector<1x1xf32>
    %625 = vector.broadcast %617 : vector<1x1xf32> to vector<1x64xf32>
    %626 = arith.subf %572, %625 : vector<1x64xf32>
    %cst_255 = arith.constant 9.99999997E-7 : f32
    %627 = vector.broadcast %cst_255 : f32 to vector<1x1xf32>
    %628 = arith.addf %624, %627 : vector<1x1xf32>
    %629 = math.rsqrt %628 : vector<1x1xf32>
    %630 = vector.broadcast %629 : vector<1x1xf32> to vector<1x64xf32>
    %631 = arith.mulf %626, %630 : vector<1x64xf32>
    %632 = vector.shape_cast %611 : vector<64xf32> to vector<1x64xf32>
    %633 = arith.mulf %631, %632 : vector<1x64xf32>
    %634 = vector.shape_cast %613 : vector<64xf32> to vector<1x64xf32>
    %635 = arith.addf %633, %634 : vector<1x64xf32>
    %c0_256 = arith.constant 0 : index
    %c0_257 = arith.constant 0 : index
    %636 = vector.load %arg60[%c0_256, %c0_257] : memref<64x1xf32, #tpu.memory_space<vmem>>, vector<64x1xf32>
    %cst_258 = arith.constant dense<0.000000e+00> : vector<1x1xf32>
    %637 = tpu.matmul %635, %636, %cst_258 {dimension_numbers = #tpu.dot_dimension_numbers<[1], [0], [0], [1], [0, 0, 1, 1], [], []>} : vector<1x64xf32>, vector<64x1xf32>, vector<1x1xf32> -> vector<1x1xf32>
    %c0_259 = arith.constant 0 : index
    %c0_260 = arith.constant 0 : index
    %638 = vector.load %arg61[%c0_259, %c0_260] : memref<1x1xf32, #tpu.memory_space<vmem>>, vector<1x1xf32>
    %639 = vector.shape_cast %638 : vector<1x1xf32> to vector<1xf32>
    %640 = vector.shape_cast %639 : vector<1xf32> to vector<1x1xf32>
    %641 = arith.addf %637, %640 : vector<1x1xf32>
    %642 = arith.negf %641 : vector<1x1xf32>
    %643 = math.exp %642 : vector<1x1xf32>
    %cst_261 = arith.constant 1.000000e+00 : f32
    %644 = vector.broadcast %cst_261 : f32 to vector<1x1xf32>
    %645 = arith.addf %644, %643 : vector<1x1xf32>
    %646 = arith.divf %644, %645 : vector<1x1xf32>
    %647 = arith.addf %609, %646 : vector<1x1xf32>
    %cst_262 = arith.constant 5.000000e-01 : f32
    %648 = vector.broadcast %cst_262 : f32 to vector<1x1xf32>
    %649 = arith.mulf %648, %647 : vector<1x1xf32>
    %650 = vector.shape_cast %649 : vector<1x1xf32> to vector<1x1xf32>
    %651 = vector.broadcast %650 : vector<1x1xf32> to vector<1x128xf32>
    %c0_263 = arith.constant 0 : index
    %c0_264 = arith.constant 0 : index
    %c0_265 = arith.constant 0 : index
    %652 = vector.load %arg62[%c0_263, %c0_264, %c0_265] : memref<1x1x128xf32, #tpu.memory_space<vmem>>, vector<1x1x128xf32>
    %653 = vector.shape_cast %652 : vector<1x1x128xf32> to vector<1x128xf32>
    %654 = vector.shape_cast %651 : vector<1x128xf32> to vector<1x1x128xf32>
    tpu.vector_store %arg62[%c0_263, %c0_264, %c0_265], %654 {strides = array<i32>} : memref<1x1x128xf32, #tpu.memory_space<vmem>>, vector<1x1x128xf32>,
    return
  }
  func.func @transform_0(%arg0: i32) -> (i32, i32, i32) {
    %c0_i32 = arith.constant 0 : i32
    %c0_i32_0 = arith.constant 0 : i32
    %c0_i32_1 = arith.constant 0 : i32
    return %arg0, %c0_i32, %c0_i32_0 : i32, i32, i32
  }
  func.func @transform_1(%arg0: i32) -> (i32, i32, i32) {
    %c0_i32 = arith.constant 0 : i32
    %c0_i32_0 = arith.constant 0 : i32
    %c0_i32_1 = arith.constant 0 : i32
    return %arg0, %c0_i32, %c0_i32_0 : i32, i32, i32
  }
  func.func @transform_2(%arg0: i32) -> (i32, i32) {
    %c0_i32 = arith.constant 0 : i32
    %c0_i32_0 = arith.constant 0 : i32
    %c0_i32_1 = arith.constant 0 : i32
    return %c0_i32, %c0_i32_0 : i32, i32
  }
  func.func @transform_3(%arg0: i32) -> (i32, i32) {
    %c0_i32 = arith.constant 0 : i32
    %c0_i32_0 = arith.constant 0 : i32
    %c0_i32_1 = arith.constant 0 : i32
    return %c0_i32, %c0_i32_0 : i32, i32
  }
  func.func @transform_4(%arg0: i32) -> (i32, i32) {
    %c0_i32 = arith.constant 0 : i32
    %c0_i32_0 = arith.constant 0 : i32
    %c0_i32_1 = arith.constant 0 : i32
    return %c0_i32, %c0_i32_0 : i32, i32
  }
  func.func @transform_5(%arg0: i32) -> (i32, i32) {
    %c0_i32 = arith.constant 0 : i32
    %c0_i32_0 = arith.constant 0 : i32
    %c0_i32_1 = arith.constant 0 : i32
    return %c0_i32, %c0_i32_0 : i32, i32
  }
  func.func @transform_6(%arg0: i32) -> (i32, i32) {
    %c0_i32 = arith.constant 0 : i32
    %c0_i32_0 = arith.constant 0 : i32
    %c0_i32_1 = arith.constant 0 : i32
    return %c0_i32, %c0_i32_0 : i32, i32
  }
  func.func @transform_7(%arg0: i32) -> (i32, i32) {
    %c0_i32 = arith.constant 0 : i32
    %c0_i32_0 = arith.constant 0 : i32
    %c0_i32_1 = arith.constant 0 : i32
    return %c0_i32, %c0_i32_0 : i32, i32
  }
  func.func @transform_8(%arg0: i32) -> (i32, i32) {
    %c0_i32 = arith.constant 0 : i32
    %c0_i32_0 = arith.constant 0 : i32
    %c0_i32_1 = arith.constant 0 : i32
    return %c0_i32, %c0_i32_0 : i32, i32
  }
  func.func @transform_9(%arg0: i32) -> (i32, i32) {
    %c0_i32 = arith.constant 0 : i32
    %c0_i32_0 = arith.constant 0 : i32
    %c0_i32_1 = arith.constant 0 : i32
    return %c0_i32, %c0_i32_0 : i32, i32
  }
  func.func @transform_10(%arg0: i32) -> (i32, i32) {
    %c0_i32 = arith.constant 0 : i32
    %c0_i32_0 = arith.constant 0 : i32
    %c0_i32_1 = arith.constant 0 : i32
    return %c0_i32, %c0_i32_0 : i32, i32
  }
  func.func @transform_11(%arg0: i32) -> (i32, i32) {
    %c0_i32 = arith.constant 0 : i32
    %c0_i32_0 = arith.constant 0 : i32
    %c0_i32_1 = arith.constant 0 : i32
    return %c0_i32, %c0_i32_0 : i32, i32
  }
  func.func @transform_12(%arg0: i32) -> (i32, i32) {
    %c0_i32 = arith.constant 0 : i32
    %c0_i32_0 = arith.constant 0 : i32
    %c0_i32_1 = arith.constant 0 : i32
    return %c0_i32, %c0_i32_0 : i32, i32
  }
  func.func @transform_13(%arg0: i32) -> (i32, i32) {
    %c0_i32 = arith.constant 0 : i32
    %c0_i32_0 = arith.constant 0 : i32
    %c0_i32_1 = arith.constant 0 : i32
    return %c0_i32, %c0_i32_0 : i32, i32
  }
  func.func @transform_14(%arg0: i32) -> (i32, i32) {
    %c0_i32 = arith.constant 0 : i32
    %c0_i32_0 = arith.constant 0 : i32
    %c0_i32_1 = arith.constant 0 : i32
    return %c0_i32, %c0_i32_0 : i32, i32
  }
  func.func @transform_15(%arg0: i32) -> (i32, i32) {
    %c0_i32 = arith.constant 0 : i32
    %c0_i32_0 = arith.constant 0 : i32
    %c0_i32_1 = arith.constant 0 : i32
    return %c0_i32, %c0_i32_0 : i32, i32
  }
  func.func @transform_16(%arg0: i32) -> (i32, i32) {
    %c0_i32 = arith.constant 0 : i32
    %c0_i32_0 = arith.constant 0 : i32
    %c0_i32_1 = arith.constant 0 : i32
    return %c0_i32, %c0_i32_0 : i32, i32
  }
  func.func @transform_17(%arg0: i32) -> (i32, i32) {
    %c0_i32 = arith.constant 0 : i32
    %c0_i32_0 = arith.constant 0 : i32
    %c0_i32_1 = arith.constant 0 : i32
    return %c0_i32, %c0_i32_0 : i32, i32
  }
  func.func @transform_18(%arg0: i32) -> (i32, i32) {
    %c0_i32 = arith.constant 0 : i32
    %c0_i32_0 = arith.constant 0 : i32
    %c0_i32_1 = arith.constant 0 : i32
    return %c0_i32, %c0_i32_0 : i32, i32
  }
  func.func @transform_19(%arg0: i32) -> (i32, i32) {
    %c0_i32 = arith.constant 0 : i32
    %c0_i32_0 = arith.constant 0 : i32
    %c0_i32_1 = arith.constant 0 : i32
    return %c0_i32, %c0_i32_0 : i32, i32
  }
  func.func @transform_20(%arg0: i32) -> (i32, i32) {
    %c0_i32 = arith.constant 0 : i32
    %c0_i32_0 = arith.constant 0 : i32
    %c0_i32_1 = arith.constant 0 : i32
    return %c0_i32, %c0_i32_0 : i32, i32
  }
  func.func @transform_21(%arg0: i32) -> (i32, i32) {
    %c0_i32 = arith.constant 0 : i32
    %c0_i32_0 = arith.constant 0 : i32
    %c0_i32_1 = arith.constant 0 : i32
    return %c0_i32, %c0_i32_0 : i32, i32
  }
  func.func @transform_22(%arg0: i32) -> (i32, i32) {
    %c0_i32 = arith.constant 0 : i32
    %c0_i32_0 = arith.constant 0 : i32
    %c0_i32_1 = arith.constant 0 : i32
    return %c0_i32, %c0_i32_0 : i32, i32
  }
  func.func @transform_23(%arg0: i32) -> (i32, i32) {
    %c0_i32 = arith.constant 0 : i32
    %c0_i32_0 = arith.constant 0 : i32
    %c0_i32_1 = arith.constant 0 : i32
    return %c0_i32, %c0_i32_0 : i32, i32
  }
  func.func @transform_24(%arg0: i32) -> (i32, i32) {
    %c0_i32 = arith.constant 0 : i32
    %c0_i32_0 = arith.constant 0 : i32
    %c0_i32_1 = arith.constant 0 : i32
    return %c0_i32, %c0_i32_0 : i32, i32
  }
  func.func @transform_25(%arg0: i32) -> (i32, i32) {
    %c0_i32 = arith.constant 0 : i32
    %c0_i32_0 = arith.constant 0 : i32
    %c0_i32_1 = arith.constant 0 : i32
    return %c0_i32, %c0_i32_0 : i32, i32
  }
  func.func @transform_26(%arg0: i32) -> (i32, i32) {
    %c0_i32 = arith.constant 0 : i32
    %c0_i32_0 = arith.constant 0 : i32
    %c0_i32_1 = arith.constant 0 : i32
    return %c0_i32, %c0_i32_0 : i32, i32
  }
  func.func @transform_27(%arg0: i32) -> (i32, i32) {
    %c0_i32 = arith.constant 0 : i32
    %c0_i32_0 = arith.constant 0 : i32
    %c0_i32_1 = arith.constant 0 : i32
    return %c0_i32, %c0_i32_0 : i32, i32
  }
  func.func @transform_28(%arg0: i32) -> (i32, i32) {
    %c0_i32 = arith.constant 0 : i32
    %c0_i32_0 = arith.constant 0 : i32
    %c0_i32_1 = arith.constant 0 : i32
    return %c0_i32, %c0_i32_0 : i32, i32
  }
  func.func @transform_29(%arg0: i32) -> (i32, i32) {
    %c0_i32 = arith.constant 0 : i32
    %c0_i32_0 = arith.constant 0 : i32
    %c0_i32_1 = arith.constant 0 : i32
    return %c0_i32, %c0_i32_0 : i32, i32
  }
  func.func @transform_30(%arg0: i32) -> (i32, i32) {
    %c0_i32 = arith.constant 0 : i32
    %c0_i32_0 = arith.constant 0 : i32
    %c0_i32_1 = arith.constant 0 : i32
    return %c0_i32, %c0_i32_0 : i32, i32
  }
  func.func @transform_31(%arg0: i32) -> (i32, i32) {
    %c0_i32 = arith.constant 0 : i32
    %c0_i32_0 = arith.constant 0 : i32
    %c0_i32_1 = arith.constant 0 : i32
    return %c0_i32, %c0_i32_0 : i32, i32
  }
  func.func @transform_32(%arg0: i32) -> (i32, i32) {
    %c0_i32 = arith.constant 0 : i32
    %c0_i32_0 = arith.constant 0 : i32
    %c0_i32_1 = arith.constant 0 : i32
    return %c0_i32, %c0_i32_0 : i32, i32
  }
  func.func @transform_33(%arg0: i32) -> (i32, i32) {
    %c0_i32 = arith.constant 0 : i32
    %c0_i32_0 = arith.constant 0 : i32
    %c0_i32_1 = arith.constant 0 : i32
    return %c0_i32, %c0_i32_0 : i32, i32
  }
  func.func @transform_34(%arg0: i32) -> (i32, i32) {
    %c0_i32 = arith.constant 0 : i32
    %c0_i32_0 = arith.constant 0 : i32
    %c0_i32_1 = arith.constant 0 : i32
    return %c0_i32, %c0_i32_0 : i32, i32
  }
  func.func @transform_35(%arg0: i32) -> (i32, i32) {
    %c0_i32 = arith.constant 0 : i32
    %c0_i32_0 = arith.constant 0 : i32
    %c0_i32_1 = arith.constant 0 : i32
    return %c0_i32, %c0_i32_0 : i32, i32
  }
  func.func @transform_36(%arg0: i32) -> (i32, i32) {
    %c0_i32 = arith.constant 0 : i32
    %c0_i32_0 = arith.constant 0 : i32
    %c0_i32_1 = arith.constant 0 : i32
    return %c0_i32, %c0_i32_0 : i32, i32
  }
  func.func @transform_37(%arg0: i32) -> (i32, i32) {
    %c0_i32 = arith.constant 0 : i32
    %c0_i32_0 = arith.constant 0 : i32
    %c0_i32_1 = arith.constant 0 : i32
    return %c0_i32, %c0_i32_0 : i32, i32
  }
  func.func @transform_38(%arg0: i32) -> (i32, i32) {
    %c0_i32 = arith.constant 0 : i32
    %c0_i32_0 = arith.constant 0 : i32
    %c0_i32_1 = arith.constant 0 : i32
    return %c0_i32, %c0_i32_0 : i32, i32
  }
  func.func @transform_39(%arg0: i32) -> (i32, i32) {
    %c0_i32 = arith.constant 0 : i32
    %c0_i32_0 = arith.constant 0 : i32
    %c0_i32_1 = arith.constant 0 : i32
    return %c0_i32, %c0_i32_0 : i32, i32
  }
  func.func @transform_40(%arg0: i32) -> (i32, i32) {
    %c0_i32 = arith.constant 0 : i32
    %c0_i32_0 = arith.constant 0 : i32
    %c0_i32_1 = arith.constant 0 : i32
    return %c0_i32, %c0_i32_0 : i32, i32
  }
  func.func @transform_41(%arg0: i32) -> (i32, i32) {
    %c0_i32 = arith.constant 0 : i32
    %c0_i32_0 = arith.constant 0 : i32
    %c0_i32_1 = arith.constant 0 : i32
    return %c0_i32, %c0_i32_0 : i32, i32
  }
  func.func @transform_42(%arg0: i32) -> (i32, i32) {
    %c0_i32 = arith.constant 0 : i32
    %c0_i32_0 = arith.constant 0 : i32
    %c0_i32_1 = arith.constant 0 : i32
    return %c0_i32, %c0_i32_0 : i32, i32
  }
  func.func @transform_43(%arg0: i32) -> (i32, i32) {
    %c0_i32 = arith.constant 0 : i32
    %c0_i32_0 = arith.constant 0 : i32
    %c0_i32_1 = arith.constant 0 : i32
    return %c0_i32, %c0_i32_0 : i32, i32
  }
  func.func @transform_44(%arg0: i32) -> (i32, i32) {
    %c0_i32 = arith.constant 0 : i32
    %c0_i32_0 = arith.constant 0 : i32
    %c0_i32_1 = arith.constant 0 : i32
    return %c0_i32, %c0_i32_0 : i32, i32
  }
  func.func @transform_45(%arg0: i32) -> (i32, i32) {
    %c0_i32 = arith.constant 0 : i32
    %c0_i32_0 = arith.constant 0 : i32
    %c0_i32_1 = arith.constant 0 : i32
    return %c0_i32, %c0_i32_0 : i32, i32
  }
  func.func @transform_46(%arg0: i32) -> (i32, i32) {
    %c0_i32 = arith.constant 0 : i32
    %c0_i32_0 = arith.constant 0 : i32
    %c0_i32_1 = arith.constant 0 : i32
    return %c0_i32, %c0_i32_0 : i32, i32
  }
  func.func @transform_47(%arg0: i32) -> (i32, i32) {
    %c0_i32 = arith.constant 0 : i32
    %c0_i32_0 = arith.constant 0 : i32
    %c0_i32_1 = arith.constant 0 : i32
    return %c0_i32, %c0_i32_0 : i32, i32
  }
  func.func @transform_48(%arg0: i32) -> (i32, i32) {
    %c0_i32 = arith.constant 0 : i32
    %c0_i32_0 = arith.constant 0 : i32
    %c0_i32_1 = arith.constant 0 : i32
    return %c0_i32, %c0_i32_0 : i32, i32
  }
  func.func @transform_49(%arg0: i32) -> (i32, i32) {
    %c0_i32 = arith.constant 0 : i32
    %c0_i32_0 = arith.constant 0 : i32
    %c0_i32_1 = arith.constant 0 : i32
    return %c0_i32, %c0_i32_0 : i32, i32
  }
  func.func @transform_50(%arg0: i32) -> (i32, i32) {
    %c0_i32 = arith.constant 0 : i32
    %c0_i32_0 = arith.constant 0 : i32
    %c0_i32_1 = arith.constant 0 : i32
    return %c0_i32, %c0_i32_0 : i32, i32
  }
  func.func @transform_51(%arg0: i32) -> (i32, i32) {
    %c0_i32 = arith.constant 0 : i32
    %c0_i32_0 = arith.constant 0 : i32
    %c0_i32_1 = arith.constant 0 : i32
    return %c0_i32, %c0_i32_0 : i32, i32
  }
  func.func @transform_52(%arg0: i32) -> (i32, i32) {
    %c0_i32 = arith.constant 0 : i32
    %c0_i32_0 = arith.constant 0 : i32
    %c0_i32_1 = arith.constant 0 : i32
    return %c0_i32, %c0_i32_0 : i32, i32
  }
  func.func @transform_53(%arg0: i32) -> (i32, i32) {
    %c0_i32 = arith.constant 0 : i32
    %c0_i32_0 = arith.constant 0 : i32
    %c0_i32_1 = arith.constant 0 : i32
    return %c0_i32, %c0_i32_0 : i32, i32
  }
  func.func @transform_54(%arg0: i32) -> (i32, i32) {
    %c0_i32 = arith.constant 0 : i32
    %c0_i32_0 = arith.constant 0 : i32
    %c0_i32_1 = arith.constant 0 : i32
    return %c0_i32, %c0_i32_0 : i32, i32
  }
  func.func @transform_55(%arg0: i32) -> (i32, i32) {
    %c0_i32 = arith.constant 0 : i32
    %c0_i32_0 = arith.constant 0 : i32
    %c0_i32_1 = arith.constant 0 : i32
    return %c0_i32, %c0_i32_0 : i32, i32
  }
  func.func @transform_56(%arg0: i32) -> (i32, i32) {
    %c0_i32 = arith.constant 0 : i32
    %c0_i32_0 = arith.constant 0 : i32
    %c0_i32_1 = arith.constant 0 : i32
    return %c0_i32, %c0_i32_0 : i32, i32
  }
  func.func @transform_57(%arg0: i32) -> (i32, i32) {
    %c0_i32 = arith.constant 0 : i32
    %c0_i32_0 = arith.constant 0 : i32
    %c0_i32_1 = arith.constant 0 : i32
    return %c0_i32, %c0_i32_0 : i32, i32
  }
  func.func @transform_58(%arg0: i32) -> (i32, i32) {
    %c0_i32 = arith.constant 0 : i32
    %c0_i32_0 = arith.constant 0 : i32
    %c0_i32_1 = arith.constant 0 : i32
    return %c0_i32, %c0_i32_0 : i32, i32
  }
  func.func @transform_59(%arg0: i32) -> (i32, i32) {
    %c0_i32 = arith.constant 0 : i32
    %c0_i32_0 = arith.constant 0 : i32
    %c0_i32_1 = arith.constant 0 : i32
    return %c0_i32, %c0_i32_0 : i32, i32
  }
  func.func @transform_60(%arg0: i32) -> (i32, i32) {
    %c0_i32 = arith.constant 0 : i32
    %c0_i32_0 = arith.constant 0 : i32
    %c0_i32_1 = arith.constant 0 : i32
    return %c0_i32, %c0_i32_0 : i32, i32
  }
  func.func @transform_61(%arg0: i32) -> (i32, i32, i32) {
    %c0_i32 = arith.constant 0 : i32
    %c0_i32_0 = arith.constant 0 : i32
    %c0_i32_1 = arith.constant 0 : i32
    return %arg0, %c0_i32, %c0_i32_0 : i32, i32, i32
  }
}

</mosaic_0001>

<llo_original>
// kernel: tpu_custom_call.1
$region0: #{tpu_custom_call.1}
  #allocation0 [shape = 'u32[]', space=smem, size = 0x4, offset = 0x4, fixed_abs, tag = 'smem constant byte address 0x4 - core index']
  #allocation1 [shape = 'u32[144,128]{1,0:T(1,128)}', space=vmem, size = 0x12000, scoped, tag = 'internal scratch']
  #allocation2 [shape = 'f32[1,1]{1,0:T(1,128)S(1)}', space=vmem, size = 0x200, scoped, tag = 'scoped memory for tpu_custom_call.1']
  #allocation3 [shape = 'f32[1,1]{1,0:T(1,128)S(1)}', space=vmem, size = 0x200, scoped, tag = 'scoped memory for tpu_custom_call.1']
  %s0 = inlined_call_operand.smem [shape: u32[62], index: -1, kind: input, shape index: {}]
  %s1 = sld [smem:[%s0]]
  %s2 = scalar_lea.smem %s0, 1
  %s3 = sld [smem:[%s2]]
  %s4 = scalar_lea.smem %s0, 2
  %s5 = sld [smem:[%s4]]
  %s6 = scalar_lea.smem %s0, 3
  %s7 = sld [smem:[%s6]]
  %s8 = scalar_lea.smem %s0, 4
  %s9 = sld [smem:[%s8]]
  %s10 = scalar_lea.smem %s0, 5
  %s11 = sld [smem:[%s10]]
  %s12 = scalar_lea.smem %s0, 6
  %s13 = sld [smem:[%s12]]
  %s14 = scalar_lea.smem %s0, 7
  %s15 = sld [smem:[%s14]]
  %s16 = scalar_lea.smem %s0, 8
  %s17 = sld [smem:[%s16]]
  %s18 = scalar_lea.smem %s0, 9
  %s19 = sld [smem:[%s18]]
  %s20 = scalar_lea.smem %s0, 10
  %s21 = sld [smem:[%s20]]
  %s22 = scalar_lea.smem %s0, 11
  %s23 = sld [smem:[%s22]]
  %s24 = scalar_lea.smem %s0, 12
  %s25 = sld [smem:[%s24]]
  %s26 = scalar_lea.smem %s0, 13
  %s27 = sld [smem:[%s26]]
  %s28 = scalar_lea.smem %s0, 14
  %s29 = sld [smem:[%s28]]
  %s30 = scalar_lea.smem %s0, 15
  %s31 = sld [smem:[%s30]]
  %s32 = scalar_lea.smem %s0, 16
  %s33 = sld [smem:[%s32]]
  %s34 = scalar_lea.smem %s0, 17
  %s35 = sld [smem:[%s34]]
  %s36 = scalar_lea.smem %s0, 18
  %s37 = sld [smem:[%s36]]
  %s38 = scalar_lea.smem %s0, 19
  %s39 = sld [smem:[%s38]]
  %s40 = scalar_lea.smem %s0, 20
  %s41 = sld [smem:[%s40]]
  %s42 = scalar_lea.smem %s0, 21
  %s43 = sld [smem:[%s42]]
  %s44 = scalar_lea.smem %s0, 22
  %s45 = sld [smem:[%s44]]
  %s46 = scalar_lea.smem %s0, 23
  %s47 = sld [smem:[%s46]]
  %s48 = scalar_lea.smem %s0, 24
  %s49 = sld [smem:[%s48]]
  %s50 = scalar_lea.smem %s0, 25
  %s51 = sld [smem:[%s50]]
  %s52 = scalar_lea.smem %s0, 26
  %s53 = sld [smem:[%s52]]
  %s54 = scalar_lea.smem %s0, 27
  %s55 = sld [smem:[%s54]]
  %s56 = scalar_lea.smem %s0, 28
  %s57 = sld [smem:[%s56]]
  %s58 = scalar_lea.smem %s0, 29
  %s59 = sld [smem:[%s58]]
  %s60 = scalar_lea.smem %s0, 30
  %s61 = sld [smem:[%s60]]
  %s62 = scalar_lea.smem %s0, 31
  %s63 = sld [smem:[%s62]]
  %s64 = scalar_lea.smem %s0, 32
  %s65 = sld [smem:[%s64]]
  %s66 = scalar_lea.smem %s0, 33
  %s67 = sld [smem:[%s66]]
  %s68 = scalar_lea.smem %s0, 34
  %s69 = sld [smem:[%s68]]
  %s70 = scalar_lea.smem %s0, 35
  %s71 = sld [smem:[%s70]]
  %s72 = scalar_lea.smem %s0, 36
  %s73 = sld [smem:[%s72]]
  %s74 = scalar_lea.smem %s0, 37
  %s75 = sld [smem:[%s74]]
  %s76 = scalar_lea.smem %s0, 38
  %s77 = sld [smem:[%s76]]
  %s78 = scalar_lea.smem %s0, 39
  %s79 = sld [smem:[%s78]]
  %s80 = scalar_lea.smem %s0, 40
  %s81 = sld [smem:[%s80]]
  %s82 = scalar_lea.smem %s0, 41
  %s83 = sld [smem:[%s82]]
  %s84 = scalar_lea.smem %s0, 42
  %s85 = sld [smem:[%s84]]
  %s86 = scalar_lea.smem %s0, 43
  %s87 = sld [smem:[%s86]]
  %s88 = scalar_lea.smem %s0, 44
  %s89 = sld [smem:[%s88]]
  %s90 = scalar_lea.smem %s0, 45
  %s91 = sld [smem:[%s90]]
  %s92 = scalar_lea.smem %s0, 46
  %s93 = sld [smem:[%s92]]
  %s94 = scalar_lea.smem %s0, 47
  %s95 = sld [smem:[%s94]]
  %s96 = scalar_lea.smem %s0, 48
  %s97 = sld [smem:[%s96]]
  %s98 = scalar_lea.smem %s0, 49
  %s99 = sld [smem:[%s98]]
  %s100 = scalar_lea.smem %s0, 50
  %s101 = sld [smem:[%s100]]
  %s102 = scalar_lea.smem %s0, 51
  %s103 = sld [smem:[%s102]]
  %s104 = scalar_lea.smem %s0, 52
  %s105 = sld [smem:[%s104]]
  %s106 = scalar_lea.smem %s0, 53
  %s107 = sld [smem:[%s106]]
  %s108 = scalar_lea.smem %s0, 54
  %s109 = sld [smem:[%s108]]
  %s110 = scalar_lea.smem %s0, 55
  %s111 = sld [smem:[%s110]]
  %s112 = scalar_lea.smem %s0, 56
  %s113 = sld [smem:[%s112]]
  %s114 = scalar_lea.smem %s0, 57
  %s115 = sld [smem:[%s114]]
  %s116 = scalar_lea.smem %s0, 58
  %s117 = sld [smem:[%s116]]
  %s118 = scalar_lea.smem %s0, 59
  %s119 = sld [smem:[%s118]]
  %s120 = scalar_lea.smem %s0, 60
  %s121 = sld [smem:[%s120]]
  %s122 = scalar_lea.smem %s0, 61
  %s123 = sld [smem:[%s122]]
  %s124 = sld [smem:[#allocation0]]
  $region409: #{tpu_custom_call.1} parent=0
    _
  %s126 = ssub.s32 1, %s124
  %s127 = scalar_select 0, %s126, %s124
  %v128 = vstv %s113
  %129 = vst [vmem:[#allocation2] sm:$0x1] %v128
  %v130 = vstv %s121
  %131 = vst [vmem:[#allocation3] sm:$0x1] %v130
  $region1: #{tpu_custom_call.1} parent=0
    #allocation4 [shape = 'u8[512]{0}', space=vmem, size = 0x400, scoped, tag = 'input window, operand 2, single buffered']
    #allocation5 [shape = 's32[2]{0}', space=sflag, size = 0x8, scoped, tag = 'scoped memory for tpu_custom_call.1']
    #allocation6 [shape = 's32[2]{0}', space=sflag, size = 0x8, scoped, tag = 'scoped memory for tpu_custom_call.1']
    #allocation7 [shape = 'u8[512]{0}', space=vmem, size = 0x400, scoped, tag = 'input window, operand 3, single buffered']
    #allocation8 [shape = 's32[1]{0}', space=sflag, size = 0x4, scoped, tag = 'scoped memory for tpu_custom_call.1']
    #allocation9 [shape = 'u8[512]{0}', space=vmem, size = 0x400, scoped, tag = 'input window, operand 5, single buffered']
    #allocation10 [shape = 'u8[512]{0}', space=vmem, size = 0x400, scoped, tag = 'input window, operand 6, single buffered']
    #allocation11 [shape = 's32[1]{0}', space=sflag, size = 0x4, scoped, tag = 'scoped memory for tpu_custom_call.1']
    #allocation12 [shape = 'u8[512]{0}', space=vmem, size = 0x400, scoped, tag = 'input window, operand 8, single buffered']
    #allocation13 [shape = 'u8[512]{0}', space=vmem, size = 0x400, scoped, tag = 'input window, operand 10, single buffered']
    #allocation14 [shape = 's32[1]{0}', space=sflag, size = 0x4, scoped, tag = 'scoped memory for tpu_custom_call.1']
    #allocation15 [shape = 'u8[512]{0}', space=vmem, size = 0x400, scoped, tag = 'input window, operand 12, single buffered']
    #allocation16 [shape = 'u8[512]{0}', space=vmem, size = 0x400, scoped, tag = 'input window, operand 14, single buffered']
    #allocation17 [shape = 's32[1]{0}', space=sflag, size = 0x4, scoped, tag = 'scoped memory for tpu_custom_call.1']
    #allocation18 [shape = 'u8[512]{0}', space=vmem, size = 0x400, scoped, tag = 'input window, operand 15, single buffered']
    #allocation19 [shape = 'u8[512]{0}', space=vmem, size = 0x400, scoped, tag = 'input window, operand 16, single buffered']
    #allocation20 [shape = 's32[1]{0}', space=sflag, size = 0x4, scoped, tag = 'scoped memory for tpu_custom_call.1']
    #allocation21 [shape = 'u8[512]{0}', space=vmem, size = 0x400, scoped, tag = 'input window, operand 18, single buffered']
    #allocation22 [shape = 'u8[512]{0}', space=vmem, size = 0x400, scoped, tag = 'input window, operand 20, single buffered']
    #allocation23 [shape = 's32[1]{0}', space=sflag, size = 0x4, scoped, tag = 'scoped memory for tpu_custom_call.1']
    #allocation24 [shape = 'u8[512]{0}', space=vmem, size = 0x400, scoped, tag = 'input window, operand 21, single buffered']
    #allocation25 [shape = 'u8[512]{0}', space=vmem, size = 0x400, scoped, tag = 'input window, operand 22, single buffered']
    #allocation26 [shape = 's32[1]{0}', space=sflag, size = 0x4, scoped, tag = 'scoped memory for tpu_custom_call.1']
    #allocation27 [shape = 'u8[512]{0}', space=vmem, size = 0x400, scoped, tag = 'input window, operand 24, single buffered']
    #allocation28 [shape = 'u8[512]{0}', space=vmem, size = 0x400, scoped, tag = 'input window, operand 26, single buffered']
    #allocation29 [shape = 's32[1]{0}', space=sflag, size = 0x4, scoped, tag = 'scoped memory for tpu_custom_call.1']
    #allocation30 [shape = 'u8[512]{0}', space=vmem, size = 0x400, scoped, tag = 'input window, operand 28, single buffered']
    #allocation31 [shape = 'u8[512]{0}', space=vmem, size = 0x400, scoped, tag = 'input window, operand 30, single buffered']
    #allocation32 [shape = 's32[1]{0}', space=sflag, size = 0x4, scoped, tag = 'scoped memory for tpu_custom_call.1']
    #allocation33 [shape = 'u8[512]{0}', space=vmem, size = 0x400, scoped, tag = 'input window, operand 31, single buffered']
    #allocation34 [shape = 'u8[512]{0}', space=vmem, size = 0x400, scoped, tag = 'input window, operand 32, single buffered']
    #allocation35 [shape = 's32[1]{0}', space=sflag, size = 0x4, scoped, tag = 'scoped memory for tpu_custom_call.1']
    #allocation36 [shape = 'u8[512]{0}', space=vmem, size = 0x400, scoped, tag = 'input window, operand 34, single buffered']
    #allocation37 [shape = 'u8[512]{0}', space=vmem, size = 0x400, scoped, tag = 'input window, operand 36, single buffered']
    #allocation38 [shape = 's32[1]{0}', space=sflag, size = 0x4, scoped, tag = 'scoped memory for tpu_custom_call.1']
    #allocation39 [shape = 'u8[512]{0}', space=vmem, size = 0x400, scoped, tag = 'input window, operand 37, single buffered']
    #allocation40 [shape = 'u8[512]{0}', space=vmem, size = 0x400, scoped, tag = 'input window, operand 38, single buffered']
    #allocation41 [shape = 's32[1]{0}', space=sflag, size = 0x4, scoped, tag = 'scoped memory for tpu_custom_call.1']
    #allocation42 [shape = 'u8[512]{0}', space=vmem, size = 0x400, scoped, tag = 'input window, operand 40, single buffered']
    #allocation43 [shape = 'u8[32768]{0}', space=vmem, size = 0x8000, scoped, tag = 'input window, operand 41, single buffered']
    #allocation44 [shape = 's32[1]{0}', space=sflag, size = 0x4, scoped, tag = 'scoped memory for tpu_custom_call.1']
    #allocation45 [shape = 'u8[512]{0}', space=vmem, size = 0x400, scoped, tag = 'input window, operand 42, single buffered']
    #allocation46 [shape = 'u8[32768]{0}', space=vmem, size = 0x8000, scoped, tag = 'input window, operand 43, single buffered']
    #allocation47 [shape = 's32[1]{0}', space=sflag, size = 0x4, scoped, tag = 'scoped memory for tpu_custom_call.1']
    #allocation48 [shape = 'u8[512]{0}', space=vmem, size = 0x400, scoped, tag = 'input window, operand 44, single buffered']
    #allocation49 [shape = 'u8[32768]{0}', space=vmem, size = 0x8000, scoped, tag = 'input window, operand 45, single buffered']
    #allocation50 [shape = 's32[1]{0}', space=sflag, size = 0x4, scoped, tag = 'scoped memory for tpu_custom_call.1']
    #allocation51 [shape = 'u8[512]{0}', space=vmem, size = 0x400, scoped, tag = 'input window, operand 46, single buffered']
    #allocation52 [shape = 'u8[512]{0}', space=vmem, size = 0x400, scoped, tag = 'input window, operand 47, single buffered']
    #allocation53 [shape = 's32[1]{0}', space=sflag, size = 0x4, scoped, tag = 'scoped memory for tpu_custom_call.1']
    #allocation54 [shape = 'u8[512]{0}', space=vmem, size = 0x400, scoped, tag = 'input window, operand 48, single buffered']
    #allocation55 [shape = 'u8[1024]{0}', space=vmem, size = 0x400, scoped, tag = 'output window, operand 0']
    %132 = vsyncpa [#allocation5], 0
    %133 = vsyncpa [#allocation8], 0
    %134 = vsyncpa [#allocation11], 0
    %135 = vsyncpa [#allocation14], 0
    %136 = vsyncpa [#allocation17], 0
    %137 = vsyncpa [#allocation20], 0
    %138 = vsyncpa [#allocation23], 0
    %139 = vsyncpa [#allocation26], 0
    %140 = vsyncpa [#allocation29], 0
    %141 = vsyncpa [#allocation32], 0
    %142 = vsyncpa [#allocation35], 0
    %143 = vsyncpa [#allocation38], 0
    %144 = vsyncpa [#allocation41], 0
    %145 = vsyncpa [#allocation44], 0
    %146 = vsyncpa [#allocation47], 0
    %147 = vsyncpa [#allocation50], 0
    %148 = vsyncpa [#allocation53], 0
    %149 = vsyncpa [#allocation6], 0
    %s150 = scalar_lea.sflag [#allocation6], 1
    %151 = vsyncpa %s150, 0
    loop: start=0, step=1, limit=4
    $region2: #{tpu_custom_call.1} parent=1 // loop_pre_header
      _
    $region3: #{tpu_custom_call.1} parent=1 // loop_header
      %s153 = sphi 0, %s157
      %p154 = scmp.ge.s32.totalorder %s153, 4
      %s163 = sphi 0, %s165
      %s166 = sphi 0, %s163
      %s167 = sphi 0, %s166
      %s183 = sphi 0, %s167
      %s189 = sphi 0, %s191
      %s192 = sphi 0, %s189
      %s193 = sphi 0, %s192
      %s209 = sphi 0, %s193
      %s213 = sphi 0, %s213
      %s215 = sphi 0, %s213
      %s216 = sphi 0, %s215
      %s230 = sphi 0, %s216
      %s234 = sphi 0, %s234
      %s236 = sphi 0, %s234
      %s237 = sphi 0, %s236
      %s251 = sphi 0, %s237
      %s255 = sphi 0, %s255
      %s257 = sphi 0, %s255
      %s258 = sphi 0, %s257
      %s272 = sphi 0, %s258
      %s276 = sphi 0, %s276
      %s278 = sphi 0, %s276
      %s279 = sphi 0, %s278
      %s293 = sphi 0, %s279
      %s297 = sphi 0, %s297
      %s299 = sphi 0, %s297
      %s300 = sphi 0, %s299
      %s314 = sphi 0, %s300
      %s318 = sphi 0, %s318
      %s320 = sphi 0, %s318
      %s321 = sphi 0, %s320
      %s335 = sphi 0, %s321
      %s339 = sphi 0, %s339
      %s341 = sphi 0, %s339
      %s342 = sphi 0, %s341
      %s356 = sphi 0, %s342
      %s360 = sphi 0, %s360
      %s362 = sphi 0, %s360
      %s363 = sphi 0, %s362
      %s377 = sphi 0, %s363
      %s381 = sphi 0, %s381
      %s383 = sphi 0, %s381
      %s384 = sphi 0, %s383
      %s398 = sphi 0, %s384
      %s402 = sphi 0, %s402
      %s404 = sphi 0, %s402
      %s405 = sphi 0, %s404
      %s419 = sphi 0, %s405
      %s423 = sphi 0, %s423
      %s425 = sphi 0, %s423
      %s426 = sphi 0, %s425
      %s440 = sphi 0, %s426
      %s444 = sphi 0, %s444
      %s446 = sphi 0, %s444
      %s447 = sphi 0, %s446
      %s461 = sphi 0, %s447
      %s465 = sphi 0, %s465
      %s467 = sphi 0, %s465
      %s468 = sphi 0, %s467
      %s482 = sphi 0, %s468
      %s486 = sphi 0, %s486
      %s488 = sphi 0, %s486
      %s489 = sphi 0, %s488
      %s503 = sphi 0, %s489
      %s507 = sphi 0, %s507
      %s509 = sphi 0, %s507
      %s510 = sphi 0, %s509
      %s524 = sphi 0, %s510
      %s528 = sphi 0, %s528
      %s530 = sphi 0, %s528
      %s531 = sphi 0, %s530
      %s545 = sphi 0, %s531
      %s549 = sphi 0, %s549
      %s551 = sphi 0, %s549
      %s552 = sphi 0, %s551
      %s566 = sphi 0, %s552
      %s570 = sphi 0, %s570
      %s572 = sphi 0, %s570
      %s573 = sphi 0, %s572
      %s587 = sphi 0, %s573
      %s591 = sphi 0, %s591
      %s593 = sphi 0, %s591
      %s594 = sphi 0, %s593
      %s608 = sphi 0, %s594
      %s612 = sphi 0, %s612
      %s614 = sphi 0, %s612
      %s615 = sphi 0, %s614
      %s629 = sphi 0, %s615
      %s633 = sphi 0, %s633
      %s635 = sphi 0, %s633
      %s636 = sphi 0, %s635
      %s650 = sphi 0, %s636
      %s654 = sphi 0, %s654
      %s656 = sphi 0, %s654
      %s657 = sphi 0, %s656
      %s671 = sphi 0, %s657
      %s675 = sphi 0, %s675
      %s677 = sphi 0, %s675
      %s678 = sphi 0, %s677
      %s692 = sphi 0, %s678
      %s696 = sphi 0, %s696
      %s698 = sphi 0, %s696
      %s699 = sphi 0, %s698
      %s713 = sphi 0, %s699
      %s717 = sphi 0, %s717
      %s719 = sphi 0, %s717
      %s720 = sphi 0, %s719
      %s734 = sphi 0, %s720
      %s738 = sphi 0, %s738
      %s740 = sphi 0, %s738
      %s741 = sphi 0, %s740
      %s755 = sphi 0, %s741
      %s759 = sphi 0, %s759
      %s761 = sphi 0, %s759
      %s762 = sphi 0, %s761
      %s776 = sphi 0, %s762
      %s780 = sphi 0, %s780
      %s782 = sphi 0, %s780
      %s783 = sphi 0, %s782
      %s797 = sphi 0, %s783
      %s801 = sphi 0, %s801
      %s803 = sphi 0, %s801
      %s804 = sphi 0, %s803
      %s818 = sphi 0, %s804
      %s822 = sphi 0, %s822
      %s824 = sphi 0, %s822
      %s825 = sphi 0, %s824
      %s839 = sphi 0, %s825
      %s843 = sphi 0, %s843
      %s845 = sphi 0, %s843
      %s846 = sphi 0, %s845
      %s860 = sphi 0, %s846
      %s864 = sphi 0, %s864
      %s866 = sphi 0, %s864
      %s867 = sphi 0, %s866
      %s881 = sphi 0, %s867
      %s885 = sphi 0, %s885
      %s887 = sphi 0, %s885
      %s888 = sphi 0, %s887
      %s902 = sphi 0, %s888
      %s906 = sphi 0, %s906
      %s908 = sphi 0, %s906
      %s909 = sphi 0, %s908
      %s923 = sphi 0, %s909
      %s927 = sphi 0, %s927
      %s929 = sphi 0, %s927
      %s930 = sphi 0, %s929
      %s944 = sphi 0, %s930
      %s948 = sphi 0, %s948
      %s950 = sphi 0, %s948
      %s951 = sphi 0, %s950
      %s965 = sphi 0, %s951
      %s969 = sphi 0, %s969
      %s971 = sphi 0, %s969
      %s972 = sphi 0, %s971
      %s986 = sphi 0, %s972
      %s990 = sphi 0, %s990
      %s992 = sphi 0, %s990
      %s993 = sphi 0, %s992
      %s1007 = sphi 0, %s993
      %s1011 = sphi 0, %s1011
      %s1013 = sphi 0, %s1011
      %s1014 = sphi 0, %s1013
      %s1028 = sphi 0, %s1014
      %s1032 = sphi 0, %s1032
      %s1034 = sphi 0, %s1032
      %s1035 = sphi 0, %s1034
      %s1049 = sphi 0, %s1035
      %s1053 = sphi 0, %s1053
      %s1055 = sphi 0, %s1053
      %s1056 = sphi 0, %s1055
      %s1070 = sphi 0, %s1056
      %s1074 = sphi 0, %s1074
      %s1076 = sphi 0, %s1074
      %s1077 = sphi 0, %s1076
      %s1091 = sphi 0, %s1077
      %s1095 = sphi 0, %s1095
      %s1097 = sphi 0, %s1095
      %s1098 = sphi 0, %s1097
      %s1112 = sphi 0, %s1098
      %s1116 = sphi 0, %s1116
      %s1118 = sphi 0, %s1116
      %s1119 = sphi 0, %s1118
      %s1133 = sphi 0, %s1119
      %s1137 = sphi 0, %s1137
      %s1139 = sphi 0, %s1137
      %s1140 = sphi 0, %s1139
      %s1154 = sphi 0, %s1140
      %s1158 = sphi 0, %s1158
      %s1160 = sphi 0, %s1158
      %s1161 = sphi 0, %s1160
      %s1175 = sphi 0, %s1161
      %s1179 = sphi 0, %s1179
      %s1181 = sphi 0, %s1179
      %s1182 = sphi 0, %s1181
      %s1196 = sphi 0, %s1182
      %s1200 = sphi 0, %s1200
      %s1202 = sphi 0, %s1200
      %s1203 = sphi 0, %s1202
      %s1217 = sphi 0, %s1203
      %s1221 = sphi 0, %s1221
      %s1223 = sphi 0, %s1221
      %s1224 = sphi 0, %s1223
      %s1238 = sphi 0, %s1224
      %s1242 = sphi 0, %s1242
      %s1244 = sphi 0, %s1242
      %s1245 = sphi 0, %s1244
      %s1259 = sphi 0, %s1245
      %s1263 = sphi 0, %s1263
      %s1265 = sphi 0, %s1263
      %s1266 = sphi 0, %s1265
      %s1280 = sphi 0, %s1266
      %s1284 = sphi 0, %s1284
      %s1286 = sphi 0, %s1284
      %s1287 = sphi 0, %s1286
      %s1301 = sphi 0, %s1287
      %s1305 = sphi 0, %s1305
      %s1307 = sphi 0, %s1305
      %s1308 = sphi 0, %s1307
      %s1322 = sphi 0, %s1308
      %s1326 = sphi 0, %s1326
      %s1328 = sphi 0, %s1326
      %s1329 = sphi 0, %s1328
      %s1343 = sphi 0, %s1329
      %s1347 = sphi 0, %s1347
      %s1349 = sphi 0, %s1347
      %s1350 = sphi 0, %s1349
      %s1364 = sphi 0, %s1350
      %s1368 = sphi 0, %s1368
      %s1370 = sphi 0, %s1368
      %s1371 = sphi 0, %s1370
      %s1385 = sphi 0, %s1371
      %s1389 = sphi 0, %s1389
      %s1391 = sphi 0, %s1389
      %s1392 = sphi 0, %s1391
      %s1406 = sphi 0, %s1392
      %s1410 = sphi 0, %s1410
      %s1412 = sphi 0, %s1410
      %s1413 = sphi 0, %s1412
      %s1427 = sphi 0, %s1413
      %s1431 = sphi 0, %s1431
      %s1433 = sphi 0, %s1431
      %s1434 = sphi 0, %s1433
      %s1448 = sphi 0, %s1434
      %s1454 = sphi 0, %s1456
      %s1457 = sphi 0, %s1454
      %s1458 = sphi 0, %s1457
      %s1474 = sphi 0, %s1458
    $region4: #{tpu_custom_call.1} parent=1 // loop_header_branch
      %156 = sbr.rel (%p154) target = $region8
    $region5: #{tpu_custom_call.1} parent=1 // loop_body
      %s158 = ssub.s32 %s153, 1
      %s159 = ssub.s32 %s153, 2
      %s160 = sadd.s32 %s153, 1
      %s161 = ssub.s32 %s153, %s160
      %p162 = scmp.eq.s32.totalorder %s161, 0
      %s164 = sadd.s32 %s163, 1
      %s165 = scalar_select %p162, %s163, %s164
      %p168 = pneg %p162
      %p169 = scmp.eq.s32.totalorder %s153, 1
      %p170 = por %p168, %p169
      %p171 = scmp.ne.s32.totalorder %s163, %s166
      %p172 = scmp.eq.s32.totalorder %s153, 0
      %p173 = por %p171, %p172
      %p174 = scmp.ne.s32.totalorder %s163, %s166
      %p175 = scmp.eq.s32.totalorder %s158, 1
      %p176 = por %p174, %p175
      %p177 = scmp.ne.s32.totalorder %s166, %s167
      %p178 = scmp.eq.s32.totalorder %s158, 0
      %p179 = por %p177, %p178
      %p180 = scmp.ne.s32.totalorder %s166, %s167
      %p181 = scmp.eq.s32.totalorder %s159, 1
      %p182 = por %p180, %p181
      %p184 = scmp.ne.s32.totalorder %s167, %s183
      %p185 = scmp.eq.s32.totalorder %s159, 0
      %p186 = por %p184, %p185
      %s187 = ssub.s32 %s153, %s160
      %p188 = scmp.eq.s32.totalorder %s187, 0
      %s190 = sadd.s32 %s189, 1
      %s191 = scalar_select %p188, %s189, %s190
      %p194 = pneg %p188
      %p195 = scmp.eq.s32.totalorder %s153, 1
      %p196 = por %p194, %p195
      %p197 = scmp.ne.s32.totalorder %s189, %s192
      %p198 = scmp.eq.s32.totalorder %s153, 0
      %p199 = por %p197, %p198
      %p200 = scmp.ne.s32.totalorder %s189, %s192
      %p201 = scmp.eq.s32.totalorder %s158, 1
      %p202 = por %p200, %p201
      %p203 = scmp.ne.s32.totalorder %s192, %s193
      %p204 = scmp.eq.s32.totalorder %s158, 0
      %p205 = por %p203, %p204
      %p206 = scmp.ne.s32.totalorder %s192, %s193
      %p207 = scmp.eq.s32.totalorder %s159, 1
      %p208 = por %p206, %p207
      %p210 = scmp.ne.s32.totalorder %s193, %s209
      %p211 = scmp.eq.s32.totalorder %s159, 0
      %p212 = por %p210, %p211
      %s214 = sadd.s32 %s213, 1
      %p217 = scmp.eq.s32.totalorder %s153, 1
      %p218 = scmp.ne.s32.totalorder %s213, %s215
      %p219 = scmp.eq.s32.totalorder %s153, 0
      %p220 = por %p218, %p219
      %p221 = scmp.ne.s32.totalorder %s213, %s215
      %p222 = scmp.eq.s32.totalorder %s158, 1
      %p223 = por %p221, %p222
      %p224 = scmp.ne.s32.totalorder %s215, %s216
      %p225 = scmp.eq.s32.totalorder %s158, 0
      %p226 = por %p224, %p225
      %p227 = scmp.ne.s32.totalorder %s215, %s216
      %p228 = scmp.eq.s32.totalorder %s159, 1
      %p229 = por %p227, %p228
      %p231 = scmp.ne.s32.totalorder %s216, %s230
      %p232 = scmp.eq.s32.totalorder %s159, 0
      %p233 = por %p231, %p232
      %s235 = sadd.s32 %s234, 1
      %p238 = scmp.eq.s32.totalorder %s153, 1
      %p239 = scmp.ne.s32.totalorder %s234, %s236
      %p240 = scmp.eq.s32.totalorder %s153, 0
      %p241 = por %p239, %p240
      %p242 = scmp.ne.s32.totalorder %s234, %s236
      %p243 = scmp.eq.s32.totalorder %s158, 1
      %p244 = por %p242, %p243
      %p245 = scmp.ne.s32.totalorder %s236, %s237
      %p246 = scmp.eq.s32.totalorder %s158, 0
      %p247 = por %p245, %p246
      %p248 = scmp.ne.s32.totalorder %s236, %s237
      %p249 = scmp.eq.s32.totalorder %s159, 1
      %p250 = por %p248, %p249
      %p252 = scmp.ne.s32.totalorder %s237, %s251
      %p253 = scmp.eq.s32.totalorder %s159, 0
      %p254 = por %p252, %p253
      %s256 = sadd.s32 %s255, 1
      %p259 = scmp.eq.s32.totalorder %s153, 1
      %p260 = scmp.ne.s32.totalorder %s255, %s257
      %p261 = scmp.eq.s32.totalorder %s153, 0
      %p262 = por %p260, %p261
      %p263 = scmp.ne.s32.totalorder %s255, %s257
      %p264 = scmp.eq.s32.totalorder %s158, 1
      %p265 = por %p263, %p264
      %p266 = scmp.ne.s32.totalorder %s257, %s258
      %p267 = scmp.eq.s32.totalorder %s158, 0
      %p268 = por %p266, %p267
      %p269 = scmp.ne.s32.totalorder %s257, %s258
      %p270 = scmp.eq.s32.totalorder %s159, 1
      %p271 = por %p269, %p270
      %p273 = scmp.ne.s32.totalorder %s258, %s272
      %p274 = scmp.eq.s32.totalorder %s159, 0
      %p275 = por %p273, %p274
      %s277 = sadd.s32 %s276, 1
      %p280 = scmp.eq.s32.totalorder %s153, 1
      %p281 = scmp.ne.s32.totalorder %s276, %s278
      %p282 = scmp.eq.s32.totalorder %s153, 0
      %p283 = por %p281, %p282
      %p284 = scmp.ne.s32.totalorder %s276, %s278
      %p285 = scmp.eq.s32.totalorder %s158, 1
      %p286 = por %p284, %p285
      %p287 = scmp.ne.s32.totalorder %s278, %s279
      %p288 = scmp.eq.s32.totalorder %s158, 0
      %p289 = por %p287, %p288
      %p290 = scmp.ne.s32.totalorder %s278, %s279
      %p291 = scmp.eq.s32.totalorder %s159, 1
      %p292 = por %p290, %p291
      %p294 = scmp.ne.s32.totalorder %s279, %s293
      %p295 = scmp.eq.s32.totalorder %s159, 0
      %p296 = por %p294, %p295
      %s298 = sadd.s32 %s297, 1
      %p301 = scmp.eq.s32.totalorder %s153, 1
      %p302 = scmp.ne.s32.totalorder %s297, %s299
      %p303 = scmp.eq.s32.totalorder %s153, 0
      %p304 = por %p302, %p303
      %p305 = scmp.ne.s32.totalorder %s297, %s299
      %p306 = scmp.eq.s32.totalorder %s158, 1
      %p307 = por %p305, %p306
      %p308 = scmp.ne.s32.totalorder %s299, %s300
      %p309 = scmp.eq.s32.totalorder %s158, 0
      %p310 = por %p308, %p309
      %p311 = scmp.ne.s32.totalorder %s299, %s300
      %p312 = scmp.eq.s32.totalorder %s159, 1
      %p313 = por %p311, %p312
      %p315 = scmp.ne.s32.totalorder %s300, %s314
      %p316 = scmp.eq.s32.totalorder %s159, 0
      %p317 = por %p315, %p316
      %s319 = sadd.s32 %s318, 1
      %p322 = scmp.eq.s32.totalorder %s153, 1
      %p323 = scmp.ne.s32.totalorder %s318, %s320
      %p324 = scmp.eq.s32.totalorder %s153, 0
      %p325 = por %p323, %p324
      %p326 = scmp.ne.s32.totalorder %s318, %s320
      %p327 = scmp.eq.s32.totalorder %s158, 1
      %p328 = por %p326, %p327
      %p329 = scmp.ne.s32.totalorder %s320, %s321
      %p330 = scmp.eq.s32.totalorder %s158, 0
      %p331 = por %p329, %p330
      %p332 = scmp.ne.s32.totalorder %s320, %s321
      %p333 = scmp.eq.s32.totalorder %s159, 1
      %p334 = por %p332, %p333
      %p336 = scmp.ne.s32.totalorder %s321, %s335
      %p337 = scmp.eq.s32.totalorder %s159, 0
      %p338 = por %p336, %p337
      %s340 = sadd.s32 %s339, 1
      %p343 = scmp.eq.s32.totalorder %s153, 1
      %p344 = scmp.ne.s32.totalorder %s339, %s341
      %p345 = scmp.eq.s32.totalorder %s153, 0
      %p346 = por %p344, %p345
      %p347 = scmp.ne.s32.totalorder %s339, %s341
      %p348 = scmp.eq.s32.totalorder %s158, 1
      %p349 = por %p347, %p348
      %p350 = scmp.ne.s32.totalorder %s341, %s342
      %p351 = scmp.eq.s32.totalorder %s158, 0
      %p352 = por %p350, %p351
      %p353 = scmp.ne.s32.totalorder %s341, %s342
      %p354 = scmp.eq.s32.totalorder %s159, 1
      %p355 = por %p353, %p354
      %p357 = scmp.ne.s32.totalorder %s342, %s356
      %p358 = scmp.eq.s32.totalorder %s159, 0
      %p359 = por %p357, %p358
      %s361 = sadd.s32 %s360, 1
      %p364 = scmp.eq.s32.totalorder %s153, 1
      %p365 = scmp.ne.s32.totalorder %s360, %s362
      %p366 = scmp.eq.s32.totalorder %s153, 0
      %p367 = por %p365, %p366
      %p368 = scmp.ne.s32.totalorder %s360, %s362
      %p369 = scmp.eq.s32.totalorder %s158, 1
      %p370 = por %p368, %p369
      %p371 = scmp.ne.s32.totalorder %s362, %s363
      %p372 = scmp.eq.s32.totalorder %s158, 0
      %p373 = por %p371, %p372
      %p374 = scmp.ne.s32.totalorder %s362, %s363
      %p375 = scmp.eq.s32.totalorder %s159, 1
      %p376 = por %p374, %p375
      %p378 = scmp.ne.s32.totalorder %s363, %s377
      %p379 = scmp.eq.s32.totalorder %s159, 0
      %p380 = por %p378, %p379
      %s382 = sadd.s32 %s381, 1
      %p385 = scmp.eq.s32.totalorder %s153, 1
      %p386 = scmp.ne.s32.totalorder %s381, %s383
      %p387 = scmp.eq.s32.totalorder %s153, 0
      %p388 = por %p386, %p387
      %p389 = scmp.ne.s32.totalorder %s381, %s383
      %p390 = scmp.eq.s32.totalorder %s158, 1
      %p391 = por %p389, %p390
      %p392 = scmp.ne.s32.totalorder %s383, %s384
      %p393 = scmp.eq.s32.totalorder %s158, 0
      %p394 = por %p392, %p393
      %p395 = scmp.ne.s32.totalorder %s383, %s384
      %p396 = scmp.eq.s32.totalorder %s159, 1
      %p397 = por %p395, %p396
      %p399 = scmp.ne.s32.totalorder %s384, %s398
      %p400 = scmp.eq.s32.totalorder %s159, 0
      %p401 = por %p399, %p400
      %s403 = sadd.s32 %s402, 1
      %p406 = scmp.eq.s32.totalorder %s153, 1
      %p407 = scmp.ne.s32.totalorder %s402, %s404
      %p408 = scmp.eq.s32.totalorder %s153, 0
      %p409 = por %p407, %p408
      %p410 = scmp.ne.s32.totalorder %s402, %s404
      %p411 = scmp.eq.s32.totalorder %s158, 1
      %p412 = por %p410, %p411
      %p413 = scmp.ne.s32.totalorder %s404, %s405
      %p414 = scmp.eq.s32.totalorder %s158, 0
      %p415 = por %p413, %p414
      %p416 = scmp.ne.s32.totalorder %s404, %s405
      %p417 = scmp.eq.s32.totalorder %s159, 1
      %p418 = por %p416, %p417
      %p420 = scmp.ne.s32.totalorder %s405, %s419
      %p421 = scmp.eq.s32.totalorder %s159, 0
      %p422 = por %p420, %p421
      %s424 = sadd.s32 %s423, 1
      %p427 = scmp.eq.s32.totalorder %s153, 1
      %p428 = scmp.ne.s32.totalorder %s423, %s425
      %p429 = scmp.eq.s32.totalorder %s153, 0
      %p430 = por %p428, %p429
      %p431 = scmp.ne.s32.totalorder %s423, %s425
      %p432 = scmp.eq.s32.totalorder %s158, 1
      %p433 = por %p431, %p432
      %p434 = scmp.ne.s32.totalorder %s425, %s426
      %p435 = scmp.eq.s32.totalorder %s158, 0
      %p436 = por %p434, %p435
      %p437 = scmp.ne.s32.totalorder %s425, %s426
      %p438 = scmp.eq.s32.totalorder %s159, 1
      %p439 = por %p437, %p438
      %p441 = scmp.ne.s32.totalorder %s426, %s440
      %p442 = scmp.eq.s32.totalorder %s159, 0
      %p443 = por %p441, %p442
      %s445 = sadd.s32 %s444, 1
      %p448 = scmp.eq.s32.totalorder %s153, 1
      %p449 = scmp.ne.s32.totalorder %s444, %s446
      %p450 = scmp.eq.s32.totalorder %s153, 0
      %p451 = por %p449, %p450
      %p452 = scmp.ne.s32.totalorder %s444, %s446
      %p453 = scmp.eq.s32.totalorder %s158, 1
      %p454 = por %p452, %p453
      %p455 = scmp.ne.s32.totalorder %s446, %s447
      %p456 = scmp.eq.s32.totalorder %s158, 0
      %p457 = por %p455, %p456
      %p458 = scmp.ne.s32.totalorder %s446, %s447
      %p459 = scmp.eq.s32.totalorder %s159, 1
      %p460 = por %p458, %p459
      %p462 = scmp.ne.s32.totalorder %s447, %s461
      %p463 = scmp.eq.s32.totalorder %s159, 0
      %p464 = por %p462, %p463
      %s466 = sadd.s32 %s465, 1
      %p469 = scmp.eq.s32.totalorder %s153, 1
      %p470 = scmp.ne.s32.totalorder %s465, %s467
      %p471 = scmp.eq.s32.totalorder %s153, 0
      %p472 = por %p470, %p471
      %p473 = scmp.ne.s32.totalorder %s465, %s467
      %p474 = scmp.eq.s32.totalorder %s158, 1
      %p475 = por %p473, %p474
      %p476 = scmp.ne.s32.totalorder %s467, %s468
      %p477 = scmp.eq.s32.totalorder %s158, 0
      %p478 = por %p476, %p477
      %p479 = scmp.ne.s32.totalorder %s467, %s468
      %p480 = scmp.eq.s32.totalorder %s159, 1
      %p481 = por %p479, %p480
      %p483 = scmp.ne.s32.totalorder %s468, %s482
      %p484 = scmp.eq.s32.totalorder %s159, 0
      %p485 = por %p483, %p484
      %s487 = sadd.s32 %s486, 1
      %p490 = scmp.eq.s32.totalorder %s153, 1
      %p491 = scmp.ne.s32.totalorder %s486, %s488
      %p492 = scmp.eq.s32.totalorder %s153, 0
      %p493 = por %p491, %p492
      %p494 = scmp.ne.s32.totalorder %s486, %s488
      %p495 = scmp.eq.s32.totalorder %s158, 1
      %p496 = por %p494, %p495
      %p497 = scmp.ne.s32.totalorder %s488, %s489
      %p498 = scmp.eq.s32.totalorder %s158, 0
      %p499 = por %p497, %p498
      %p500 = scmp.ne.s32.totalorder %s488, %s489
      %p501 = scmp.eq.s32.totalorder %s159, 1
      %p502 = por %p500, %p501
      %p504 = scmp.ne.s32.totalorder %s489, %s503
      %p505 = scmp.eq.s32.totalorder %s159, 0
      %p506 = por %p504, %p505
      %s508 = sadd.s32 %s507, 1
      %p511 = scmp.eq.s32.totalorder %s153, 1
      %p512 = scmp.ne.s32.totalorder %s507, %s509
      %p513 = scmp.eq.s32.totalorder %s153, 0
      %p514 = por %p512, %p513
      %p515 = scmp.ne.s32.totalorder %s507, %s509
      %p516 = scmp.eq.s32.totalorder %s158, 1
      %p517 = por %p515, %p516
      %p518 = scmp.ne.s32.totalorder %s509, %s510
      %p519 = scmp.eq.s32.totalorder %s158, 0
      %p520 = por %p518, %p519
      %p521 = scmp.ne.s32.totalorder %s509, %s510
      %p522 = scmp.eq.s32.totalorder %s159, 1
      %p523 = por %p521, %p522
      %p525 = scmp.ne.s32.totalorder %s510, %s524
      %p526 = scmp.eq.s32.totalorder %s159, 0
      %p527 = por %p525, %p526
      %s529 = sadd.s32 %s528, 1
      %p532 = scmp.eq.s32.totalorder %s153, 1
      %p533 = scmp.ne.s32.totalorder %s528, %s530
      %p534 = scmp.eq.s32.totalorder %s153, 0
      %p535 = por %p533, %p534
      %p536 = scmp.ne.s32.totalorder %s528, %s530
      %p537 = scmp.eq.s32.totalorder %s158, 1
      %p538 = por %p536, %p537
      %p539 = scmp.ne.s32.totalorder %s530, %s531
      %p540 = scmp.eq.s32.totalorder %s158, 0
      %p541 = por %p539, %p540
      %p542 = scmp.ne.s32.totalorder %s530, %s531
      %p543 = scmp.eq.s32.totalorder %s159, 1
      %p544 = por %p542, %p543
      %p546 = scmp.ne.s32.totalorder %s531, %s545
      %p547 = scmp.eq.s32.totalorder %s159, 0
      %p548 = por %p546, %p547
      %s550 = sadd.s32 %s549, 1
      %p553 = scmp.eq.s32.totalorder %s153, 1
      %p554 = scmp.ne.s32.totalorder %s549, %s551
      %p555 = scmp.eq.s32.totalorder %s153, 0
      %p556 = por %p554, %p555
      %p557 = scmp.ne.s32.totalorder %s549, %s551
      %p558 = scmp.eq.s32.totalorder %s158, 1
      %p559 = por %p557, %p558
      %p560 = scmp.ne.s32.totalorder %s551, %s552
      %p561 = scmp.eq.s32.totalorder %s158, 0
      %p562 = por %p560, %p561
      %p563 = scmp.ne.s32.totalorder %s551, %s552
      %p564 = scmp.eq.s32.totalorder %s159, 1
      %p565 = por %p563, %p564
      %p567 = scmp.ne.s32.totalorder %s552, %s566
      %p568 = scmp.eq.s32.totalorder %s159, 0
      %p569 = por %p567, %p568
      %s571 = sadd.s32 %s570, 1
      %p574 = scmp.eq.s32.totalorder %s153, 1
      %p575 = scmp.ne.s32.totalorder %s570, %s572
      %p576 = scmp.eq.s32.totalorder %s153, 0
      %p577 = por %p575, %p576
      %p578 = scmp.ne.s32.totalorder %s570, %s572
      %p579 = scmp.eq.s32.totalorder %s158, 1
      %p580 = por %p578, %p579
      %p581 = scmp.ne.s32.totalorder %s572, %s573
      %p582 = scmp.eq.s32.totalorder %s158, 0
      %p583 = por %p581, %p582
      %p584 = scmp.ne.s32.totalorder %s572, %s573
      %p585 = scmp.eq.s32.totalorder %s159, 1
      %p586 = por %p584, %p585
      %p588 = scmp.ne.s32.totalorder %s573, %s587
      %p589 = scmp.eq.s32.totalorder %s159, 0
      %p590 = por %p588, %p589
      %s592 = sadd.s32 %s591, 1
      %p595 = scmp.eq.s32.totalorder %s153, 1
      %p596 = scmp.ne.s32.totalorder %s591, %s593
      %p597 = scmp.eq.s32.totalorder %s153, 0
      %p598 = por %p596, %p597
      %p599 = scmp.ne.s32.totalorder %s591, %s593
      %p600 = scmp.eq.s32.totalorder %s158, 1
      %p601 = por %p599, %p600
      %p602 = scmp.ne.s32.totalorder %s593, %s594
      %p603 = scmp.eq.s32.totalorder %s158, 0
      %p604 = por %p602, %p603
      %p605 = scmp.ne.s32.totalorder %s593, %s594
      %p606 = scmp.eq.s32.totalorder %s159, 1
      %p607 = por %p605, %p606
      %p609 = scmp.ne.s32.totalorder %s594, %s608
      %p610 = scmp.eq.s32.totalorder %s159, 0
      %p611 = por %p609, %p610
      %s613 = sadd.s32 %s612, 1
      %p616 = scmp.eq.s32.totalorder %s153, 1
      %p617 = scmp.ne.s32.totalorder %s612, %s614
      %p618 = scmp.eq.s32.totalorder %s153, 0
      %p619 = por %p617, %p618
      %p620 = scmp.ne.s32.totalorder %s612, %s614
      %p621 = scmp.eq.s32.totalorder %s158, 1
      %p622 = por %p620, %p621
      %p623 = scmp.ne.s32.totalorder %s614, %s615
      %p624 = scmp.eq.s32.totalorder %s158, 0
      %p625 = por %p623, %p624
      %p626 = scmp.ne.s32.totalorder %s614, %s615
      %p627 = scmp.eq.s32.totalorder %s159, 1
      %p628 = por %p626, %p627
      %p630 = scmp.ne.s32.totalorder %s615, %s629
      %p631 = scmp.eq.s32.totalorder %s159, 0
      %p632 = por %p630, %p631
      %s634 = sadd.s32 %s633, 1
      %p637 = scmp.eq.s32.totalorder %s153, 1
      %p638 = scmp.ne.s32.totalorder %s633, %s635
      %p639 = scmp.eq.s32.totalorder %s153, 0
      %p640 = por %p638, %p639
      %p641 = scmp.ne.s32.totalorder %s633, %s635
      %p642 = scmp.eq.s32.totalorder %s158, 1
      %p643 = por %p641, %p642
      %p644 = scmp.ne.s32.totalorder %s635, %s636
      %p645 = scmp.eq.s32.totalorder %s158, 0
      %p646 = por %p644, %p645
      %p647 = scmp.ne.s32.totalorder %s635, %s636
      %p648 = scmp.eq.s32.totalorder %s159, 1
      %p649 = por %p647, %p648
      %p651 = scmp.ne.s32.totalorder %s636, %s650
      %p652 = scmp.eq.s32.totalorder %s159, 0
      %p653 = por %p651, %p652
      %s655 = sadd.s32 %s654, 1
      %p658 = scmp.eq.s32.totalorder %s153, 1
      %p659 = scmp.ne.s32.totalorder %s654, %s656
      %p660 = scmp.eq.s32.totalorder %s153, 0
      %p661 = por %p659, %p660
      %p662 = scmp.ne.s32.totalorder %s654, %s656
      %p663 = scmp.eq.s32.totalorder %s158, 1
      %p664 = por %p662, %p663
      %p665 = scmp.ne.s32.totalorder %s656, %s657
      %p666 = scmp.eq.s32.totalorder %s158, 0
      %p667 = por %p665, %p666
      %p668 = scmp.ne.s32.totalorder %s656, %s657
      %p669 = scmp.eq.s32.totalorder %s159, 1
      %p670 = por %p668, %p669
      %p672 = scmp.ne.s32.totalorder %s657, %s671
      %p673 = scmp.eq.s32.totalorder %s159, 0
      %p674 = por %p672, %p673
      %s676 = sadd.s32 %s675, 1
      %p679 = scmp.eq.s32.totalorder %s153, 1
      %p680 = scmp.ne.s32.totalorder %s675, %s677
      %p681 = scmp.eq.s32.totalorder %s153, 0
      %p682 = por %p680, %p681
      %p683 = scmp.ne.s32.totalorder %s675, %s677
      %p684 = scmp.eq.s32.totalorder %s158, 1
      %p685 = por %p683, %p684
      %p686 = scmp.ne.s32.totalorder %s677, %s678
      %p687 = scmp.eq.s32.totalorder %s158, 0
      %p688 = por %p686, %p687
      %p689 = scmp.ne.s32.totalorder %s677, %s678
      %p690 = scmp.eq.s32.totalorder %s159, 1
      %p691 = por %p689, %p690
      %p693 = scmp.ne.s32.totalorder %s678, %s692
      %p694 = scmp.eq.s32.totalorder %s159, 0
      %p695 = por %p693, %p694
      %s697 = sadd.s32 %s696, 1
      %p700 = scmp.eq.s32.totalorder %s153, 1
      %p701 = scmp.ne.s32.totalorder %s696, %s698
      %p702 = scmp.eq.s32.totalorder %s153, 0
      %p703 = por %p701, %p702
      %p704 = scmp.ne.s32.totalorder %s696, %s698
      %p705 = scmp.eq.s32.totalorder %s158, 1
      %p706 = por %p704, %p705
      %p707 = scmp.ne.s32.totalorder %s698, %s699
      %p708 = scmp.eq.s32.totalorder %s158, 0
      %p709 = por %p707, %p708
      %p710 = scmp.ne.s32.totalorder %s698, %s699
      %p711 = scmp.eq.s32.totalorder %s159, 1
      %p712 = por %p710, %p711
      %p714 = scmp.ne.s32.totalorder %s699, %s713
      %p715 = scmp.eq.s32.totalorder %s159, 0
      %p716 = por %p714, %p715
      %s718 = sadd.s32 %s717, 1
      %p721 = scmp.eq.s32.totalorder %s153, 1
      %p722 = scmp.ne.s32.totalorder %s717, %s719
      %p723 = scmp.eq.s32.totalorder %s153, 0
      %p724 = por %p722, %p723
      %p725 = scmp.ne.s32.totalorder %s717, %s719
      %p726 = scmp.eq.s32.totalorder %s158, 1
      %p727 = por %p725, %p726
      %p728 = scmp.ne.s32.totalorder %s719, %s720
      %p729 = scmp.eq.s32.totalorder %s158, 0
      %p730 = por %p728, %p729
      %p731 = scmp.ne.s32.totalorder %s719, %s720
      %p732 = scmp.eq.s32.totalorder %s159, 1
      %p733 = por %p731, %p732
      %p735 = scmp.ne.s32.totalorder %s720, %s734
      %p736 = scmp.eq.s32.totalorder %s159, 0
      %p737 = por %p735, %p736
      %s739 = sadd.s32 %s738, 1
      %p742 = scmp.eq.s32.totalorder %s153, 1
      %p743 = scmp.ne.s32.totalorder %s738, %s740
      %p744 = scmp.eq.s32.totalorder %s153, 0
      %p745 = por %p743, %p744
      %p746 = scmp.ne.s32.totalorder %s738, %s740
      %p747 = scmp.eq.s32.totalorder %s158, 1
      %p748 = por %p746, %p747
      %p749 = scmp.ne.s32.totalorder %s740, %s741
      %p750 = scmp.eq.s32.totalorder %s158, 0
      %p751 = por %p749, %p750
      %p752 = scmp.ne.s32.totalorder %s740, %s741
      %p753 = scmp.eq.s32.totalorder %s159, 1
      %p754 = por %p752, %p753
      %p756 = scmp.ne.s32.totalorder %s741, %s755
      %p757 = scmp.eq.s32.totalorder %s159, 0
      %p758 = por %p756, %p757
      %s760 = sadd.s32 %s759, 1
      %p763 = scmp.eq.s32.totalorder %s153, 1
      %p764 = scmp.ne.s32.totalorder %s759, %s761
      %p765 = scmp.eq.s32.totalorder %s153, 0
      %p766 = por %p764, %p765
      %p767 = scmp.ne.s32.totalorder %s759, %s761
      %p768 = scmp.eq.s32.totalorder %s158, 1
      %p769 = por %p767, %p768
      %p770 = scmp.ne.s32.totalorder %s761, %s762
      %p771 = scmp.eq.s32.totalorder %s158, 0
      %p772 = por %p770, %p771
      %p773 = scmp.ne.s32.totalorder %s761, %s762
      %p774 = scmp.eq.s32.totalorder %s159, 1
      %p775 = por %p773, %p774
      %p777 = scmp.ne.s32.totalorder %s762, %s776
      %p778 = scmp.eq.s32.totalorder %s159, 0
      %p779 = por %p777, %p778
      %s781 = sadd.s32 %s780, 1
      %p784 = scmp.eq.s32.totalorder %s153, 1
      %p785 = scmp.ne.s32.totalorder %s780, %s782
      %p786 = scmp.eq.s32.totalorder %s153, 0
      %p787 = por %p785, %p786
      %p788 = scmp.ne.s32.totalorder %s780, %s782
      %p789 = scmp.eq.s32.totalorder %s158, 1
      %p790 = por %p788, %p789
      %p791 = scmp.ne.s32.totalorder %s782, %s783
      %p792 = scmp.eq.s32.totalorder %s158, 0
      %p793 = por %p791, %p792
      %p794 = scmp.ne.s32.totalorder %s782, %s783
      %p795 = scmp.eq.s32.totalorder %s159, 1
      %p796 = por %p794, %p795
      %p798 = scmp.ne.s32.totalorder %s783, %s797
      %p799 = scmp.eq.s32.totalorder %s159, 0
      %p800 = por %p798, %p799
      %s802 = sadd.s32 %s801, 1
      %p805 = scmp.eq.s32.totalorder %s153, 1
      %p806 = scmp.ne.s32.totalorder %s801, %s803
      %p807 = scmp.eq.s32.totalorder %s153, 0
      %p808 = por %p806, %p807
      %p809 = scmp.ne.s32.totalorder %s801, %s803
      %p810 = scmp.eq.s32.totalorder %s158, 1
      %p811 = por %p809, %p810
      %p812 = scmp.ne.s32.totalorder %s803, %s804
      %p813 = scmp.eq.s32.totalorder %s158, 0
      %p814 = por %p812, %p813
      %p815 = scmp.ne.s32.totalorder %s803, %s804
      %p816 = scmp.eq.s32.totalorder %s159, 1
      %p817 = por %p815, %p816
      %p819 = scmp.ne.s32.totalorder %s804, %s818
      %p820 = scmp.eq.s32.totalorder %s159, 0
      %p821 = por %p819, %p820
      %s823 = sadd.s32 %s822, 1
      %p826 = scmp.eq.s32.totalorder %s153, 1
      %p827 = scmp.ne.s32.totalorder %s822, %s824
      %p828 = scmp.eq.s32.totalorder %s153, 0
      %p829 = por %p827, %p828
      %p830 = scmp.ne.s32.totalorder %s822, %s824
      %p831 = scmp.eq.s32.totalorder %s158, 1
      %p832 = por %p830, %p831
      %p833 = scmp.ne.s32.totalorder %s824, %s825
      %p834 = scmp.eq.s32.totalorder %s158, 0
      %p835 = por %p833, %p834
      %p836 = scmp.ne.s32.totalorder %s824, %s825
      %p837 = scmp.eq.s32.totalorder %s159, 1
      %p838 = por %p836, %p837
      %p840 = scmp.ne.s32.totalorder %s825, %s839
      %p841 = scmp.eq.s32.totalorder %s159, 0
      %p842 = por %p840, %p841
      %s844 = sadd.s32 %s843, 1
      %p847 = scmp.eq.s32.totalorder %s153, 1
      %p848 = scmp.ne.s32.totalorder %s843, %s845
      %p849 = scmp.eq.s32.totalorder %s153, 0
      %p850 = por %p848, %p849
      %p851 = scmp.ne.s32.totalorder %s843, %s845
      %p852 = scmp.eq.s32.totalorder %s158, 1
      %p853 = por %p851, %p852
      %p854 = scmp.ne.s32.totalorder %s845, %s846
      %p855 = scmp.eq.s32.totalorder %s158, 0
      %p856 = por %p854, %p855
      %p857 = scmp.ne.s32.totalorder %s845, %s846
      %p858 = scmp.eq.s32.totalorder %s159, 1
      %p859 = por %p857, %p858
      %p861 = scmp.ne.s32.totalorder %s846, %s860
      %p862 = scmp.eq.s32.totalorder %s159, 0
      %p863 = por %p861, %p862
      %s865 = sadd.s32 %s864, 1
      %p868 = scmp.eq.s32.totalorder %s153, 1
      %p869 = scmp.ne.s32.totalorder %s864, %s866
      %p870 = scmp.eq.s32.totalorder %s153, 0
      %p871 = por %p869, %p870
      %p872 = scmp.ne.s32.totalorder %s864, %s866
      %p873 = scmp.eq.s32.totalorder %s158, 1
      %p874 = por %p872, %p873
      %p875 = scmp.ne.s32.totalorder %s866, %s867
      %p876 = scmp.eq.s32.totalorder %s158, 0
      %p877 = por %p875, %p876
      %p878 = scmp.ne.s32.totalorder %s866, %s867
      %p879 = scmp.eq.s32.totalorder %s159, 1
      %p880 = por %p878, %p879
      %p882 = scmp.ne.s32.totalorder %s867, %s881
      %p883 = scmp.eq.s32.totalorder %s159, 0
      %p884 = por %p882, %p883
      %s886 = sadd.s32 %s885, 1
      %p889 = scmp.eq.s32.totalorder %s153, 1
      %p890 = scmp.ne.s32.totalorder %s885, %s887
      %p891 = scmp.eq.s32.totalorder %s153, 0
      %p892 = por %p890, %p891
      %p893 = scmp.ne.s32.totalorder %s885, %s887
      %p894 = scmp.eq.s32.totalorder %s158, 1
      %p895 = por %p893, %p894
      %p896 = scmp.ne.s32.totalorder %s887, %s888
      %p897 = scmp.eq.s32.totalorder %s158, 0
      %p898 = por %p896, %p897
      %p899 = scmp.ne.s32.totalorder %s887, %s888
      %p900 = scmp.eq.s32.totalorder %s159, 1
      %p901 = por %p899, %p900
      %p903 = scmp.ne.s32.totalorder %s888, %s902
      %p904 = scmp.eq.s32.totalorder %s159, 0
      %p905 = por %p903, %p904
      %s907 = sadd.s32 %s906, 1
      %p910 = scmp.eq.s32.totalorder %s153, 1
      %p911 = scmp.ne.s32.totalorder %s906, %s908
      %p912 = scmp.eq.s32.totalorder %s153, 0
      %p913 = por %p911, %p912
      %p914 = scmp.ne.s32.totalorder %s906, %s908
      %p915 = scmp.eq.s32.totalorder %s158, 1
      %p916 = por %p914, %p915
      %p917 = scmp.ne.s32.totalorder %s908, %s909
      %p918 = scmp.eq.s32.totalorder %s158, 0
      %p919 = por %p917, %p918
      %p920 = scmp.ne.s32.totalorder %s908, %s909
      %p921 = scmp.eq.s32.totalorder %s159, 1
      %p922 = por %p920, %p921
      %p924 = scmp.ne.s32.totalorder %s909, %s923
      %p925 = scmp.eq.s32.totalorder %s159, 0
      %p926 = por %p924, %p925
      %s928 = sadd.s32 %s927, 1
      %p931 = scmp.eq.s32.totalorder %s153, 1
      %p932 = scmp.ne.s32.totalorder %s927, %s929
      %p933 = scmp.eq.s32.totalorder %s153, 0
      %p934 = por %p932, %p933
      %p935 = scmp.ne.s32.totalorder %s927, %s929
      %p936 = scmp.eq.s32.totalorder %s158, 1
      %p937 = por %p935, %p936
      %p938 = scmp.ne.s32.totalorder %s929, %s930
      %p939 = scmp.eq.s32.totalorder %s158, 0
      %p940 = por %p938, %p939
      %p941 = scmp.ne.s32.totalorder %s929, %s930
      %p942 = scmp.eq.s32.totalorder %s159, 1
      %p943 = por %p941, %p942
      %p945 = scmp.ne.s32.totalorder %s930, %s944
      %p946 = scmp.eq.s32.totalorder %s159, 0
      %p947 = por %p945, %p946
      %s949 = sadd.s32 %s948, 1
      %p952 = scmp.eq.s32.totalorder %s153, 1
      %p953 = scmp.ne.s32.totalorder %s948, %s950
      %p954 = scmp.eq.s32.totalorder %s153, 0
      %p955 = por %p953, %p954
      %p956 = scmp.ne.s32.totalorder %s948, %s950
      %p957 = scmp.eq.s32.totalorder %s158, 1
      %p958 = por %p956, %p957
      %p959 = scmp.ne.s32.totalorder %s950, %s951
      %p960 = scmp.eq.s32.totalorder %s158, 0
      %p961 = por %p959, %p960
      %p962 = scmp.ne.s32.totalorder %s950, %s951
      %p963 = scmp.eq.s32.totalorder %s159, 1
      %p964 = por %p962, %p963
      %p966 = scmp.ne.s32.totalorder %s951, %s965
      %p967 = scmp.eq.s32.totalorder %s159, 0
      %p968 = por %p966, %p967
      %s970 = sadd.s32 %s969, 1
      %p973 = scmp.eq.s32.totalorder %s153, 1
      %p974 = scmp.ne.s32.totalorder %s969, %s971
      %p975 = scmp.eq.s32.totalorder %s153, 0
      %p976 = por %p974, %p975
      %p977 = scmp.ne.s32.totalorder %s969, %s971
      %p978 = scmp.eq.s32.totalorder %s158, 1
      %p979 = por %p977, %p978
      %p980 = scmp.ne.s32.totalorder %s971, %s972
      %p981 = scmp.eq.s32.totalorder %s158, 0
      %p982 = por %p980, %p981
      %p983 = scmp.ne.s32.totalorder %s971, %s972
      %p984 = scmp.eq.s32.totalorder %s159, 1
      %p985 = por %p983, %p984
      %p987 = scmp.ne.s32.totalorder %s972, %s986
      %p988 = scmp.eq.s32.totalorder %s159, 0
      %p989 = por %p987, %p988
      %s991 = sadd.s32 %s990, 1
      %p994 = scmp.eq.s32.totalorder %s153, 1
      %p995 = scmp.ne.s32.totalorder %s990, %s992
      %p996 = scmp.eq.s32.totalorder %s153, 0
      %p997 = por %p995, %p996
      %p998 = scmp.ne.s32.totalorder %s990, %s992
      %p999 = scmp.eq.s32.totalorder %s158, 1
      %p1000 = por %p998, %p999
      %p1001 = scmp.ne.s32.totalorder %s992, %s993
      %p1002 = scmp.eq.s32.totalorder %s158, 0
      %p1003 = por %p1001, %p1002
      %p1004 = scmp.ne.s32.totalorder %s992, %s993
      %p1005 = scmp.eq.s32.totalorder %s159, 1
      %p1006 = por %p1004, %p1005
      %p1008 = scmp.ne.s32.totalorder %s993, %s1007
      %p1009 = scmp.eq.s32.totalorder %s159, 0
      %p1010 = por %p1008, %p1009
      %s1012 = sadd.s32 %s1011, 1
      %p1015 = scmp.eq.s32.totalorder %s153, 1
      %p1016 = scmp.ne.s32.totalorder %s1011, %s1013
      %p1017 = scmp.eq.s32.totalorder %s153, 0
      %p1018 = por %p1016, %p1017
      %p1019 = scmp.ne.s32.totalorder %s1011, %s1013
      %p1020 = scmp.eq.s32.totalorder %s158, 1
      %p1021 = por %p1019, %p1020
      %p1022 = scmp.ne.s32.totalorder %s1013, %s1014
      %p1023 = scmp.eq.s32.totalorder %s158, 0
      %p1024 = por %p1022, %p1023
      %p1025 = scmp.ne.s32.totalorder %s1013, %s1014
      %p1026 = scmp.eq.s32.totalorder %s159, 1
      %p1027 = por %p1025, %p1026
      %p1029 = scmp.ne.s32.totalorder %s1014, %s1028
      %p1030 = scmp.eq.s32.totalorder %s159, 0
      %p1031 = por %p1029, %p1030
      %s1033 = sadd.s32 %s1032, 1
      %p1036 = scmp.eq.s32.totalorder %s153, 1
      %p1037 = scmp.ne.s32.totalorder %s1032, %s1034
      %p1038 = scmp.eq.s32.totalorder %s153, 0
      %p1039 = por %p1037, %p1038
      %p1040 = scmp.ne.s32.totalorder %s1032, %s1034
      %p1041 = scmp.eq.s32.totalorder %s158, 1
      %p1042 = por %p1040, %p1041
      %p1043 = scmp.ne.s32.totalorder %s1034, %s1035
      %p1044 = scmp.eq.s32.totalorder %s158, 0
      %p1045 = por %p1043, %p1044
      %p1046 = scmp.ne.s32.totalorder %s1034, %s1035
      %p1047 = scmp.eq.s32.totalorder %s159, 1
      %p1048 = por %p1046, %p1047
      %p1050 = scmp.ne.s32.totalorder %s1035, %s1049
      %p1051 = scmp.eq.s32.totalorder %s159, 0
      %p1052 = por %p1050, %p1051
      %s1054 = sadd.s32 %s1053, 1
      %p1057 = scmp.eq.s32.totalorder %s153, 1
      %p1058 = scmp.ne.s32.totalorder %s1053, %s1055
      %p1059 = scmp.eq.s32.totalorder %s153, 0
      %p1060 = por %p1058, %p1059
      %p1061 = scmp.ne.s32.totalorder %s1053, %s1055
      %p1062 = scmp.eq.s32.totalorder %s158, 1
      %p1063 = por %p1061, %p1062
      %p1064 = scmp.ne.s32.totalorder %s1055, %s1056
      %p1065 = scmp.eq.s32.totalorder %s158, 0
      %p1066 = por %p1064, %p1065
      %p1067 = scmp.ne.s32.totalorder %s1055, %s1056
      %p1068 = scmp.eq.s32.totalorder %s159, 1
      %p1069 = por %p1067, %p1068
      %p1071 = scmp.ne.s32.totalorder %s1056, %s1070
      %p1072 = scmp.eq.s32.totalorder %s159, 0
      %p1073 = por %p1071, %p1072
      %s1075 = sadd.s32 %s1074, 1
      %p1078 = scmp.eq.s32.totalorder %s153, 1
      %p1079 = scmp.ne.s32.totalorder %s1074, %s1076
      %p1080 = scmp.eq.s32.totalorder %s153, 0
      %p1081 = por %p1079, %p1080
      %p1082 = scmp.ne.s32.totalorder %s1074, %s1076
      %p1083 = scmp.eq.s32.totalorder %s158, 1
      %p1084 = por %p1082, %p1083
      %p1085 = scmp.ne.s32.totalorder %s1076, %s1077
      %p1086 = scmp.eq.s32.totalorder %s158, 0
      %p1087 = por %p1085, %p1086
      %p1088 = scmp.ne.s32.totalorder %s1076, %s1077
      %p1089 = scmp.eq.s32.totalorder %s159, 1
      %p1090 = por %p1088, %p1089
      %p1092 = scmp.ne.s32.totalorder %s1077, %s1091
      %p1093 = scmp.eq.s32.totalorder %s159, 0
      %p1094 = por %p1092, %p1093
      %s1096 = sadd.s32 %s1095, 1
      %p1099 = scmp.eq.s32.totalorder %s153, 1
      %p1100 = scmp.ne.s32.totalorder %s1095, %s1097
      %p1101 = scmp.eq.s32.totalorder %s153, 0
      %p1102 = por %p1100, %p1101
      %p1103 = scmp.ne.s32.totalorder %s1095, %s1097
      %p1104 = scmp.eq.s32.totalorder %s158, 1
      %p1105 = por %p1103, %p1104
      %p1106 = scmp.ne.s32.totalorder %s1097, %s1098
      %p1107 = scmp.eq.s32.totalorder %s158, 0
      %p1108 = por %p1106, %p1107
      %p1109 = scmp.ne.s32.totalorder %s1097, %s1098
      %p1110 = scmp.eq.s32.totalorder %s159, 1
      %p1111 = por %p1109, %p1110
      %p1113 = scmp.ne.s32.totalorder %s1098, %s1112
      %p1114 = scmp.eq.s32.totalorder %s159, 0
      %p1115 = por %p1113, %p1114
      %s1117 = sadd.s32 %s1116, 1
      %p1120 = scmp.eq.s32.totalorder %s153, 1
      %p1121 = scmp.ne.s32.totalorder %s1116, %s1118
      %p1122 = scmp.eq.s32.totalorder %s153, 0
      %p1123 = por %p1121, %p1122
      %p1124 = scmp.ne.s32.totalorder %s1116, %s1118
      %p1125 = scmp.eq.s32.totalorder %s158, 1
      %p1126 = por %p1124, %p1125
      %p1127 = scmp.ne.s32.totalorder %s1118, %s1119
      %p1128 = scmp.eq.s32.totalorder %s158, 0
      %p1129 = por %p1127, %p1128
      %p1130 = scmp.ne.s32.totalorder %s1118, %s1119
      %p1131 = scmp.eq.s32.totalorder %s159, 1
      %p1132 = por %p1130, %p1131
      %p1134 = scmp.ne.s32.totalorder %s1119, %s1133
      %p1135 = scmp.eq.s32.totalorder %s159, 0
      %p1136 = por %p1134, %p1135
      %s1138 = sadd.s32 %s1137, 1
      %p1141 = scmp.eq.s32.totalorder %s153, 1
      %p1142 = scmp.ne.s32.totalorder %s1137, %s1139
      %p1143 = scmp.eq.s32.totalorder %s153, 0
      %p1144 = por %p1142, %p1143
      %p1145 = scmp.ne.s32.totalorder %s1137, %s1139
      %p1146 = scmp.eq.s32.totalorder %s158, 1
      %p1147 = por %p1145, %p1146
      %p1148 = scmp.ne.s32.totalorder %s1139, %s1140
      %p1149 = scmp.eq.s32.totalorder %s158, 0
      %p1150 = por %p1148, %p1149
      %p1151 = scmp.ne.s32.totalorder %s1139, %s1140
      %p1152 = scmp.eq.s32.totalorder %s159, 1
      %p1153 = por %p1151, %p1152
      %p1155 = scmp.ne.s32.totalorder %s1140, %s1154
      %p1156 = scmp.eq.s32.totalorder %s159, 0
      %p1157 = por %p1155, %p1156
      %s1159 = sadd.s32 %s1158, 1
      %p1162 = scmp.eq.s32.totalorder %s153, 1
      %p1163 = scmp.ne.s32.totalorder %s1158, %s1160
      %p1164 = scmp.eq.s32.totalorder %s153, 0
      %p1165 = por %p1163, %p1164
      %p1166 = scmp.ne.s32.totalorder %s1158, %s1160
      %p1167 = scmp.eq.s32.totalorder %s158, 1
      %p1168 = por %p1166, %p1167
      %p1169 = scmp.ne.s32.totalorder %s1160, %s1161
      %p1170 = scmp.eq.s32.totalorder %s158, 0
      %p1171 = por %p1169, %p1170
      %p1172 = scmp.ne.s32.totalorder %s1160, %s1161
      %p1173 = scmp.eq.s32.totalorder %s159, 1
      %p1174 = por %p1172, %p1173
      %p1176 = scmp.ne.s32.totalorder %s1161, %s1175
      %p1177 = scmp.eq.s32.totalorder %s159, 0
      %p1178 = por %p1176, %p1177
      %s1180 = sadd.s32 %s1179, 1
      %p1183 = scmp.eq.s32.totalorder %s153, 1
      %p1184 = scmp.ne.s32.totalorder %s1179, %s1181
      %p1185 = scmp.eq.s32.totalorder %s153, 0
      %p1186 = por %p1184, %p1185
      %p1187 = scmp.ne.s32.totalorder %s1179, %s1181
      %p1188 = scmp.eq.s32.totalorder %s158, 1
      %p1189 = por %p1187, %p1188
      %p1190 = scmp.ne.s32.totalorder %s1181, %s1182
      %p1191 = scmp.eq.s32.totalorder %s158, 0
      %p1192 = por %p1190, %p1191
      %p1193 = scmp.ne.s32.totalorder %s1181, %s1182
      %p1194 = scmp.eq.s32.totalorder %s159, 1
      %p1195 = por %p1193, %p1194
      %p1197 = scmp.ne.s32.totalorder %s1182, %s1196
      %p1198 = scmp.eq.s32.totalorder %s159, 0
      %p1199 = por %p1197, %p1198
      %s1201 = sadd.s32 %s1200, 1
      %p1204 = scmp.eq.s32.totalorder %s153, 1
      %p1205 = scmp.ne.s32.totalorder %s1200, %s1202
      %p1206 = scmp.eq.s32.totalorder %s153, 0
      %p1207 = por %p1205, %p1206
      %p1208 = scmp.ne.s32.totalorder %s1200, %s1202
      %p1209 = scmp.eq.s32.totalorder %s158, 1
      %p1210 = por %p1208, %p1209
      %p1211 = scmp.ne.s32.totalorder %s1202, %s1203
      %p1212 = scmp.eq.s32.totalorder %s158, 0
      %p1213 = por %p1211, %p1212
      %p1214 = scmp.ne.s32.totalorder %s1202, %s1203
      %p1215 = scmp.eq.s32.totalorder %s159, 1
      %p1216 = por %p1214, %p1215
      %p1218 = scmp.ne.s32.totalorder %s1203, %s1217
      %p1219 = scmp.eq.s32.totalorder %s159, 0
      %p1220 = por %p1218, %p1219
      %s1222 = sadd.s32 %s1221, 1
      %p1225 = scmp.eq.s32.totalorder %s153, 1
      %p1226 = scmp.ne.s32.totalorder %s1221, %s1223
      %p1227 = scmp.eq.s32.totalorder %s153, 0
      %p1228 = por %p1226, %p1227
      %p1229 = scmp.ne.s32.totalorder %s1221, %s1223
      %p1230 = scmp.eq.s32.totalorder %s158, 1
      %p1231 = por %p1229, %p1230
      %p1232 = scmp.ne.s32.totalorder %s1223, %s1224
      %p1233 = scmp.eq.s32.totalorder %s158, 0
      %p1234 = por %p1232, %p1233
      %p1235 = scmp.ne.s32.totalorder %s1223, %s1224
      %p1236 = scmp.eq.s32.totalorder %s159, 1
      %p1237 = por %p1235, %p1236
      %p1239 = scmp.ne.s32.totalorder %s1224, %s1238
      %p1240 = scmp.eq.s32.totalorder %s159, 0
      %p1241 = por %p1239, %p1240
      %s1243 = sadd.s32 %s1242, 1
      %p1246 = scmp.eq.s32.totalorder %s153, 1
      %p1247 = scmp.ne.s32.totalorder %s1242, %s1244
      %p1248 = scmp.eq.s32.totalorder %s153, 0
      %p1249 = por %p1247, %p1248
      %p1250 = scmp.ne.s32.totalorder %s1242, %s1244
      %p1251 = scmp.eq.s32.totalorder %s158, 1
      %p1252 = por %p1250, %p1251
      %p1253 = scmp.ne.s32.totalorder %s1244, %s1245
      %p1254 = scmp.eq.s32.totalorder %s158, 0
      %p1255 = por %p1253, %p1254
      %p1256 = scmp.ne.s32.totalorder %s1244, %s1245
      %p1257 = scmp.eq.s32.totalorder %s159, 1
      %p1258 = por %p1256, %p1257
      %p1260 = scmp.ne.s32.totalorder %s1245, %s1259
      %p1261 = scmp.eq.s32.totalorder %s159, 0
      %p1262 = por %p1260, %p1261
      %s1264 = sadd.s32 %s1263, 1
      %p1267 = scmp.eq.s32.totalorder %s153, 1
      %p1268 = scmp.ne.s32.totalorder %s1263, %s1265
      %p1269 = scmp.eq.s32.totalorder %s153, 0
      %p1270 = por %p1268, %p1269
      %p1271 = scmp.ne.s32.totalorder %s1263, %s1265
      %p1272 = scmp.eq.s32.totalorder %s158, 1
      %p1273 = por %p1271, %p1272
      %p1274 = scmp.ne.s32.totalorder %s1265, %s1266
      %p1275 = scmp.eq.s32.totalorder %s158, 0
      %p1276 = por %p1274, %p1275
      %p1277 = scmp.ne.s32.totalorder %s1265, %s1266
      %p1278 = scmp.eq.s32.totalorder %s159, 1
      %p1279 = por %p1277, %p1278
      %p1281 = scmp.ne.s32.totalorder %s1266, %s1280
      %p1282 = scmp.eq.s32.totalorder %s159, 0
      %p1283 = por %p1281, %p1282
      %s1285 = sadd.s32 %s1284, 1
      %p1288 = scmp.eq.s32.totalorder %s153, 1
      %p1289 = scmp.ne.s32.totalorder %s1284, %s1286
      %p1290 = scmp.eq.s32.totalorder %s153, 0
      %p1291 = por %p1289, %p1290
      %p1292 = scmp.ne.s32.totalorder %s1284, %s1286
      %p1293 = scmp.eq.s32.totalorder %s158, 1
      %p1294 = por %p1292, %p1293
      %p1295 = scmp.ne.s32.totalorder %s1286, %s1287
      %p1296 = scmp.eq.s32.totalorder %s158, 0
      %p1297 = por %p1295, %p1296
      %p1298 = scmp.ne.s32.totalorder %s1286, %s1287
      %p1299 = scmp.eq.s32.totalorder %s159, 1
      %p1300 = por %p1298, %p1299
      %p1302 = scmp.ne.s32.totalorder %s1287, %s1301
      %p1303 = scmp.eq.s32.totalorder %s159, 0
      %p1304 = por %p1302, %p1303
      %s1306 = sadd.s32 %s1305, 1
      %p1309 = scmp.eq.s32.totalorder %s153, 1
      %p1310 = scmp.ne.s32.totalorder %s1305, %s1307
      %p1311 = scmp.eq.s32.totalorder %s153, 0
      %p1312 = por %p1310, %p1311
      %p1313 = scmp.ne.s32.totalorder %s1305, %s1307
      %p1314 = scmp.eq.s32.totalorder %s158, 1
      %p1315 = por %p1313, %p1314
      %p1316 = scmp.ne.s32.totalorder %s1307, %s1308
      %p1317 = scmp.eq.s32.totalorder %s158, 0
      %p1318 = por %p1316, %p1317
      %p1319 = scmp.ne.s32.totalorder %s1307, %s1308
      %p1320 = scmp.eq.s32.totalorder %s159, 1
      %p1321 = por %p1319, %p1320
      %p1323 = scmp.ne.s32.totalorder %s1308, %s1322
      %p1324 = scmp.eq.s32.totalorder %s159, 0
      %p1325 = por %p1323, %p1324
      %s1327 = sadd.s32 %s1326, 1
      %p1330 = scmp.eq.s32.totalorder %s153, 1
      %p1331 = scmp.ne.s32.totalorder %s1326, %s1328
      %p1332 = scmp.eq.s32.totalorder %s153, 0
      %p1333 = por %p1331, %p1332
      %p1334 = scmp.ne.s32.totalorder %s1326, %s1328
      %p1335 = scmp.eq.s32.totalorder %s158, 1
      %p1336 = por %p1334, %p1335
      %p1337 = scmp.ne.s32.totalorder %s1328, %s1329
      %p1338 = scmp.eq.s32.totalorder %s158, 0
      %p1339 = por %p1337, %p1338
      %p1340 = scmp.ne.s32.totalorder %s1328, %s1329
      %p1341 = scmp.eq.s32.totalorder %s159, 1
      %p1342 = por %p1340, %p1341
      %p1344 = scmp.ne.s32.totalorder %s1329, %s1343
      %p1345 = scmp.eq.s32.totalorder %s159, 0
      %p1346 = por %p1344, %p1345
      %s1348 = sadd.s32 %s1347, 1
      %p1351 = scmp.eq.s32.totalorder %s153, 1
      %p1352 = scmp.ne.s32.totalorder %s1347, %s1349
      %p1353 = scmp.eq.s32.totalorder %s153, 0
      %p1354 = por %p1352, %p1353
      %p1355 = scmp.ne.s32.totalorder %s1347, %s1349
      %p1356 = scmp.eq.s32.totalorder %s158, 1
      %p1357 = por %p1355, %p1356
      %p1358 = scmp.ne.s32.totalorder %s1349, %s1350
      %p1359 = scmp.eq.s32.totalorder %s158, 0
      %p1360 = por %p1358, %p1359
      %p1361 = scmp.ne.s32.totalorder %s1349, %s1350
      %p1362 = scmp.eq.s32.totalorder %s159, 1
      %p1363 = por %p1361, %p1362
      %p1365 = scmp.ne.s32.totalorder %s1350, %s1364
      %p1366 = scmp.eq.s32.totalorder %s159, 0
      %p1367 = por %p1365, %p1366
      %s1369 = sadd.s32 %s1368, 1
      %p1372 = scmp.eq.s32.totalorder %s153, 1
      %p1373 = scmp.ne.s32.totalorder %s1368, %s1370
      %p1374 = scmp.eq.s32.totalorder %s153, 0
      %p1375 = por %p1373, %p1374
      %p1376 = scmp.ne.s32.totalorder %s1368, %s1370
      %p1377 = scmp.eq.s32.totalorder %s158, 1
      %p1378 = por %p1376, %p1377
      %p1379 = scmp.ne.s32.totalorder %s1370, %s1371
      %p1380 = scmp.eq.s32.totalorder %s158, 0
      %p1381 = por %p1379, %p1380
      %p1382 = scmp.ne.s32.totalorder %s1370, %s1371
      %p1383 = scmp.eq.s32.totalorder %s159, 1
      %p1384 = por %p1382, %p1383
      %p1386 = scmp.ne.s32.totalorder %s1371, %s1385
      %p1387 = scmp.eq.s32.totalorder %s159, 0
      %p1388 = por %p1386, %p1387
      %s1390 = sadd.s32 %s1389, 1
      %p1393 = scmp.eq.s32.totalorder %s153, 1
      %p1394 = scmp.ne.s32.totalorder %s1389, %s1391
      %p1395 = scmp.eq.s32.totalorder %s153, 0
      %p1396 = por %p1394, %p1395
      %p1397 = scmp.ne.s32.totalorder %s1389, %s1391
      %p1398 = scmp.eq.s32.totalorder %s158, 1
      %p1399 = por %p1397, %p1398
      %p1400 = scmp.ne.s32.totalorder %s1391, %s1392
      %p1401 = scmp.eq.s32.totalorder %s158, 0
      %p1402 = por %p1400, %p1401
      %p1403 = scmp.ne.s32.totalorder %s1391, %s1392
      %p1404 = scmp.eq.s32.totalorder %s159, 1
      %p1405 = por %p1403, %p1404
      %p1407 = scmp.ne.s32.totalorder %s1392, %s1406
      %p1408 = scmp.eq.s32.totalorder %s159, 0
      %p1409 = por %p1407, %p1408
      %s1411 = sadd.s32 %s1410, 1
      %p1414 = scmp.eq.s32.totalorder %s153, 1
      %p1415 = scmp.ne.s32.totalorder %s1410, %s1412
      %p1416 = scmp.eq.s32.totalorder %s153, 0
      %p1417 = por %p1415, %p1416
      %p1418 = scmp.ne.s32.totalorder %s1410, %s1412
      %p1419 = scmp.eq.s32.totalorder %s158, 1
      %p1420 = por %p1418, %p1419
      %p1421 = scmp.ne.s32.totalorder %s1412, %s1413
      %p1422 = scmp.eq.s32.totalorder %s158, 0
      %p1423 = por %p1421, %p1422
      %p1424 = scmp.ne.s32.totalorder %s1412, %s1413
      %p1425 = scmp.eq.s32.totalorder %s159, 1
      %p1426 = por %p1424, %p1425
      %p1428 = scmp.ne.s32.totalorder %s1413, %s1427
      %p1429 = scmp.eq.s32.totalorder %s159, 0
      %p1430 = por %p1428, %p1429
      %s1432 = sadd.s32 %s1431, 1
      %p1435 = scmp.eq.s32.totalorder %s153, 1
      %p1436 = scmp.ne.s32.totalorder %s1431, %s1433
      %p1437 = scmp.eq.s32.totalorder %s153, 0
      %p1438 = por %p1436, %p1437
      %p1439 = scmp.ne.s32.totalorder %s1431, %s1433
      %p1440 = scmp.eq.s32.totalorder %s158, 1
      %p1441 = por %p1439, %p1440
      %p1442 = scmp.ne.s32.totalorder %s1433, %s1434
      %p1443 = scmp.eq.s32.totalorder %s158, 0
      %p1444 = por %p1442, %p1443
      %p1445 = scmp.ne.s32.totalorder %s1433, %s1434
      %p1446 = scmp.eq.s32.totalorder %s159, 1
      %p1447 = por %p1445, %p1446
      %p1449 = scmp.ne.s32.totalorder %s1434, %s1448
      %p1450 = scmp.eq.s32.totalorder %s159, 0
      %p1451 = por %p1449, %p1450
      %s1452 = ssub.s32 %s153, %s160
      %p1453 = scmp.eq.s32.totalorder %s1452, 0
      %s1455 = sadd.s32 %s1454, 1
      %s1456 = scalar_select %p1453, %s1454, %s1455
      %p1459 = pneg %p1453
      %p1460 = scmp.eq.s32.totalorder %s153, 1
      %p1461 = por %p1459, %p1460
      %p1462 = scmp.ne.s32.totalorder %s1454, %s1457
      %p1463 = scmp.eq.s32.totalorder %s153, 0
      %p1464 = por %p1462, %p1463
      %p1465 = scmp.ne.s32.totalorder %s1454, %s1457
      %p1466 = scmp.eq.s32.totalorder %s158, 1
      %p1467 = por %p1465, %p1466
      %p1468 = scmp.ne.s32.totalorder %s1457, %s1458
      %p1469 = scmp.eq.s32.totalorder %s158, 0
      %p1470 = por %p1468, %p1469
      %p1471 = scmp.ne.s32.totalorder %s1457, %s1458
      %p1472 = scmp.eq.s32.totalorder %s159, 1
      %p1473 = por %p1471, %p1472
      %p1475 = scmp.ne.s32.totalorder %s1458, %s1474
      %p1476 = scmp.eq.s32.totalorder %s159, 0
      %p1477 = por %p1475, %p1476
      %p1478 = scmp.le.s32.totalorder 1, %s153
      %p1479 = scmp.lt.s32.totalorder %s153, 3
      %p1480 = pnand %p1478, %p1479
      %p1481 = pneg %p1480
      // Predicated region
      $region9: #{tpu_custom_call.1} parent=5 // pred_check
        _
      $region10: #{tpu_custom_call.1} parent=5 // pred_check_branch
        %1483 = sbr.rel (%p1480) target = $region12
      $region11: #{tpu_custom_call.1} parent=5 // pred_region
        %s1484 = ssub.s32 %s153, 1
        // Predicated region
        $region13: #{tpu_custom_call.1} parent=11 // pred_check
          %p1485 = pneg %p226
        $region14: #{tpu_custom_call.1} parent=11 // pred_check_branch
          %1487 = sbr.rel (%p1485) target = $region16
        $region15: #{tpu_custom_call.1} parent=11 // pred_region
          %s1489 = ssub.s32 16, 16
          %1490 = vsyncadd [#allocation5], %s1489
          %s1492 = sshll.u32 [#allocation4], 4
          %s1493 = int_to_ptr.vmem [resolvable:$true] %s1492
          %1495 = dma.hbm_to_vmem [thread:$0]  %s5, 16, %s1493, [#allocation5]
        $region16: #{tpu_custom_call.1} parent=11 // pred_fallthru
          _
        // Predicated region
        $region17: #{tpu_custom_call.1} parent=11 // pred_check
          %p1496 = pneg %p247
        $region18: #{tpu_custom_call.1} parent=11 // pred_check_branch
          %1498 = sbr.rel (%p1496) target = $region20
        $region19: #{tpu_custom_call.1} parent=11 // pred_region
          %s1500 = ssub.s32 16, 16
          %1501 = vsyncadd [#allocation8], %s1500
          %s1503 = sshll.u32 [#allocation7], 4
          %s1504 = int_to_ptr.vmem [resolvable:$true] %s1503
          %1506 = dma.hbm_to_vmem [thread:$0]  %s7, 16, %s1504, [#allocation8]
        $region20: #{tpu_custom_call.1} parent=11 // pred_fallthru
          _
        // Predicated region
        $region21: #{tpu_custom_call.1} parent=11 // pred_check
          %p1507 = pneg %p268
        $region22: #{tpu_custom_call.1} parent=11 // pred_check_branch
          %1509 = sbr.rel (%p1507) target = $region24
        $region23: #{tpu_custom_call.1} parent=11 // pred_region
          _
        $region24: #{tpu_custom_call.1} parent=11 // pred_fallthru
          _
        // Predicated region
        $region25: #{tpu_custom_call.1} parent=11 // pred_check
          %p1510 = pneg %p289
        $region26: #{tpu_custom_call.1} parent=11 // pred_check_branch
          %1512 = sbr.rel (%p1510) target = $region28
        $region27: #{tpu_custom_call.1} parent=11 // pred_region
          %s1514 = ssub.s32 16, 16
          %1515 = vsyncadd [#allocation8], %s1514
          %s1517 = sshll.u32 [#allocation9], 4
          %s1518 = int_to_ptr.vmem [resolvable:$true] %s1517
          %1520 = dma.hbm_to_vmem [thread:$0]  %s11, 16, %s1518, [#allocation8]
        $region28: #{tpu_custom_call.1} parent=11 // pred_fallthru
          _
        // Predicated region
        $region29: #{tpu_custom_call.1} parent=11 // pred_check
          %p1521 = pneg %p310
        $region30: #{tpu_custom_call.1} parent=11 // pred_check_branch
          %1523 = sbr.rel (%p1521) target = $region32
        $region31: #{tpu_custom_call.1} parent=11 // pred_region
          %s1525 = ssub.s32 16, 16
          %1526 = vsyncadd [#allocation11], %s1525
          %s1528 = sshll.u32 [#allocation10], 4
          %s1529 = int_to_ptr.vmem [resolvable:$true] %s1528
          %1531 = dma.hbm_to_vmem [thread:$0]  %s13, 16, %s1529, [#allocation11]
        $region32: #{tpu_custom_call.1} parent=11 // pred_fallthru
          _
        // Predicated region
        $region33: #{tpu_custom_call.1} parent=11 // pred_check
          %p1532 = pneg %p331
        $region34: #{tpu_custom_call.1} parent=11 // pred_check_branch
          %1534 = sbr.rel (%p1532) target = $region36
        $region35: #{tpu_custom_call.1} parent=11 // pred_region
          _
        $region36: #{tpu_custom_call.1} parent=11 // pred_fallthru
          _
        // Predicated region
        $region37: #{tpu_custom_call.1} parent=11 // pred_check
          %p1535 = pneg %p352
        $region38: #{tpu_custom_call.1} parent=11 // pred_check_branch
          %1537 = sbr.rel (%p1535) target = $region40
        $region39: #{tpu_custom_call.1} parent=11 // pred_region
          %s1539 = ssub.s32 16, 16
          %1540 = vsyncadd [#allocation11], %s1539
          %s1542 = sshll.u32 [#allocation12], 4
          %s1543 = int_to_ptr.vmem [resolvable:$true] %s1542
          %1545 = dma.hbm_to_vmem [thread:$0]  %s17, 16, %s1543, [#allocation11]
        $region40: #{tpu_custom_call.1} parent=11 // pred_fallthru
          _
        // Predicated region
        $region41: #{tpu_custom_call.1} parent=11 // pred_check
          %p1546 = pneg %p373
        $region42: #{tpu_custom_call.1} parent=11 // pred_check_branch
          %1548 = sbr.rel (%p1546) target = $region44
        $region43: #{tpu_custom_call.1} parent=11 // pred_region
          _
        $region44: #{tpu_custom_call.1} parent=11 // pred_fallthru
          _
        // Predicated region
        $region45: #{tpu_custom_call.1} parent=11 // pred_check
          %p1549 = pneg %p394
        $region46: #{tpu_custom_call.1} parent=11 // pred_check_branch
          %1551 = sbr.rel (%p1549) target = $region48
        $region47: #{tpu_custom_call.1} parent=11 // pred_region
          %s1553 = ssub.s32 16, 16
          %1554 = vsyncadd [#allocation14], %s1553
          %s1556 = sshll.u32 [#allocation13], 4
          %s1557 = int_to_ptr.vmem [resolvable:$true] %s1556
          %1559 = dma.hbm_to_vmem [thread:$0]  %s21, 16, %s1557, [#allocation14]
        $region48: #{tpu_custom_call.1} parent=11 // pred_fallthru
          _
        // Predicated region
        $region49: #{tpu_custom_call.1} parent=11 // pred_check
          %p1560 = pneg %p415
        $region50: #{tpu_custom_call.1} parent=11 // pred_check_branch
          %1562 = sbr.rel (%p1560) target = $region52
        $region51: #{tpu_custom_call.1} parent=11 // pred_region
          _
        $region52: #{tpu_custom_call.1} parent=11 // pred_fallthru
          _
        // Predicated region
        $region53: #{tpu_custom_call.1} parent=11 // pred_check
          %p1563 = pneg %p436
        $region54: #{tpu_custom_call.1} parent=11 // pred_check_branch
          %1565 = sbr.rel (%p1563) target = $region56
        $region55: #{tpu_custom_call.1} parent=11 // pred_region
          %s1567 = ssub.s32 16, 16
          %1568 = vsyncadd [#allocation14], %s1567
          %s1570 = sshll.u32 [#allocation15], 4
          %s1571 = int_to_ptr.vmem [resolvable:$true] %s1570
          %1573 = dma.hbm_to_vmem [thread:$0]  %s25, 16, %s1571, [#allocation14]
        $region56: #{tpu_custom_call.1} parent=11 // pred_fallthru
          _
        // Predicated region
        $region57: #{tpu_custom_call.1} parent=11 // pred_check
          %p1574 = pneg %p457
        $region58: #{tpu_custom_call.1} parent=11 // pred_check_branch
          %1576 = sbr.rel (%p1574) target = $region60
        $region59: #{tpu_custom_call.1} parent=11 // pred_region
          _
        $region60: #{tpu_custom_call.1} parent=11 // pred_fallthru
          _
        // Predicated region
        $region61: #{tpu_custom_call.1} parent=11 // pred_check
          %p1577 = pneg %p478
        $region62: #{tpu_custom_call.1} parent=11 // pred_check_branch
          %1579 = sbr.rel (%p1577) target = $region64
        $region63: #{tpu_custom_call.1} parent=11 // pred_region
          %s1581 = ssub.s32 16, 16
          %1582 = vsyncadd [#allocation17], %s1581
          %s1584 = sshll.u32 [#allocation16], 4
          %s1585 = int_to_ptr.vmem [resolvable:$true] %s1584
          %1587 = dma.hbm_to_vmem [thread:$0]  %s29, 16, %s1585, [#allocation17]
        $region64: #{tpu_custom_call.1} parent=11 // pred_fallthru
          _
        // Predicated region
        $region65: #{tpu_custom_call.1} parent=11 // pred_check
          %p1588 = pneg %p499
        $region66: #{tpu_custom_call.1} parent=11 // pred_check_branch
          %1590 = sbr.rel (%p1588) target = $region68
        $region67: #{tpu_custom_call.1} parent=11 // pred_region
          %s1592 = ssub.s32 16, 16
          %1593 = vsyncadd [#allocation17], %s1592
          %s1595 = sshll.u32 [#allocation18], 4
          %s1596 = int_to_ptr.vmem [resolvable:$true] %s1595
          %1598 = dma.hbm_to_vmem [thread:$0]  %s31, 16, %s1596, [#allocation17]
        $region68: #{tpu_custom_call.1} parent=11 // pred_fallthru
          _
        // Predicated region
        $region69: #{tpu_custom_call.1} parent=11 // pred_check
          %p1599 = pneg %p520
        $region70: #{tpu_custom_call.1} parent=11 // pred_check_branch
          %1601 = sbr.rel (%p1599) target = $region72
        $region71: #{tpu_custom_call.1} parent=11 // pred_region
          %s1603 = ssub.s32 16, 16
          %1604 = vsyncadd [#allocation20], %s1603
          %s1606 = sshll.u32 [#allocation19], 4
          %s1607 = int_to_ptr.vmem [resolvable:$true] %s1606
          %1609 = dma.hbm_to_vmem [thread:$0]  %s33, 16, %s1607, [#allocation20]
        $region72: #{tpu_custom_call.1} parent=11 // pred_fallthru
          _
        // Predicated region
        $region73: #{tpu_custom_call.1} parent=11 // pred_check
          %p1610 = pneg %p541
        $region74: #{tpu_custom_call.1} parent=11 // pred_check_branch
          %1612 = sbr.rel (%p1610) target = $region76
        $region75: #{tpu_custom_call.1} parent=11 // pred_region
          _
        $region76: #{tpu_custom_call.1} parent=11 // pred_fallthru
          _
        // Predicated region
        $region77: #{tpu_custom_call.1} parent=11 // pred_check
          %p1613 = pneg %p562
        $region78: #{tpu_custom_call.1} parent=11 // pred_check_branch
          %1615 = sbr.rel (%p1613) target = $region80
        $region79: #{tpu_custom_call.1} parent=11 // pred_region
          %s1617 = ssub.s32 16, 16
          %1618 = vsyncadd [#allocation20], %s1617
          %s1620 = sshll.u32 [#allocation21], 4
          %s1621 = int_to_ptr.vmem [resolvable:$true] %s1620
          %1623 = dma.hbm_to_vmem [thread:$0]  %s37, 16, %s1621, [#allocation20]
        $region80: #{tpu_custom_call.1} parent=11 // pred_fallthru
          _
        // Predicated region
        $region81: #{tpu_custom_call.1} parent=11 // pred_check
          %p1624 = pneg %p583
        $region82: #{tpu_custom_call.1} parent=11 // pred_check_branch
          %1626 = sbr.rel (%p1624) target = $region84
        $region83: #{tpu_custom_call.1} parent=11 // pred_region
          _
        $region84: #{tpu_custom_call.1} parent=11 // pred_fallthru
          _
        // Predicated region
        $region85: #{tpu_custom_call.1} parent=11 // pred_check
          %p1627 = pneg %p604
        $region86: #{tpu_custom_call.1} parent=11 // pred_check_branch
          %1629 = sbr.rel (%p1627) target = $region88
        $region87: #{tpu_custom_call.1} parent=11 // pred_region
          %s1631 = ssub.s32 16, 16
          %1632 = vsyncadd [#allocation23], %s1631
          %s1634 = sshll.u32 [#allocation22], 4
          %s1635 = int_to_ptr.vmem [resolvable:$true] %s1634
          %1637 = dma.hbm_to_vmem [thread:$0]  %s41, 16, %s1635, [#allocation23]
        $region88: #{tpu_custom_call.1} parent=11 // pred_fallthru
          _
        // Predicated region
        $region89: #{tpu_custom_call.1} parent=11 // pred_check
          %p1638 = pneg %p625
        $region90: #{tpu_custom_call.1} parent=11 // pred_check_branch
          %1640 = sbr.rel (%p1638) target = $region92
        $region91: #{tpu_custom_call.1} parent=11 // pred_region
          %s1642 = ssub.s32 16, 16
          %1643 = vsyncadd [#allocation23], %s1642
          %s1645 = sshll.u32 [#allocation24], 4
          %s1646 = int_to_ptr.vmem [resolvable:$true] %s1645
          %1648 = dma.hbm_to_vmem [thread:$0]  %s43, 16, %s1646, [#allocation23]
        $region92: #{tpu_custom_call.1} parent=11 // pred_fallthru
          _
        // Predicated region
        $region93: #{tpu_custom_call.1} parent=11 // pred_check
          %p1649 = pneg %p646
        $region94: #{tpu_custom_call.1} parent=11 // pred_check_branch
          %1651 = sbr.rel (%p1649) target = $region96
        $region95: #{tpu_custom_call.1} parent=11 // pred_region
          %s1653 = ssub.s32 16, 16
          %1654 = vsyncadd [#allocation26], %s1653
          %s1656 = sshll.u32 [#allocation25], 4
          %s1657 = int_to_ptr.vmem [resolvable:$true] %s1656
          %1659 = dma.hbm_to_vmem [thread:$0]  %s45, 16, %s1657, [#allocation26]
        $region96: #{tpu_custom_call.1} parent=11 // pred_fallthru
          _
        // Predicated region
        $region97: #{tpu_custom_call.1} parent=11 // pred_check
          %p1660 = pneg %p667
        $region98: #{tpu_custom_call.1} parent=11 // pred_check_branch
          %1662 = sbr.rel (%p1660) target = $region100
        $region99: #{tpu_custom_call.1} parent=11 // pred_region
          _
        $region100: #{tpu_custom_call.1} parent=11 // pred_fallthru
          _
        // Predicated region
        $region101: #{tpu_custom_call.1} parent=11 // pred_check
          %p1663 = pneg %p688
        $region102: #{tpu_custom_call.1} parent=11 // pred_check_branch
          %1665 = sbr.rel (%p1663) target = $region104
        $region103: #{tpu_custom_call.1} parent=11 // pred_region
          %s1667 = ssub.s32 16, 16
          %1668 = vsyncadd [#allocation26], %s1667
          %s1670 = sshll.u32 [#allocation27], 4
          %s1671 = int_to_ptr.vmem [resolvable:$true] %s1670
          %1673 = dma.hbm_to_vmem [thread:$0]  %s49, 16, %s1671, [#allocation26]
        $region104: #{tpu_custom_call.1} parent=11 // pred_fallthru
          _
        // Predicated region
        $region105: #{tpu_custom_call.1} parent=11 // pred_check
          %p1674 = pneg %p709
        $region106: #{tpu_custom_call.1} parent=11 // pred_check_branch
          %1676 = sbr.rel (%p1674) target = $region108
        $region107: #{tpu_custom_call.1} parent=11 // pred_region
          _
        $region108: #{tpu_custom_call.1} parent=11 // pred_fallthru
          _
        // Predicated region
        $region109: #{tpu_custom_call.1} parent=11 // pred_check
          %p1677 = pneg %p730
        $region110: #{tpu_custom_call.1} parent=11 // pred_check_branch
          %1679 = sbr.rel (%p1677) target = $region112
        $region111: #{tpu_custom_call.1} parent=11 // pred_region
          %s1681 = ssub.s32 16, 16
          %1682 = vsyncadd [#allocation29], %s1681
          %s1684 = sshll.u32 [#allocation28], 4
          %s1685 = int_to_ptr.vmem [resolvable:$true] %s1684
          %1687 = dma.hbm_to_vmem [thread:$0]  %s53, 16, %s1685, [#allocation29]
        $region112: #{tpu_custom_call.1} parent=11 // pred_fallthru
          _
        // Predicated region
        $region113: #{tpu_custom_call.1} parent=11 // pred_check
          %p1688 = pneg %p751
        $region114: #{tpu_custom_call.1} parent=11 // pred_check_branch
          %1690 = sbr.rel (%p1688) target = $region116
        $region115: #{tpu_custom_call.1} parent=11 // pred_region
          _
        $region116: #{tpu_custom_call.1} parent=11 // pred_fallthru
          _
        // Predicated region
        $region117: #{tpu_custom_call.1} parent=11 // pred_check
          %p1691 = pneg %p772
        $region118: #{tpu_custom_call.1} parent=11 // pred_check_branch
          %1693 = sbr.rel (%p1691) target = $region120
        $region119: #{tpu_custom_call.1} parent=11 // pred_region
          %s1695 = ssub.s32 16, 16
          %1696 = vsyncadd [#allocation29], %s1695
          %s1698 = sshll.u32 [#allocation30], 4
          %s1699 = int_to_ptr.vmem [resolvable:$true] %s1698
          %1701 = dma.hbm_to_vmem [thread:$0]  %s57, 16, %s1699, [#allocation29]
        $region120: #{tpu_custom_call.1} parent=11 // pred_fallthru
          _
        // Predicated region
        $region121: #{tpu_custom_call.1} parent=11 // pred_check
          %p1702 = pneg %p793
        $region122: #{tpu_custom_call.1} parent=11 // pred_check_branch
          %1704 = sbr.rel (%p1702) target = $region124
        $region123: #{tpu_custom_call.1} parent=11 // pred_region
          _
        $region124: #{tpu_custom_call.1} parent=11 // pred_fallthru
          _
        // Predicated region
        $region125: #{tpu_custom_call.1} parent=11 // pred_check
          %p1705 = pneg %p814
        $region126: #{tpu_custom_call.1} parent=11 // pred_check_branch
          %1707 = sbr.rel (%p1705) target = $region128
        $region127: #{tpu_custom_call.1} parent=11 // pred_region
          %s1709 = ssub.s32 16, 16
          %1710 = vsyncadd [#allocation32], %s1709
          %s1712 = sshll.u32 [#allocation31], 4
          %s1713 = int_to_ptr.vmem [resolvable:$true] %s1712
          %1715 = dma.hbm_to_vmem [thread:$0]  %s61, 16, %s1713, [#allocation32]
        $region128: #{tpu_custom_call.1} parent=11 // pred_fallthru
          _
        // Predicated region
        $region129: #{tpu_custom_call.1} parent=11 // pred_check
          %p1716 = pneg %p835
        $region130: #{tpu_custom_call.1} parent=11 // pred_check_branch
          %1718 = sbr.rel (%p1716) target = $region132
        $region131: #{tpu_custom_call.1} parent=11 // pred_region
          %s1720 = ssub.s32 16, 16
          %1721 = vsyncadd [#allocation32], %s1720
          %s1723 = sshll.u32 [#allocation33], 4
          %s1724 = int_to_ptr.vmem [resolvable:$true] %s1723
          %1726 = dma.hbm_to_vmem [thread:$0]  %s63, 16, %s1724, [#allocation32]
        $region132: #{tpu_custom_call.1} parent=11 // pred_fallthru
          _
        // Predicated region
        $region133: #{tpu_custom_call.1} parent=11 // pred_check
          %p1727 = pneg %p856
        $region134: #{tpu_custom_call.1} parent=11 // pred_check_branch
          %1729 = sbr.rel (%p1727) target = $region136
        $region135: #{tpu_custom_call.1} parent=11 // pred_region
          %s1731 = ssub.s32 16, 16
          %1732 = vsyncadd [#allocation35], %s1731
          %s1734 = sshll.u32 [#allocation34], 4
          %s1735 = int_to_ptr.vmem [resolvable:$true] %s1734
          %1737 = dma.hbm_to_vmem [thread:$0]  %s65, 16, %s1735, [#allocation35]
        $region136: #{tpu_custom_call.1} parent=11 // pred_fallthru
          _
        // Predicated region
        $region137: #{tpu_custom_call.1} parent=11 // pred_check
          %p1738 = pneg %p877
        $region138: #{tpu_custom_call.1} parent=11 // pred_check_branch
          %1740 = sbr.rel (%p1738) target = $region140
        $region139: #{tpu_custom_call.1} parent=11 // pred_region
          _
        $region140: #{tpu_custom_call.1} parent=11 // pred_fallthru
          _
        // Predicated region
        $region141: #{tpu_custom_call.1} parent=11 // pred_check
          %p1741 = pneg %p898
        $region142: #{tpu_custom_call.1} parent=11 // pred_check_branch
          %1743 = sbr.rel (%p1741) target = $region144
        $region143: #{tpu_custom_call.1} parent=11 // pred_region
          %s1745 = ssub.s32 16, 16
          %1746 = vsyncadd [#allocation35], %s1745
          %s1748 = sshll.u32 [#allocation36], 4
          %s1749 = int_to_ptr.vmem [resolvable:$true] %s1748
          %1751 = dma.hbm_to_vmem [thread:$0]  %s69, 16, %s1749, [#allocation35]
        $region144: #{tpu_custom_call.1} parent=11 // pred_fallthru
          _
        // Predicated region
        $region145: #{tpu_custom_call.1} parent=11 // pred_check
          %p1752 = pneg %p919
        $region146: #{tpu_custom_call.1} parent=11 // pred_check_branch
          %1754 = sbr.rel (%p1752) target = $region148
        $region147: #{tpu_custom_call.1} parent=11 // pred_region
          _
        $region148: #{tpu_custom_call.1} parent=11 // pred_fallthru
          _
        // Predicated region
        $region149: #{tpu_custom_call.1} parent=11 // pred_check
          %p1755 = pneg %p940
        $region150: #{tpu_custom_call.1} parent=11 // pred_check_branch
          %1757 = sbr.rel (%p1755) target = $region152
        $region151: #{tpu_custom_call.1} parent=11 // pred_region
          %s1759 = ssub.s32 16, 16
          %1760 = vsyncadd [#allocation38], %s1759
          %s1762 = sshll.u32 [#allocation37], 4
          %s1763 = int_to_ptr.vmem [resolvable:$true] %s1762
          %1765 = dma.hbm_to_vmem [thread:$0]  %s73, 16, %s1763, [#allocation38]
        $region152: #{tpu_custom_call.1} parent=11 // pred_fallthru
          _
        // Predicated region
        $region153: #{tpu_custom_call.1} parent=11 // pred_check
          %p1766 = pneg %p961
        $region154: #{tpu_custom_call.1} parent=11 // pred_check_branch
          %1768 = sbr.rel (%p1766) target = $region156
        $region155: #{tpu_custom_call.1} parent=11 // pred_region
          %s1770 = ssub.s32 16, 16
          %1771 = vsyncadd [#allocation38], %s1770
          %s1773 = sshll.u32 [#allocation39], 4
          %s1774 = int_to_ptr.vmem [resolvable:$true] %s1773
          %1776 = dma.hbm_to_vmem [thread:$0]  %s75, 16, %s1774, [#allocation38]
        $region156: #{tpu_custom_call.1} parent=11 // pred_fallthru
          _
        // Predicated region
        $region157: #{tpu_custom_call.1} parent=11 // pred_check
          %p1777 = pneg %p982
        $region158: #{tpu_custom_call.1} parent=11 // pred_check_branch
          %1779 = sbr.rel (%p1777) target = $region160
        $region159: #{tpu_custom_call.1} parent=11 // pred_region
          %s1781 = ssub.s32 16, 16
          %1782 = vsyncadd [#allocation41], %s1781
          %s1784 = sshll.u32 [#allocation40], 4
          %s1785 = int_to_ptr.vmem [resolvable:$true] %s1784
          %1787 = dma.hbm_to_vmem [thread:$0]  %s77, 16, %s1785, [#allocation41]
        $region160: #{tpu_custom_call.1} parent=11 // pred_fallthru
          _
        // Predicated region
        $region161: #{tpu_custom_call.1} parent=11 // pred_check
          %p1788 = pneg %p1003
        $region162: #{tpu_custom_call.1} parent=11 // pred_check_branch
          %1790 = sbr.rel (%p1788) target = $region164
        $region163: #{tpu_custom_call.1} parent=11 // pred_region
          _
        $region164: #{tpu_custom_call.1} parent=11 // pred_fallthru
          _
        // Predicated region
        $region165: #{tpu_custom_call.1} parent=11 // pred_check
          %p1791 = pneg %p1024
        $region166: #{tpu_custom_call.1} parent=11 // pred_check_branch
          %1793 = sbr.rel (%p1791) target = $region168
        $region167: #{tpu_custom_call.1} parent=11 // pred_region
          %s1795 = ssub.s32 16, 16
          %1796 = vsyncadd [#allocation41], %s1795
          %s1798 = sshll.u32 [#allocation42], 4
          %s1799 = int_to_ptr.vmem [resolvable:$true] %s1798
          %1801 = dma.hbm_to_vmem [thread:$0]  %s81, 16, %s1799, [#allocation41]
        $region168: #{tpu_custom_call.1} parent=11 // pred_fallthru
          _
        // Predicated region
        $region169: #{tpu_custom_call.1} parent=11 // pred_check
          %p1802 = pneg %p1045
        $region170: #{tpu_custom_call.1} parent=11 // pred_check_branch
          %1804 = sbr.rel (%p1802) target = $region172
        $region171: #{tpu_custom_call.1} parent=11 // pred_region
          %s1806 = ssub.s32 1024, 1024
          %1807 = vsyncadd [#allocation44], %s1806
          %s1808 = sshll.u32 [#allocation43], 4
          %s1809 = int_to_ptr.vmem [resolvable:$true] %s1808
          %1814 = dma.hbm_to_vmem [thread:$0]  %s83, 1024, %s1809, [#allocation44], 128, 128, 8
        $region172: #{tpu_custom_call.1} parent=11 // pred_fallthru
          _
        // Predicated region
        $region173: #{tpu_custom_call.1} parent=11 // pred_check
          %p1815 = pneg %p1066
        $region174: #{tpu_custom_call.1} parent=11 // pred_check_branch
          %1817 = sbr.rel (%p1815) target = $region176
        $region175: #{tpu_custom_call.1} parent=11 // pred_region
          %s1819 = ssub.s32 16, 16
          %1820 = vsyncadd [#allocation44], %s1819
          %s1822 = sshll.u32 [#allocation45], 4
          %s1823 = int_to_ptr.vmem [resolvable:$true] %s1822
          %1825 = dma.hbm_to_vmem [thread:$0]  %s85, 16, %s1823, [#allocation44]
        $region176: #{tpu_custom_call.1} parent=11 // pred_fallthru
          _
        // Predicated region
        $region177: #{tpu_custom_call.1} parent=11 // pred_check
          %p1826 = pneg %p1087
        $region178: #{tpu_custom_call.1} parent=11 // pred_check_branch
          %1828 = sbr.rel (%p1826) target = $region180
        $region179: #{tpu_custom_call.1} parent=11 // pred_region
          %s1830 = ssub.s32 1024, 1024
          %1831 = vsyncadd [#allocation47], %s1830
          %s1832 = sshll.u32 [#allocation46], 4
          %s1833 = int_to_ptr.vmem [resolvable:$true] %s1832
          %1838 = dma.hbm_to_vmem [thread:$0]  %s87, 1024, %s1833, [#allocation47], 128, 128, 8
        $region180: #{tpu_custom_call.1} parent=11 // pred_fallthru
          _
        // Predicated region
        $region181: #{tpu_custom_call.1} parent=11 // pred_check
          %p1839 = pneg %p1108
        $region182: #{tpu_custom_call.1} parent=11 // pred_check_branch
          %1841 = sbr.rel (%p1839) target = $region184
        $region183: #{tpu_custom_call.1} parent=11 // pred_region
          %s1843 = ssub.s32 16, 16
          %1844 = vsyncadd [#allocation47], %s1843
          %s1846 = sshll.u32 [#allocation48], 4
          %s1847 = int_to_ptr.vmem [resolvable:$true] %s1846
          %1849 = dma.hbm_to_vmem [thread:$0]  %s89, 16, %s1847, [#allocation47]
        $region184: #{tpu_custom_call.1} parent=11 // pred_fallthru
          _
        // Predicated region
        $region185: #{tpu_custom_call.1} parent=11 // pred_check
          %p1850 = pneg %p1129
        $region186: #{tpu_custom_call.1} parent=11 // pred_check_branch
          %1852 = sbr.rel (%p1850) target = $region188
        $region187: #{tpu_custom_call.1} parent=11 // pred_region
          %s1854 = ssub.s32 1024, 1024
          %1855 = vsyncadd [#allocation50], %s1854
          %s1856 = sshll.u32 [#allocation49], 4
          %s1857 = int_to_ptr.vmem [resolvable:$true] %s1856
          %1862 = dma.hbm_to_vmem [thread:$0]  %s91, 1024, %s1857, [#allocation50], 128, 128, 8
        $region188: #{tpu_custom_call.1} parent=11 // pred_fallthru
          _
        // Predicated region
        $region189: #{tpu_custom_call.1} parent=11 // pred_check
          %p1863 = pneg %p1150
        $region190: #{tpu_custom_call.1} parent=11 // pred_check_branch
          %1865 = sbr.rel (%p1863) target = $region192
        $region191: #{tpu_custom_call.1} parent=11 // pred_region
          %s1867 = ssub.s32 16, 16
          %1868 = vsyncadd [#allocation50], %s1867
          %s1870 = sshll.u32 [#allocation51], 4
          %s1871 = int_to_ptr.vmem [resolvable:$true] %s1870
          %1873 = dma.hbm_to_vmem [thread:$0]  %s93, 16, %s1871, [#allocation50]
        $region192: #{tpu_custom_call.1} parent=11 // pred_fallthru
          _
        // Predicated region
        $region193: #{tpu_custom_call.1} parent=11 // pred_check
          %p1874 = pneg %p1171
        $region194: #{tpu_custom_call.1} parent=11 // pred_check_branch
          %1876 = sbr.rel (%p1874) target = $region196
        $region195: #{tpu_custom_call.1} parent=11 // pred_region
          %s1878 = ssub.s32 16, 16
          %1879 = vsyncadd [#allocation53], %s1878
          %s1881 = sshll.u32 [#allocation52], 4
          %s1882 = int_to_ptr.vmem [resolvable:$true] %s1881
          %1884 = dma.hbm_to_vmem [thread:$0]  %s95, 16, %s1882, [#allocation53]
        $region196: #{tpu_custom_call.1} parent=11 // pred_fallthru
          _
        // Predicated region
        $region197: #{tpu_custom_call.1} parent=11 // pred_check
          %p1885 = pneg %p1192
        $region198: #{tpu_custom_call.1} parent=11 // pred_check_branch
          %1887 = sbr.rel (%p1885) target = $region200
        $region199: #{tpu_custom_call.1} parent=11 // pred_region
          %s1889 = ssub.s32 16, 16
          %1890 = vsyncadd [#allocation53], %s1889
          %s1892 = sshll.u32 [#allocation54], 4
          %s1893 = int_to_ptr.vmem [resolvable:$true] %s1892
          %1895 = dma.hbm_to_vmem [thread:$0]  %s97, 16, %s1893, [#allocation53]
        $region200: #{tpu_custom_call.1} parent=11 // pred_fallthru
          _
        // Predicated region
        $region201: #{tpu_custom_call.1} parent=11 // pred_check
          %p1896 = pneg %p1213
        $region202: #{tpu_custom_call.1} parent=11 // pred_check_branch
          %1898 = sbr.rel (%p1896) target = $region204
        $region203: #{tpu_custom_call.1} parent=11 // pred_region
          _
        $region204: #{tpu_custom_call.1} parent=11 // pred_fallthru
          _
        // Predicated region
        $region205: #{tpu_custom_call.1} parent=11 // pred_check
          %p1899 = pneg %p1234
        $region206: #{tpu_custom_call.1} parent=11 // pred_check_branch
          %1901 = sbr.rel (%p1899) target = $region208
        $region207: #{tpu_custom_call.1} parent=11 // pred_region
          _
        $region208: #{tpu_custom_call.1} parent=11 // pred_fallthru
          _
        // Predicated region
        $region209: #{tpu_custom_call.1} parent=11 // pred_check
          %p1902 = pneg %p1255
        $region210: #{tpu_custom_call.1} parent=11 // pred_check_branch
          %1904 = sbr.rel (%p1902) target = $region212
        $region211: #{tpu_custom_call.1} parent=11 // pred_region
          _
        $region212: #{tpu_custom_call.1} parent=11 // pred_fallthru
          _
        // Predicated region
        $region213: #{tpu_custom_call.1} parent=11 // pred_check
          %p1905 = pneg %p1276
        $region214: #{tpu_custom_call.1} parent=11 // pred_check_branch
          %1907 = sbr.rel (%p1905) target = $region216
        $region215: #{tpu_custom_call.1} parent=11 // pred_region
          _
        $region216: #{tpu_custom_call.1} parent=11 // pred_fallthru
          _
        // Predicated region
        $region217: #{tpu_custom_call.1} parent=11 // pred_check
          %p1908 = pneg %p1297
        $region218: #{tpu_custom_call.1} parent=11 // pred_check_branch
          %1910 = sbr.rel (%p1908) target = $region220
        $region219: #{tpu_custom_call.1} parent=11 // pred_region
          _
        $region220: #{tpu_custom_call.1} parent=11 // pred_fallthru
          _
        // Predicated region
        $region221: #{tpu_custom_call.1} parent=11 // pred_check
          %p1911 = pneg %p1318
        $region222: #{tpu_custom_call.1} parent=11 // pred_check_branch
          %1913 = sbr.rel (%p1911) target = $region224
        $region223: #{tpu_custom_call.1} parent=11 // pred_region
          _
        $region224: #{tpu_custom_call.1} parent=11 // pred_fallthru
          _
        // Predicated region
        $region225: #{tpu_custom_call.1} parent=11 // pred_check
          %p1914 = pneg %p1339
        $region226: #{tpu_custom_call.1} parent=11 // pred_check_branch
          %1916 = sbr.rel (%p1914) target = $region228
        $region227: #{tpu_custom_call.1} parent=11 // pred_region
          _
        $region228: #{tpu_custom_call.1} parent=11 // pred_fallthru
          _
        // Predicated region
        $region229: #{tpu_custom_call.1} parent=11 // pred_check
          %p1917 = pneg %p1360
        $region230: #{tpu_custom_call.1} parent=11 // pred_check_branch
          %1919 = sbr.rel (%p1917) target = $region232
        $region231: #{tpu_custom_call.1} parent=11 // pred_region
          _
        $region232: #{tpu_custom_call.1} parent=11 // pred_fallthru
          _
        // Predicated region
        $region233: #{tpu_custom_call.1} parent=11 // pred_check
          %p1920 = pneg %p1381
        $region234: #{tpu_custom_call.1} parent=11 // pred_check_branch
          %1922 = sbr.rel (%p1920) target = $region236
        $region235: #{tpu_custom_call.1} parent=11 // pred_region
          _
        $region236: #{tpu_custom_call.1} parent=11 // pred_fallthru
          _
        // Predicated region
        $region237: #{tpu_custom_call.1} parent=11 // pred_check
          %p1923 = pneg %p1402
        $region238: #{tpu_custom_call.1} parent=11 // pred_check_branch
          %1925 = sbr.rel (%p1923) target = $region240
        $region239: #{tpu_custom_call.1} parent=11 // pred_region
          _
        $region240: #{tpu_custom_call.1} parent=11 // pred_fallthru
          _
        // Predicated region
        $region241: #{tpu_custom_call.1} parent=11 // pred_check
          %p1926 = pneg %p1423
        $region242: #{tpu_custom_call.1} parent=11 // pred_check_branch
          %1928 = sbr.rel (%p1926) target = $region244
        $region243: #{tpu_custom_call.1} parent=11 // pred_region
          _
        $region244: #{tpu_custom_call.1} parent=11 // pred_fallthru
          _
        // Predicated region
        $region245: #{tpu_custom_call.1} parent=11 // pred_check
          %p1929 = pneg %p1444
        $region246: #{tpu_custom_call.1} parent=11 // pred_check_branch
          %1931 = sbr.rel (%p1929) target = $region248
        $region247: #{tpu_custom_call.1} parent=11 // pred_region
          _
        $region248: #{tpu_custom_call.1} parent=11 // pred_fallthru
          _
      $region12: #{tpu_custom_call.1} parent=5 // pred_fallthru
        _
      %p1932 = scmp.lt.s32.totalorder %s153, 2
      // Predicated region
      $region249: #{tpu_custom_call.1} parent=5 // pred_check
        %p1933 = pneg %p1932
      $region250: #{tpu_custom_call.1} parent=5 // pred_check_branch
        %1935 = sbr.rel (%p1933) target = $region252
      $region251: #{tpu_custom_call.1} parent=5 // pred_region
        // Predicated region
        $region253: #{tpu_custom_call.1} parent=251 // pred_check
          %p1936 = pneg %p173
        $region254: #{tpu_custom_call.1} parent=251 // pred_check_branch
          %1938 = sbr.rel (%p1936) target = $region256
        $region255: #{tpu_custom_call.1} parent=251 // pred_region
          %p1939 = scmp.lt.s32.totalorder %s153, 1
          %s1940 = scalar_select %p1939, %s153, 1
          %s1941 = smul.addr %s1940, 2
          %s1942 = smul.addr %s1941, 8
          %s1943 = scalar_lea.vmem %s1, %s1942
        $region256: #{tpu_custom_call.1} parent=251 // pred_fallthru
          _
        // Predicated region
        $region257: #{tpu_custom_call.1} parent=251 // pred_check
          %p1944 = pneg %p199
        $region258: #{tpu_custom_call.1} parent=251 // pred_check_branch
          %1946 = sbr.rel (%p1944) target = $region260
        $region259: #{tpu_custom_call.1} parent=251 // pred_region
          %p1947 = scmp.lt.s32.totalorder %s153, 1
          %s1948 = scalar_select %p1947, %s153, 1
          %s1949 = smul.addr %s1948, 8
          %s1950 = scalar_lea.vmem %s3, %s1949
        $region260: #{tpu_custom_call.1} parent=251 // pred_fallthru
          _
      $region252: #{tpu_custom_call.1} parent=5 // pred_fallthru
        _
      %p1951 = scmp.le.s32.totalorder 1, %s153
      %p1952 = scmp.lt.s32.totalorder %s153, 3
      %p1953 = pnand %p1951, %p1952
      %p1954 = pneg %p1953
      // Predicated region
      $region261: #{tpu_custom_call.1} parent=5 // pred_check
        _
      $region262: #{tpu_custom_call.1} parent=5 // pred_check_branch
        %1956 = sbr.rel (%p1953) target = $region264
      $region263: #{tpu_custom_call.1} parent=5 // pred_region
        %s1957 = ssub.s32 %s153, 1
        // Predicated region
        $region265: #{tpu_custom_call.1} parent=263 // pred_check
          %p1958 = pneg %p226
        $region266: #{tpu_custom_call.1} parent=263 // pred_check_branch
          %1960 = sbr.rel (%p1958) target = $region268
        $region267: #{tpu_custom_call.1} parent=263 // pred_region
          %1961 = dma.done [#allocation5], 16
        $region268: #{tpu_custom_call.1} parent=263 // pred_fallthru
          _
        // Predicated region
        $region269: #{tpu_custom_call.1} parent=263 // pred_check
          %p1962 = pneg %p247
        $region270: #{tpu_custom_call.1} parent=263 // pred_check_branch
          %1964 = sbr.rel (%p1962) target = $region272
        $region271: #{tpu_custom_call.1} parent=263 // pred_region
          %1965 = dma.done [#allocation8], 16
        $region272: #{tpu_custom_call.1} parent=263 // pred_fallthru
          _
        // Predicated region
        $region273: #{tpu_custom_call.1} parent=263 // pred_check
          %p1966 = pneg %p289
        $region274: #{tpu_custom_call.1} parent=263 // pred_check_branch
          %1968 = sbr.rel (%p1966) target = $region276
        $region275: #{tpu_custom_call.1} parent=263 // pred_region
          %1969 = dma.done [#allocation8], 16
        $region276: #{tpu_custom_call.1} parent=263 // pred_fallthru
          _
        // Predicated region
        $region277: #{tpu_custom_call.1} parent=263 // pred_check
          %p1970 = pneg %p310
        $region278: #{tpu_custom_call.1} parent=263 // pred_check_branch
          %1972 = sbr.rel (%p1970) target = $region280
        $region279: #{tpu_custom_call.1} parent=263 // pred_region
          %1973 = dma.done [#allocation11], 16
        $region280: #{tpu_custom_call.1} parent=263 // pred_fallthru
          _
        // Predicated region
        $region281: #{tpu_custom_call.1} parent=263 // pred_check
          %p1974 = pneg %p352
        $region282: #{tpu_custom_call.1} parent=263 // pred_check_branch
          %1976 = sbr.rel (%p1974) target = $region284
        $region283: #{tpu_custom_call.1} parent=263 // pred_region
          %1977 = dma.done [#allocation11], 16
        $region284: #{tpu_custom_call.1} parent=263 // pred_fallthru
          _
        // Predicated region
        $region285: #{tpu_custom_call.1} parent=263 // pred_check
          %p1978 = pneg %p394
        $region286: #{tpu_custom_call.1} parent=263 // pred_check_branch
          %1980 = sbr.rel (%p1978) target = $region288
        $region287: #{tpu_custom_call.1} parent=263 // pred_region
          %1981 = dma.done [#allocation14], 16
        $region288: #{tpu_custom_call.1} parent=263 // pred_fallthru
          _
        // Predicated region
        $region289: #{tpu_custom_call.1} parent=263 // pred_check
          %p1982 = pneg %p436
        $region290: #{tpu_custom_call.1} parent=263 // pred_check_branch
          %1984 = sbr.rel (%p1982) target = $region292
        $region291: #{tpu_custom_call.1} parent=263 // pred_region
          %1985 = dma.done [#allocation14], 16
        $region292: #{tpu_custom_call.1} parent=263 // pred_fallthru
          _
        // Predicated region
        $region293: #{tpu_custom_call.1} parent=263 // pred_check
          %p1986 = pneg %p478
        $region294: #{tpu_custom_call.1} parent=263 // pred_check_branch
          %1988 = sbr.rel (%p1986) target = $region296
        $region295: #{tpu_custom_call.1} parent=263 // pred_region
          %1989 = dma.done [#allocation17], 16
        $region296: #{tpu_custom_call.1} parent=263 // pred_fallthru
          _
        // Predicated region
        $region297: #{tpu_custom_call.1} parent=263 // pred_check
          %p1990 = pneg %p499
        $region298: #{tpu_custom_call.1} parent=263 // pred_check_branch
          %1992 = sbr.rel (%p1990) target = $region300
        $region299: #{tpu_custom_call.1} parent=263 // pred_region
          %1993 = dma.done [#allocation17], 16
        $region300: #{tpu_custom_call.1} parent=263 // pred_fallthru
          _
        // Predicated region
        $region301: #{tpu_custom_call.1} parent=263 // pred_check
          %p1994 = pneg %p520
        $region302: #{tpu_custom_call.1} parent=263 // pred_check_branch
          %1996 = sbr.rel (%p1994) target = $region304
        $region303: #{tpu_custom_call.1} parent=263 // pred_region
          %1997 = dma.done [#allocation20], 16
        $region304: #{tpu_custom_call.1} parent=263 // pred_fallthru
          _
        // Predicated region
        $region305: #{tpu_custom_call.1} parent=263 // pred_check
          %p1998 = pneg %p562
        $region306: #{tpu_custom_call.1} parent=263 // pred_check_branch
          %2000 = sbr.rel (%p1998) target = $region308
        $region307: #{tpu_custom_call.1} parent=263 // pred_region
          %2001 = dma.done [#allocation20], 16
        $region308: #{tpu_custom_call.1} parent=263 // pred_fallthru
          _
        // Predicated region
        $region309: #{tpu_custom_call.1} parent=263 // pred_check
          %p2002 = pneg %p604
        $region310: #{tpu_custom_call.1} parent=263 // pred_check_branch
          %2004 = sbr.rel (%p2002) target = $region312
        $region311: #{tpu_custom_call.1} parent=263 // pred_region
          %2005 = dma.done [#allocation23], 16
        $region312: #{tpu_custom_call.1} parent=263 // pred_fallthru
          _
        // Predicated region
        $region313: #{tpu_custom_call.1} parent=263 // pred_check
          %p2006 = pneg %p625
        $region314: #{tpu_custom_call.1} parent=263 // pred_check_branch
          %2008 = sbr.rel (%p2006) target = $region316
        $region315: #{tpu_custom_call.1} parent=263 // pred_region
          %2009 = dma.done [#allocation23], 16
        $region316: #{tpu_custom_call.1} parent=263 // pred_fallthru
          _
        // Predicated region
        $region317: #{tpu_custom_call.1} parent=263 // pred_check
          %p2010 = pneg %p646
        $region318: #{tpu_custom_call.1} parent=263 // pred_check_branch
          %2012 = sbr.rel (%p2010) target = $region320
        $region319: #{tpu_custom_call.1} parent=263 // pred_region
          %2013 = dma.done [#allocation26], 16
        $region320: #{tpu_custom_call.1} parent=263 // pred_fallthru
          _
        // Predicated region
        $region321: #{tpu_custom_call.1} parent=263 // pred_check
          %p2014 = pneg %p688
        $region322: #{tpu_custom_call.1} parent=263 // pred_check_branch
          %2016 = sbr.rel (%p2014) target = $region324
        $region323: #{tpu_custom_call.1} parent=263 // pred_region
          %2017 = dma.done [#allocation26], 16
        $region324: #{tpu_custom_call.1} parent=263 // pred_fallthru
          _
        // Predicated region
        $region325: #{tpu_custom_call.1} parent=263 // pred_check
          %p2018 = pneg %p730
        $region326: #{tpu_custom_call.1} parent=263 // pred_check_branch
          %2020 = sbr.rel (%p2018) target = $region328
        $region327: #{tpu_custom_call.1} parent=263 // pred_region
          %2021 = dma.done [#allocation29], 16
        $region328: #{tpu_custom_call.1} parent=263 // pred_fallthru
          _
        // Predicated region
        $region329: #{tpu_custom_call.1} parent=263 // pred_check
          %p2022 = pneg %p772
        $region330: #{tpu_custom_call.1} parent=263 // pred_check_branch
          %2024 = sbr.rel (%p2022) target = $region332
        $region331: #{tpu_custom_call.1} parent=263 // pred_region
          %2025 = dma.done [#allocation29], 16
        $region332: #{tpu_custom_call.1} parent=263 // pred_fallthru
          _
        // Predicated region
        $region333: #{tpu_custom_call.1} parent=263 // pred_check
          %p2026 = pneg %p814
        $region334: #{tpu_custom_call.1} parent=263 // pred_check_branch
          %2028 = sbr.rel (%p2026) target = $region336
        $region335: #{tpu_custom_call.1} parent=263 // pred_region
          %2029 = dma.done [#allocation32], 16
        $region336: #{tpu_custom_call.1} parent=263 // pred_fallthru
          _
        // Predicated region
        $region337: #{tpu_custom_call.1} parent=263 // pred_check
          %p2030 = pneg %p835
        $region338: #{tpu_custom_call.1} parent=263 // pred_check_branch
          %2032 = sbr.rel (%p2030) target = $region340
        $region339: #{tpu_custom_call.1} parent=263 // pred_region
          %2033 = dma.done [#allocation32], 16
        $region340: #{tpu_custom_call.1} parent=263 // pred_fallthru
          _
        // Predicated region
        $region341: #{tpu_custom_call.1} parent=263 // pred_check
          %p2034 = pneg %p856
        $region342: #{tpu_custom_call.1} parent=263 // pred_check_branch
          %2036 = sbr.rel (%p2034) target = $region344
        $region343: #{tpu_custom_call.1} parent=263 // pred_region
          %2037 = dma.done [#allocation35], 16
        $region344: #{tpu_custom_call.1} parent=263 // pred_fallthru
          _
        // Predicated region
        $region345: #{tpu_custom_call.1} parent=263 // pred_check
          %p2038 = pneg %p898
        $region346: #{tpu_custom_call.1} parent=263 // pred_check_branch
          %2040 = sbr.rel (%p2038) target = $region348
        $region347: #{tpu_custom_call.1} parent=263 // pred_region
          %2041 = dma.done [#allocation35], 16
        $region348: #{tpu_custom_call.1} parent=263 // pred_fallthru
          _
        // Predicated region
        $region349: #{tpu_custom_call.1} parent=263 // pred_check
          %p2042 = pneg %p940
        $region350: #{tpu_custom_call.1} parent=263 // pred_check_branch
          %2044 = sbr.rel (%p2042) target = $region352
        $region351: #{tpu_custom_call.1} parent=263 // pred_region
          %2045 = dma.done [#allocation38], 16
        $region352: #{tpu_custom_call.1} parent=263 // pred_fallthru
          _
        // Predicated region
        $region353: #{tpu_custom_call.1} parent=263 // pred_check
          %p2046 = pneg %p961
        $region354: #{tpu_custom_call.1} parent=263 // pred_check_branch
          %2048 = sbr.rel (%p2046) target = $region356
        $region355: #{tpu_custom_call.1} parent=263 // pred_region
          %2049 = dma.done [#allocation38], 16
        $region356: #{tpu_custom_call.1} parent=263 // pred_fallthru
          _
        // Predicated region
        $region357: #{tpu_custom_call.1} parent=263 // pred_check
          %p2050 = pneg %p982
        $region358: #{tpu_custom_call.1} parent=263 // pred_check_branch
          %2052 = sbr.rel (%p2050) target = $region360
        $region359: #{tpu_custom_call.1} parent=263 // pred_region
          %2053 = dma.done [#allocation41], 16
        $region360: #{tpu_custom_call.1} parent=263 // pred_fallthru
          _
        // Predicated region
        $region361: #{tpu_custom_call.1} parent=263 // pred_check
          %p2054 = pneg %p1024
        $region362: #{tpu_custom_call.1} parent=263 // pred_check_branch
          %2056 = sbr.rel (%p2054) target = $region364
        $region363: #{tpu_custom_call.1} parent=263 // pred_region
          %2057 = dma.done [#allocation41], 16
        $region364: #{tpu_custom_call.1} parent=263 // pred_fallthru
          _
        // Predicated region
        $region365: #{tpu_custom_call.1} parent=263 // pred_check
          %p2058 = pneg %p1045
        $region366: #{tpu_custom_call.1} parent=263 // pred_check_branch
          %2060 = sbr.rel (%p2058) target = $region368
        $region367: #{tpu_custom_call.1} parent=263 // pred_region
          %2061 = dma.done [#allocation44], 1024
        $region368: #{tpu_custom_call.1} parent=263 // pred_fallthru
          _
        // Predicated region
        $region369: #{tpu_custom_call.1} parent=263 // pred_check
          %p2062 = pneg %p1066
        $region370: #{tpu_custom_call.1} parent=263 // pred_check_branch
          %2064 = sbr.rel (%p2062) target = $region372
        $region371: #{tpu_custom_call.1} parent=263 // pred_region
          %2065 = dma.done [#allocation44], 16
        $region372: #{tpu_custom_call.1} parent=263 // pred_fallthru
          _
        // Predicated region
        $region373: #{tpu_custom_call.1} parent=263 // pred_check
          %p2066 = pneg %p1087
        $region374: #{tpu_custom_call.1} parent=263 // pred_check_branch
          %2068 = sbr.rel (%p2066) target = $region376
        $region375: #{tpu_custom_call.1} parent=263 // pred_region
          %2069 = dma.done [#allocation47], 1024
        $region376: #{tpu_custom_call.1} parent=263 // pred_fallthru
          _
        // Predicated region
        $region377: #{tpu_custom_call.1} parent=263 // pred_check
          %p2070 = pneg %p1108
        $region378: #{tpu_custom_call.1} parent=263 // pred_check_branch
          %2072 = sbr.rel (%p2070) target = $region380
        $region379: #{tpu_custom_call.1} parent=263 // pred_region
          %2073 = dma.done [#allocation47], 16
        $region380: #{tpu_custom_call.1} parent=263 // pred_fallthru
          _
        // Predicated region
        $region381: #{tpu_custom_call.1} parent=263 // pred_check
          %p2074 = pneg %p1129
        $region382: #{tpu_custom_call.1} parent=263 // pred_check_branch
          %2076 = sbr.rel (%p2074) target = $region384
        $region383: #{tpu_custom_call.1} parent=263 // pred_region
          %2077 = dma.done [#allocation50], 1024
        $region384: #{tpu_custom_call.1} parent=263 // pred_fallthru
          _
        // Predicated region
        $region385: #{tpu_custom_call.1} parent=263 // pred_check
          %p2078 = pneg %p1150
        $region386: #{tpu_custom_call.1} parent=263 // pred_check_branch
          %2080 = sbr.rel (%p2078) target = $region388
        $region387: #{tpu_custom_call.1} parent=263 // pred_region
          %2081 = dma.done [#allocation50], 16
        $region388: #{tpu_custom_call.1} parent=263 // pred_fallthru
          _
        // Predicated region
        $region389: #{tpu_custom_call.1} parent=263 // pred_check
          %p2082 = pneg %p1171
        $region390: #{tpu_custom_call.1} parent=263 // pred_check_branch
          %2084 = sbr.rel (%p2082) target = $region392
        $region391: #{tpu_custom_call.1} parent=263 // pred_region
          %2085 = dma.done [#allocation53], 16
        $region392: #{tpu_custom_call.1} parent=263 // pred_fallthru
          _
        // Predicated region
        $region393: #{tpu_custom_call.1} parent=263 // pred_check
          %p2086 = pneg %p1192
        $region394: #{tpu_custom_call.1} parent=263 // pred_check_branch
          %2088 = sbr.rel (%p2086) target = $region396
        $region395: #{tpu_custom_call.1} parent=263 // pred_region
          %2089 = dma.done [#allocation53], 16
        $region396: #{tpu_custom_call.1} parent=263 // pred_fallthru
          _
        %p2090 = scmp.lt.s32.totalorder %s158, 1
        %s2091 = scalar_select %p2090, %s158, 1
        %s2092 = smul.addr %s2091, 2
        %s2093 = smul.addr %s2092, 8
        %s2094 = scalar_lea.vmem %s1, %s2093
        %p2095 = pneg %p179
        %p2096 = pneg %p176
        %p2097 = scmp.lt.s32.totalorder %s158, 1
        %s2098 = scalar_select %p2097, %s158, 1
        %s2099 = smul.addr %s2098, 8
        %s2100 = scalar_lea.vmem %s3, %s2099
        %p2101 = pneg %p205
        %p2102 = pneg %p202
        %p2103 = pneg %p226
        %p2104 = pneg %p223
        %p2105 = pneg %p247
        %p2106 = pneg %p244
        %p2107 = pneg %p268
        %p2108 = pneg %p265
        %p2109 = pneg %p289
        %p2110 = pneg %p286
        %p2111 = pneg %p310
        %p2112 = pneg %p307
        %p2113 = pneg %p331
        %p2114 = pneg %p328
        %p2115 = pneg %p352
        %p2116 = pneg %p349
        %p2117 = pneg %p373
        %p2118 = pneg %p370
        %p2119 = pneg %p394
        %p2120 = pneg %p391
        %p2121 = pneg %p415
        %p2122 = pneg %p412
        %p2123 = pneg %p436
        %p2124 = pneg %p433
        %p2125 = pneg %p457
        %p2126 = pneg %p454
        %p2127 = pneg %p478
        %p2128 = pneg %p475
        %p2129 = pneg %p499
        %p2130 = pneg %p496
        %p2131 = pneg %p520
        %p2132 = pneg %p517
        %p2133 = pneg %p541
        %p2134 = pneg %p538
        %p2135 = pneg %p562
        %p2136 = pneg %p559
        %p2137 = pneg %p583
        %p2138 = pneg %p580
        %p2139 = pneg %p604
        %p2140 = pneg %p601
        %p2141 = pneg %p625
        %p2142 = pneg %p622
        %p2143 = pneg %p646
        %p2144 = pneg %p643
        %p2145 = pneg %p667
        %p2146 = pneg %p664
        %p2147 = pneg %p688
        %p2148 = pneg %p685
        %p2149 = pneg %p709
        %p2150 = pneg %p706
        %p2151 = pneg %p730
        %p2152 = pneg %p727
        %p2153 = pneg %p751
        %p2154 = pneg %p748
        %p2155 = pneg %p772
        %p2156 = pneg %p769
        %p2157 = pneg %p793
        %p2158 = pneg %p790
        %p2159 = pneg %p814
        %p2160 = pneg %p811
        %p2161 = pneg %p835
        %p2162 = pneg %p832
        %p2163 = pneg %p856
        %p2164 = pneg %p853
        %p2165 = pneg %p877
        %p2166 = pneg %p874
        %p2167 = pneg %p898
        %p2168 = pneg %p895
        %p2169 = pneg %p919
        %p2170 = pneg %p916
        %p2171 = pneg %p940
        %p2172 = pneg %p937
        %p2173 = pneg %p961
        %p2174 = pneg %p958
        %p2175 = pneg %p982
        %p2176 = pneg %p979
        %p2177 = pneg %p1003
        %p2178 = pneg %p1000
        %p2179 = pneg %p1024
        %p2180 = pneg %p1021
        %p2181 = pneg %p1045
        %p2182 = pneg %p1042
        %p2183 = pneg %p1066
        %p2184 = pneg %p1063
        %p2185 = pneg %p1087
        %p2186 = pneg %p1084
        %p2187 = pneg %p1108
        %p2188 = pneg %p1105
        %p2189 = pneg %p1129
        %p2190 = pneg %p1126
        %p2191 = pneg %p1150
        %p2192 = pneg %p1147
        %p2193 = pneg %p1171
        %p2194 = pneg %p1168
        %p2195 = pneg %p1192
        %p2196 = pneg %p1189
        %p2197 = pneg %p1213
        %p2198 = pneg %p1210
        %p2199 = pneg %p1234
        %p2200 = pneg %p1231
        %p2201 = pneg %p1255
        %p2202 = pneg %p1252
        %p2203 = pneg %p1276
        %p2204 = pneg %p1273
        %p2205 = pneg %p1297
        %p2206 = pneg %p1294
        %p2207 = pneg %p1318
        %p2208 = pneg %p1315
        %p2209 = pneg %p1339
        %p2210 = pneg %p1336
        %p2211 = pneg %p1360
        %p2212 = pneg %p1357
        %p2213 = pneg %p1381
        %p2214 = pneg %p1378
        %p2215 = pneg %p1402
        %p2216 = pneg %p1399
        %p2217 = pneg %p1423
        %p2218 = pneg %p1420
        %p2219 = pneg %p1444
        %p2220 = pneg %p1441
        %p2221 = pneg %p1470
        %p2222 = pneg %p1467
        %s2223 = sand.u32 %s1457, 1
        %s2224 = scalar_lea.sflag [#allocation6], %s2223
        %s2225 = sand.u32 %s1457, 1
        %s2226 = scalar_lea.vmem [#allocation55], %s2225
        %p2227 = scmp.lt.s32.totalorder %s158, 1
        %s2228 = scalar_select %p2227, %s158, 1
        %s2229 = smul.addr %s2228, 2
        %s2230 = smul.addr %s2229, 8
        %s2231 = scalar_lea.vmem %s1, %s2230
        %p2232 = scmp.lt.s32.totalorder %s158, 1
        %s2233 = scalar_select %p2232, %s158, 1
        %s2234 = smul.addr %s2233, 8
        %s2235 = scalar_lea.vmem %s3, %s2234
        %v2236 = vld [vmem:[%s2231] sm:$0xff]
        %v2237 = vld [vmem:[%s2231 + $0x8] sm:$0x1]
        %v2238 = vld [vmem:[%s2235] sm:$0x1f]
        %v2239 = vld [vmem:[#allocation4] sm:$0x1]
        %v2240 = vld [vmem:[#allocation7] sm:$0x1]
        %v2241 = vld [vmem:[%s9] sm:$0x3]
        %v2243 = vrot.slane %v2238, 7
        %v2246 = vrot.slane %v2241, 2
        %vm2248 = vcmask 1040384
        %v2249 = vsel %vm2248, %v2240, %v2243
        %vm2250 = vcmask 1045504
        %v2251 = vsel %vm2250, %v2249, %v2246
        %v2252 = vld [vmem:[#allocation9] sm:$0x1]
        %v2253 = vld [vmem:[#allocation10] sm:$0x1]
        %vm2254 = vcmask 523264
        %v2255 = vsel %vm2254, %v2251, 0.0
        %2256 = vadd.xlane.f32.xlu0 %v2255
        %v2257 = vpop.xlane.xlu0 %2256
        %v2258 = vrcp.pop 64.0
        %v2259 = vmul.f32 %v2257, %v2258
        %v2260 = vsub.f32 %v2251, %v2259
        %v2261 = vmul.f32 %v2260, %v2260
        %v2262 = vsel %vm2254, %v2261, 0.0
        %2263 = vadd.xlane.f32.xlu0 %v2262
        %v2264 = vpop.xlane.xlu0 %2263
        %v2265 = vmul.f32 %v2264, %v2258
        %v2266 = vadd.f32 %v2265, 1e-05
        %v2267 = vrsqrt.pop %v2266
        %v2268 = vmul.f32 %v2260, %v2267
        %v2270 = vlaneseq
        %v2271 = vshrl.u32 %v2270, 7
        %v2272 = vsub.s32 0, %v2271
        %v2273 = vrot.slane %v2252, %v2272
        %v2275 = vmul.f32 %v2268, %v2273
        %v2277 = vlaneseq
        %v2278 = vshrl.u32 %v2277, 7
        %v2279 = vsub.s32 0, %v2278
        %v2280 = vrot.slane %v2253, %v2279
        %v2282 = vadd.f32 %v2275, %v2280
        %v2283 = vld [vmem:[%s15] sm:$0xff]
        %v2284 = vld [vmem:[%s15 + $0x8] sm:$0xff]
        %v2285 = vld [vmem:[%s15 + $0x10] sm:$0xff]
        %v2286 = vld [vmem:[%s15 + $0x18] sm:$0xff]
        %v2287 = vld [vmem:[%s15 + $0x20] sm:$0xff]
        %v2288 = vld [vmem:[%s15 + $0x28] sm:$0xff]
        %v2289 = vld [vmem:[%s15 + $0x30] sm:$0xff]
        %v2290 = vld [vmem:[%s15 + $0x38] sm:$0xff]
        %v2291 = vld [vmem:[#allocation12] sm:$0x1]
        %v2293 = vlaneseq
        %v2294 = vshrl.u32 %v2293, 7
        %v2295 = vsub.s32 0, %v2294
        %v2296 = vrot.slane %v2291, %v2295
        %v2299 = vsel %vm2254, %v2282, 0
        %2301 = vmatprep.subr.mxu0 0.0
        %2302 = vmatpush1.msra.mxu0 %v2283
        %2303 = vmatprep.subr.mxu0 0.0
        %2304 = vmatpush1.msra.mxu0 %v2284
        %2305 = vmatprep.subr.mxu0 0.0
        %2306 = vmatpush1.msra.mxu0 %v2285
        %2307 = vmatprep.subr.mxu0 0.0
        %2308 = vmatpush1.msra.mxu0 %v2286
        %2309 = vmatprep.subr.mxu0 0.0
        %2310 = vmatpush1.msra.mxu0 %v2287
        %2311 = vmatprep.subr.mxu0 0.0
        %2312 = vmatpush1.msra.mxu0 %v2288
        %2313 = vmatprep.subr.mxu0 0.0
        %2314 = vmatpush1.msra.mxu0 %v2289
        %2315 = vmatprep.subr.mxu0 0.0
        %2316 = vmatpush1.msra.mxu0 %v2290
        %2317 = vmatprep.subr.mxu0 0.0
        %2318 = vmatpush1.msra.mxu0 0.0
        %2319 = vmatprep.subr.mxu0 0.0
        %2320 = vmatpush1.msra.mxu0 0.0
        %2321 = vmatprep.subr.mxu0 0.0
        %2322 = vmatpush1.msra.mxu0 0.0
        %2323 = vmatprep.subr.mxu0 0.0
        %2324 = vmatpush1.msra.mxu0 0.0
        %2325 = vmatprep.subr.mxu0 0.0
        %2326 = vmatpush1.msra.mxu0 0.0
        %2327 = vmatprep.subr.mxu0 0.0
        %2328 = vmatpush1.msra.mxu0 0.0
        %2329 = vmatprep.subr.mxu0 0.0
        %2330 = vmatpush1.msra.mxu0 0.0
        %2331 = vmatprep.subr.mxu0 0.0
        %2332 = vmatpush1.msra.mxu0 0.0
        %2333 = vmatprep.subr.mxu0 0.0
        %2334 = vmatpush1.msra.mxu0 0.0
        %2335 = vmatprep.subr.mxu0 0.0
        %2336 = vmatpush1.msra.mxu0 0.0
        %2337 = vmatprep.subr.mxu0 0.0
        %2338 = vmatpush1.msra.mxu0 0.0
        %2339 = vmatprep.subr.mxu0 0.0
        %2340 = vmatpush1.msra.mxu0 0.0
        %2341 = vmatprep.subr.mxu0 0.0
        %2342 = vmatpush1.msra.mxu0 0.0
        %2343 = vmatprep.subr.mxu0 0.0
        %2344 = vmatpush1.msra.mxu0 0.0
        %2345 = vmatprep.subr.mxu0 0.0
        %2346 = vmatpush1.msra.mxu0 0.0
        %2347 = vmatprep.subr.mxu0 0.0
        %2348 = vmatpush1.msra.mxu0 0.0
        %2349 = vmatprep.subr.mxu0 0.0
        %2350 = vmatpush1.msra.mxu0 0.0
        %2351 = vmatprep.subr.mxu0 0.0
        %2352 = vmatpush1.msra.mxu0 0.0
        %2353 = vmatprep.subr.mxu0 0.0
        %2354 = vmatpush1.msra.mxu0 0.0
        %2355 = vmatprep.subr.mxu0 0.0
        %2356 = vmatpush1.msra.mxu0 0.0
        %2357 = vmatprep.subr.mxu0 0.0
        %2358 = vmatpush1.msra.mxu0 0.0
        %2359 = vmatprep.subr.mxu0 0.0
        %2360 = vmatpush1.msra.mxu0 0.0
        %2361 = vmatprep.subr.mxu0 0.0
        %2362 = vmatpush1.msra.mxu0 0.0
        %2363 = vmatprep.subr.mxu0 0.0
        %2364 = vmatpush1.msra.mxu0 0.0
        %2365 = vmatprep.mubr.f32.mxu0 0.0
        %2366 = vmatmul.mubr.f32.gmra.mrb[0].mxu0 %v2299
        %v2367 = vpop.f32.mrb[0].mxu0
        %v2368 = vadd.f32 %v2296, %v2367
        %v2369 = vpop.f32.mrb[0].mxu0
        %2370 = vdwg.mxu0
        %v2371 = vld [vmem:[%s19] sm:$0xff]
        %v2372 = vld [vmem:[%s19 + $0x8] sm:$0xff]
        %v2373 = vld [vmem:[%s19 + $0x10] sm:$0xff]
        %v2374 = vld [vmem:[%s19 + $0x18] sm:$0xff]
        %v2375 = vld [vmem:[%s19 + $0x20] sm:$0xff]
        %v2376 = vld [vmem:[%s19 + $0x28] sm:$0xff]
        %v2377 = vld [vmem:[%s19 + $0x30] sm:$0xff]
        %v2378 = vld [vmem:[%s19 + $0x38] sm:$0xff]
        %v2379 = vld [vmem:[#allocation13] sm:$0x1]
        %v2381 = vlaneseq
        %v2382 = vshrl.u32 %v2381, 7
        %v2383 = vsub.s32 0, %v2382
        %v2384 = vrot.slane %v2379, %v2383
        %2386 = vmatprep.subr.mxu0 0.0
        %2387 = vmatpush1.msra.mxu0 %v2371
        %2388 = vmatprep.subr.mxu0 0.0
        %2389 = vmatpush1.msra.mxu0 %v2372
        %2390 = vmatprep.subr.mxu0 0.0
        %2391 = vmatpush1.msra.mxu0 %v2373
        %2392 = vmatprep.subr.mxu0 0.0
        %2393 = vmatpush1.msra.mxu0 %v2374
        %2394 = vmatprep.subr.mxu0 0.0
        %2395 = vmatpush1.msra.mxu0 %v2375
        %2396 = vmatprep.subr.mxu0 0.0
        %2397 = vmatpush1.msra.mxu0 %v2376
        %2398 = vmatprep.subr.mxu0 0.0
        %2399 = vmatpush1.msra.mxu0 %v2377
        %2400 = vmatprep.subr.mxu0 0.0
        %2401 = vmatpush1.msra.mxu0 %v2378
        %2402 = vmatprep.subr.mxu0 0.0
        %2403 = vmatpush1.msra.mxu0 0.0
        %2404 = vmatprep.subr.mxu0 0.0
        %2405 = vmatpush1.msra.mxu0 0.0
        %2406 = vmatprep.subr.mxu0 0.0
        %2407 = vmatpush1.msra.mxu0 0.0
        %2408 = vmatprep.subr.mxu0 0.0
        %2409 = vmatpush1.msra.mxu0 0.0
        %2410 = vmatprep.subr.mxu0 0.0
        %2411 = vmatpush1.msra.mxu0 0.0
        %2412 = vmatprep.subr.mxu0 0.0
        %2413 = vmatpush1.msra.mxu0 0.0
        %2414 = vmatprep.subr.mxu0 0.0
        %2415 = vmatpush1.msra.mxu0 0.0
        %2416 = vmatprep.subr.mxu0 0.0
        %2417 = vmatpush1.msra.mxu0 0.0
        %2418 = vmatprep.subr.mxu0 0.0
        %2419 = vmatpush1.msra.mxu0 0.0
        %2420 = vmatprep.subr.mxu0 0.0
        %2421 = vmatpush1.msra.mxu0 0.0
        %2422 = vmatprep.subr.mxu0 0.0
        %2423 = vmatpush1.msra.mxu0 0.0
        %2424 = vmatprep.subr.mxu0 0.0
        %2425 = vmatpush1.msra.mxu0 0.0
        %2426 = vmatprep.subr.mxu0 0.0
        %2427 = vmatpush1.msra.mxu0 0.0
        %2428 = vmatprep.subr.mxu0 0.0
        %2429 = vmatpush1.msra.mxu0 0.0
        %2430 = vmatprep.subr.mxu0 0.0
        %2431 = vmatpush1.msra.mxu0 0.0
        %2432 = vmatprep.subr.mxu0 0.0
        %2433 = vmatpush1.msra.mxu0 0.0
        %2434 = vmatprep.subr.mxu0 0.0
        %2435 = vmatpush1.msra.mxu0 0.0
        %2436 = vmatprep.subr.mxu0 0.0
        %2437 = vmatpush1.msra.mxu0 0.0
        %2438 = vmatprep.subr.mxu0 0.0
        %2439 = vmatpush1.msra.mxu0 0.0
        %2440 = vmatprep.subr.mxu0 0.0
        %2441 = vmatpush1.msra.mxu0 0.0
        %2442 = vmatprep.subr.mxu0 0.0
        %2443 = vmatpush1.msra.mxu0 0.0
        %2444 = vmatprep.subr.mxu0 0.0
        %2445 = vmatpush1.msra.mxu0 0.0
        %2446 = vmatprep.subr.mxu0 0.0
        %2447 = vmatpush1.msra.mxu0 0.0
        %2448 = vmatprep.subr.mxu0 0.0
        %2449 = vmatpush1.msra.mxu0 0.0
        %2450 = vmatprep.mubr.f32.mxu0 0.0
        %2451 = vmatmul.mubr.f32.gmra.mrb[0].mxu0 %v2299
        %v2452 = vpop.f32.mrb[0].mxu0
        %v2453 = vadd.f32 %v2384, %v2452
        %v2454 = vpop.f32.mrb[0].mxu0
        %2455 = vdwg.mxu0
        %v2456 = vld [vmem:[%s23] sm:$0xff]
        %v2457 = vld [vmem:[%s23 + $0x8] sm:$0xff]
        %v2458 = vld [vmem:[%s23 + $0x10] sm:$0xff]
        %v2459 = vld [vmem:[%s23 + $0x18] sm:$0xff]
        %v2460 = vld [vmem:[%s23 + $0x20] sm:$0xff]
        %v2461 = vld [vmem:[%s23 + $0x28] sm:$0xff]
        %v2462 = vld [vmem:[%s23 + $0x30] sm:$0xff]
        %v2463 = vld [vmem:[%s23 + $0x38] sm:$0xff]
        %v2464 = vld [vmem:[#allocation15] sm:$0x1]
        %v2466 = vlaneseq
        %v2467 = vshrl.u32 %v2466, 7
        %v2468 = vsub.s32 0, %v2467
        %v2469 = vrot.slane %v2464, %v2468
        %2471 = vmatprep.subr.mxu0 0.0
        %2472 = vmatpush1.msra.mxu0 %v2456
        %2473 = vmatprep.subr.mxu0 0.0
        %2474 = vmatpush1.msra.mxu0 %v2457
        %2475 = vmatprep.subr.mxu0 0.0
        %2476 = vmatpush1.msra.mxu0 %v2458
        %2477 = vmatprep.subr.mxu0 0.0
        %2478 = vmatpush1.msra.mxu0 %v2459
        %2479 = vmatprep.subr.mxu0 0.0
        %2480 = vmatpush1.msra.mxu0 %v2460
        %2481 = vmatprep.subr.mxu0 0.0
        %2482 = vmatpush1.msra.mxu0 %v2461
        %2483 = vmatprep.subr.mxu0 0.0
        %2484 = vmatpush1.msra.mxu0 %v2462
        %2485 = vmatprep.subr.mxu0 0.0
        %2486 = vmatpush1.msra.mxu0 %v2463
        %2487 = vmatprep.subr.mxu0 0.0
        %2488 = vmatpush1.msra.mxu0 0.0
        %2489 = vmatprep.subr.mxu0 0.0
        %2490 = vmatpush1.msra.mxu0 0.0
        %2491 = vmatprep.subr.mxu0 0.0
        %2492 = vmatpush1.msra.mxu0 0.0
        %2493 = vmatprep.subr.mxu0 0.0
        %2494 = vmatpush1.msra.mxu0 0.0
        %2495 = vmatprep.subr.mxu0 0.0
        %2496 = vmatpush1.msra.mxu0 0.0
        %2497 = vmatprep.subr.mxu0 0.0
        %2498 = vmatpush1.msra.mxu0 0.0
        %2499 = vmatprep.subr.mxu0 0.0
        %2500 = vmatpush1.msra.mxu0 0.0
        %2501 = vmatprep.subr.mxu0 0.0
        %2502 = vmatpush1.msra.mxu0 0.0
        %2503 = vmatprep.subr.mxu0 0.0
        %2504 = vmatpush1.msra.mxu0 0.0
        %2505 = vmatprep.subr.mxu0 0.0
        %2506 = vmatpush1.msra.mxu0 0.0
        %2507 = vmatprep.subr.mxu0 0.0
        %2508 = vmatpush1.msra.mxu0 0.0
        %2509 = vmatprep.subr.mxu0 0.0
        %2510 = vmatpush1.msra.mxu0 0.0
        %2511 = vmatprep.subr.mxu0 0.0
        %2512 = vmatpush1.msra.mxu0 0.0
        %2513 = vmatprep.subr.mxu0 0.0
        %2514 = vmatpush1.msra.mxu0 0.0
        %2515 = vmatprep.subr.mxu0 0.0
        %2516 = vmatpush1.msra.mxu0 0.0
        %2517 = vmatprep.subr.mxu0 0.0
        %2518 = vmatpush1.msra.mxu0 0.0
        %2519 = vmatprep.subr.mxu0 0.0
        %2520 = vmatpush1.msra.mxu0 0.0
        %2521 = vmatprep.subr.mxu0 0.0
        %2522 = vmatpush1.msra.mxu0 0.0
        %2523 = vmatprep.subr.mxu0 0.0
        %2524 = vmatpush1.msra.mxu0 0.0
        %2525 = vmatprep.subr.mxu0 0.0
        %2526 = vmatpush1.msra.mxu0 0.0
        %2527 = vmatprep.subr.mxu0 0.0
        %2528 = vmatpush1.msra.mxu0 0.0
        %2529 = vmatprep.subr.mxu0 0.0
        %2530 = vmatpush1.msra.mxu0 0.0
        %2531 = vmatprep.subr.mxu0 0.0
        %2532 = vmatpush1.msra.mxu0 0.0
        %2533 = vmatprep.subr.mxu0 0.0
        %2534 = vmatpush1.msra.mxu0 0.0
        %2535 = vmatprep.mubr.f32.mxu0 0.0
        %2536 = vmatmul.mubr.f32.gmra.mrb[0].mxu0 %v2299
        %v2537 = vpop.f32.mrb[0].mxu0
        %v2538 = vadd.f32 %v2469, %v2537
        %v2539 = vpop.f32.mrb[0].mxu0
        %2540 = vdwg.mxu0
        %v2541 = vld [vmem:[%s27] sm:$0xff]
        %v2542 = vld [vmem:[%s27 + $0x8] sm:$0xff]
        %v2543 = vld [vmem:[%s27 + $0x10] sm:$0xff]
        %v2544 = vld [vmem:[%s27 + $0x18] sm:$0xff]
        %v2545 = vld [vmem:[%s27 + $0x20] sm:$0xff]
        %v2546 = vld [vmem:[%s27 + $0x28] sm:$0xff]
        %v2547 = vld [vmem:[%s27 + $0x30] sm:$0xff]
        %v2548 = vld [vmem:[%s27 + $0x38] sm:$0xff]
        %vm2549 = vcmask 130048
        %v2551 = vsel %vm2549, %v2368, 0
        %v2554 = vsel %vm2549, %v2453, 0
        %2556 = vmatprep.subr.mxu0 0.0
        %2557 = vmatpush1.xpose.msra.mxu0 %v2554
        %2558 = vmatprep.subr.mxu0 0.0
        %2559 = vmatpush1.xpose.msra.mxu0 0.0
        %2560 = vmatprep.subr.mxu0 0.0
        %2561 = vmatpush1.xpose.msra.mxu0 0.0
        %2562 = vmatprep.subr.mxu0 0.0
        %2563 = vmatpush1.xpose.msra.mxu0 0.0
        %2564 = vmatprep.subr.mxu0 0.0
        %2565 = vmatpush1.xpose.msra.mxu0 0.0
        %2566 = vmatprep.subr.mxu0 0.0
        %2567 = vmatpush1.xpose.msra.mxu0 0.0
        %2568 = vmatprep.subr.mxu0 0.0
        %2569 = vmatpush1.xpose.msra.mxu0 0.0
        %2570 = vmatprep.subr.mxu0 0.0
        %2571 = vmatpush1.xpose.msra.mxu0 0.0
        %2572 = vmatprep.subr.mxu0 0.0
        %2573 = vmatpush1.xpose.msra.mxu0 0.0
        %2574 = vmatprep.subr.mxu0 0.0
        %2575 = vmatpush1.xpose.msra.mxu0 0.0
        %2576 = vmatprep.subr.mxu0 0.0
        %2577 = vmatpush1.xpose.msra.mxu0 0.0
        %2578 = vmatprep.subr.mxu0 0.0
        %2579 = vmatpush1.xpose.msra.mxu0 0.0
        %2580 = vmatprep.subr.mxu0 0.0
        %2581 = vmatpush1.xpose.msra.mxu0 0.0
        %2582 = vmatprep.subr.mxu0 0.0
        %2583 = vmatpush1.xpose.msra.mxu0 0.0
        %2584 = vmatprep.subr.mxu0 0.0
        %2585 = vmatpush1.xpose.msra.mxu0 0.0
        %2586 = vmatprep.subr.mxu0 0.0
        %2587 = vmatpush1.xpose.msra.mxu0 0.0
        %2588 = vmatprep.subr.mxu0 0.0
        %2589 = vmatpush1.xpose.msra.mxu0 0.0
        %2590 = vmatprep.subr.mxu0 0.0
        %2591 = vmatpush1.xpose.msra.mxu0 0.0
        %2592 = vmatprep.subr.mxu0 0.0
        %2593 = vmatpush1.xpose.msra.mxu0 0.0
        %2594 = vmatprep.subr.mxu0 0.0
        %2595 = vmatpush1.xpose.msra.mxu0 0.0
        %2596 = vmatprep.subr.mxu0 0.0
        %2597 = vmatpush1.xpose.msra.mxu0 0.0
        %2598 = vmatprep.subr.mxu0 0.0
        %2599 = vmatpush1.xpose.msra.mxu0 0.0
        %2600 = vmatprep.subr.mxu0 0.0
        %2601 = vmatpush1.xpose.msra.mxu0 0.0
        %2602 = vmatprep.subr.mxu0 0.0
        %2603 = vmatpush1.xpose.msra.mxu0 0.0
        %2604 = vmatprep.subr.mxu0 0.0
        %2605 = vmatpush1.xpose.msra.mxu0 0.0
        %2606 = vmatprep.subr.mxu0 0.0
        %2607 = vmatpush1.xpose.msra.mxu0 0.0
        %2608 = vmatprep.subr.mxu0 0.0
        %2609 = vmatpush1.xpose.msra.mxu0 0.0
        %2610 = vmatprep.subr.mxu0 0.0
        %2611 = vmatpush1.xpose.msra.mxu0 0.0
        %2612 = vmatprep.subr.mxu0 0.0
        %2613 = vmatpush1.xpose.msra.mxu0 0.0
        %2614 = vmatprep.subr.mxu0 0.0
        %2615 = vmatpush1.xpose.msra.mxu0 0.0
        %2616 = vmatprep.subr.mxu0 0.0
        %2617 = vmatpush1.xpose.msra.mxu0 0.0
        %2618 = vmatprep.subr.mxu0 0.0
        %2619 = vmatpush1.xpose.msra.mxu0 0.0
        %2620 = vmatprep.mubr.f32.mxu0 0.0
        %2621 = vmatmul.mubr.f32.gmra.mrb[0].mxu0 %v2551
        %v2622 = vpop.f32.mrb[0].mxu0
        %v2623 = vadd.f32 0.0, %v2622
        %v2624 = vpop.f32.mrb[0].mxu0
        %2625 = vdwg.mxu0
        %v2626 = vmul.f32 %v2623, 0.25
        %vm2627 = vcmask 64512
        %v2628 = vsel %vm2627, %v2626, -inf
        %2629 = vmax.xlane.f32.xlu0 %v2628
        %v2630 = vpop.xlane.xlu0 %2629
        %v2631 = vsub.f32 %v2626, %v2630
        %v2632 = vmul.f32 %v2631, 1.442695
        %v2633 = vpow.pop %v2632
        %v2634 = vsel %vm2627, %v2633, 0.0
        %2635 = vadd.xlane.f32.xlu0 %v2634
        %v2636 = vpop.xlane.xlu0 %2635
        %v2637 = vrcp.pop %v2636
        %v2638 = vmul.f32 %v2633, %v2637
        %v2640 = vsel %vm2627, %v2638, 0
        %2642 = vmatprep.subr.mxu0 0.0
        %2643 = vmatpush1.msra.mxu0 %v2538
        %2644 = vmatprep.subr.mxu0 0.0
        %2645 = vmatpush1.msra.mxu0 0.0
        %2646 = vmatprep.subr.mxu0 0.0
        %2647 = vmatpush1.msra.mxu0 0.0
        %2648 = vmatprep.subr.mxu0 0.0
        %2649 = vmatpush1.msra.mxu0 0.0
        %2650 = vmatprep.subr.mxu0 0.0
        %2651 = vmatpush1.msra.mxu0 0.0
        %2652 = vmatprep.subr.mxu0 0.0
        %2653 = vmatpush1.msra.mxu0 0.0
        %2654 = vmatprep.subr.mxu0 0.0
        %2655 = vmatpush1.msra.mxu0 0.0
        %2656 = vmatprep.subr.mxu0 0.0
        %2657 = vmatpush1.msra.mxu0 0.0
        %2658 = vmatprep.subr.mxu0 0.0
        %2659 = vmatpush1.msra.mxu0 0.0
        %2660 = vmatprep.subr.mxu0 0.0
        %2661 = vmatpush1.msra.mxu0 0.0
        %2662 = vmatprep.subr.mxu0 0.0
        %2663 = vmatpush1.msra.mxu0 0.0
        %2664 = vmatprep.subr.mxu0 0.0
        %2665 = vmatpush1.msra.mxu0 0.0
        %2666 = vmatprep.subr.mxu0 0.0
        %2667 = vmatpush1.msra.mxu0 0.0
        %2668 = vmatprep.subr.mxu0 0.0
        %2669 = vmatpush1.msra.mxu0 0.0
        %2670 = vmatprep.subr.mxu0 0.0
        %2671 = vmatpush1.msra.mxu0 0.0
        %2672 = vmatprep.subr.mxu0 0.0
        %2673 = vmatpush1.msra.mxu0 0.0
        %2674 = vmatprep.subr.mxu0 0.0
        %2675 = vmatpush1.msra.mxu0 0.0
        %2676 = vmatprep.subr.mxu0 0.0
        %2677 = vmatpush1.msra.mxu0 0.0
        %2678 = vmatprep.subr.mxu0 0.0
        %2679 = vmatpush1.msra.mxu0 0.0
        %2680 = vmatprep.subr.mxu0 0.0
        %2681 = vmatpush1.msra.mxu0 0.0
        %2682 = vmatprep.subr.mxu0 0.0
        %2683 = vmatpush1.msra.mxu0 0.0
        %2684 = vmatprep.subr.mxu0 0.0
        %2685 = vmatpush1.msra.mxu0 0.0
        %2686 = vmatprep.subr.mxu0 0.0
        %2687 = vmatpush1.msra.mxu0 0.0
        %2688 = vmatprep.subr.mxu0 0.0
        %2689 = vmatpush1.msra.mxu0 0.0
        %2690 = vmatprep.subr.mxu0 0.0
        %2691 = vmatpush1.msra.mxu0 0.0
        %2692 = vmatprep.subr.mxu0 0.0
        %2693 = vmatpush1.msra.mxu0 0.0
        %2694 = vmatprep.subr.mxu0 0.0
        %2695 = vmatpush1.msra.mxu0 0.0
        %2696 = vmatprep.subr.mxu0 0.0
        %2697 = vmatpush1.msra.mxu0 0.0
        %2698 = vmatprep.subr.mxu0 0.0
        %2699 = vmatpush1.msra.mxu0 0.0
        %2700 = vmatprep.subr.mxu0 0.0
        %2701 = vmatpush1.msra.mxu0 0.0
        %2702 = vmatprep.subr.mxu0 0.0
        %2703 = vmatpush1.msra.mxu0 0.0
        %2704 = vmatprep.subr.mxu0 0.0
        %2705 = vmatpush1.msra.mxu0 0.0
        %2706 = vmatprep.mubr.f32.mxu0 0.0
        %2707 = vmatmul.mubr.f32.gmra.mrb[0].mxu0 %v2640
        %v2708 = vpop.f32.mrb[0].mxu0
        %v2709 = vadd.f32 0.0, %v2708
        %v2710 = vpop.f32.mrb[0].mxu0
        %2711 = vdwg.mxu0
        %2712 = vrot.lane.b32.xlu0 %v2368, 112
        %v2713 = vpop.permute.xlu0 %2712
        %2714 = vrot.lane.b32.xlu0 %v2453, 112
        %v2715 = vpop.permute.xlu0 %2714
        %v2716 = vsel %vm2549, %v2713, 0
        %v2718 = vsel %vm2549, %v2715, 0
        %2720 = vmatprep.subr.mxu0 0.0
        %2721 = vmatpush1.xpose.msra.mxu0 %v2718
        %2722 = vmatprep.subr.mxu0 0.0
        %2723 = vmatpush1.xpose.msra.mxu0 0.0
        %2724 = vmatprep.subr.mxu0 0.0
        %2725 = vmatpush1.xpose.msra.mxu0 0.0
        %2726 = vmatprep.subr.mxu0 0.0
        %2727 = vmatpush1.xpose.msra.mxu0 0.0
        %2728 = vmatprep.subr.mxu0 0.0
        %2729 = vmatpush1.xpose.msra.mxu0 0.0
        %2730 = vmatprep.subr.mxu0 0.0
        %2731 = vmatpush1.xpose.msra.mxu0 0.0
        %2732 = vmatprep.subr.mxu0 0.0
        %2733 = vmatpush1.xpose.msra.mxu0 0.0
        %2734 = vmatprep.subr.mxu0 0.0
        %2735 = vmatpush1.xpose.msra.mxu0 0.0
        %2736 = vmatprep.subr.mxu0 0.0
        %2737 = vmatpush1.xpose.msra.mxu0 0.0
        %2738 = vmatprep.subr.mxu0 0.0
        %2739 = vmatpush1.xpose.msra.mxu0 0.0
        %2740 = vmatprep.subr.mxu0 0.0
        %2741 = vmatpush1.xpose.msra.mxu0 0.0
        %2742 = vmatprep.subr.mxu0 0.0
        %2743 = vmatpush1.xpose.msra.mxu0 0.0
        %2744 = vmatprep.subr.mxu0 0.0
        %2745 = vmatpush1.xpose.msra.mxu0 0.0
        %2746 = vmatprep.subr.mxu0 0.0
        %2747 = vmatpush1.xpose.msra.mxu0 0.0
        %2748 = vmatprep.subr.mxu0 0.0
        %2749 = vmatpush1.xpose.msra.mxu0 0.0
        %2750 = vmatprep.subr.mxu0 0.0
        %2751 = vmatpush1.xpose.msra.mxu0 0.0
        %2752 = vmatprep.subr.mxu0 0.0
        %2753 = vmatpush1.xpose.msra.mxu0 0.0
        %2754 = vmatprep.subr.mxu0 0.0
        %2755 = vmatpush1.xpose.msra.mxu0 0.0
        %2756 = vmatprep.subr.mxu0 0.0
        %2757 = vmatpush1.xpose.msra.mxu0 0.0
        %2758 = vmatprep.subr.mxu0 0.0
        %2759 = vmatpush1.xpose.msra.mxu0 0.0
        %2760 = vmatprep.subr.mxu0 0.0
        %2761 = vmatpush1.xpose.msra.mxu0 0.0
        %2762 = vmatprep.subr.mxu0 0.0
        %2763 = vmatpush1.xpose.msra.mxu0 0.0
        %2764 = vmatprep.subr.mxu0 0.0
        %2765 = vmatpush1.xpose.msra.mxu0 0.0
        %2766 = vmatprep.subr.mxu0 0.0
        %2767 = vmatpush1.xpose.msra.mxu0 0.0
        %2768 = vmatprep.subr.mxu0 0.0
        %2769 = vmatpush1.xpose.msra.mxu0 0.0
        %2770 = vmatprep.subr.mxu0 0.0
        %2771 = vmatpush1.xpose.msra.mxu0 0.0
        %2772 = vmatprep.subr.mxu0 0.0
        %2773 = vmatpush1.xpose.msra.mxu0 0.0
        %2774 = vmatprep.subr.mxu0 0.0
        %2775 = vmatpush1.xpose.msra.mxu0 0.0
        %2776 = vmatprep.subr.mxu0 0.0
        %2777 = vmatpush1.xpose.msra.mxu0 0.0
        %2778 = vmatprep.subr.mxu0 0.0
        %2779 = vmatpush1.xpose.msra.mxu0 0.0
        %2780 = vmatprep.subr.mxu0 0.0
        %2781 = vmatpush1.xpose.msra.mxu0 0.0
        %2782 = vmatprep.subr.mxu0 0.0
        %2783 = vmatpush1.xpose.msra.mxu0 0.0
        %2784 = vmatprep.mubr.f32.mxu0 0.0
        %2785 = vmatmul.mubr.f32.gmra.mrb[0].mxu0 %v2716
        %v2786 = vpop.f32.mrb[0].mxu0
        %v2787 = vadd.f32 0.0, %v2786
        %v2788 = vpop.f32.mrb[0].mxu0
        %2789 = vdwg.mxu0
        %v2790 = vmul.f32 %v2787, 0.25
        %v2791 = vsel %vm2627, %v2790, -inf
        %2792 = vmax.xlane.f32.xlu0 %v2791
        %v2793 = vpop.xlane.xlu0 %2792
        %v2794 = vsub.f32 %v2790, %v2793
        %v2795 = vmul.f32 %v2794, 1.442695
        %v2796 = vpow.pop %v2795
        %v2797 = vsel %vm2627, %v2796, 0.0
        %2798 = vadd.xlane.f32.xlu0 %v2797
        %v2799 = vpop.xlane.xlu0 %2798
        %v2800 = vrcp.pop %v2799
        %v2801 = vmul.f32 %v2796, %v2800
        %2803 = vrot.lane.b32.xlu0 %v2538, 112
        %v2804 = vpop.permute.xlu0 %2803
        %v2807 = vsel %vm2627, %v2801, 0
        %2809 = vmatprep.subr.mxu0 0.0
        %2810 = vmatpush1.msra.mxu0 %v2804
        %2811 = vmatprep.subr.mxu0 0.0
        %2812 = vmatpush1.msra.mxu0 0.0
        %2813 = vmatprep.subr.mxu0 0.0
        %2814 = vmatpush1.msra.mxu0 0.0
        %2815 = vmatprep.subr.mxu0 0.0
        %2816 = vmatpush1.msra.mxu0 0.0
        %2817 = vmatprep.subr.mxu0 0.0
        %2818 = vmatpush1.msra.mxu0 0.0
        %2819 = vmatprep.subr.mxu0 0.0
        %2820 = vmatpush1.msra.mxu0 0.0
        %2821 = vmatprep.subr.mxu0 0.0
        %2822 = vmatpush1.msra.mxu0 0.0
        %2823 = vmatprep.subr.mxu0 0.0
        %2824 = vmatpush1.msra.mxu0 0.0
        %2825 = vmatprep.subr.mxu0 0.0
        %2826 = vmatpush1.msra.mxu0 0.0
        %2827 = vmatprep.subr.mxu0 0.0
        %2828 = vmatpush1.msra.mxu0 0.0
        %2829 = vmatprep.subr.mxu0 0.0
        %2830 = vmatpush1.msra.mxu0 0.0
        %2831 = vmatprep.subr.mxu0 0.0
        %2832 = vmatpush1.msra.mxu0 0.0
        %2833 = vmatprep.subr.mxu0 0.0
        %2834 = vmatpush1.msra.mxu0 0.0
        %2835 = vmatprep.subr.mxu0 0.0
        %2836 = vmatpush1.msra.mxu0 0.0
        %2837 = vmatprep.subr.mxu0 0.0
        %2838 = vmatpush1.msra.mxu0 0.0
        %2839 = vmatprep.subr.mxu0 0.0
        %2840 = vmatpush1.msra.mxu0 0.0
        %2841 = vmatprep.subr.mxu0 0.0
        %2842 = vmatpush1.msra.mxu0 0.0
        %2843 = vmatprep.subr.mxu0 0.0
        %2844 = vmatpush1.msra.mxu0 0.0
        %2845 = vmatprep.subr.mxu0 0.0
        %2846 = vmatpush1.msra.mxu0 0.0
        %2847 = vmatprep.subr.mxu0 0.0
        %2848 = vmatpush1.msra.mxu0 0.0
        %2849 = vmatprep.subr.mxu0 0.0
        %2850 = vmatpush1.msra.mxu0 0.0
        %2851 = vmatprep.subr.mxu0 0.0
        %2852 = vmatpush1.msra.mxu0 0.0
        %2853 = vmatprep.subr.mxu0 0.0
        %2854 = vmatpush1.msra.mxu0 0.0
        %2855 = vmatprep.subr.mxu0 0.0
        %2856 = vmatpush1.msra.mxu0 0.0
        %2857 = vmatprep.subr.mxu0 0.0
        %2858 = vmatpush1.msra.mxu0 0.0
        %2859 = vmatprep.subr.mxu0 0.0
        %2860 = vmatpush1.msra.mxu0 0.0
        %2861 = vmatprep.subr.mxu0 0.0
        %2862 = vmatpush1.msra.mxu0 0.0
        %2863 = vmatprep.subr.mxu0 0.0
        %2864 = vmatpush1.msra.mxu0 0.0
        %2865 = vmatprep.subr.mxu0 0.0
        %2866 = vmatpush1.msra.mxu0 0.0
        %2867 = vmatprep.subr.mxu0 0.0
        %2868 = vmatpush1.msra.mxu0 0.0
        %2869 = vmatprep.subr.mxu0 0.0
        %2870 = vmatpush1.msra.mxu0 0.0
        %2871 = vmatprep.subr.mxu0 0.0
        %2872 = vmatpush1.msra.mxu0 0.0
        %2873 = vmatprep.mubr.f32.mxu0 0.0
        %2874 = vmatmul.mubr.f32.gmra.mrb[0].mxu0 %v2807
        %v2875 = vpop.f32.mrb[0].mxu0
        %v2876 = vadd.f32 0.0, %v2875
        %v2877 = vpop.f32.mrb[0].mxu0
        %2878 = vdwg.mxu0
        %v2880 = vsel %vm2549, %v2876, 0
        %2882 = vmatprep.subr.mxu0 0.0
        %2883 = vmatpush1.msra.mxu0 %v2543
        %2884 = vmatprep.subr.mxu0 0.0
        %2885 = vmatpush1.msra.mxu0 %v2544
        %2886 = vmatprep.subr.mxu0 0.0
        %2887 = vmatpush1.msra.mxu0 0.0
        %2888 = vmatprep.subr.mxu0 0.0
        %2889 = vmatpush1.msra.mxu0 0.0
        %2890 = vmatprep.subr.mxu0 0.0
        %2891 = vmatpush1.msra.mxu0 0.0
        %2892 = vmatprep.subr.mxu0 0.0
        %2893 = vmatpush1.msra.mxu0 0.0
        %2894 = vmatprep.subr.mxu0 0.0
        %2895 = vmatpush1.msra.mxu0 0.0
        %2896 = vmatprep.subr.mxu0 0.0
        %2897 = vmatpush1.msra.mxu0 0.0
        %2898 = vmatprep.subr.mxu0 0.0
        %2899 = vmatpush1.msra.mxu0 0.0
        %2900 = vmatprep.subr.mxu0 0.0
        %2901 = vmatpush1.msra.mxu0 0.0
        %2902 = vmatprep.subr.mxu0 0.0
        %2903 = vmatpush1.msra.mxu0 0.0
        %2904 = vmatprep.subr.mxu0 0.0
        %2905 = vmatpush1.msra.mxu0 0.0
        %2906 = vmatprep.subr.mxu0 0.0
        %2907 = vmatpush1.msra.mxu0 0.0
        %2908 = vmatprep.subr.mxu0 0.0
        %2909 = vmatpush1.msra.mxu0 0.0
        %2910 = vmatprep.subr.mxu0 0.0
        %2911 = vmatpush1.msra.mxu0 0.0
        %2912 = vmatprep.subr.mxu0 0.0
        %2913 = vmatpush1.msra.mxu0 0.0
        %2914 = vmatprep.subr.mxu0 0.0
        %2915 = vmatpush1.msra.mxu0 0.0
        %2916 = vmatprep.subr.mxu0 0.0
        %2917 = vmatpush1.msra.mxu0 0.0
        %2918 = vmatprep.subr.mxu0 0.0
        %2919 = vmatpush1.msra.mxu0 0.0
        %2920 = vmatprep.subr.mxu0 0.0
        %2921 = vmatpush1.msra.mxu0 0.0
        %2922 = vmatprep.subr.mxu0 0.0
        %2923 = vmatpush1.msra.mxu0 0.0
        %2924 = vmatprep.subr.mxu0 0.0
        %2925 = vmatpush1.msra.mxu0 0.0
        %2926 = vmatprep.subr.mxu0 0.0
        %2927 = vmatpush1.msra.mxu0 0.0
        %2928 = vmatprep.subr.mxu0 0.0
        %2929 = vmatpush1.msra.mxu0 0.0
        %2930 = vmatprep.subr.mxu0 0.0
        %2931 = vmatpush1.msra.mxu0 0.0
        %2932 = vmatprep.subr.mxu0 0.0
        %2933 = vmatpush1.msra.mxu0 0.0
        %2934 = vmatprep.subr.mxu0 0.0
        %2935 = vmatpush1.msra.mxu0 0.0
        %2936 = vmatprep.subr.mxu0 0.0
        %2937 = vmatpush1.msra.mxu0 0.0
        %2938 = vmatprep.subr.mxu0 0.0
        %2939 = vmatpush1.msra.mxu0 0.0
        %2940 = vmatprep.subr.mxu0 0.0
        %2941 = vmatpush1.msra.mxu0 0.0
        %2942 = vmatprep.subr.mxu0 0.0
        %2943 = vmatpush1.msra.mxu0 0.0
        %2944 = vmatprep.subr.mxu0 0.0
        %2945 = vmatpush1.msra.mxu0 0.0
        %2946 = vmatprep.mubr.f32.mxu0 0.0
        %2947 = vmatmul.mubr.f32.gmra.mrb[0].mxu0 %v2880
        %v2948 = vpop.f32.mrb[0].mxu0
        %v2949 = vadd.f32 0.0, %v2948
        %v2950 = vpop.f32.mrb[0].mxu0
        %2951 = vdwg.mxu0
        %v2953 = vsel %vm2549, %v2709, 0
        %2955 = vmatprep.subr.mxu0 0.0
        %2956 = vmatpush1.msra.mxu0 %v2541
        %2957 = vmatprep.subr.mxu0 0.0
        %2958 = vmatpush1.msra.mxu0 %v2542
        %2959 = vmatprep.subr.mxu0 0.0
        %2960 = vmatpush1.msra.mxu0 0.0
        %2961 = vmatprep.subr.mxu0 0.0
        %2962 = vmatpush1.msra.mxu0 0.0
        %2963 = vmatprep.subr.mxu0 0.0
        %2964 = vmatpush1.msra.mxu0 0.0
        %2965 = vmatprep.subr.mxu0 0.0
        %2966 = vmatpush1.msra.mxu0 0.0
        %2967 = vmatprep.subr.mxu0 0.0
        %2968 = vmatpush1.msra.mxu0 0.0
        %2969 = vmatprep.subr.mxu0 0.0
        %2970 = vmatpush1.msra.mxu0 0.0
        %2971 = vmatprep.subr.mxu0 0.0
        %2972 = vmatpush1.msra.mxu0 0.0
        %2973 = vmatprep.subr.mxu0 0.0
        %2974 = vmatpush1.msra.mxu0 0.0
        %2975 = vmatprep.subr.mxu0 0.0
        %2976 = vmatpush1.msra.mxu0 0.0
        %2977 = vmatprep.subr.mxu0 0.0
        %2978 = vmatpush1.msra.mxu0 0.0
        %2979 = vmatprep.subr.mxu0 0.0
        %2980 = vmatpush1.msra.mxu0 0.0
        %2981 = vmatprep.subr.mxu0 0.0
        %2982 = vmatpush1.msra.mxu0 0.0
        %2983 = vmatprep.subr.mxu0 0.0
        %2984 = vmatpush1.msra.mxu0 0.0
        %2985 = vmatprep.subr.mxu0 0.0
        %2986 = vmatpush1.msra.mxu0 0.0
        %2987 = vmatprep.subr.mxu0 0.0
        %2988 = vmatpush1.msra.mxu0 0.0
        %2989 = vmatprep.subr.mxu0 0.0
        %2990 = vmatpush1.msra.mxu0 0.0
        %2991 = vmatprep.subr.mxu0 0.0
        %2992 = vmatpush1.msra.mxu0 0.0
        %2993 = vmatprep.subr.mxu0 0.0
        %2994 = vmatpush1.msra.mxu0 0.0
        %2995 = vmatprep.subr.mxu0 0.0
        %2996 = vmatpush1.msra.mxu0 0.0
        %2997 = vmatprep.subr.mxu0 0.0
        %2998 = vmatpush1.msra.mxu0 0.0
        %2999 = vmatprep.subr.mxu0 0.0
        %3000 = vmatpush1.msra.mxu0 0.0
        %3001 = vmatprep.subr.mxu0 0.0
        %3002 = vmatpush1.msra.mxu0 0.0
        %3003 = vmatprep.subr.mxu0 0.0
        %3004 = vmatpush1.msra.mxu0 0.0
        %3005 = vmatprep.subr.mxu0 0.0
        %3006 = vmatpush1.msra.mxu0 0.0
        %3007 = vmatprep.subr.mxu0 0.0
        %3008 = vmatpush1.msra.mxu0 0.0
        %3009 = vmatprep.subr.mxu0 0.0
        %3010 = vmatpush1.msra.mxu0 0.0
        %3011 = vmatprep.subr.mxu0 0.0
        %3012 = vmatpush1.msra.mxu0 0.0
        %3013 = vmatprep.subr.mxu0 0.0
        %3014 = vmatpush1.msra.mxu0 0.0
        %3015 = vmatprep.subr.mxu0 0.0
        %3016 = vmatpush1.msra.mxu0 0.0
        %3017 = vmatprep.subr.mxu0 0.0
        %3018 = vmatpush1.msra.mxu0 0.0
        %3019 = vmatprep.mubr.f32.mxu0 0.0
        %3020 = vmatmul.mubr.f32.gmra.mrb[0].mxu0 %v2953
        %v3021 = vpop.f32.mrb[0].mxu0
        %v3022 = vadd.f32 %v2949, %v3021
        %v3023 = vpop.f32.mrb[0].mxu0
        %3024 = vdwg.mxu0
        %3025 = vrot.lane.b32.xlu0 %v2368, 96
        %v3026 = vpop.permute.xlu0 %3025
        %3027 = vrot.lane.b32.xlu0 %v2453, 96
        %v3028 = vpop.permute.xlu0 %3027
        %v3029 = vsel %vm2549, %v3026, 0
        %v3031 = vsel %vm2549, %v3028, 0
        %3033 = vmatprep.subr.mxu0 0.0
        %3034 = vmatpush1.xpose.msra.mxu0 %v3031
        %3035 = vmatprep.subr.mxu0 0.0
        %3036 = vmatpush1.xpose.msra.mxu0 0.0
        %3037 = vmatprep.subr.mxu0 0.0
        %3038 = vmatpush1.xpose.msra.mxu0 0.0
        %3039 = vmatprep.subr.mxu0 0.0
        %3040 = vmatpush1.xpose.msra.mxu0 0.0
        %3041 = vmatprep.subr.mxu0 0.0
        %3042 = vmatpush1.xpose.msra.mxu0 0.0
        %3043 = vmatprep.subr.mxu0 0.0
        %3044 = vmatpush1.xpose.msra.mxu0 0.0
        %3045 = vmatprep.subr.mxu0 0.0
        %3046 = vmatpush1.xpose.msra.mxu0 0.0
        %3047 = vmatprep.subr.mxu0 0.0
        %3048 = vmatpush1.xpose.msra.mxu0 0.0
        %3049 = vmatprep.subr.mxu0 0.0
        %3050 = vmatpush1.xpose.msra.mxu0 0.0
        %3051 = vmatprep.subr.mxu0 0.0
        %3052 = vmatpush1.xpose.msra.mxu0 0.0
        %3053 = vmatprep.subr.mxu0 0.0
        %3054 = vmatpush1.xpose.msra.mxu0 0.0
        %3055 = vmatprep.subr.mxu0 0.0
        %3056 = vmatpush1.xpose.msra.mxu0 0.0
        %3057 = vmatprep.subr.mxu0 0.0
        %3058 = vmatpush1.xpose.msra.mxu0 0.0
        %3059 = vmatprep.subr.mxu0 0.0
        %3060 = vmatpush1.xpose.msra.mxu0 0.0
        %3061 = vmatprep.subr.mxu0 0.0
        %3062 = vmatpush1.xpose.msra.mxu0 0.0
        %3063 = vmatprep.subr.mxu0 0.0
        %3064 = vmatpush1.xpose.msra.mxu0 0.0
        %3065 = vmatprep.subr.mxu0 0.0
        %3066 = vmatpush1.xpose.msra.mxu0 0.0
        %3067 = vmatprep.subr.mxu0 0.0
        %3068 = vmatpush1.xpose.msra.mxu0 0.0
        %3069 = vmatprep.subr.mxu0 0.0
        %3070 = vmatpush1.xpose.msra.mxu0 0.0
        %3071 = vmatprep.subr.mxu0 0.0
        %3072 = vmatpush1.xpose.msra.mxu0 0.0
        %3073 = vmatprep.subr.mxu0 0.0
        %3074 = vmatpush1.xpose.msra.mxu0 0.0
        %3075 = vmatprep.subr.mxu0 0.0
        %3076 = vmatpush1.xpose.msra.mxu0 0.0
        %3077 = vmatprep.subr.mxu0 0.0
        %3078 = vmatpush1.xpose.msra.mxu0 0.0
        %3079 = vmatprep.subr.mxu0 0.0
        %3080 = vmatpush1.xpose.msra.mxu0 0.0
        %3081 = vmatprep.subr.mxu0 0.0
        %3082 = vmatpush1.xpose.msra.mxu0 0.0
        %3083 = vmatprep.subr.mxu0 0.0
        %3084 = vmatpush1.xpose.msra.mxu0 0.0
        %3085 = vmatprep.subr.mxu0 0.0
        %3086 = vmatpush1.xpose.msra.mxu0 0.0
        %3087 = vmatprep.subr.mxu0 0.0
        %3088 = vmatpush1.xpose.msra.mxu0 0.0
        %3089 = vmatprep.subr.mxu0 0.0
        %3090 = vmatpush1.xpose.msra.mxu0 0.0
        %3091 = vmatprep.subr.mxu0 0.0
        %3092 = vmatpush1.xpose.msra.mxu0 0.0
        %3093 = vmatprep.subr.mxu0 0.0
        %3094 = vmatpush1.xpose.msra.mxu0 0.0
        %3095 = vmatprep.subr.mxu0 0.0
        %3096 = vmatpush1.xpose.msra.mxu0 0.0
        %3097 = vmatprep.mubr.f32.mxu0 0.0
        %3098 = vmatmul.mubr.f32.gmra.mrb[0].mxu0 %v3029
        %v3099 = vpop.f32.mrb[0].mxu0
        %v3100 = vadd.f32 0.0, %v3099
        %v3101 = vpop.f32.mrb[0].mxu0
        %3102 = vdwg.mxu0
        %v3103 = vmul.f32 %v3100, 0.25
        %v3104 = vsel %vm2627, %v3103, -inf
        %3105 = vmax.xlane.f32.xlu0 %v3104
        %v3106 = vpop.xlane.xlu0 %3105
        %v3107 = vsub.f32 %v3103, %v3106
        %v3108 = vmul.f32 %v3107, 1.442695
        %v3109 = vpow.pop %v3108
        %v3110 = vsel %vm2627, %v3109, 0.0
        %3111 = vadd.xlane.f32.xlu0 %v3110
        %v3112 = vpop.xlane.xlu0 %3111
        %v3113 = vrcp.pop %v3112
        %v3114 = vmul.f32 %v3109, %v3113
        %3115 = vrot.lane.b32.xlu0 %v2538, 96
        %v3116 = vpop.permute.xlu0 %3115
        %v3119 = vsel %vm2627, %v3114, 0
        %3121 = vmatprep.subr.mxu0 0.0
        %3122 = vmatpush1.msra.mxu0 %v3116
        %3123 = vmatprep.subr.mxu0 0.0
        %3124 = vmatpush1.msra.mxu0 0.0
        %3125 = vmatprep.subr.mxu0 0.0
        %3126 = vmatpush1.msra.mxu0 0.0
        %3127 = vmatprep.subr.mxu0 0.0
        %3128 = vmatpush1.msra.mxu0 0.0
        %3129 = vmatprep.subr.mxu0 0.0
        %3130 = vmatpush1.msra.mxu0 0.0
        %3131 = vmatprep.subr.mxu0 0.0
        %3132 = vmatpush1.msra.mxu0 0.0
        %3133 = vmatprep.subr.mxu0 0.0
        %3134 = vmatpush1.msra.mxu0 0.0
        %3135 = vmatprep.subr.mxu0 0.0
        %3136 = vmatpush1.msra.mxu0 0.0
        %3137 = vmatprep.subr.mxu0 0.0
        %3138 = vmatpush1.msra.mxu0 0.0
        %3139 = vmatprep.subr.mxu0 0.0
        %3140 = vmatpush1.msra.mxu0 0.0
        %3141 = vmatprep.subr.mxu0 0.0
        %3142 = vmatpush1.msra.mxu0 0.0
        %3143 = vmatprep.subr.mxu0 0.0
        %3144 = vmatpush1.msra.mxu0 0.0
        %3145 = vmatprep.subr.mxu0 0.0
        %3146 = vmatpush1.msra.mxu0 0.0
        %3147 = vmatprep.subr.mxu0 0.0
        %3148 = vmatpush1.msra.mxu0 0.0
        %3149 = vmatprep.subr.mxu0 0.0
        %3150 = vmatpush1.msra.mxu0 0.0
        %3151 = vmatprep.subr.mxu0 0.0
        %3152 = vmatpush1.msra.mxu0 0.0
        %3153 = vmatprep.subr.mxu0 0.0
        %3154 = vmatpush1.msra.mxu0 0.0
        %3155 = vmatprep.subr.mxu0 0.0
        %3156 = vmatpush1.msra.mxu0 0.0
        %3157 = vmatprep.subr.mxu0 0.0
        %3158 = vmatpush1.msra.mxu0 0.0
        %3159 = vmatprep.subr.mxu0 0.0
        %3160 = vmatpush1.msra.mxu0 0.0
        %3161 = vmatprep.subr.mxu0 0.0
        %3162 = vmatpush1.msra.mxu0 0.0
        %3163 = vmatprep.subr.mxu0 0.0
        %3164 = vmatpush1.msra.mxu0 0.0
        %3165 = vmatprep.subr.mxu0 0.0
        %3166 = vmatpush1.msra.mxu0 0.0
        %3167 = vmatprep.subr.mxu0 0.0
        %3168 = vmatpush1.msra.mxu0 0.0
        %3169 = vmatprep.subr.mxu0 0.0
        %3170 = vmatpush1.msra.mxu0 0.0
        %3171 = vmatprep.subr.mxu0 0.0
        %3172 = vmatpush1.msra.mxu0 0.0
        %3173 = vmatprep.subr.mxu0 0.0
        %3174 = vmatpush1.msra.mxu0 0.0
        %3175 = vmatprep.subr.mxu0 0.0
        %3176 = vmatpush1.msra.mxu0 0.0
        %3177 = vmatprep.subr.mxu0 0.0
        %3178 = vmatpush1.msra.mxu0 0.0
        %3179 = vmatprep.subr.mxu0 0.0
        %3180 = vmatpush1.msra.mxu0 0.0
        %3181 = vmatprep.subr.mxu0 0.0
        %3182 = vmatpush1.msra.mxu0 0.0
        %3183 = vmatprep.subr.mxu0 0.0
        %3184 = vmatpush1.msra.mxu0 0.0
        %3185 = vmatprep.mubr.f32.mxu0 0.0
        %3186 = vmatmul.mubr.f32.gmra.mrb[0].mxu0 %v3119
        %v3187 = vpop.f32.mrb[0].mxu0
        %v3188 = vadd.f32 0.0, %v3187
        %v3189 = vpop.f32.mrb[0].mxu0
        %3190 = vdwg.mxu0
        %v3192 = vsel %vm2549, %v3188, 0
        %3194 = vmatprep.subr.mxu0 0.0
        %3195 = vmatpush1.msra.mxu0 %v2545
        %3196 = vmatprep.subr.mxu0 0.0
        %3197 = vmatpush1.msra.mxu0 %v2546
        %3198 = vmatprep.subr.mxu0 0.0
        %3199 = vmatpush1.msra.mxu0 0.0
        %3200 = vmatprep.subr.mxu0 0.0
        %3201 = vmatpush1.msra.mxu0 0.0
        %3202 = vmatprep.subr.mxu0 0.0
        %3203 = vmatpush1.msra.mxu0 0.0
        %3204 = vmatprep.subr.mxu0 0.0
        %3205 = vmatpush1.msra.mxu0 0.0
        %3206 = vmatprep.subr.mxu0 0.0
        %3207 = vmatpush1.msra.mxu0 0.0
        %3208 = vmatprep.subr.mxu0 0.0
        %3209 = vmatpush1.msra.mxu0 0.0
        %3210 = vmatprep.subr.mxu0 0.0
        %3211 = vmatpush1.msra.mxu0 0.0
        %3212 = vmatprep.subr.mxu0 0.0
        %3213 = vmatpush1.msra.mxu0 0.0
        %3214 = vmatprep.subr.mxu0 0.0
        %3215 = vmatpush1.msra.mxu0 0.0
        %3216 = vmatprep.subr.mxu0 0.0
        %3217 = vmatpush1.msra.mxu0 0.0
        %3218 = vmatprep.subr.mxu0 0.0
        %3219 = vmatpush1.msra.mxu0 0.0
        %3220 = vmatprep.subr.mxu0 0.0
        %3221 = vmatpush1.msra.mxu0 0.0
        %3222 = vmatprep.subr.mxu0 0.0
        %3223 = vmatpush1.msra.mxu0 0.0
        %3224 = vmatprep.subr.mxu0 0.0
        %3225 = vmatpush1.msra.mxu0 0.0
        %3226 = vmatprep.subr.mxu0 0.0
        %3227 = vmatpush1.msra.mxu0 0.0
        %3228 = vmatprep.subr.mxu0 0.0
        %3229 = vmatpush1.msra.mxu0 0.0
        %3230 = vmatprep.subr.mxu0 0.0
        %3231 = vmatpush1.msra.mxu0 0.0
        %3232 = vmatprep.subr.mxu0 0.0
        %3233 = vmatpush1.msra.mxu0 0.0
        %3234 = vmatprep.subr.mxu0 0.0
        %3235 = vmatpush1.msra.mxu0 0.0
        %3236 = vmatprep.subr.mxu0 0.0
        %3237 = vmatpush1.msra.mxu0 0.0
        %3238 = vmatprep.subr.mxu0 0.0
        %3239 = vmatpush1.msra.mxu0 0.0
        %3240 = vmatprep.subr.mxu0 0.0
        %3241 = vmatpush1.msra.mxu0 0.0
        %3242 = vmatprep.subr.mxu0 0.0
        %3243 = vmatpush1.msra.mxu0 0.0
        %3244 = vmatprep.subr.mxu0 0.0
        %3245 = vmatpush1.msra.mxu0 0.0
        %3246 = vmatprep.subr.mxu0 0.0
        %3247 = vmatpush1.msra.mxu0 0.0
        %3248 = vmatprep.subr.mxu0 0.0
        %3249 = vmatpush1.msra.mxu0 0.0
        %3250 = vmatprep.subr.mxu0 0.0
        %3251 = vmatpush1.msra.mxu0 0.0
        %3252 = vmatprep.subr.mxu0 0.0
        %3253 = vmatpush1.msra.mxu0 0.0
        %3254 = vmatprep.subr.mxu0 0.0
        %3255 = vmatpush1.msra.mxu0 0.0
        %3256 = vmatprep.subr.mxu0 0.0
        %3257 = vmatpush1.msra.mxu0 0.0
        %3258 = vmatprep.mubr.f32.mxu0 0.0
        %3259 = vmatmul.mubr.f32.gmra.mrb[0].mxu0 %v3192
        %v3260 = vpop.f32.mrb[0].mxu0
        %v3261 = vadd.f32 0.0, %v3260
        %v3262 = vpop.f32.mrb[0].mxu0
        %3263 = vdwg.mxu0
        %v3264 = vadd.f32 %v3022, %v3261
        %3265 = vrot.lane.b32.xlu0 %v2368, 80
        %v3266 = vpop.permute.xlu0 %3265
        %3267 = vrot.lane.b32.xlu0 %v2453, 80
        %v3268 = vpop.permute.xlu0 %3267
        %v3269 = vsel %vm2549, %v3266, 0
        %v3271 = vsel %vm2549, %v3268, 0
        %3273 = vmatprep.subr.mxu0 0.0
        %3274 = vmatpush1.xpose.msra.mxu0 %v3271
        %3275 = vmatprep.subr.mxu0 0.0
        %3276 = vmatpush1.xpose.msra.mxu0 0.0
        %3277 = vmatprep.subr.mxu0 0.0
        %3278 = vmatpush1.xpose.msra.mxu0 0.0
        %3279 = vmatprep.subr.mxu0 0.0
        %3280 = vmatpush1.xpose.msra.mxu0 0.0
        %3281 = vmatprep.subr.mxu0 0.0
        %3282 = vmatpush1.xpose.msra.mxu0 0.0
        %3283 = vmatprep.subr.mxu0 0.0
        %3284 = vmatpush1.xpose.msra.mxu0 0.0
        %3285 = vmatprep.subr.mxu0 0.0
        %3286 = vmatpush1.xpose.msra.mxu0 0.0
        %3287 = vmatprep.subr.mxu0 0.0
        %3288 = vmatpush1.xpose.msra.mxu0 0.0
        %3289 = vmatprep.subr.mxu0 0.0
        %3290 = vmatpush1.xpose.msra.mxu0 0.0
        %3291 = vmatprep.subr.mxu0 0.0
        %3292 = vmatpush1.xpose.msra.mxu0 0.0
        %3293 = vmatprep.subr.mxu0 0.0
        %3294 = vmatpush1.xpose.msra.mxu0 0.0
        %3295 = vmatprep.subr.mxu0 0.0
        %3296 = vmatpush1.xpose.msra.mxu0 0.0
        %3297 = vmatprep.subr.mxu0 0.0
        %3298 = vmatpush1.xpose.msra.mxu0 0.0
        %3299 = vmatprep.subr.mxu0 0.0
        %3300 = vmatpush1.xpose.msra.mxu0 0.0
        %3301 = vmatprep.subr.mxu0 0.0
        %3302 = vmatpush1.xpose.msra.mxu0 0.0
        %3303 = vmatprep.subr.mxu0 0.0
        %3304 = vmatpush1.xpose.msra.mxu0 0.0
        %3305 = vmatprep.subr.mxu0 0.0
        %3306 = vmatpush1.xpose.msra.mxu0 0.0
        %3307 = vmatprep.subr.mxu0 0.0
        %3308 = vmatpush1.xpose.msra.mxu0 0.0
        %3309 = vmatprep.subr.mxu0 0.0
        %3310 = vmatpush1.xpose.msra.mxu0 0.0
        %3311 = vmatprep.subr.mxu0 0.0
        %3312 = vmatpush1.xpose.msra.mxu0 0.0
        %3313 = vmatprep.subr.mxu0 0.0
        %3314 = vmatpush1.xpose.msra.mxu0 0.0
        %3315 = vmatprep.subr.mxu0 0.0
        %3316 = vmatpush1.xpose.msra.mxu0 0.0
        %3317 = vmatprep.subr.mxu0 0.0
        %3318 = vmatpush1.xpose.msra.mxu0 0.0
        %3319 = vmatprep.subr.mxu0 0.0
        %3320 = vmatpush1.xpose.msra.mxu0 0.0
        %3321 = vmatprep.subr.mxu0 0.0
        %3322 = vmatpush1.xpose.msra.mxu0 0.0
        %3323 = vmatprep.subr.mxu0 0.0
        %3324 = vmatpush1.xpose.msra.mxu0 0.0
        %3325 = vmatprep.subr.mxu0 0.0
        %3326 = vmatpush1.xpose.msra.mxu0 0.0
        %3327 = vmatprep.subr.mxu0 0.0
        %3328 = vmatpush1.xpose.msra.mxu0 0.0
        %3329 = vmatprep.subr.mxu0 0.0
        %3330 = vmatpush1.xpose.msra.mxu0 0.0
        %3331 = vmatprep.subr.mxu0 0.0
        %3332 = vmatpush1.xpose.msra.mxu0 0.0
        %3333 = vmatprep.subr.mxu0 0.0
        %3334 = vmatpush1.xpose.msra.mxu0 0.0
        %3335 = vmatprep.subr.mxu0 0.0
        %3336 = vmatpush1.xpose.msra.mxu0 0.0
        %3337 = vmatprep.mubr.f32.mxu0 0.0
        %3338 = vmatmul.mubr.f32.gmra.mrb[0].mxu0 %v3269
        %v3339 = vpop.f32.mrb[0].mxu0
        %v3340 = vadd.f32 0.0, %v3339
        %v3341 = vpop.f32.mrb[0].mxu0
        %3342 = vdwg.mxu0
        %v3343 = vmul.f32 %v3340, 0.25
        %v3344 = vsel %vm2627, %v3343, -inf
        %3345 = vmax.xlane.f32.xlu0 %v3344
        %v3346 = vpop.xlane.xlu0 %3345
        %v3347 = vsub.f32 %v3343, %v3346
        %v3348 = vmul.f32 %v3347, 1.442695
        %v3349 = vpow.pop %v3348
        %v3350 = vsel %vm2627, %v3349, 0.0
        %3351 = vadd.xlane.f32.xlu0 %v3350
        %v3352 = vpop.xlane.xlu0 %3351
        %v3353 = vrcp.pop %v3352
        %v3354 = vmul.f32 %v3349, %v3353
        %3355 = vrot.lane.b32.xlu0 %v2538, 80
        %v3356 = vpop.permute.xlu0 %3355
        %v3359 = vsel %vm2627, %v3354, 0
        %3361 = vmatprep.subr.mxu0 0.0
        %3362 = vmatpush1.msra.mxu0 %v3356
        %3363 = vmatprep.subr.mxu0 0.0
        %3364 = vmatpush1.msra.mxu0 0.0
        %3365 = vmatprep.subr.mxu0 0.0
        %3366 = vmatpush1.msra.mxu0 0.0
        %3367 = vmatprep.subr.mxu0 0.0
        %3368 = vmatpush1.msra.mxu0 0.0
        %3369 = vmatprep.subr.mxu0 0.0
        %3370 = vmatpush1.msra.mxu0 0.0
        %3371 = vmatprep.subr.mxu0 0.0
        %3372 = vmatpush1.msra.mxu0 0.0
        %3373 = vmatprep.subr.mxu0 0.0
        %3374 = vmatpush1.msra.mxu0 0.0
        %3375 = vmatprep.subr.mxu0 0.0
        %3376 = vmatpush1.msra.mxu0 0.0
        %3377 = vmatprep.subr.mxu0 0.0
        %3378 = vmatpush1.msra.mxu0 0.0
        %3379 = vmatprep.subr.mxu0 0.0
        %3380 = vmatpush1.msra.mxu0 0.0
        %3381 = vmatprep.subr.mxu0 0.0
        %3382 = vmatpush1.msra.mxu0 0.0
        %3383 = vmatprep.subr.mxu0 0.0
        %3384 = vmatpush1.msra.mxu0 0.0
        %3385 = vmatprep.subr.mxu0 0.0
        %3386 = vmatpush1.msra.mxu0 0.0
        %3387 = vmatprep.subr.mxu0 0.0
        %3388 = vmatpush1.msra.mxu0 0.0
        %3389 = vmatprep.subr.mxu0 0.0
        %3390 = vmatpush1.msra.mxu0 0.0
        %3391 = vmatprep.subr.mxu0 0.0
        %3392 = vmatpush1.msra.mxu0 0.0
        %3393 = vmatprep.subr.mxu0 0.0
        %3394 = vmatpush1.msra.mxu0 0.0
        %3395 = vmatprep.subr.mxu0 0.0
        %3396 = vmatpush1.msra.mxu0 0.0
        %3397 = vmatprep.subr.mxu0 0.0
        %3398 = vmatpush1.msra.mxu0 0.0
        %3399 = vmatprep.subr.mxu0 0.0
        %3400 = vmatpush1.msra.mxu0 0.0
        %3401 = vmatprep.subr.mxu0 0.0
        %3402 = vmatpush1.msra.mxu0 0.0
        %3403 = vmatprep.subr.mxu0 0.0
        %3404 = vmatpush1.msra.mxu0 0.0
        %3405 = vmatprep.subr.mxu0 0.0
        %3406 = vmatpush1.msra.mxu0 0.0
        %3407 = vmatprep.subr.mxu0 0.0
        %3408 = vmatpush1.msra.mxu0 0.0
        %3409 = vmatprep.subr.mxu0 0.0
        %3410 = vmatpush1.msra.mxu0 0.0
        %3411 = vmatprep.subr.mxu0 0.0
        %3412 = vmatpush1.msra.mxu0 0.0
        %3413 = vmatprep.subr.mxu0 0.0
        %3414 = vmatpush1.msra.mxu0 0.0
        %3415 = vmatprep.subr.mxu0 0.0
        %3416 = vmatpush1.msra.mxu0 0.0
        %3417 = vmatprep.subr.mxu0 0.0
        %3418 = vmatpush1.msra.mxu0 0.0
        %3419 = vmatprep.subr.mxu0 0.0
        %3420 = vmatpush1.msra.mxu0 0.0
        %3421 = vmatprep.subr.mxu0 0.0
        %3422 = vmatpush1.msra.mxu0 0.0
        %3423 = vmatprep.subr.mxu0 0.0
        %3424 = vmatpush1.msra.mxu0 0.0
        %3425 = vmatprep.mubr.f32.mxu0 0.0
        %3426 = vmatmul.mubr.f32.gmra.mrb[0].mxu0 %v3359
        %v3427 = vpop.f32.mrb[0].mxu0
        %v3428 = vadd.f32 0.0, %v3427
        %v3429 = vpop.f32.mrb[0].mxu0
        %3430 = vdwg.mxu0
        %v3432 = vsel %vm2549, %v3428, 0
        %3434 = vmatprep.subr.mxu0 0.0
        %3435 = vmatpush1.msra.mxu0 %v2547
        %3436 = vmatprep.subr.mxu0 0.0
        %3437 = vmatpush1.msra.mxu0 %v2548
        %3438 = vmatprep.subr.mxu0 0.0
        %3439 = vmatpush1.msra.mxu0 0.0
        %3440 = vmatprep.subr.mxu0 0.0
        %3441 = vmatpush1.msra.mxu0 0.0
        %3442 = vmatprep.subr.mxu0 0.0
        %3443 = vmatpush1.msra.mxu0 0.0
        %3444 = vmatprep.subr.mxu0 0.0
        %3445 = vmatpush1.msra.mxu0 0.0
        %3446 = vmatprep.subr.mxu0 0.0
        %3447 = vmatpush1.msra.mxu0 0.0
        %3448 = vmatprep.subr.mxu0 0.0
        %3449 = vmatpush1.msra.mxu0 0.0
        %3450 = vmatprep.subr.mxu0 0.0
        %3451 = vmatpush1.msra.mxu0 0.0
        %3452 = vmatprep.subr.mxu0 0.0
        %3453 = vmatpush1.msra.mxu0 0.0
        %3454 = vmatprep.subr.mxu0 0.0
        %3455 = vmatpush1.msra.mxu0 0.0
        %3456 = vmatprep.subr.mxu0 0.0
        %3457 = vmatpush1.msra.mxu0 0.0
        %3458 = vmatprep.subr.mxu0 0.0
        %3459 = vmatpush1.msra.mxu0 0.0
        %3460 = vmatprep.subr.mxu0 0.0
        %3461 = vmatpush1.msra.mxu0 0.0
        %3462 = vmatprep.subr.mxu0 0.0
        %3463 = vmatpush1.msra.mxu0 0.0
        %3464 = vmatprep.subr.mxu0 0.0
        %3465 = vmatpush1.msra.mxu0 0.0
        %3466 = vmatprep.subr.mxu0 0.0
        %3467 = vmatpush1.msra.mxu0 0.0
        %3468 = vmatprep.subr.mxu0 0.0
        %3469 = vmatpush1.msra.mxu0 0.0
        %3470 = vmatprep.subr.mxu0 0.0
        %3471 = vmatpush1.msra.mxu0 0.0
        %3472 = vmatprep.subr.mxu0 0.0
        %3473 = vmatpush1.msra.mxu0 0.0
        %3474 = vmatprep.subr.mxu0 0.0
        %3475 = vmatpush1.msra.mxu0 0.0
        %3476 = vmatprep.subr.mxu0 0.0
        %3477 = vmatpush1.msra.mxu0 0.0
        %3478 = vmatprep.subr.mxu0 0.0
        %3479 = vmatpush1.msra.mxu0 0.0
        %3480 = vmatprep.subr.mxu0 0.0
        %3481 = vmatpush1.msra.mxu0 0.0
        %3482 = vmatprep.subr.mxu0 0.0
        %3483 = vmatpush1.msra.mxu0 0.0
        %3484 = vmatprep.subr.mxu0 0.0
        %3485 = vmatpush1.msra.mxu0 0.0
        %3486 = vmatprep.subr.mxu0 0.0
        %3487 = vmatpush1.msra.mxu0 0.0
        %3488 = vmatprep.subr.mxu0 0.0
        %3489 = vmatpush1.msra.mxu0 0.0
        %3490 = vmatprep.subr.mxu0 0.0
        %3491 = vmatpush1.msra.mxu0 0.0
        %3492 = vmatprep.subr.mxu0 0.0
        %3493 = vmatpush1.msra.mxu0 0.0
        %3494 = vmatprep.subr.mxu0 0.0
        %3495 = vmatpush1.msra.mxu0 0.0
        %3496 = vmatprep.subr.mxu0 0.0
        %3497 = vmatpush1.msra.mxu0 0.0
        %3498 = vmatprep.mubr.f32.mxu0 0.0
        %3499 = vmatmul.mubr.f32.gmra.mrb[0].mxu0 %v3432
        %v3500 = vpop.f32.mrb[0].mxu0
        %v3501 = vadd.f32 0.0, %v3500
        %v3502 = vpop.f32.mrb[0].mxu0
        %3503 = vdwg.mxu0
        %v3504 = vadd.f32 %v3264, %v3501
        %v3505 = vadd.f32 %v2251, %v3504
        %v3506 = vld [vmem:[#allocation16] sm:$0x1]
        %v3508 = vlaneseq
        %v3509 = vshrl.u32 %v3508, 7
        %v3510 = vsub.s32 0, %v3509
        %v3511 = vrot.slane %v3506, %v3510
        %v3513 = vadd.f32 %v3505, %v3511
        %v3514 = vld [vmem:[#allocation18] sm:$0x1]
        %v3515 = vld [vmem:[#allocation19] sm:$0x1]
        %v3516 = vsel %vm2254, %v3513, 0.0
        %3517 = vadd.xlane.f32.xlu0 %v3516
        %v3518 = vpop.xlane.xlu0 %3517
        %v3519 = vmul.f32 %v3518, %v2258
        %v3520 = vsub.f32 %v3513, %v3519
        %v3521 = vmul.f32 %v3520, %v3520
        %v3522 = vsel %vm2254, %v3521, 0.0
        %3523 = vadd.xlane.f32.xlu0 %v3522
        %v3524 = vpop.xlane.xlu0 %3523
        %v3525 = vmul.f32 %v3524, %v2258
        %v3526 = vadd.f32 %v3525, 1e-05
        %v3527 = vrsqrt.pop %v3526
        %v3528 = vmul.f32 %v3520, %v3527
        %v3530 = vlaneseq
        %v3531 = vshrl.u32 %v3530, 7
        %v3532 = vsub.s32 0, %v3531
        %v3533 = vrot.slane %v3514, %v3532
        %v3535 = vmul.f32 %v3528, %v3533
        %v3537 = vlaneseq
        %v3538 = vshrl.u32 %v3537, 7
        %v3539 = vsub.s32 0, %v3538
        %v3540 = vrot.slane %v3515, %v3539
        %v3542 = vadd.f32 %v3535, %v3540
        %v3543 = vld [vmem:[%s35] sm:$0xff]
        %v3544 = vld [vmem:[%s35 + $0x8] sm:$0xff]
        %v3545 = vld [vmem:[%s35 + $0x10] sm:$0xff]
        %v3546 = vld [vmem:[%s35 + $0x18] sm:$0xff]
        %v3547 = vld [vmem:[%s35 + $0x20] sm:$0xff]
        %v3548 = vld [vmem:[%s35 + $0x28] sm:$0xff]
        %v3549 = vld [vmem:[%s35 + $0x30] sm:$0xff]
        %v3550 = vld [vmem:[%s35 + $0x38] sm:$0xff]
        %v3551 = vld [vmem:[#allocation21] sm:$0x1]
        %v3553 = vlaneseq
        %v3554 = vshrl.u32 %v3553, 7
        %v3555 = vsub.s32 0, %v3554
        %v3556 = vrot.slane %v3551, %v3555
        %v3559 = vsel %vm2254, %v3542, 0
        %3561 = vmatprep.subr.mxu0 0.0
        %3562 = vmatpush1.msra.mxu0 %v3543
        %3563 = vmatprep.subr.mxu0 0.0
        %3564 = vmatpush1.msra.mxu0 %v3544
        %3565 = vmatprep.subr.mxu0 0.0
        %3566 = vmatpush1.msra.mxu0 %v3545
        %3567 = vmatprep.subr.mxu0 0.0
        %3568 = vmatpush1.msra.mxu0 %v3546
        %3569 = vmatprep.subr.mxu0 0.0
        %3570 = vmatpush1.msra.mxu0 %v3547
        %3571 = vmatprep.subr.mxu0 0.0
        %3572 = vmatpush1.msra.mxu0 %v3548
        %3573 = vmatprep.subr.mxu0 0.0
        %3574 = vmatpush1.msra.mxu0 %v3549
        %3575 = vmatprep.subr.mxu0 0.0
        %3576 = vmatpush1.msra.mxu0 %v3550
        %3577 = vmatprep.subr.mxu0 0.0
        %3578 = vmatpush1.msra.mxu0 0.0
        %3579 = vmatprep.subr.mxu0 0.0
        %3580 = vmatpush1.msra.mxu0 0.0
        %3581 = vmatprep.subr.mxu0 0.0
        %3582 = vmatpush1.msra.mxu0 0.0
        %3583 = vmatprep.subr.mxu0 0.0
        %3584 = vmatpush1.msra.mxu0 0.0
        %3585 = vmatprep.subr.mxu0 0.0
        %3586 = vmatpush1.msra.mxu0 0.0
        %3587 = vmatprep.subr.mxu0 0.0
        %3588 = vmatpush1.msra.mxu0 0.0
        %3589 = vmatprep.subr.mxu0 0.0
        %3590 = vmatpush1.msra.mxu0 0.0
        %3591 = vmatprep.subr.mxu0 0.0
        %3592 = vmatpush1.msra.mxu0 0.0
        %3593 = vmatprep.subr.mxu0 0.0
        %3594 = vmatpush1.msra.mxu0 0.0
        %3595 = vmatprep.subr.mxu0 0.0
        %3596 = vmatpush1.msra.mxu0 0.0
        %3597 = vmatprep.subr.mxu0 0.0
        %3598 = vmatpush1.msra.mxu0 0.0
        %3599 = vmatprep.subr.mxu0 0.0
        %3600 = vmatpush1.msra.mxu0 0.0
        %3601 = vmatprep.subr.mxu0 0.0
        %3602 = vmatpush1.msra.mxu0 0.0
        %3603 = vmatprep.subr.mxu0 0.0
        %3604 = vmatpush1.msra.mxu0 0.0
        %3605 = vmatprep.subr.mxu0 0.0
        %3606 = vmatpush1.msra.mxu0 0.0
        %3607 = vmatprep.subr.mxu0 0.0
        %3608 = vmatpush1.msra.mxu0 0.0
        %3609 = vmatprep.subr.mxu0 0.0
        %3610 = vmatpush1.msra.mxu0 0.0
        %3611 = vmatprep.subr.mxu0 0.0
        %3612 = vmatpush1.msra.mxu0 0.0
        %3613 = vmatprep.subr.mxu0 0.0
        %3614 = vmatpush1.msra.mxu0 0.0
        %3615 = vmatprep.subr.mxu0 0.0
        %3616 = vmatpush1.msra.mxu0 0.0
        %3617 = vmatprep.subr.mxu0 0.0
        %3618 = vmatpush1.msra.mxu0 0.0
        %3619 = vmatprep.subr.mxu0 0.0
        %3620 = vmatpush1.msra.mxu0 0.0
        %3621 = vmatprep.subr.mxu0 0.0
        %3622 = vmatpush1.msra.mxu0 0.0
        %3623 = vmatprep.subr.mxu0 0.0
        %3624 = vmatpush1.msra.mxu0 0.0
        %3625 = vmatprep.mubr.f32.mxu0 0.0
        %3626 = vmatmul.mubr.f32.gmra.mrb[0].mxu0 %v3559
        %v3627 = vpop.f32.mrb[0].mxu0
        %v3628 = vadd.f32 %v3556, %v3627
        %v3629 = vpop.f32.mrb[0].mxu0
        %3630 = vdwg.mxu0
        %v3631 = vmul.f32 %v3628, 0.5
        %v3632 = vmul.f32 %v3628, 0.70710677
        %v3633 = verf.f32.pop %v3632
        %v3634 = vadd.f32 %v3633, 1.0
        %v3635 = vmul.f32 %v3631, %v3634
        %v3636 = vld [vmem:[%s39] sm:$0xff]
        %v3637 = vld [vmem:[%s39 + $0x8] sm:$0xff]
        %v3638 = vld [vmem:[%s39 + $0x10] sm:$0xff]
        %v3639 = vld [vmem:[%s39 + $0x18] sm:$0xff]
        %v3640 = vld [vmem:[%s39 + $0x20] sm:$0xff]
        %v3641 = vld [vmem:[%s39 + $0x28] sm:$0xff]
        %v3642 = vld [vmem:[%s39 + $0x30] sm:$0xff]
        %v3643 = vld [vmem:[%s39 + $0x38] sm:$0xff]
        %v3644 = vld [vmem:[%s39 + $0x40] sm:$0xff]
        %v3645 = vld [vmem:[%s39 + $0x48] sm:$0xff]
        %v3646 = vld [vmem:[%s39 + $0x50] sm:$0xff]
        %v3647 = vld [vmem:[%s39 + $0x58] sm:$0xff]
        %v3648 = vld [vmem:[%s39 + $0x60] sm:$0xff]
        %v3649 = vld [vmem:[%s39 + $0x68] sm:$0xff]
        %v3650 = vld [vmem:[%s39 + $0x70] sm:$0xff]
        %v3651 = vld [vmem:[%s39 + $0x78] sm:$0xff]
        %v3652 = vld [vmem:[#allocation22] sm:$0x1]
        %v3654 = vlaneseq
        %v3655 = vshrl.u32 %v3654, 7
        %v3656 = vsub.s32 0, %v3655
        %v3657 = vrot.slane %v3652, %v3656
        %3659 = vmatprep.subr.mxu0 0.0
        %3660 = vmatpush1.msra.mxu0 %v3636
        %3661 = vmatprep.subr.mxu0 0.0
        %3662 = vmatpush1.msra.mxu0 %v3637
        %3663 = vmatprep.subr.mxu0 0.0
        %3664 = vmatpush1.msra.mxu0 %v3638
        %3665 = vmatprep.subr.mxu0 0.0
        %3666 = vmatpush1.msra.mxu0 %v3639
        %3667 = vmatprep.subr.mxu0 0.0
        %3668 = vmatpush1.msra.mxu0 %v3640
        %3669 = vmatprep.subr.mxu0 0.0
        %3670 = vmatpush1.msra.mxu0 %v3641
        %3671 = vmatprep.subr.mxu0 0.0
        %3672 = vmatpush1.msra.mxu0 %v3642
        %3673 = vmatprep.subr.mxu0 0.0
        %3674 = vmatpush1.msra.mxu0 %v3643
        %3675 = vmatprep.subr.mxu0 0.0
        %3676 = vmatpush1.msra.mxu0 %v3644
        %3677 = vmatprep.subr.mxu0 0.0
        %3678 = vmatpush1.msra.mxu0 %v3645
        %3679 = vmatprep.subr.mxu0 0.0
        %3680 = vmatpush1.msra.mxu0 %v3646
        %3681 = vmatprep.subr.mxu0 0.0
        %3682 = vmatpush1.msra.mxu0 %v3647
        %3683 = vmatprep.subr.mxu0 0.0
        %3684 = vmatpush1.msra.mxu0 %v3648
        %3685 = vmatprep.subr.mxu0 0.0
        %3686 = vmatpush1.msra.mxu0 %v3649
        %3687 = vmatprep.subr.mxu0 0.0
        %3688 = vmatpush1.msra.mxu0 %v3650
        %3689 = vmatprep.subr.mxu0 0.0
        %3690 = vmatpush1.msra.mxu0 %v3651
        %3691 = vmatprep.subr.mxu0 0.0
        %3692 = vmatpush1.msra.mxu0 0.0
        %3693 = vmatprep.subr.mxu0 0.0
        %3694 = vmatpush1.msra.mxu0 0.0
        %3695 = vmatprep.subr.mxu0 0.0
        %3696 = vmatpush1.msra.mxu0 0.0
        %3697 = vmatprep.subr.mxu0 0.0
        %3698 = vmatpush1.msra.mxu0 0.0
        %3699 = vmatprep.subr.mxu0 0.0
        %3700 = vmatpush1.msra.mxu0 0.0
        %3701 = vmatprep.subr.mxu0 0.0
        %3702 = vmatpush1.msra.mxu0 0.0
        %3703 = vmatprep.subr.mxu0 0.0
        %3704 = vmatpush1.msra.mxu0 0.0
        %3705 = vmatprep.subr.mxu0 0.0
        %3706 = vmatpush1.msra.mxu0 0.0
        %3707 = vmatprep.subr.mxu0 0.0
        %3708 = vmatpush1.msra.mxu0 0.0
        %3709 = vmatprep.subr.mxu0 0.0
        %3710 = vmatpush1.msra.mxu0 0.0
        %3711 = vmatprep.subr.mxu0 0.0
        %3712 = vmatpush1.msra.mxu0 0.0
        %3713 = vmatprep.subr.mxu0 0.0
        %3714 = vmatpush1.msra.mxu0 0.0
        %3715 = vmatprep.subr.mxu0 0.0
        %3716 = vmatpush1.msra.mxu0 0.0
        %3717 = vmatprep.subr.mxu0 0.0
        %3718 = vmatpush1.msra.mxu0 0.0
        %3719 = vmatprep.subr.mxu0 0.0
        %3720 = vmatpush1.msra.mxu0 0.0
        %3721 = vmatprep.subr.mxu0 0.0
        %3722 = vmatpush1.msra.mxu0 0.0
        %3723 = vmatprep.mubr.f32.mxu0 0.0
        %3724 = vmatmul.mubr.f32.gmra.mrb[0].mxu0 %v3635
        %v3725 = vpop.f32.mrb[0].mxu0
        %v3726 = vadd.f32 %v3657, %v3725
        %v3727 = vpop.f32.mrb[0].mxu0
        %3728 = vdwg.mxu0
        %v3729 = vadd.f32 %v3513, %v3726
        %v3732 = vrot.slane %v2236, 7
        %v3733 = vrot.slane %v2237, 7
        %v3734 = vsel %vm2248, %v3732, %v3733
        %v3738 = vrot.slane %v3729, 4
        %v3740 = vsel %vm2248, %v2239, %v3732
        %vm3741 = vcmask 1041408
        %v3742 = vsel %vm3741, %v3734, %v3738
        %v3743 = vld [vmem:[#allocation24] sm:$0x1]
        %v3744 = vld [vmem:[#allocation25] sm:$0x1]
        %v3745 = vsel %vm2254, %v3740, 0.0
        %3746 = vadd.xlane.f32.xlu0 %v3745
        %v3747 = vpop.xlane.xlu0 %3746
        %vm3748 = vcmask 519168
        %v3749 = vsel %vm3748, %v3742, 0.0
        %3750 = vadd.xlane.f32.xlu0 %v3749
        %v3751 = vpop.xlane.xlu0 %3750
        %v3752 = vmul.f32 %v3747, %v2258
        %v3753 = vmul.f32 %v3751, %v2258
        %v3754 = vsub.f32 %v3740, %v3752
        %v3755 = vsub.f32 %v3742, %v3753
        %v3756 = vmul.f32 %v3754, %v3754
        %v3757 = vmul.f32 %v3755, %v3755
        %v3758 = vsel %vm2254, %v3756, 0.0
        %3759 = vadd.xlane.f32.xlu0 %v3758
        %v3760 = vpop.xlane.xlu0 %3759
        %v3761 = vsel %vm3748, %v3757, 0.0
        %3762 = vadd.xlane.f32.xlu0 %v3761
        %v3763 = vpop.xlane.xlu0 %3762
        %v3764 = vmul.f32 %v3760, %v2258
        %v3765 = vmul.f32 %v3763, %v2258
        %v3766 = vadd.f32 %v3764, 1e-05
        %v3767 = vadd.f32 %v3765, 1e-05
        %v3768 = vrsqrt.pop %v3766
        %v3769 = vrsqrt.pop %v3767
        %v3770 = vmul.f32 %v3754, %v3768
        %v3771 = vmul.f32 %v3755, %v3769
        %v3773 = vlaneseq
        %v3774 = vshrl.u32 %v3773, 7
        %v3775 = vsub.s32 0, %v3774
        %v3776 = vrot.slane %v3743, %v3775
        %v3778 = vmul.f32 %v3770, %v3776
        %v3779 = vmul.f32 %v3771, %v3776
        %v3781 = vlaneseq
        %v3782 = vshrl.u32 %v3781, 7
        %v3783 = vsub.s32 0, %v3782
        %v3784 = vrot.slane %v3744, %v3783
        %v3786 = vadd.f32 %v3778, %v3784
        %v3787 = vadd.f32 %v3779, %v3784
        %v3788 = vld [vmem:[%s47] sm:$0xff]
        %v3789 = vld [vmem:[%s47 + $0x8] sm:$0xff]
        %v3790 = vld [vmem:[%s47 + $0x10] sm:$0xff]
        %v3791 = vld [vmem:[%s47 + $0x18] sm:$0xff]
        %v3792 = vld [vmem:[%s47 + $0x20] sm:$0xff]
        %v3793 = vld [vmem:[%s47 + $0x28] sm:$0xff]
        %v3794 = vld [vmem:[%s47 + $0x30] sm:$0xff]
        %v3795 = vld [vmem:[%s47 + $0x38] sm:$0xff]
        %v3796 = vld [vmem:[#allocation27] sm:$0x1]
        %v3798 = vlaneseq
        %v3799 = vshrl.u32 %v3798, 7
        %v3800 = vsub.s32 0, %v3799
        %v3801 = vrot.slane %v3796, %v3800
        %v3804 = vsel %vm2254, %v3786, 0
        %v3807 = vsel %vm2254, %v3787, 0
        %3809 = vmatprep.subr.mxu0 0.0
        %3810 = vmatpush1.msra.mxu0 %v3788
        %3811 = vmatprep.subr.mxu0 0.0
        %3812 = vmatpush1.msra.mxu0 %v3789
        %3813 = vmatprep.subr.mxu0 0.0
        %3814 = vmatpush1.msra.mxu0 %v3790
        %3815 = vmatprep.subr.mxu0 0.0
        %3816 = vmatpush1.msra.mxu0 %v3791
        %3817 = vmatprep.subr.mxu0 0.0
        %3818 = vmatpush1.msra.mxu0 %v3792
        %3819 = vmatprep.subr.mxu0 0.0
        %3820 = vmatpush1.msra.mxu0 %v3793
        %3821 = vmatprep.subr.mxu0 0.0
        %3822 = vmatpush1.msra.mxu0 %v3794
        %3823 = vmatprep.subr.mxu0 0.0
        %3824 = vmatpush1.msra.mxu0 %v3795
        %3825 = vmatprep.subr.mxu0 0.0
        %3826 = vmatpush1.msra.mxu0 0.0
        %3827 = vmatprep.subr.mxu0 0.0
        %3828 = vmatpush1.msra.mxu0 0.0
        %3829 = vmatprep.subr.mxu0 0.0
        %3830 = vmatpush1.msra.mxu0 0.0
        %3831 = vmatprep.subr.mxu0 0.0
        %3832 = vmatpush1.msra.mxu0 0.0
        %3833 = vmatprep.subr.mxu0 0.0
        %3834 = vmatpush1.msra.mxu0 0.0
        %3835 = vmatprep.subr.mxu0 0.0
        %3836 = vmatpush1.msra.mxu0 0.0
        %3837 = vmatprep.subr.mxu0 0.0
        %3838 = vmatpush1.msra.mxu0 0.0
        %3839 = vmatprep.subr.mxu0 0.0
        %3840 = vmatpush1.msra.mxu0 0.0
        %3841 = vmatprep.subr.mxu0 0.0
        %3842 = vmatpush1.msra.mxu0 0.0
        %3843 = vmatprep.subr.mxu0 0.0
        %3844 = vmatpush1.msra.mxu0 0.0
        %3845 = vmatprep.subr.mxu0 0.0
        %3846 = vmatpush1.msra.mxu0 0.0
        %3847 = vmatprep.subr.mxu0 0.0
        %3848 = vmatpush1.msra.mxu0 0.0
        %3849 = vmatprep.subr.mxu0 0.0
        %3850 = vmatpush1.msra.mxu0 0.0
        %3851 = vmatprep.subr.mxu0 0.0
        %3852 = vmatpush1.msra.mxu0 0.0
        %3853 = vmatprep.subr.mxu0 0.0
        %3854 = vmatpush1.msra.mxu0 0.0
        %3855 = vmatprep.subr.mxu0 0.0
        %3856 = vmatpush1.msra.mxu0 0.0
        %3857 = vmatprep.subr.mxu0 0.0
        %3858 = vmatpush1.msra.mxu0 0.0
        %3859 = vmatprep.subr.mxu0 0.0
        %3860 = vmatpush1.msra.mxu0 0.0
        %3861 = vmatprep.subr.mxu0 0.0
        %3862 = vmatpush1.msra.mxu0 0.0
        %3863 = vmatprep.subr.mxu0 0.0
        %3864 = vmatpush1.msra.mxu0 0.0
        %3865 = vmatprep.subr.mxu0 0.0
        %3866 = vmatpush1.msra.mxu0 0.0
        %3867 = vmatprep.subr.mxu0 0.0
        %3868 = vmatpush1.msra.mxu0 0.0
        %3869 = vmatprep.subr.mxu0 0.0
        %3870 = vmatpush1.msra.mxu0 0.0
        %3871 = vmatprep.subr.mxu0 0.0
        %3872 = vmatpush1.msra.mxu0 0.0
        %3873 = vmatprep.mubr.f32.mxu0 0.0
        %3874 = vmatmul.mubr.f32.gmra.mrb[0].mxu0 %v3804
        %v3875 = vpop.f32.mrb[0].mxu0
        %v3876 = vadd.f32 %v3801, %v3875
        %v3877 = vpop.f32.mrb[0].mxu0
        %3878 = vmatprep.mubr.f32.mxu0 0.0
        %3879 = vmatmul.mubr.f32.gmra.mrb[0].mxu0 %v3807
        %v3880 = vpop.f32.mrb[0].mxu0
        %v3881 = vadd.f32 %v3801, %v3880
        %v3882 = vpop.f32.mrb[0].mxu0
        %3883 = vdwg.mxu0
        %v3884 = vld [vmem:[%s51] sm:$0xff]
        %v3885 = vld [vmem:[%s51 + $0x8] sm:$0xff]
        %v3886 = vld [vmem:[%s51 + $0x10] sm:$0xff]
        %v3887 = vld [vmem:[%s51 + $0x18] sm:$0xff]
        %v3888 = vld [vmem:[%s51 + $0x20] sm:$0xff]
        %v3889 = vld [vmem:[%s51 + $0x28] sm:$0xff]
        %v3890 = vld [vmem:[%s51 + $0x30] sm:$0xff]
        %v3891 = vld [vmem:[%s51 + $0x38] sm:$0xff]
        %v3892 = vld [vmem:[#allocation28] sm:$0x1]
        %v3894 = vlaneseq
        %v3895 = vshrl.u32 %v3894, 7
        %v3896 = vsub.s32 0, %v3895
        %v3897 = vrot.slane %v3892, %v3896
        %3899 = vmatprep.subr.mxu0 0.0
        %3900 = vmatpush1.msra.mxu0 %v3884
        %3901 = vmatprep.subr.mxu0 0.0
        %3902 = vmatpush1.msra.mxu0 %v3885
        %3903 = vmatprep.subr.mxu0 0.0
        %3904 = vmatpush1.msra.mxu0 %v3886
        %3905 = vmatprep.subr.mxu0 0.0
        %3906 = vmatpush1.msra.mxu0 %v3887
        %3907 = vmatprep.subr.mxu0 0.0
        %3908 = vmatpush1.msra.mxu0 %v3888
        %3909 = vmatprep.subr.mxu0 0.0
        %3910 = vmatpush1.msra.mxu0 %v3889
        %3911 = vmatprep.subr.mxu0 0.0
        %3912 = vmatpush1.msra.mxu0 %v3890
        %3913 = vmatprep.subr.mxu0 0.0
        %3914 = vmatpush1.msra.mxu0 %v3891
        %3915 = vmatprep.subr.mxu0 0.0
        %3916 = vmatpush1.msra.mxu0 0.0
        %3917 = vmatprep.subr.mxu0 0.0
        %3918 = vmatpush1.msra.mxu0 0.0
        %3919 = vmatprep.subr.mxu0 0.0
        %3920 = vmatpush1.msra.mxu0 0.0
        %3921 = vmatprep.subr.mxu0 0.0
        %3922 = vmatpush1.msra.mxu0 0.0
        %3923 = vmatprep.subr.mxu0 0.0
        %3924 = vmatpush1.msra.mxu0 0.0
        %3925 = vmatprep.subr.mxu0 0.0
        %3926 = vmatpush1.msra.mxu0 0.0
        %3927 = vmatprep.subr.mxu0 0.0
        %3928 = vmatpush1.msra.mxu0 0.0
        %3929 = vmatprep.subr.mxu0 0.0
        %3930 = vmatpush1.msra.mxu0 0.0
        %3931 = vmatprep.subr.mxu0 0.0
        %3932 = vmatpush1.msra.mxu0 0.0
        %3933 = vmatprep.subr.mxu0 0.0
        %3934 = vmatpush1.msra.mxu0 0.0
        %3935 = vmatprep.subr.mxu0 0.0
        %3936 = vmatpush1.msra.mxu0 0.0
        %3937 = vmatprep.subr.mxu0 0.0
        %3938 = vmatpush1.msra.mxu0 0.0
        %3939 = vmatprep.subr.mxu0 0.0
        %3940 = vmatpush1.msra.mxu0 0.0
        %3941 = vmatprep.subr.mxu0 0.0
        %3942 = vmatpush1.msra.mxu0 0.0
        %3943 = vmatprep.subr.mxu0 0.0
        %3944 = vmatpush1.msra.mxu0 0.0
        %3945 = vmatprep.subr.mxu0 0.0
        %3946 = vmatpush1.msra.mxu0 0.0
        %3947 = vmatprep.subr.mxu0 0.0
        %3948 = vmatpush1.msra.mxu0 0.0
        %3949 = vmatprep.subr.mxu0 0.0
        %3950 = vmatpush1.msra.mxu0 0.0
        %3951 = vmatprep.subr.mxu0 0.0
        %3952 = vmatpush1.msra.mxu0 0.0
        %3953 = vmatprep.subr.mxu0 0.0
        %3954 = vmatpush1.msra.mxu0 0.0
        %3955 = vmatprep.subr.mxu0 0.0
        %3956 = vmatpush1.msra.mxu0 0.0
        %3957 = vmatprep.subr.mxu0 0.0
        %3958 = vmatpush1.msra.mxu0 0.0
        %3959 = vmatprep.subr.mxu0 0.0
        %3960 = vmatpush1.msra.mxu0 0.0
        %3961 = vmatprep.subr.mxu0 0.0
        %3962 = vmatpush1.msra.mxu0 0.0
        %3963 = vmatprep.mubr.f32.mxu0 0.0
        %3964 = vmatmul.mubr.f32.gmra.mrb[0].mxu0 %v3804
        %v3965 = vpop.f32.mrb[0].mxu0
        %v3966 = vadd.f32 %v3897, %v3965
        %v3967 = vpop.f32.mrb[0].mxu0
        %3968 = vmatprep.mubr.f32.mxu0 0.0
        %3969 = vmatmul.mubr.f32.gmra.mrb[0].mxu0 %v3807
        %v3970 = vpop.f32.mrb[0].mxu0
        %v3971 = vadd.f32 %v3897, %v3970
        %v3972 = vpop.f32.mrb[0].mxu0
        %3973 = vdwg.mxu0
        %v3974 = vld [vmem:[%s55] sm:$0xff]
        %v3975 = vld [vmem:[%s55 + $0x8] sm:$0xff]
        %v3976 = vld [vmem:[%s55 + $0x10] sm:$0xff]
        %v3977 = vld [vmem:[%s55 + $0x18] sm:$0xff]
        %v3978 = vld [vmem:[%s55 + $0x20] sm:$0xff]
        %v3979 = vld [vmem:[%s55 + $0x28] sm:$0xff]
        %v3980 = vld [vmem:[%s55 + $0x30] sm:$0xff]
        %v3981 = vld [vmem:[%s55 + $0x38] sm:$0xff]
        %v3982 = vld [vmem:[#allocation30] sm:$0x1]
        %v3984 = vlaneseq
        %v3985 = vshrl.u32 %v3984, 7
        %v3986 = vsub.s32 0, %v3985
        %v3987 = vrot.slane %v3982, %v3986
        %3989 = vmatprep.subr.mxu0 0.0
        %3990 = vmatpush1.msra.mxu0 %v3974
        %3991 = vmatprep.subr.mxu0 0.0
        %3992 = vmatpush1.msra.mxu0 %v3975
        %3993 = vmatprep.subr.mxu0 0.0
        %3994 = vmatpush1.msra.mxu0 %v3976
        %3995 = vmatprep.subr.mxu0 0.0
        %3996 = vmatpush1.msra.mxu0 %v3977
        %3997 = vmatprep.subr.mxu0 0.0
        %3998 = vmatpush1.msra.mxu0 %v3978
        %3999 = vmatprep.subr.mxu0 0.0
        %4000 = vmatpush1.msra.mxu0 %v3979
        %4001 = vmatprep.subr.mxu0 0.0
        %4002 = vmatpush1.msra.mxu0 %v3980
        %4003 = vmatprep.subr.mxu0 0.0
        %4004 = vmatpush1.msra.mxu0 %v3981
        %4005 = vmatprep.subr.mxu0 0.0
        %4006 = vmatpush1.msra.mxu0 0.0
        %4007 = vmatprep.subr.mxu0 0.0
        %4008 = vmatpush1.msra.mxu0 0.0
        %4009 = vmatprep.subr.mxu0 0.0
        %4010 = vmatpush1.msra.mxu0 0.0
        %4011 = vmatprep.subr.mxu0 0.0
        %4012 = vmatpush1.msra.mxu0 0.0
        %4013 = vmatprep.subr.mxu0 0.0
        %4014 = vmatpush1.msra.mxu0 0.0
        %4015 = vmatprep.subr.mxu0 0.0
        %4016 = vmatpush1.msra.mxu0 0.0
        %4017 = vmatprep.subr.mxu0 0.0
        %4018 = vmatpush1.msra.mxu0 0.0
        %4019 = vmatprep.subr.mxu0 0.0
        %4020 = vmatpush1.msra.mxu0 0.0
        %4021 = vmatprep.subr.mxu0 0.0
        %4022 = vmatpush1.msra.mxu0 0.0
        %4023 = vmatprep.subr.mxu0 0.0
        %4024 = vmatpush1.msra.mxu0 0.0
        %4025 = vmatprep.subr.mxu0 0.0
        %4026 = vmatpush1.msra.mxu0 0.0
        %4027 = vmatprep.subr.mxu0 0.0
        %4028 = vmatpush1.msra.mxu0 0.0
        %4029 = vmatprep.subr.mxu0 0.0
        %4030 = vmatpush1.msra.mxu0 0.0
        %4031 = vmatprep.subr.mxu0 0.0
        %4032 = vmatpush1.msra.mxu0 0.0
        %4033 = vmatprep.subr.mxu0 0.0
        %4034 = vmatpush1.msra.mxu0 0.0
        %4035 = vmatprep.subr.mxu0 0.0
        %4036 = vmatpush1.msra.mxu0 0.0
        %4037 = vmatprep.subr.mxu0 0.0
        %4038 = vmatpush1.msra.mxu0 0.0
        %4039 = vmatprep.subr.mxu0 0.0
        %4040 = vmatpush1.msra.mxu0 0.0
        %4041 = vmatprep.subr.mxu0 0.0
        %4042 = vmatpush1.msra.mxu0 0.0
        %4043 = vmatprep.subr.mxu0 0.0
        %4044 = vmatpush1.msra.mxu0 0.0
        %4045 = vmatprep.subr.mxu0 0.0
        %4046 = vmatpush1.msra.mxu0 0.0
        %4047 = vmatprep.subr.mxu0 0.0
        %4048 = vmatpush1.msra.mxu0 0.0
        %4049 = vmatprep.subr.mxu0 0.0
        %4050 = vmatpush1.msra.mxu0 0.0
        %4051 = vmatprep.subr.mxu0 0.0
        %4052 = vmatpush1.msra.mxu0 0.0
        %4053 = vmatprep.mubr.f32.mxu0 0.0
        %4054 = vmatmul.mubr.f32.gmra.mrb[0].mxu0 %v3804
        %v4055 = vpop.f32.mrb[0].mxu0
        %v4056 = vadd.f32 %v3987, %v4055
        %v4057 = vpop.f32.mrb[0].mxu0
        %4058 = vmatprep.mubr.f32.mxu0 0.0
        %4059 = vmatmul.mubr.f32.gmra.mrb[0].mxu0 %v3807
        %v4060 = vpop.f32.mrb[0].mxu0
        %v4061 = vadd.f32 %v3987, %v4060
        %v4062 = vpop.f32.mrb[0].mxu0
        %4063 = vdwg.mxu0
        %v4064 = vld [vmem:[%s59] sm:$0xff]
        %v4065 = vld [vmem:[%s59 + $0x8] sm:$0xff]
        %v4066 = vld [vmem:[%s59 + $0x10] sm:$0xff]
        %v4067 = vld [vmem:[%s59 + $0x18] sm:$0xff]
        %v4068 = vld [vmem:[%s59 + $0x20] sm:$0xff]
        %v4069 = vld [vmem:[%s59 + $0x28] sm:$0xff]
        %v4070 = vld [vmem:[%s59 + $0x30] sm:$0xff]
        %v4071 = vld [vmem:[%s59 + $0x38] sm:$0xff]
        %v4073 = vsel %vm2549, %v3876, 0
        %v4076 = vsel %vm2549, %v3881, 0
        %v4079 = vsel %vm2549, %v3966, 0
        %v4082 = vsel %vm2549, %v3971, 0
        %4084 = vmatprep.subr.mxu0 0.0
        %4085 = vmatpush1.xpose.msra.mxu0 %v4079
        %4086 = vmatprep.subr.mxu0 0.0
        %4087 = vmatpush1.xpose.msra.mxu0 %v4082
        %4088 = vmatprep.subr.mxu0 0.0
        %4089 = vmatpush1.xpose.msra.mxu0 0.0
        %4090 = vmatprep.subr.mxu0 0.0
        %4091 = vmatpush1.xpose.msra.mxu0 0.0
        %4092 = vmatprep.subr.mxu0 0.0
        %4093 = vmatpush1.xpose.msra.mxu0 0.0
        %4094 = vmatprep.subr.mxu0 0.0
        %4095 = vmatpush1.xpose.msra.mxu0 0.0
        %4096 = vmatprep.subr.mxu0 0.0
        %4097 = vmatpush1.xpose.msra.mxu0 0.0
        %4098 = vmatprep.subr.mxu0 0.0
        %4099 = vmatpush1.xpose.msra.mxu0 0.0
        %4100 = vmatprep.subr.mxu0 0.0
        %4101 = vmatpush1.xpose.msra.mxu0 0.0
        %4102 = vmatprep.subr.mxu0 0.0
        %4103 = vmatpush1.xpose.msra.mxu0 0.0
        %4104 = vmatprep.subr.mxu0 0.0
        %4105 = vmatpush1.xpose.msra.mxu0 0.0
        %4106 = vmatprep.subr.mxu0 0.0
        %4107 = vmatpush1.xpose.msra.mxu0 0.0
        %4108 = vmatprep.subr.mxu0 0.0
        %4109 = vmatpush1.xpose.msra.mxu0 0.0
        %4110 = vmatprep.subr.mxu0 0.0
        %4111 = vmatpush1.xpose.msra.mxu0 0.0
        %4112 = vmatprep.subr.mxu0 0.0
        %4113 = vmatpush1.xpose.msra.mxu0 0.0
        %4114 = vmatprep.subr.mxu0 0.0
        %4115 = vmatpush1.xpose.msra.mxu0 0.0
        %4116 = vmatprep.subr.mxu0 0.0
        %4117 = vmatpush1.xpose.msra.mxu0 0.0
        %4118 = vmatprep.subr.mxu0 0.0
        %4119 = vmatpush1.xpose.msra.mxu0 0.0
        %4120 = vmatprep.subr.mxu0 0.0
        %4121 = vmatpush1.xpose.msra.mxu0 0.0
        %4122 = vmatprep.subr.mxu0 0.0
        %4123 = vmatpush1.xpose.msra.mxu0 0.0
        %4124 = vmatprep.subr.mxu0 0.0
        %4125 = vmatpush1.xpose.msra.mxu0 0.0
        %4126 = vmatprep.subr.mxu0 0.0
        %4127 = vmatpush1.xpose.msra.mxu0 0.0
        %4128 = vmatprep.subr.mxu0 0.0
        %4129 = vmatpush1.xpose.msra.mxu0 0.0
        %4130 = vmatprep.subr.mxu0 0.0
        %4131 = vmatpush1.xpose.msra.mxu0 0.0
        %4132 = vmatprep.subr.mxu0 0.0
        %4133 = vmatpush1.xpose.msra.mxu0 0.0
        %4134 = vmatprep.subr.mxu0 0.0
        %4135 = vmatpush1.xpose.msra.mxu0 0.0
        %4136 = vmatprep.subr.mxu0 0.0
        %4137 = vmatpush1.xpose.msra.mxu0 0.0
        %4138 = vmatprep.subr.mxu0 0.0
        %4139 = vmatpush1.xpose.msra.mxu0 0.0
        %4140 = vmatprep.subr.mxu0 0.0
        %4141 = vmatpush1.xpose.msra.mxu0 0.0
        %4142 = vmatprep.subr.mxu0 0.0
        %4143 = vmatpush1.xpose.msra.mxu0 0.0
        %4144 = vmatprep.subr.mxu0 0.0
        %4145 = vmatpush1.xpose.msra.mxu0 0.0
        %4146 = vmatprep.subr.mxu0 0.0
        %4147 = vmatpush1.xpose.msra.mxu0 0.0
        %4148 = vmatprep.mubr.f32.mxu0 0.0
        %4149 = vmatmul.mubr.f32.gmra.mrb[0].mxu0 %v4073
        %v4150 = vpop.f32.mrb[0].mxu0
        %v4151 = vadd.f32 0.0, %v4150
        %v4152 = vpop.f32.mrb[0].mxu0
        %4153 = vmatprep.mubr.f32.mxu0 0.0
        %4154 = vmatmul.mubr.f32.gmra.mrb[0].mxu0 %v4076
        %v4155 = vpop.f32.mrb[0].mxu0
        %v4156 = vadd.f32 0.0, %v4155
        %v4157 = vpop.f32.mrb[0].mxu0
        %4158 = vdwg.mxu0
        %v4159 = vmul.f32 %v4151, 0.25
        %v4160 = vmul.f32 %v4156, 0.25
        %vm4161 = vcmask 97280
        %v4162 = vsel %vm4161, %v4159, -inf
        %4163 = vmax.xlane.f32.xlu0 %v4162
        %v4164 = vpop.xlane.xlu0 %4163
        %vm4165 = vcmask 93184
        %v4166 = vsel %vm4165, %v4160, -inf
        %4167 = vmax.xlane.f32.xlu0 %v4166
        %v4168 = vpop.xlane.xlu0 %4167
        %v4169 = vsub.f32 %v4159, %v4164
        %v4170 = vsub.f32 %v4160, %v4168
        %v4171 = vmul.f32 %v4169, 1.442695
        %v4172 = vpow.pop %v4171
        %v4173 = vmul.f32 %v4170, 1.442695
        %v4174 = vpow.pop %v4173
        %v4175 = vsel %vm4161, %v4172, 0.0
        %4176 = vadd.xlane.f32.xlu0 %v4175
        %v4177 = vpop.xlane.xlu0 %4176
        %v4178 = vsel %vm4165, %v4174, 0.0
        %4179 = vadd.xlane.f32.xlu0 %v4178
        %v4180 = vpop.xlane.xlu0 %4179
        %v4181 = vrcp.pop %v4177
        %v4182 = vrcp.pop %v4180
        %v4183 = vmul.f32 %v4172, %v4181
        %v4184 = vmul.f32 %v4174, %v4182
        %v4186 = vsel %vm4161, %v4183, 0
        %v4189 = vsel %vm4161, %v4184, 0
        %vm4191 = vcmask 1043456
        %v4193 = vsel %vm4191, %v4061, 0
        %4195 = vmatprep.subr.mxu0 0.0
        %4196 = vmatpush1.msra.mxu0 %v4056
        %4197 = vmatprep.subr.mxu0 0.0
        %4198 = vmatpush1.msra.mxu0 %v4193
        %4199 = vmatprep.subr.mxu0 0.0
        %4200 = vmatpush1.msra.mxu0 0.0
        %4201 = vmatprep.subr.mxu0 0.0
        %4202 = vmatpush1.msra.mxu0 0.0
        %4203 = vmatprep.subr.mxu0 0.0
        %4204 = vmatpush1.msra.mxu0 0.0
        %4205 = vmatprep.subr.mxu0 0.0
        %4206 = vmatpush1.msra.mxu0 0.0
        %4207 = vmatprep.subr.mxu0 0.0
        %4208 = vmatpush1.msra.mxu0 0.0
        %4209 = vmatprep.subr.mxu0 0.0
        %4210 = vmatpush1.msra.mxu0 0.0
        %4211 = vmatprep.subr.mxu0 0.0
        %4212 = vmatpush1.msra.mxu0 0.0
        %4213 = vmatprep.subr.mxu0 0.0
        %4214 = vmatpush1.msra.mxu0 0.0
        %4215 = vmatprep.subr.mxu0 0.0
        %4216 = vmatpush1.msra.mxu0 0.0
        %4217 = vmatprep.subr.mxu0 0.0
        %4218 = vmatpush1.msra.mxu0 0.0
        %4219 = vmatprep.subr.mxu0 0.0
        %4220 = vmatpush1.msra.mxu0 0.0
        %4221 = vmatprep.subr.mxu0 0.0
        %4222 = vmatpush1.msra.mxu0 0.0
        %4223 = vmatprep.subr.mxu0 0.0
        %4224 = vmatpush1.msra.mxu0 0.0
        %4225 = vmatprep.subr.mxu0 0.0
        %4226 = vmatpush1.msra.mxu0 0.0
        %4227 = vmatprep.subr.mxu0 0.0
        %4228 = vmatpush1.msra.mxu0 0.0
        %4229 = vmatprep.subr.mxu0 0.0
        %4230 = vmatpush1.msra.mxu0 0.0
        %4231 = vmatprep.subr.mxu0 0.0
        %4232 = vmatpush1.msra.mxu0 0.0
        %4233 = vmatprep.subr.mxu0 0.0
        %4234 = vmatpush1.msra.mxu0 0.0
        %4235 = vmatprep.subr.mxu0 0.0
        %4236 = vmatpush1.msra.mxu0 0.0
        %4237 = vmatprep.subr.mxu0 0.0
        %4238 = vmatpush1.msra.mxu0 0.0
        %4239 = vmatprep.subr.mxu0 0.0
        %4240 = vmatpush1.msra.mxu0 0.0
        %4241 = vmatprep.subr.mxu0 0.0
        %4242 = vmatpush1.msra.mxu0 0.0
        %4243 = vmatprep.subr.mxu0 0.0
        %4244 = vmatpush1.msra.mxu0 0.0
        %4245 = vmatprep.subr.mxu0 0.0
        %4246 = vmatpush1.msra.mxu0 0.0
        %4247 = vmatprep.subr.mxu0 0.0
        %4248 = vmatpush1.msra.mxu0 0.0
        %4249 = vmatprep.subr.mxu0 0.0
        %4250 = vmatpush1.msra.mxu0 0.0
        %4251 = vmatprep.subr.mxu0 0.0
        %4252 = vmatpush1.msra.mxu0 0.0
        %4253 = vmatprep.subr.mxu0 0.0
        %4254 = vmatpush1.msra.mxu0 0.0
        %4255 = vmatprep.subr.mxu0 0.0
        %4256 = vmatpush1.msra.mxu0 0.0
        %4257 = vmatprep.subr.mxu0 0.0
        %4258 = vmatpush1.msra.mxu0 0.0
        %4259 = vmatprep.mubr.f32.mxu0 0.0
        %4260 = vmatmul.mubr.f32.gmra.mrb[0].mxu0 %v4186
        %v4261 = vpop.f32.mrb[0].mxu0
        %v4262 = vadd.f32 0.0, %v4261
        %v4263 = vpop.f32.mrb[0].mxu0
        %4264 = vmatprep.mubr.f32.mxu0 0.0
        %4265 = vmatmul.mubr.f32.gmra.mrb[0].mxu0 %v4189
        %v4266 = vpop.f32.mrb[0].mxu0
        %v4267 = vadd.f32 0.0, %v4266
        %v4268 = vpop.f32.mrb[0].mxu0
        %4269 = vdwg.mxu0
        %4270 = vrot.lane.b32.xlu0 %v3876, 112
        %v4271 = vpop.permute.xlu0 %4270
        %4272 = vrot.lane.b32.xlu0 %v3881, 112
        %v4273 = vpop.permute.xlu0 %4272
        %4274 = vrot.lane.b32.xlu0 %v3966, 112
        %v4275 = vpop.permute.xlu0 %4274
        %4276 = vrot.lane.b32.xlu0 %v3971, 112
        %v4277 = vpop.permute.xlu0 %4276
        %v4278 = vsel %vm2549, %v4271, 0
        %v4280 = vsel %vm2549, %v4273, 0
        %v4282 = vsel %vm2549, %v4275, 0
        %v4284 = vsel %vm2549, %v4277, 0
        %4286 = vmatprep.subr.mxu0 0.0
        %4287 = vmatpush1.xpose.msra.mxu0 %v4282
        %4288 = vmatprep.subr.mxu0 0.0
        %4289 = vmatpush1.xpose.msra.mxu0 %v4284
        %4290 = vmatprep.subr.mxu0 0.0
        %4291 = vmatpush1.xpose.msra.mxu0 0.0
        %4292 = vmatprep.subr.mxu0 0.0
        %4293 = vmatpush1.xpose.msra.mxu0 0.0
        %4294 = vmatprep.subr.mxu0 0.0
        %4295 = vmatpush1.xpose.msra.mxu0 0.0
        %4296 = vmatprep.subr.mxu0 0.0
        %4297 = vmatpush1.xpose.msra.mxu0 0.0
        %4298 = vmatprep.subr.mxu0 0.0
        %4299 = vmatpush1.xpose.msra.mxu0 0.0
        %4300 = vmatprep.subr.mxu0 0.0
        %4301 = vmatpush1.xpose.msra.mxu0 0.0
        %4302 = vmatprep.subr.mxu0 0.0
        %4303 = vmatpush1.xpose.msra.mxu0 0.0
        %4304 = vmatprep.subr.mxu0 0.0
        %4305 = vmatpush1.xpose.msra.mxu0 0.0
        %4306 = vmatprep.subr.mxu0 0.0
        %4307 = vmatpush1.xpose.msra.mxu0 0.0
        %4308 = vmatprep.subr.mxu0 0.0
        %4309 = vmatpush1.xpose.msra.mxu0 0.0
        %4310 = vmatprep.subr.mxu0 0.0
        %4311 = vmatpush1.xpose.msra.mxu0 0.0
        %4312 = vmatprep.subr.mxu0 0.0
        %4313 = vmatpush1.xpose.msra.mxu0 0.0
        %4314 = vmatprep.subr.mxu0 0.0
        %4315 = vmatpush1.xpose.msra.mxu0 0.0
        %4316 = vmatprep.subr.mxu0 0.0
        %4317 = vmatpush1.xpose.msra.mxu0 0.0
        %4318 = vmatprep.subr.mxu0 0.0
        %4319 = vmatpush1.xpose.msra.mxu0 0.0
        %4320 = vmatprep.subr.mxu0 0.0
        %4321 = vmatpush1.xpose.msra.mxu0 0.0
        %4322 = vmatprep.subr.mxu0 0.0
        %4323 = vmatpush1.xpose.msra.mxu0 0.0
        %4324 = vmatprep.subr.mxu0 0.0
        %4325 = vmatpush1.xpose.msra.mxu0 0.0
        %4326 = vmatprep.subr.mxu0 0.0
        %4327 = vmatpush1.xpose.msra.mxu0 0.0
        %4328 = vmatprep.subr.mxu0 0.0
        %4329 = vmatpush1.xpose.msra.mxu0 0.0
        %4330 = vmatprep.subr.mxu0 0.0
        %4331 = vmatpush1.xpose.msra.mxu0 0.0
        %4332 = vmatprep.subr.mxu0 0.0
        %4333 = vmatpush1.xpose.msra.mxu0 0.0
        %4334 = vmatprep.subr.mxu0 0.0
        %4335 = vmatpush1.xpose.msra.mxu0 0.0
        %4336 = vmatprep.subr.mxu0 0.0
        %4337 = vmatpush1.xpose.msra.mxu0 0.0
        %4338 = vmatprep.subr.mxu0 0.0
        %4339 = vmatpush1.xpose.msra.mxu0 0.0
        %4340 = vmatprep.subr.mxu0 0.0
        %4341 = vmatpush1.xpose.msra.mxu0 0.0
        %4342 = vmatprep.subr.mxu0 0.0
        %4343 = vmatpush1.xpose.msra.mxu0 0.0
        %4344 = vmatprep.subr.mxu0 0.0
        %4345 = vmatpush1.xpose.msra.mxu0 0.0
        %4346 = vmatprep.subr.mxu0 0.0
        %4347 = vmatpush1.xpose.msra.mxu0 0.0
        %4348 = vmatprep.subr.mxu0 0.0
        %4349 = vmatpush1.xpose.msra.mxu0 0.0
        %4350 = vmatprep.mubr.f32.mxu0 0.0
        %4351 = vmatmul.mubr.f32.gmra.mrb[0].mxu0 %v4278
        %v4352 = vpop.f32.mrb[0].mxu0
        %v4353 = vadd.f32 0.0, %v4352
        %v4354 = vpop.f32.mrb[0].mxu0
        %4355 = vmatprep.mubr.f32.mxu0 0.0
        %4356 = vmatmul.mubr.f32.gmra.mrb[0].mxu0 %v4280
        %v4357 = vpop.f32.mrb[0].mxu0
        %v4358 = vadd.f32 0.0, %v4357
        %v4359 = vpop.f32.mrb[0].mxu0
        %4360 = vdwg.mxu0
        %v4361 = vmul.f32 %v4353, 0.25
        %v4362 = vmul.f32 %v4358, 0.25
        %v4363 = vsel %vm4161, %v4361, -inf
        %4364 = vmax.xlane.f32.xlu0 %v4363
        %v4365 = vpop.xlane.xlu0 %4364
        %v4366 = vsel %vm4165, %v4362, -inf
        %4367 = vmax.xlane.f32.xlu0 %v4366
        %v4368 = vpop.xlane.xlu0 %4367
        %v4369 = vsub.f32 %v4361, %v4365
        %v4370 = vsub.f32 %v4362, %v4368
        %v4371 = vmul.f32 %v4369, 1.442695
        %v4372 = vpow.pop %v4371
        %v4373 = vmul.f32 %v4370, 1.442695
        %v4374 = vpow.pop %v4373
        %v4375 = vsel %vm4161, %v4372, 0.0
        %4376 = vadd.xlane.f32.xlu0 %v4375
        %v4377 = vpop.xlane.xlu0 %4376
        %v4378 = vsel %vm4165, %v4374, 0.0
        %4379 = vadd.xlane.f32.xlu0 %v4378
        %v4380 = vpop.xlane.xlu0 %4379
        %v4381 = vrcp.pop %v4377
        %v4382 = vrcp.pop %v4380
        %v4383 = vmul.f32 %v4372, %v4381
        %v4384 = vmul.f32 %v4374, %v4382
        %4386 = vrot.lane.b32.xlu0 %v4056, 112
        %v4387 = vpop.permute.xlu0 %4386
        %4388 = vrot.lane.b32.xlu0 %v4061, 112
        %v4389 = vpop.permute.xlu0 %4388
        %v4392 = vsel %vm4161, %v4383, 0
        %v4395 = vsel %vm4161, %v4384, 0
        %v4397 = vsel %vm4191, %v4389, 0
        %4399 = vmatprep.subr.mxu0 0.0
        %4400 = vmatpush1.msra.mxu0 %v4387
        %4401 = vmatprep.subr.mxu0 0.0
        %4402 = vmatpush1.msra.mxu0 %v4397
        %4403 = vmatprep.subr.mxu0 0.0
        %4404 = vmatpush1.msra.mxu0 0.0
        %4405 = vmatprep.subr.mxu0 0.0
        %4406 = vmatpush1.msra.mxu0 0.0
        %4407 = vmatprep.subr.mxu0 0.0
        %4408 = vmatpush1.msra.mxu0 0.0
        %4409 = vmatprep.subr.mxu0 0.0
        %4410 = vmatpush1.msra.mxu0 0.0
        %4411 = vmatprep.subr.mxu0 0.0
        %4412 = vmatpush1.msra.mxu0 0.0
        %4413 = vmatprep.subr.mxu0 0.0
        %4414 = vmatpush1.msra.mxu0 0.0
        %4415 = vmatprep.subr.mxu0 0.0
        %4416 = vmatpush1.msra.mxu0 0.0
        %4417 = vmatprep.subr.mxu0 0.0
        %4418 = vmatpush1.msra.mxu0 0.0
        %4419 = vmatprep.subr.mxu0 0.0
        %4420 = vmatpush1.msra.mxu0 0.0
        %4421 = vmatprep.subr.mxu0 0.0
        %4422 = vmatpush1.msra.mxu0 0.0
        %4423 = vmatprep.subr.mxu0 0.0
        %4424 = vmatpush1.msra.mxu0 0.0
        %4425 = vmatprep.subr.mxu0 0.0
        %4426 = vmatpush1.msra.mxu0 0.0
        %4427 = vmatprep.subr.mxu0 0.0
        %4428 = vmatpush1.msra.mxu0 0.0
        %4429 = vmatprep.subr.mxu0 0.0
        %4430 = vmatpush1.msra.mxu0 0.0
        %4431 = vmatprep.subr.mxu0 0.0
        %4432 = vmatpush1.msra.mxu0 0.0
        %4433 = vmatprep.subr.mxu0 0.0
        %4434 = vmatpush1.msra.mxu0 0.0
        %4435 = vmatprep.subr.mxu0 0.0
        %4436 = vmatpush1.msra.mxu0 0.0
        %4437 = vmatprep.subr.mxu0 0.0
        %4438 = vmatpush1.msra.mxu0 0.0
        %4439 = vmatprep.subr.mxu0 0.0
        %4440 = vmatpush1.msra.mxu0 0.0
        %4441 = vmatprep.subr.mxu0 0.0
        %4442 = vmatpush1.msra.mxu0 0.0
        %4443 = vmatprep.subr.mxu0 0.0
        %4444 = vmatpush1.msra.mxu0 0.0
        %4445 = vmatprep.subr.mxu0 0.0
        %4446 = vmatpush1.msra.mxu0 0.0
        %4447 = vmatprep.subr.mxu0 0.0
        %4448 = vmatpush1.msra.mxu0 0.0
        %4449 = vmatprep.subr.mxu0 0.0
        %4450 = vmatpush1.msra.mxu0 0.0
        %4451 = vmatprep.subr.mxu0 0.0
        %4452 = vmatpush1.msra.mxu0 0.0
        %4453 = vmatprep.subr.mxu0 0.0
        %4454 = vmatpush1.msra.mxu0 0.0
        %4455 = vmatprep.subr.mxu0 0.0
        %4456 = vmatpush1.msra.mxu0 0.0
        %4457 = vmatprep.subr.mxu0 0.0
        %4458 = vmatpush1.msra.mxu0 0.0
        %4459 = vmatprep.subr.mxu0 0.0
        %4460 = vmatpush1.msra.mxu0 0.0
        %4461 = vmatprep.subr.mxu0 0.0
        %4462 = vmatpush1.msra.mxu0 0.0
        %4463 = vmatprep.mubr.f32.mxu0 0.0
        %4464 = vmatmul.mubr.f32.gmra.mrb[0].mxu0 %v4392
        %v4465 = vpop.f32.mrb[0].mxu0
        %v4466 = vadd.f32 0.0, %v4465
        %v4467 = vpop.f32.mrb[0].mxu0
        %4468 = vmatprep.mubr.f32.mxu0 0.0
        %4469 = vmatmul.mubr.f32.gmra.mrb[0].mxu0 %v4395
        %v4470 = vpop.f32.mrb[0].mxu0
        %v4471 = vadd.f32 0.0, %v4470
        %v4472 = vpop.f32.mrb[0].mxu0
        %4473 = vdwg.mxu0
        %v4475 = vsel %vm2549, %v4466, 0
        %v4478 = vsel %vm2549, %v4471, 0
        %4480 = vmatprep.subr.mxu0 0.0
        %4481 = vmatpush1.msra.mxu0 %v4066
        %4482 = vmatprep.subr.mxu0 0.0
        %4483 = vmatpush1.msra.mxu0 %v4067
        %4484 = vmatprep.subr.mxu0 0.0
        %4485 = vmatpush1.msra.mxu0 0.0
        %4486 = vmatprep.subr.mxu0 0.0
        %4487 = vmatpush1.msra.mxu0 0.0
        %4488 = vmatprep.subr.mxu0 0.0
        %4489 = vmatpush1.msra.mxu0 0.0
        %4490 = vmatprep.subr.mxu0 0.0
        %4491 = vmatpush1.msra.mxu0 0.0
        %4492 = vmatprep.subr.mxu0 0.0
        %4493 = vmatpush1.msra.mxu0 0.0
        %4494 = vmatprep.subr.mxu0 0.0
        %4495 = vmatpush1.msra.mxu0 0.0
        %4496 = vmatprep.subr.mxu0 0.0
        %4497 = vmatpush1.msra.mxu0 0.0
        %4498 = vmatprep.subr.mxu0 0.0
        %4499 = vmatpush1.msra.mxu0 0.0
        %4500 = vmatprep.subr.mxu0 0.0
        %4501 = vmatpush1.msra.mxu0 0.0
        %4502 = vmatprep.subr.mxu0 0.0
        %4503 = vmatpush1.msra.mxu0 0.0
        %4504 = vmatprep.subr.mxu0 0.0
        %4505 = vmatpush1.msra.mxu0 0.0
        %4506 = vmatprep.subr.mxu0 0.0
        %4507 = vmatpush1.msra.mxu0 0.0
        %4508 = vmatprep.subr.mxu0 0.0
        %4509 = vmatpush1.msra.mxu0 0.0
        %4510 = vmatprep.subr.mxu0 0.0
        %4511 = vmatpush1.msra.mxu0 0.0
        %4512 = vmatprep.subr.mxu0 0.0
        %4513 = vmatpush1.msra.mxu0 0.0
        %4514 = vmatprep.subr.mxu0 0.0
        %4515 = vmatpush1.msra.mxu0 0.0
        %4516 = vmatprep.subr.mxu0 0.0
        %4517 = vmatpush1.msra.mxu0 0.0
        %4518 = vmatprep.subr.mxu0 0.0
        %4519 = vmatpush1.msra.mxu0 0.0
        %4520 = vmatprep.subr.mxu0 0.0
        %4521 = vmatpush1.msra.mxu0 0.0
        %4522 = vmatprep.subr.mxu0 0.0
        %4523 = vmatpush1.msra.mxu0 0.0
        %4524 = vmatprep.subr.mxu0 0.0
        %4525 = vmatpush1.msra.mxu0 0.0
        %4526 = vmatprep.subr.mxu0 0.0
        %4527 = vmatpush1.msra.mxu0 0.0
        %4528 = vmatprep.subr.mxu0 0.0
        %4529 = vmatpush1.msra.mxu0 0.0
        %4530 = vmatprep.subr.mxu0 0.0
        %4531 = vmatpush1.msra.mxu0 0.0
        %4532 = vmatprep.subr.mxu0 0.0
        %4533 = vmatpush1.msra.mxu0 0.0
        %4534 = vmatprep.subr.mxu0 0.0
        %4535 = vmatpush1.msra.mxu0 0.0
        %4536 = vmatprep.subr.mxu0 0.0
        %4537 = vmatpush1.msra.mxu0 0.0
        %4538 = vmatprep.subr.mxu0 0.0
        %4539 = vmatpush1.msra.mxu0 0.0
        %4540 = vmatprep.subr.mxu0 0.0
        %4541 = vmatpush1.msra.mxu0 0.0
        %4542 = vmatprep.subr.mxu0 0.0
        %4543 = vmatpush1.msra.mxu0 0.0
        %4544 = vmatprep.mubr.f32.mxu0 0.0
        %4545 = vmatmul.mubr.f32.gmra.mrb[0].mxu0 %v4475
        %v4546 = vpop.f32.mrb[0].mxu0
        %v4547 = vadd.f32 0.0, %v4546
        %v4548 = vpop.f32.mrb[0].mxu0
        %4549 = vmatprep.mubr.f32.mxu0 0.0
        %4550 = vmatmul.mubr.f32.gmra.mrb[0].mxu0 %v4478
        %v4551 = vpop.f32.mrb[0].mxu0
        %v4552 = vadd.f32 0.0, %v4551
        %v4553 = vpop.f32.mrb[0].mxu0
        %4554 = vdwg.mxu0
        %v4556 = vsel %vm2549, %v4262, 0
        %v4559 = vsel %vm2549, %v4267, 0
        %4561 = vmatprep.subr.mxu0 0.0
        %4562 = vmatpush1.msra.mxu0 %v4064
        %4563 = vmatprep.subr.mxu0 0.0
        %4564 = vmatpush1.msra.mxu0 %v4065
        %4565 = vmatprep.subr.mxu0 0.0
        %4566 = vmatpush1.msra.mxu0 0.0
        %4567 = vmatprep.subr.mxu0 0.0
        %4568 = vmatpush1.msra.mxu0 0.0
        %4569 = vmatprep.subr.mxu0 0.0
        %4570 = vmatpush1.msra.mxu0 0.0
        %4571 = vmatprep.subr.mxu0 0.0
        %4572 = vmatpush1.msra.mxu0 0.0
        %4573 = vmatprep.subr.mxu0 0.0
        %4574 = vmatpush1.msra.mxu0 0.0
        %4575 = vmatprep.subr.mxu0 0.0
        %4576 = vmatpush1.msra.mxu0 0.0
        %4577 = vmatprep.subr.mxu0 0.0
        %4578 = vmatpush1.msra.mxu0 0.0
        %4579 = vmatprep.subr.mxu0 0.0
        %4580 = vmatpush1.msra.mxu0 0.0
        %4581 = vmatprep.subr.mxu0 0.0
        %4582 = vmatpush1.msra.mxu0 0.0
        %4583 = vmatprep.subr.mxu0 0.0
        %4584 = vmatpush1.msra.mxu0 0.0
        %4585 = vmatprep.subr.mxu0 0.0
        %4586 = vmatpush1.msra.mxu0 0.0
        %4587 = vmatprep.subr.mxu0 0.0
        %4588 = vmatpush1.msra.mxu0 0.0
        %4589 = vmatprep.subr.mxu0 0.0
        %4590 = vmatpush1.msra.mxu0 0.0
        %4591 = vmatprep.subr.mxu0 0.0
        %4592 = vmatpush1.msra.mxu0 0.0
        %4593 = vmatprep.subr.mxu0 0.0
        %4594 = vmatpush1.msra.mxu0 0.0
        %4595 = vmatprep.subr.mxu0 0.0
        %4596 = vmatpush1.msra.mxu0 0.0
        %4597 = vmatprep.subr.mxu0 0.0
        %4598 = vmatpush1.msra.mxu0 0.0
        %4599 = vmatprep.subr.mxu0 0.0
        %4600 = vmatpush1.msra.mxu0 0.0
        %4601 = vmatprep.subr.mxu0 0.0
        %4602 = vmatpush1.msra.mxu0 0.0
        %4603 = vmatprep.subr.mxu0 0.0
        %4604 = vmatpush1.msra.mxu0 0.0
        %4605 = vmatprep.subr.mxu0 0.0
        %4606 = vmatpush1.msra.mxu0 0.0
        %4607 = vmatprep.subr.mxu0 0.0
        %4608 = vmatpush1.msra.mxu0 0.0
        %4609 = vmatprep.subr.mxu0 0.0
        %4610 = vmatpush1.msra.mxu0 0.0
        %4611 = vmatprep.subr.mxu0 0.0
        %4612 = vmatpush1.msra.mxu0 0.0
        %4613 = vmatprep.subr.mxu0 0.0
        %4614 = vmatpush1.msra.mxu0 0.0
        %4615 = vmatprep.subr.mxu0 0.0
        %4616 = vmatpush1.msra.mxu0 0.0
        %4617 = vmatprep.subr.mxu0 0.0
        %4618 = vmatpush1.msra.mxu0 0.0
        %4619 = vmatprep.subr.mxu0 0.0
        %4620 = vmatpush1.msra.mxu0 0.0
        %4621 = vmatprep.subr.mxu0 0.0
        %4622 = vmatpush1.msra.mxu0 0.0
        %4623 = vmatprep.subr.mxu0 0.0
        %4624 = vmatpush1.msra.mxu0 0.0
        %4625 = vmatprep.mubr.f32.mxu0 0.0
        %4626 = vmatmul.mubr.f32.gmra.mrb[0].mxu0 %v4556
        %v4627 = vpop.f32.mrb[0].mxu0
        %v4628 = vadd.f32 %v4547, %v4627
        %v4629 = vpop.f32.mrb[0].mxu0
        %4630 = vmatprep.mubr.f32.mxu0 0.0
        %4631 = vmatmul.mubr.f32.gmra.mrb[0].mxu0 %v4559
        %v4632 = vpop.f32.mrb[0].mxu0
        %v4633 = vadd.f32 %v4552, %v4632
        %v4634 = vpop.f32.mrb[0].mxu0
        %4635 = vdwg.mxu0
        %4636 = vrot.lane.b32.xlu0 %v3876, 96
        %v4637 = vpop.permute.xlu0 %4636
        %4638 = vrot.lane.b32.xlu0 %v3881, 96
        %v4639 = vpop.permute.xlu0 %4638
        %4640 = vrot.lane.b32.xlu0 %v3966, 96
        %v4641 = vpop.permute.xlu0 %4640
        %4642 = vrot.lane.b32.xlu0 %v3971, 96
        %v4643 = vpop.permute.xlu0 %4642
        %v4644 = vsel %vm2549, %v4637, 0
        %v4646 = vsel %vm2549, %v4639, 0
        %v4648 = vsel %vm2549, %v4641, 0
        %v4650 = vsel %vm2549, %v4643, 0
        %4652 = vmatprep.subr.mxu0 0.0
        %4653 = vmatpush1.xpose.msra.mxu0 %v4648
        %4654 = vmatprep.subr.mxu0 0.0
        %4655 = vmatpush1.xpose.msra.mxu0 %v4650
        %4656 = vmatprep.subr.mxu0 0.0
        %4657 = vmatpush1.xpose.msra.mxu0 0.0
        %4658 = vmatprep.subr.mxu0 0.0
        %4659 = vmatpush1.xpose.msra.mxu0 0.0
        %4660 = vmatprep.subr.mxu0 0.0
        %4661 = vmatpush1.xpose.msra.mxu0 0.0
        %4662 = vmatprep.subr.mxu0 0.0
        %4663 = vmatpush1.xpose.msra.mxu0 0.0
        %4664 = vmatprep.subr.mxu0 0.0
        %4665 = vmatpush1.xpose.msra.mxu0 0.0
        %4666 = vmatprep.subr.mxu0 0.0
        %4667 = vmatpush1.xpose.msra.mxu0 0.0
        %4668 = vmatprep.subr.mxu0 0.0
        %4669 = vmatpush1.xpose.msra.mxu0 0.0
        %4670 = vmatprep.subr.mxu0 0.0
        %4671 = vmatpush1.xpose.msra.mxu0 0.0
        %4672 = vmatprep.subr.mxu0 0.0
        %4673 = vmatpush1.xpose.msra.mxu0 0.0
        %4674 = vmatprep.subr.mxu0 0.0
        %4675 = vmatpush1.xpose.msra.mxu0 0.0
        %4676 = vmatprep.subr.mxu0 0.0
        %4677 = vmatpush1.xpose.msra.mxu0 0.0
        %4678 = vmatprep.subr.mxu0 0.0
        %4679 = vmatpush1.xpose.msra.mxu0 0.0
        %4680 = vmatprep.subr.mxu0 0.0
        %4681 = vmatpush1.xpose.msra.mxu0 0.0
        %4682 = vmatprep.subr.mxu0 0.0
        %4683 = vmatpush1.xpose.msra.mxu0 0.0
        %4684 = vmatprep.subr.mxu0 0.0
        %4685 = vmatpush1.xpose.msra.mxu0 0.0
        %4686 = vmatprep.subr.mxu0 0.0
        %4687 = vmatpush1.xpose.msra.mxu0 0.0
        %4688 = vmatprep.subr.mxu0 0.0
        %4689 = vmatpush1.xpose.msra.mxu0 0.0
        %4690 = vmatprep.subr.mxu0 0.0
        %4691 = vmatpush1.xpose.msra.mxu0 0.0
        %4692 = vmatprep.subr.mxu0 0.0
        %4693 = vmatpush1.xpose.msra.mxu0 0.0
        %4694 = vmatprep.subr.mxu0 0.0
        %4695 = vmatpush1.xpose.msra.mxu0 0.0
        %4696 = vmatprep.subr.mxu0 0.0
        %4697 = vmatpush1.xpose.msra.mxu0 0.0
        %4698 = vmatprep.subr.mxu0 0.0
        %4699 = vmatpush1.xpose.msra.mxu0 0.0
        %4700 = vmatprep.subr.mxu0 0.0
        %4701 = vmatpush1.xpose.msra.mxu0 0.0
        %4702 = vmatprep.subr.mxu0 0.0
        %4703 = vmatpush1.xpose.msra.mxu0 0.0
        %4704 = vmatprep.subr.mxu0 0.0
        %4705 = vmatpush1.xpose.msra.mxu0 0.0
        %4706 = vmatprep.subr.mxu0 0.0
        %4707 = vmatpush1.xpose.msra.mxu0 0.0
        %4708 = vmatprep.subr.mxu0 0.0
        %4709 = vmatpush1.xpose.msra.mxu0 0.0
        %4710 = vmatprep.subr.mxu0 0.0
        %4711 = vmatpush1.xpose.msra.mxu0 0.0
        %4712 = vmatprep.subr.mxu0 0.0
        %4713 = vmatpush1.xpose.msra.mxu0 0.0
        %4714 = vmatprep.subr.mxu0 0.0
        %4715 = vmatpush1.xpose.msra.mxu0 0.0
        %4716 = vmatprep.mubr.f32.mxu0 0.0
        %4717 = vmatmul.mubr.f32.gmra.mrb[0].mxu0 %v4644
        %v4718 = vpop.f32.mrb[0].mxu0
        %v4719 = vadd.f32 0.0, %v4718
        %v4720 = vpop.f32.mrb[0].mxu0
        %4721 = vmatprep.mubr.f32.mxu0 0.0
        %4722 = vmatmul.mubr.f32.gmra.mrb[0].mxu0 %v4646
        %v4723 = vpop.f32.mrb[0].mxu0
        %v4724 = vadd.f32 0.0, %v4723
        %v4725 = vpop.f32.mrb[0].mxu0
        %4726 = vdwg.mxu0
        %v4727 = vmul.f32 %v4719, 0.25
        %v4728 = vmul.f32 %v4724, 0.25
        %v4729 = vsel %vm4161, %v4727, -inf
        %4730 = vmax.xlane.f32.xlu0 %v4729
        %v4731 = vpop.xlane.xlu0 %4730
        %v4732 = vsel %vm4165, %v4728, -inf
        %4733 = vmax.xlane.f32.xlu0 %v4732
        %v4734 = vpop.xlane.xlu0 %4733
        %v4735 = vsub.f32 %v4727, %v4731
        %v4736 = vsub.f32 %v4728, %v4734
        %v4737 = vmul.f32 %v4735, 1.442695
        %v4738 = vpow.pop %v4737
        %v4739 = vmul.f32 %v4736, 1.442695
        %v4740 = vpow.pop %v4739
        %v4741 = vsel %vm4161, %v4738, 0.0
        %4742 = vadd.xlane.f32.xlu0 %v4741
        %v4743 = vpop.xlane.xlu0 %4742
        %v4744 = vsel %vm4165, %v4740, 0.0
        %4745 = vadd.xlane.f32.xlu0 %v4744
        %v4746 = vpop.xlane.xlu0 %4745
        %v4747 = vrcp.pop %v4743
        %v4748 = vrcp.pop %v4746
        %v4749 = vmul.f32 %v4738, %v4747
        %v4750 = vmul.f32 %v4740, %v4748
        %4751 = vrot.lane.b32.xlu0 %v4056, 96
        %v4752 = vpop.permute.xlu0 %4751
        %4753 = vrot.lane.b32.xlu0 %v4061, 96
        %v4754 = vpop.permute.xlu0 %4753
        %v4757 = vsel %vm4161, %v4749, 0
        %v4760 = vsel %vm4161, %v4750, 0
        %v4762 = vsel %vm4191, %v4754, 0
        %4764 = vmatprep.subr.mxu0 0.0
        %4765 = vmatpush1.msra.mxu0 %v4752
        %4766 = vmatprep.subr.mxu0 0.0
        %4767 = vmatpush1.msra.mxu0 %v4762
        %4768 = vmatprep.subr.mxu0 0.0
        %4769 = vmatpush1.msra.mxu0 0.0
        %4770 = vmatprep.subr.mxu0 0.0
        %4771 = vmatpush1.msra.mxu0 0.0
        %4772 = vmatprep.subr.mxu0 0.0
        %4773 = vmatpush1.msra.mxu0 0.0
        %4774 = vmatprep.subr.mxu0 0.0
        %4775 = vmatpush1.msra.mxu0 0.0
        %4776 = vmatprep.subr.mxu0 0.0
        %4777 = vmatpush1.msra.mxu0 0.0
        %4778 = vmatprep.subr.mxu0 0.0
        %4779 = vmatpush1.msra.mxu0 0.0
        %4780 = vmatprep.subr.mxu0 0.0
        %4781 = vmatpush1.msra.mxu0 0.0
        %4782 = vmatprep.subr.mxu0 0.0
        %4783 = vmatpush1.msra.mxu0 0.0
        %4784 = vmatprep.subr.mxu0 0.0
        %4785 = vmatpush1.msra.mxu0 0.0
        %4786 = vmatprep.subr.mxu0 0.0
        %4787 = vmatpush1.msra.mxu0 0.0
        %4788 = vmatprep.subr.mxu0 0.0
        %4789 = vmatpush1.msra.mxu0 0.0
        %4790 = vmatprep.subr.mxu0 0.0
        %4791 = vmatpush1.msra.mxu0 0.0
        %4792 = vmatprep.subr.mxu0 0.0
        %4793 = vmatpush1.msra.mxu0 0.0
        %4794 = vmatprep.subr.mxu0 0.0
        %4795 = vmatpush1.msra.mxu0 0.0
        %4796 = vmatprep.subr.mxu0 0.0
        %4797 = vmatpush1.msra.mxu0 0.0
        %4798 = vmatprep.subr.mxu0 0.0
        %4799 = vmatpush1.msra.mxu0 0.0
        %4800 = vmatprep.subr.mxu0 0.0
        %4801 = vmatpush1.msra.mxu0 0.0
        %4802 = vmatprep.subr.mxu0 0.0
        %4803 = vmatpush1.msra.mxu0 0.0
        %4804 = vmatprep.subr.mxu0 0.0
        %4805 = vmatpush1.msra.mxu0 0.0
        %4806 = vmatprep.subr.mxu0 0.0
        %4807 = vmatpush1.msra.mxu0 0.0
        %4808 = vmatprep.subr.mxu0 0.0
        %4809 = vmatpush1.msra.mxu0 0.0
        %4810 = vmatprep.subr.mxu0 0.0
        %4811 = vmatpush1.msra.mxu0 0.0
        %4812 = vmatprep.subr.mxu0 0.0
        %4813 = vmatpush1.msra.mxu0 0.0
        %4814 = vmatprep.subr.mxu0 0.0
        %4815 = vmatpush1.msra.mxu0 0.0
        %4816 = vmatprep.subr.mxu0 0.0
        %4817 = vmatpush1.msra.mxu0 0.0
        %4818 = vmatprep.subr.mxu0 0.0
        %4819 = vmatpush1.msra.mxu0 0.0
        %4820 = vmatprep.subr.mxu0 0.0
        %4821 = vmatpush1.msra.mxu0 0.0
        %4822 = vmatprep.subr.mxu0 0.0
        %4823 = vmatpush1.msra.mxu0 0.0
        %4824 = vmatprep.subr.mxu0 0.0
        %4825 = vmatpush1.msra.mxu0 0.0
        %4826 = vmatprep.subr.mxu0 0.0
        %4827 = vmatpush1.msra.mxu0 0.0
        %4828 = vmatprep.mubr.f32.mxu0 0.0
        %4829 = vmatmul.mubr.f32.gmra.mrb[0].mxu0 %v4757
        %v4830 = vpop.f32.mrb[0].mxu0
        %v4831 = vadd.f32 0.0, %v4830
        %v4832 = vpop.f32.mrb[0].mxu0
        %4833 = vmatprep.mubr.f32.mxu0 0.0
        %4834 = vmatmul.mubr.f32.gmra.mrb[0].mxu0 %v4760
        %v4835 = vpop.f32.mrb[0].mxu0
        %v4836 = vadd.f32 0.0, %v4835
        %v4837 = vpop.f32.mrb[0].mxu0
        %4838 = vdwg.mxu0
        %v4840 = vsel %vm2549, %v4831, 0
        %v4843 = vsel %vm2549, %v4836, 0
        %4845 = vmatprep.subr.mxu0 0.0
        %4846 = vmatpush1.msra.mxu0 %v4068
        %4847 = vmatprep.subr.mxu0 0.0
        %4848 = vmatpush1.msra.mxu0 %v4069
        %4849 = vmatprep.subr.mxu0 0.0
        %4850 = vmatpush1.msra.mxu0 0.0
        %4851 = vmatprep.subr.mxu0 0.0
        %4852 = vmatpush1.msra.mxu0 0.0
        %4853 = vmatprep.subr.mxu0 0.0
        %4854 = vmatpush1.msra.mxu0 0.0
        %4855 = vmatprep.subr.mxu0 0.0
        %4856 = vmatpush1.msra.mxu0 0.0
        %4857 = vmatprep.subr.mxu0 0.0
        %4858 = vmatpush1.msra.mxu0 0.0
        %4859 = vmatprep.subr.mxu0 0.0
        %4860 = vmatpush1.msra.mxu0 0.0
        %4861 = vmatprep.subr.mxu0 0.0
        %4862 = vmatpush1.msra.mxu0 0.0
        %4863 = vmatprep.subr.mxu0 0.0
        %4864 = vmatpush1.msra.mxu0 0.0
        %4865 = vmatprep.subr.mxu0 0.0
        %4866 = vmatpush1.msra.mxu0 0.0
        %4867 = vmatprep.subr.mxu0 0.0
        %4868 = vmatpush1.msra.mxu0 0.0
        %4869 = vmatprep.subr.mxu0 0.0
        %4870 = vmatpush1.msra.mxu0 0.0
        %4871 = vmatprep.subr.mxu0 0.0
        %4872 = vmatpush1.msra.mxu0 0.0
        %4873 = vmatprep.subr.mxu0 0.0
        %4874 = vmatpush1.msra.mxu0 0.0
        %4875 = vmatprep.subr.mxu0 0.0
        %4876 = vmatpush1.msra.mxu0 0.0
        %4877 = vmatprep.subr.mxu0 0.0
        %4878 = vmatpush1.msra.mxu0 0.0
        %4879 = vmatprep.subr.mxu0 0.0
        %4880 = vmatpush1.msra.mxu0 0.0
        %4881 = vmatprep.subr.mxu0 0.0
        %4882 = vmatpush1.msra.mxu0 0.0
        %4883 = vmatprep.subr.mxu0 0.0
        %4884 = vmatpush1.msra.mxu0 0.0
        %4885 = vmatprep.subr.mxu0 0.0
        %4886 = vmatpush1.msra.mxu0 0.0
        %4887 = vmatprep.subr.mxu0 0.0
        %4888 = vmatpush1.msra.mxu0 0.0
        %4889 = vmatprep.subr.mxu0 0.0
        %4890 = vmatpush1.msra.mxu0 0.0
        %4891 = vmatprep.subr.mxu0 0.0
        %4892 = vmatpush1.msra.mxu0 0.0
        %4893 = vmatprep.subr.mxu0 0.0
        %4894 = vmatpush1.msra.mxu0 0.0
        %4895 = vmatprep.subr.mxu0 0.0
        %4896 = vmatpush1.msra.mxu0 0.0
        %4897 = vmatprep.subr.mxu0 0.0
        %4898 = vmatpush1.msra.mxu0 0.0
        %4899 = vmatprep.subr.mxu0 0.0
        %4900 = vmatpush1.msra.mxu0 0.0
        %4901 = vmatprep.subr.mxu0 0.0
        %4902 = vmatpush1.msra.mxu0 0.0
        %4903 = vmatprep.subr.mxu0 0.0
        %4904 = vmatpush1.msra.mxu0 0.0
        %4905 = vmatprep.subr.mxu0 0.0
        %4906 = vmatpush1.msra.mxu0 0.0
        %4907 = vmatprep.subr.mxu0 0.0
        %4908 = vmatpush1.msra.mxu0 0.0
        %4909 = vmatprep.mubr.f32.mxu0 0.0
        %4910 = vmatmul.mubr.f32.gmra.mrb[0].mxu0 %v4840
        %v4911 = vpop.f32.mrb[0].mxu0
        %v4912 = vadd.f32 0.0, %v4911
        %v4913 = vpop.f32.mrb[0].mxu0
        %4914 = vmatprep.mubr.f32.mxu0 0.0
        %4915 = vmatmul.mubr.f32.gmra.mrb[0].mxu0 %v4843
        %v4916 = vpop.f32.mrb[0].mxu0
        %v4917 = vadd.f32 0.0, %v4916
        %v4918 = vpop.f32.mrb[0].mxu0
        %4919 = vdwg.mxu0
        %v4920 = vadd.f32 %v4628, %v4912
        %v4921 = vadd.f32 %v4633, %v4917
        %4922 = vrot.lane.b32.xlu0 %v3876, 80
        %v4923 = vpop.permute.xlu0 %4922
        %4924 = vrot.lane.b32.xlu0 %v3881, 80
        %v4925 = vpop.permute.xlu0 %4924
        %4926 = vrot.lane.b32.xlu0 %v3966, 80
        %v4927 = vpop.permute.xlu0 %4926
        %4928 = vrot.lane.b32.xlu0 %v3971, 80
        %v4929 = vpop.permute.xlu0 %4928
        %v4930 = vsel %vm2549, %v4923, 0
        %v4932 = vsel %vm2549, %v4925, 0
        %v4934 = vsel %vm2549, %v4927, 0
        %v4936 = vsel %vm2549, %v4929, 0
        %4938 = vmatprep.subr.mxu0 0.0
        %4939 = vmatpush1.xpose.msra.mxu0 %v4934
        %4940 = vmatprep.subr.mxu0 0.0
        %4941 = vmatpush1.xpose.msra.mxu0 %v4936
        %4942 = vmatprep.subr.mxu0 0.0
        %4943 = vmatpush1.xpose.msra.mxu0 0.0
        %4944 = vmatprep.subr.mxu0 0.0
        %4945 = vmatpush1.xpose.msra.mxu0 0.0
        %4946 = vmatprep.subr.mxu0 0.0
        %4947 = vmatpush1.xpose.msra.mxu0 0.0
        %4948 = vmatprep.subr.mxu0 0.0
        %4949 = vmatpush1.xpose.msra.mxu0 0.0
        %4950 = vmatprep.subr.mxu0 0.0
        %4951 = vmatpush1.xpose.msra.mxu0 0.0
        %4952 = vmatprep.subr.mxu0 0.0
        %4953 = vmatpush1.xpose.msra.mxu0 0.0
        %4954 = vmatprep.subr.mxu0 0.0
        %4955 = vmatpush1.xpose.msra.mxu0 0.0
        %4956 = vmatprep.subr.mxu0 0.0
        %4957 = vmatpush1.xpose.msra.mxu0 0.0
        %4958 = vmatprep.subr.mxu0 0.0
        %4959 = vmatpush1.xpose.msra.mxu0 0.0
        %4960 = vmatprep.subr.mxu0 0.0
        %4961 = vmatpush1.xpose.msra.mxu0 0.0
        %4962 = vmatprep.subr.mxu0 0.0
        %4963 = vmatpush1.xpose.msra.mxu0 0.0
        %4964 = vmatprep.subr.mxu0 0.0
        %4965 = vmatpush1.xpose.msra.mxu0 0.0
        %4966 = vmatprep.subr.mxu0 0.0
        %4967 = vmatpush1.xpose.msra.mxu0 0.0
        %4968 = vmatprep.subr.mxu0 0.0
        %4969 = vmatpush1.xpose.msra.mxu0 0.0
        %4970 = vmatprep.subr.mxu0 0.0
        %4971 = vmatpush1.xpose.msra.mxu0 0.0
        %4972 = vmatprep.subr.mxu0 0.0
        %4973 = vmatpush1.xpose.msra.mxu0 0.0
        %4974 = vmatprep.subr.mxu0 0.0
        %4975 = vmatpush1.xpose.msra.mxu0 0.0
        %4976 = vmatprep.subr.mxu0 0.0
        %4977 = vmatpush1.xpose.msra.mxu0 0.0
        %4978 = vmatprep.subr.mxu0 0.0
        %4979 = vmatpush1.xpose.msra.mxu0 0.0
        %4980 = vmatprep.subr.mxu0 0.0
        %4981 = vmatpush1.xpose.msra.mxu0 0.0
        %4982 = vmatprep.subr.mxu0 0.0
        %4983 = vmatpush1.xpose.msra.mxu0 0.0
        %4984 = vmatprep.subr.mxu0 0.0
        %4985 = vmatpush1.xpose.msra.mxu0 0.0
        %4986 = vmatprep.subr.mxu0 0.0
        %4987 = vmatpush1.xpose.msra.mxu0 0.0
        %4988 = vmatprep.subr.mxu0 0.0
        %4989 = vmatpush1.xpose.msra.mxu0 0.0
        %4990 = vmatprep.subr.mxu0 0.0
        %4991 = vmatpush1.xpose.msra.mxu0 0.0
        %4992 = vmatprep.subr.mxu0 0.0
        %4993 = vmatpush1.xpose.msra.mxu0 0.0
        %4994 = vmatprep.subr.mxu0 0.0
        %4995 = vmatpush1.xpose.msra.mxu0 0.0
        %4996 = vmatprep.subr.mxu0 0.0
        %4997 = vmatpush1.xpose.msra.mxu0 0.0
        %4998 = vmatprep.subr.mxu0 0.0
        %4999 = vmatpush1.xpose.msra.mxu0 0.0
        %5000 = vmatprep.subr.mxu0 0.0
        %5001 = vmatpush1.xpose.msra.mxu0 0.0
        %5002 = vmatprep.mubr.f32.mxu0 0.0
        %5003 = vmatmul.mubr.f32.gmra.mrb[0].mxu0 %v4930
        %v5004 = vpop.f32.mrb[0].mxu0
        %v5005 = vadd.f32 0.0, %v5004
        %v5006 = vpop.f32.mrb[0].mxu0
        %5007 = vmatprep.mubr.f32.mxu0 0.0
        %5008 = vmatmul.mubr.f32.gmra.mrb[0].mxu0 %v4932
        %v5009 = vpop.f32.mrb[0].mxu0
        %v5010 = vadd.f32 0.0, %v5009
        %v5011 = vpop.f32.mrb[0].mxu0
        %5012 = vdwg.mxu0
        %v5013 = vmul.f32 %v5005, 0.25
        %v5014 = vmul.f32 %v5010, 0.25
        %v5015 = vsel %vm4161, %v5013, -inf
        %5016 = vmax.xlane.f32.xlu0 %v5015
        %v5017 = vpop.xlane.xlu0 %5016
        %v5018 = vsel %vm4165, %v5014, -inf
        %5019 = vmax.xlane.f32.xlu0 %v5018
        %v5020 = vpop.xlane.xlu0 %5019
        %v5021 = vsub.f32 %v5013, %v5017
        %v5022 = vsub.f32 %v5014, %v5020
        %v5023 = vmul.f32 %v5021, 1.442695
        %v5024 = vpow.pop %v5023
        %v5025 = vmul.f32 %v5022, 1.442695
        %v5026 = vpow.pop %v5025
        %v5027 = vsel %vm4161, %v5024, 0.0
        %5028 = vadd.xlane.f32.xlu0 %v5027
        %v5029 = vpop.xlane.xlu0 %5028
        %v5030 = vsel %vm4165, %v5026, 0.0
        %5031 = vadd.xlane.f32.xlu0 %v5030
        %v5032 = vpop.xlane.xlu0 %5031
        %v5033 = vrcp.pop %v5029
        %v5034 = vrcp.pop %v5032
        %v5035 = vmul.f32 %v5024, %v5033
        %v5036 = vmul.f32 %v5026, %v5034
        %5037 = vrot.lane.b32.xlu0 %v4056, 80
        %v5038 = vpop.permute.xlu0 %5037
        %5039 = vrot.lane.b32.xlu0 %v4061, 80
        %v5040 = vpop.permute.xlu0 %5039
        %v5043 = vsel %vm4161, %v5035, 0
        %v5046 = vsel %vm4161, %v5036, 0
        %v5048 = vsel %vm4191, %v5040, 0
        %5050 = vmatprep.subr.mxu0 0.0
        %5051 = vmatpush1.msra.mxu0 %v5038
        %5052 = vmatprep.subr.mxu0 0.0
        %5053 = vmatpush1.msra.mxu0 %v5048
        %5054 = vmatprep.subr.mxu0 0.0
        %5055 = vmatpush1.msra.mxu0 0.0
        %5056 = vmatprep.subr.mxu0 0.0
        %5057 = vmatpush1.msra.mxu0 0.0
        %5058 = vmatprep.subr.mxu0 0.0
        %5059 = vmatpush1.msra.mxu0 0.0
        %5060 = vmatprep.subr.mxu0 0.0
        %5061 = vmatpush1.msra.mxu0 0.0
        %5062 = vmatprep.subr.mxu0 0.0
        %5063 = vmatpush1.msra.mxu0 0.0
        %5064 = vmatprep.subr.mxu0 0.0
        %5065 = vmatpush1.msra.mxu0 0.0
        %5066 = vmatprep.subr.mxu0 0.0
        %5067 = vmatpush1.msra.mxu0 0.0
        %5068 = vmatprep.subr.mxu0 0.0
        %5069 = vmatpush1.msra.mxu0 0.0
        %5070 = vmatprep.subr.mxu0 0.0
        %5071 = vmatpush1.msra.mxu0 0.0
        %5072 = vmatprep.subr.mxu0 0.0
        %5073 = vmatpush1.msra.mxu0 0.0
        %5074 = vmatprep.subr.mxu0 0.0
        %5075 = vmatpush1.msra.mxu0 0.0
        %5076 = vmatprep.subr.mxu0 0.0
        %5077 = vmatpush1.msra.mxu0 0.0
        %5078 = vmatprep.subr.mxu0 0.0
        %5079 = vmatpush1.msra.mxu0 0.0
        %5080 = vmatprep.subr.mxu0 0.0
        %5081 = vmatpush1.msra.mxu0 0.0
        %5082 = vmatprep.subr.mxu0 0.0
        %5083 = vmatpush1.msra.mxu0 0.0
        %5084 = vmatprep.subr.mxu0 0.0
        %5085 = vmatpush1.msra.mxu0 0.0
        %5086 = vmatprep.subr.mxu0 0.0
        %5087 = vmatpush1.msra.mxu0 0.0
        %5088 = vmatprep.subr.mxu0 0.0
        %5089 = vmatpush1.msra.mxu0 0.0
        %5090 = vmatprep.subr.mxu0 0.0
        %5091 = vmatpush1.msra.mxu0 0.0
        %5092 = vmatprep.subr.mxu0 0.0
        %5093 = vmatpush1.msra.mxu0 0.0
        %5094 = vmatprep.subr.mxu0 0.0
        %5095 = vmatpush1.msra.mxu0 0.0
        %5096 = vmatprep.subr.mxu0 0.0
        %5097 = vmatpush1.msra.mxu0 0.0
        %5098 = vmatprep.subr.mxu0 0.0
        %5099 = vmatpush1.msra.mxu0 0.0
        %5100 = vmatprep.subr.mxu0 0.0
        %5101 = vmatpush1.msra.mxu0 0.0
        %5102 = vmatprep.subr.mxu0 0.0
        %5103 = vmatpush1.msra.mxu0 0.0
        %5104 = vmatprep.subr.mxu0 0.0
        %5105 = vmatpush1.msra.mxu0 0.0
        %5106 = vmatprep.subr.mxu0 0.0
        %5107 = vmatpush1.msra.mxu0 0.0
        %5108 = vmatprep.subr.mxu0 0.0
        %5109 = vmatpush1.msra.mxu0 0.0
        %5110 = vmatprep.subr.mxu0 0.0
        %5111 = vmatpush1.msra.mxu0 0.0
        %5112 = vmatprep.subr.mxu0 0.0
        %5113 = vmatpush1.msra.mxu0 0.0
        %5114 = vmatprep.mubr.f32.mxu0 0.0
        %5115 = vmatmul.mubr.f32.gmra.mrb[0].mxu0 %v5043
        %v5116 = vpop.f32.mrb[0].mxu0
        %v5117 = vadd.f32 0.0, %v5116
        %v5118 = vpop.f32.mrb[0].mxu0
        %5119 = vmatprep.mubr.f32.mxu0 0.0
        %5120 = vmatmul.mubr.f32.gmra.mrb[0].mxu0 %v5046
        %v5121 = vpop.f32.mrb[0].mxu0
        %v5122 = vadd.f32 0.0, %v5121
        %v5123 = vpop.f32.mrb[0].mxu0
        %5124 = vdwg.mxu0
        %v5126 = vsel %vm2549, %v5117, 0
        %v5129 = vsel %vm2549, %v5122, 0
        %5131 = vmatprep.subr.mxu0 0.0
        %5132 = vmatpush1.msra.mxu0 %v4070
        %5133 = vmatprep.subr.mxu0 0.0
        %5134 = vmatpush1.msra.mxu0 %v4071
        %5135 = vmatprep.subr.mxu0 0.0
        %5136 = vmatpush1.msra.mxu0 0.0
        %5137 = vmatprep.subr.mxu0 0.0
        %5138 = vmatpush1.msra.mxu0 0.0
        %5139 = vmatprep.subr.mxu0 0.0
        %5140 = vmatpush1.msra.mxu0 0.0
        %5141 = vmatprep.subr.mxu0 0.0
        %5142 = vmatpush1.msra.mxu0 0.0
        %5143 = vmatprep.subr.mxu0 0.0
        %5144 = vmatpush1.msra.mxu0 0.0
        %5145 = vmatprep.subr.mxu0 0.0
        %5146 = vmatpush1.msra.mxu0 0.0
        %5147 = vmatprep.subr.mxu0 0.0
        %5148 = vmatpush1.msra.mxu0 0.0
        %5149 = vmatprep.subr.mxu0 0.0
        %5150 = vmatpush1.msra.mxu0 0.0
        %5151 = vmatprep.subr.mxu0 0.0
        %5152 = vmatpush1.msra.mxu0 0.0
        %5153 = vmatprep.subr.mxu0 0.0
        %5154 = vmatpush1.msra.mxu0 0.0
        %5155 = vmatprep.subr.mxu0 0.0
        %5156 = vmatpush1.msra.mxu0 0.0
        %5157 = vmatprep.subr.mxu0 0.0
        %5158 = vmatpush1.msra.mxu0 0.0
        %5159 = vmatprep.subr.mxu0 0.0
        %5160 = vmatpush1.msra.mxu0 0.0
        %5161 = vmatprep.subr.mxu0 0.0
        %5162 = vmatpush1.msra.mxu0 0.0
        %5163 = vmatprep.subr.mxu0 0.0
        %5164 = vmatpush1.msra.mxu0 0.0
        %5165 = vmatprep.subr.mxu0 0.0
        %5166 = vmatpush1.msra.mxu0 0.0
        %5167 = vmatprep.subr.mxu0 0.0
        %5168 = vmatpush1.msra.mxu0 0.0
        %5169 = vmatprep.subr.mxu0 0.0
        %5170 = vmatpush1.msra.mxu0 0.0
        %5171 = vmatprep.subr.mxu0 0.0
        %5172 = vmatpush1.msra.mxu0 0.0
        %5173 = vmatprep.subr.mxu0 0.0
        %5174 = vmatpush1.msra.mxu0 0.0
        %5175 = vmatprep.subr.mxu0 0.0
        %5176 = vmatpush1.msra.mxu0 0.0
        %5177 = vmatprep.subr.mxu0 0.0
        %5178 = vmatpush1.msra.mxu0 0.0
        %5179 = vmatprep.subr.mxu0 0.0
        %5180 = vmatpush1.msra.mxu0 0.0
        %5181 = vmatprep.subr.mxu0 0.0
        %5182 = vmatpush1.msra.mxu0 0.0
        %5183 = vmatprep.subr.mxu0 0.0
        %5184 = vmatpush1.msra.mxu0 0.0
        %5185 = vmatprep.subr.mxu0 0.0
        %5186 = vmatpush1.msra.mxu0 0.0
        %5187 = vmatprep.subr.mxu0 0.0
        %5188 = vmatpush1.msra.mxu0 0.0
        %5189 = vmatprep.subr.mxu0 0.0
        %5190 = vmatpush1.msra.mxu0 0.0
        %5191 = vmatprep.subr.mxu0 0.0
        %5192 = vmatpush1.msra.mxu0 0.0
        %5193 = vmatprep.subr.mxu0 0.0
        %5194 = vmatpush1.msra.mxu0 0.0
        %5195 = vmatprep.mubr.f32.mxu0 0.0
        %5196 = vmatmul.mubr.f32.gmra.mrb[0].mxu0 %v5126
        %v5197 = vpop.f32.mrb[0].mxu0
        %v5198 = vadd.f32 0.0, %v5197
        %v5199 = vpop.f32.mrb[0].mxu0
        %5200 = vmatprep.mubr.f32.mxu0 0.0
        %5201 = vmatmul.mubr.f32.gmra.mrb[0].mxu0 %v5129
        %v5202 = vpop.f32.mrb[0].mxu0
        %v5203 = vadd.f32 0.0, %v5202
        %v5204 = vpop.f32.mrb[0].mxu0
        %5205 = vdwg.mxu0
        %v5206 = vadd.f32 %v4920, %v5198
        %v5207 = vadd.f32 %v4921, %v5203
        %v5208 = vadd.f32 %v3740, %v5206
        %v5209 = vadd.f32 %v3742, %v5207
        %v5210 = vld [vmem:[#allocation31] sm:$0x1]
        %v5212 = vlaneseq
        %v5213 = vshrl.u32 %v5212, 7
        %v5214 = vsub.s32 0, %v5213
        %v5215 = vrot.slane %v5210, %v5214
        %v5217 = vadd.f32 %v5208, %v5215
        %v5218 = vadd.f32 %v5209, %v5215
        %v5219 = vld [vmem:[#allocation33] sm:$0x1]
        %v5220 = vld [vmem:[#allocation34] sm:$0x1]
        %v5221 = vsel %vm2254, %v5217, 0.0
        %5222 = vadd.xlane.f32.xlu0 %v5221
        %v5223 = vpop.xlane.xlu0 %5222
        %v5224 = vsel %vm3748, %v5218, 0.0
        %5225 = vadd.xlane.f32.xlu0 %v5224
        %v5226 = vpop.xlane.xlu0 %5225
        %v5227 = vmul.f32 %v5223, %v2258
        %v5228 = vmul.f32 %v5226, %v2258
        %v5229 = vsub.f32 %v5217, %v5227
        %v5230 = vsub.f32 %v5218, %v5228
        %v5231 = vmul.f32 %v5229, %v5229
        %v5232 = vmul.f32 %v5230, %v5230
        %v5233 = vsel %vm2254, %v5231, 0.0
        %5234 = vadd.xlane.f32.xlu0 %v5233
        %v5235 = vpop.xlane.xlu0 %5234
        %v5236 = vsel %vm3748, %v5232, 0.0
        %5237 = vadd.xlane.f32.xlu0 %v5236
        %v5238 = vpop.xlane.xlu0 %5237
        %v5239 = vmul.f32 %v5235, %v2258
        %v5240 = vmul.f32 %v5238, %v2258
        %v5241 = vadd.f32 %v5239, 1e-05
        %v5242 = vadd.f32 %v5240, 1e-05
        %v5243 = vrsqrt.pop %v5241
        %v5244 = vrsqrt.pop %v5242
        %v5245 = vmul.f32 %v5229, %v5243
        %v5246 = vmul.f32 %v5230, %v5244
        %v5248 = vlaneseq
        %v5249 = vshrl.u32 %v5248, 7
        %v5250 = vsub.s32 0, %v5249
        %v5251 = vrot.slane %v5219, %v5250
        %v5253 = vmul.f32 %v5245, %v5251
        %v5254 = vmul.f32 %v5246, %v5251
        %v5256 = vlaneseq
        %v5257 = vshrl.u32 %v5256, 7
        %v5258 = vsub.s32 0, %v5257
        %v5259 = vrot.slane %v5220, %v5258
        %v5261 = vadd.f32 %v5253, %v5259
        %v5262 = vadd.f32 %v5254, %v5259
        %v5263 = vld [vmem:[%s67] sm:$0xff]
        %v5264 = vld [vmem:[%s67 + $0x8] sm:$0xff]
        %v5265 = vld [vmem:[%s67 + $0x10] sm:$0xff]
        %v5266 = vld [vmem:[%s67 + $0x18] sm:$0xff]
        %v5267 = vld [vmem:[%s67 + $0x20] sm:$0xff]
        %v5268 = vld [vmem:[%s67 + $0x28] sm:$0xff]
        %v5269 = vld [vmem:[%s67 + $0x30] sm:$0xff]
        %v5270 = vld [vmem:[%s67 + $0x38] sm:$0xff]
        %v5271 = vld [vmem:[#allocation36] sm:$0x1]
        %v5273 = vlaneseq
        %v5274 = vshrl.u32 %v5273, 7
        %v5275 = vsub.s32 0, %v5274
        %v5276 = vrot.slane %v5271, %v5275
        %v5279 = vsel %vm2254, %v5261, 0
        %v5282 = vsel %vm2254, %v5262, 0
        %5284 = vmatprep.subr.mxu0 0.0
        %5285 = vmatpush1.msra.mxu0 %v5263
        %5286 = vmatprep.subr.mxu0 0.0
        %5287 = vmatpush1.msra.mxu0 %v5264
        %5288 = vmatprep.subr.mxu0 0.0
        %5289 = vmatpush1.msra.mxu0 %v5265
        %5290 = vmatprep.subr.mxu0 0.0
        %5291 = vmatpush1.msra.mxu0 %v5266
        %5292 = vmatprep.subr.mxu0 0.0
        %5293 = vmatpush1.msra.mxu0 %v5267
        %5294 = vmatprep.subr.mxu0 0.0
        %5295 = vmatpush1.msra.mxu0 %v5268
        %5296 = vmatprep.subr.mxu0 0.0
        %5297 = vmatpush1.msra.mxu0 %v5269
        %5298 = vmatprep.subr.mxu0 0.0
        %5299 = vmatpush1.msra.mxu0 %v5270
        %5300 = vmatprep.subr.mxu0 0.0
        %5301 = vmatpush1.msra.mxu0 0.0
        %5302 = vmatprep.subr.mxu0 0.0
        %5303 = vmatpush1.msra.mxu0 0.0
        %5304 = vmatprep.subr.mxu0 0.0
        %5305 = vmatpush1.msra.mxu0 0.0
        %5306 = vmatprep.subr.mxu0 0.0
        %5307 = vmatpush1.msra.mxu0 0.0
        %5308 = vmatprep.subr.mxu0 0.0
        %5309 = vmatpush1.msra.mxu0 0.0
        %5310 = vmatprep.subr.mxu0 0.0
        %5311 = vmatpush1.msra.mxu0 0.0
        %5312 = vmatprep.subr.mxu0 0.0
        %5313 = vmatpush1.msra.mxu0 0.0
        %5314 = vmatprep.subr.mxu0 0.0
        %5315 = vmatpush1.msra.mxu0 0.0
        %5316 = vmatprep.subr.mxu0 0.0
        %5317 = vmatpush1.msra.mxu0 0.0
        %5318 = vmatprep.subr.mxu0 0.0
        %5319 = vmatpush1.msra.mxu0 0.0
        %5320 = vmatprep.subr.mxu0 0.0
        %5321 = vmatpush1.msra.mxu0 0.0
        %5322 = vmatprep.subr.mxu0 0.0
        %5323 = vmatpush1.msra.mxu0 0.0
        %5324 = vmatprep.subr.mxu0 0.0
        %5325 = vmatpush1.msra.mxu0 0.0
        %5326 = vmatprep.subr.mxu0 0.0
        %5327 = vmatpush1.msra.mxu0 0.0
        %5328 = vmatprep.subr.mxu0 0.0
        %5329 = vmatpush1.msra.mxu0 0.0
        %5330 = vmatprep.subr.mxu0 0.0
        %5331 = vmatpush1.msra.mxu0 0.0
        %5332 = vmatprep.subr.mxu0 0.0
        %5333 = vmatpush1.msra.mxu0 0.0
        %5334 = vmatprep.subr.mxu0 0.0
        %5335 = vmatpush1.msra.mxu0 0.0
        %5336 = vmatprep.subr.mxu0 0.0
        %5337 = vmatpush1.msra.mxu0 0.0
        %5338 = vmatprep.subr.mxu0 0.0
        %5339 = vmatpush1.msra.mxu0 0.0
        %5340 = vmatprep.subr.mxu0 0.0
        %5341 = vmatpush1.msra.mxu0 0.0
        %5342 = vmatprep.subr.mxu0 0.0
        %5343 = vmatpush1.msra.mxu0 0.0
        %5344 = vmatprep.subr.mxu0 0.0
        %5345 = vmatpush1.msra.mxu0 0.0
        %5346 = vmatprep.subr.mxu0 0.0
        %5347 = vmatpush1.msra.mxu0 0.0
        %5348 = vmatprep.mubr.f32.mxu0 0.0
        %5349 = vmatmul.mubr.f32.gmra.mrb[0].mxu0 %v5279
        %v5350 = vpop.f32.mrb[0].mxu0
        %v5351 = vadd.f32 %v5276, %v5350
        %v5352 = vpop.f32.mrb[0].mxu0
        %5353 = vmatprep.mubr.f32.mxu0 0.0
        %5354 = vmatmul.mubr.f32.gmra.mrb[0].mxu0 %v5282
        %v5355 = vpop.f32.mrb[0].mxu0
        %v5356 = vadd.f32 %v5276, %v5355
        %v5357 = vpop.f32.mrb[0].mxu0
        %5358 = vdwg.mxu0
        %v5359 = vmul.f32 %v5351, 0.5
        %v5360 = vmul.f32 %v5356, 0.5
        %v5361 = vmul.f32 %v5351, 0.70710677
        %v5362 = vmul.f32 %v5356, 0.70710677
        %v5363 = verf.f32.pop %v5361
        %v5364 = verf.f32.pop %v5362
        %v5365 = vadd.f32 %v5363, 1.0
        %v5366 = vadd.f32 %v5364, 1.0
        %v5367 = vmul.f32 %v5359, %v5365
        %v5368 = vmul.f32 %v5360, %v5366
        %v5369 = vld [vmem:[%s71] sm:$0xff]
        %v5370 = vld [vmem:[%s71 + $0x8] sm:$0xff]
        %v5371 = vld [vmem:[%s71 + $0x10] sm:$0xff]
        %v5372 = vld [vmem:[%s71 + $0x18] sm:$0xff]
        %v5373 = vld [vmem:[%s71 + $0x20] sm:$0xff]
        %v5374 = vld [vmem:[%s71 + $0x28] sm:$0xff]
        %v5375 = vld [vmem:[%s71 + $0x30] sm:$0xff]
        %v5376 = vld [vmem:[%s71 + $0x38] sm:$0xff]
        %v5377 = vld [vmem:[%s71 + $0x40] sm:$0xff]
        %v5378 = vld [vmem:[%s71 + $0x48] sm:$0xff]
        %v5379 = vld [vmem:[%s71 + $0x50] sm:$0xff]
        %v5380 = vld [vmem:[%s71 + $0x58] sm:$0xff]
        %v5381 = vld [vmem:[%s71 + $0x60] sm:$0xff]
        %v5382 = vld [vmem:[%s71 + $0x68] sm:$0xff]
        %v5383 = vld [vmem:[%s71 + $0x70] sm:$0xff]
        %v5384 = vld [vmem:[%s71 + $0x78] sm:$0xff]
        %v5385 = vld [vmem:[#allocation37] sm:$0x1]
        %v5387 = vlaneseq
        %v5388 = vshrl.u32 %v5387, 7
        %v5389 = vsub.s32 0, %v5388
        %v5390 = vrot.slane %v5385, %v5389
        %5392 = vmatprep.subr.mxu0 0.0
        %5393 = vmatpush1.msra.mxu0 %v5369
        %5394 = vmatprep.subr.mxu0 0.0
        %5395 = vmatpush1.msra.mxu0 %v5370
        %5396 = vmatprep.subr.mxu0 0.0
        %5397 = vmatpush1.msra.mxu0 %v5371
        %5398 = vmatprep.subr.mxu0 0.0
        %5399 = vmatpush1.msra.mxu0 %v5372
        %5400 = vmatprep.subr.mxu0 0.0
        %5401 = vmatpush1.msra.mxu0 %v5373
        %5402 = vmatprep.subr.mxu0 0.0
        %5403 = vmatpush1.msra.mxu0 %v5374
        %5404 = vmatprep.subr.mxu0 0.0
        %5405 = vmatpush1.msra.mxu0 %v5375
        %5406 = vmatprep.subr.mxu0 0.0
        %5407 = vmatpush1.msra.mxu0 %v5376
        %5408 = vmatprep.subr.mxu0 0.0
        %5409 = vmatpush1.msra.mxu0 %v5377
        %5410 = vmatprep.subr.mxu0 0.0
        %5411 = vmatpush1.msra.mxu0 %v5378
        %5412 = vmatprep.subr.mxu0 0.0
        %5413 = vmatpush1.msra.mxu0 %v5379
        %5414 = vmatprep.subr.mxu0 0.0
        %5415 = vmatpush1.msra.mxu0 %v5380
        %5416 = vmatprep.subr.mxu0 0.0
        %5417 = vmatpush1.msra.mxu0 %v5381
        %5418 = vmatprep.subr.mxu0 0.0
        %5419 = vmatpush1.msra.mxu0 %v5382
        %5420 = vmatprep.subr.mxu0 0.0
        %5421 = vmatpush1.msra.mxu0 %v5383
        %5422 = vmatprep.subr.mxu0 0.0
        %5423 = vmatpush1.msra.mxu0 %v5384
        %5424 = vmatprep.subr.mxu0 0.0
        %5425 = vmatpush1.msra.mxu0 0.0
        %5426 = vmatprep.subr.mxu0 0.0
        %5427 = vmatpush1.msra.mxu0 0.0
        %5428 = vmatprep.subr.mxu0 0.0
        %5429 = vmatpush1.msra.mxu0 0.0
        %5430 = vmatprep.subr.mxu0 0.0
        %5431 = vmatpush1.msra.mxu0 0.0
        %5432 = vmatprep.subr.mxu0 0.0
        %5433 = vmatpush1.msra.mxu0 0.0
        %5434 = vmatprep.subr.mxu0 0.0
        %5435 = vmatpush1.msra.mxu0 0.0
        %5436 = vmatprep.subr.mxu0 0.0
        %5437 = vmatpush1.msra.mxu0 0.0
        %5438 = vmatprep.subr.mxu0 0.0
        %5439 = vmatpush1.msra.mxu0 0.0
        %5440 = vmatprep.subr.mxu0 0.0
        %5441 = vmatpush1.msra.mxu0 0.0
        %5442 = vmatprep.subr.mxu0 0.0
        %5443 = vmatpush1.msra.mxu0 0.0
        %5444 = vmatprep.subr.mxu0 0.0
        %5445 = vmatpush1.msra.mxu0 0.0
        %5446 = vmatprep.subr.mxu0 0.0
        %5447 = vmatpush1.msra.mxu0 0.0
        %5448 = vmatprep.subr.mxu0 0.0
        %5449 = vmatpush1.msra.mxu0 0.0
        %5450 = vmatprep.subr.mxu0 0.0
        %5451 = vmatpush1.msra.mxu0 0.0
        %5452 = vmatprep.subr.mxu0 0.0
        %5453 = vmatpush1.msra.mxu0 0.0
        %5454 = vmatprep.subr.mxu0 0.0
        %5455 = vmatpush1.msra.mxu0 0.0
        %5456 = vmatprep.mubr.f32.mxu0 0.0
        %5457 = vmatmul.mubr.f32.gmra.mrb[0].mxu0 %v5367
        %v5458 = vpop.f32.mrb[0].mxu0
        %v5459 = vadd.f32 %v5390, %v5458
        %v5460 = vpop.f32.mrb[0].mxu0
        %5461 = vmatprep.mubr.f32.mxu0 0.0
        %5462 = vmatmul.mubr.f32.gmra.mrb[0].mxu0 %v5368
        %v5463 = vpop.f32.mrb[0].mxu0
        %v5464 = vadd.f32 %v5390, %v5463
        %v5465 = vpop.f32.mrb[0].mxu0
        %5466 = vdwg.mxu0
        %v5467 = vadd.f32 %v5217, %v5459
        %v5468 = vadd.f32 %v5218, %v5464
        %v5470 = vrot.slane %v5468, 4
        %v5472 = vsel %vm2250, %v3729, %v5470
        %v5473 = vld [vmem:[#allocation39] sm:$0x1]
        %v5474 = vld [vmem:[#allocation40] sm:$0x1]
        %v5475 = vsel %vm2254, %v5472, 0.0
        %5476 = vadd.xlane.f32.xlu0 %v5475
        %v5477 = vpop.xlane.xlu0 %5476
        %v5478 = vmul.f32 %v5477, %v2258
        %v5479 = vsub.f32 %v5472, %v5478
        %v5480 = vmul.f32 %v5479, %v5479
        %v5481 = vsel %vm2254, %v5480, 0.0
        %5482 = vadd.xlane.f32.xlu0 %v5481
        %v5483 = vpop.xlane.xlu0 %5482
        %v5484 = vmul.f32 %v5483, %v2258
        %v5485 = vadd.f32 %v5484, 1e-05
        %v5486 = vrsqrt.pop %v5485
        %v5487 = vmul.f32 %v5479, %v5486
        %v5489 = vlaneseq
        %v5490 = vshrl.u32 %v5489, 7
        %v5491 = vsub.s32 0, %v5490
        %v5492 = vrot.slane %v5473, %v5491
        %v5494 = vmul.f32 %v5487, %v5492
        %v5496 = vlaneseq
        %v5497 = vshrl.u32 %v5496, 7
        %v5498 = vsub.s32 0, %v5497
        %v5499 = vrot.slane %v5474, %v5498
        %v5501 = vadd.f32 %v5494, %v5499
        %v5502 = vld [vmem:[%s79] sm:$0xff]
        %v5503 = vld [vmem:[%s79 + $0x8] sm:$0xff]
        %v5504 = vld [vmem:[%s79 + $0x10] sm:$0xff]
        %v5505 = vld [vmem:[%s79 + $0x18] sm:$0xff]
        %v5506 = vld [vmem:[%s79 + $0x20] sm:$0xff]
        %v5507 = vld [vmem:[%s79 + $0x28] sm:$0xff]
        %v5508 = vld [vmem:[%s79 + $0x30] sm:$0xff]
        %v5509 = vld [vmem:[%s79 + $0x38] sm:$0xff]
        %v5510 = vld [vmem:[#allocation42] sm:$0x1]
        %v5512 = vlaneseq
        %v5513 = vshrl.u32 %v5512, 7
        %v5514 = vsub.s32 0, %v5513
        %v5515 = vrot.slane %v5510, %v5514
        %v5518 = vsel %vm2254, %v5501, 0
        %5520 = vmatprep.subr.mxu0 0.0
        %5521 = vmatpush1.msra.mxu0 %v5502
        %5522 = vmatprep.subr.mxu0 0.0
        %5523 = vmatpush1.msra.mxu0 %v5503
        %5524 = vmatprep.subr.mxu0 0.0
        %5525 = vmatpush1.msra.mxu0 %v5504
        %5526 = vmatprep.subr.mxu0 0.0
        %5527 = vmatpush1.msra.mxu0 %v5505
        %5528 = vmatprep.subr.mxu0 0.0
        %5529 = vmatpush1.msra.mxu0 %v5506
        %5530 = vmatprep.subr.mxu0 0.0
        %5531 = vmatpush1.msra.mxu0 %v5507
        %5532 = vmatprep.subr.mxu0 0.0
        %5533 = vmatpush1.msra.mxu0 %v5508
        %5534 = vmatprep.subr.mxu0 0.0
        %5535 = vmatpush1.msra.mxu0 %v5509
        %5536 = vmatprep.subr.mxu0 0.0
        %5537 = vmatpush1.msra.mxu0 0.0
        %5538 = vmatprep.subr.mxu0 0.0
        %5539 = vmatpush1.msra.mxu0 0.0
        %5540 = vmatprep.subr.mxu0 0.0
        %5541 = vmatpush1.msra.mxu0 0.0
        %5542 = vmatprep.subr.mxu0 0.0
        %5543 = vmatpush1.msra.mxu0 0.0
        %5544 = vmatprep.subr.mxu0 0.0
        %5545 = vmatpush1.msra.mxu0 0.0
        %5546 = vmatprep.subr.mxu0 0.0
        %5547 = vmatpush1.msra.mxu0 0.0
        %5548 = vmatprep.subr.mxu0 0.0
        %5549 = vmatpush1.msra.mxu0 0.0
        %5550 = vmatprep.subr.mxu0 0.0
        %5551 = vmatpush1.msra.mxu0 0.0
        %5552 = vmatprep.subr.mxu0 0.0
        %5553 = vmatpush1.msra.mxu0 0.0
        %5554 = vmatprep.subr.mxu0 0.0
        %5555 = vmatpush1.msra.mxu0 0.0
        %5556 = vmatprep.subr.mxu0 0.0
        %5557 = vmatpush1.msra.mxu0 0.0
        %5558 = vmatprep.subr.mxu0 0.0
        %5559 = vmatpush1.msra.mxu0 0.0
        %5560 = vmatprep.subr.mxu0 0.0
        %5561 = vmatpush1.msra.mxu0 0.0
        %5562 = vmatprep.subr.mxu0 0.0
        %5563 = vmatpush1.msra.mxu0 0.0
        %5564 = vmatprep.subr.mxu0 0.0
        %5565 = vmatpush1.msra.mxu0 0.0
        %5566 = vmatprep.subr.mxu0 0.0
        %5567 = vmatpush1.msra.mxu0 0.0
        %5568 = vmatprep.subr.mxu0 0.0
        %5569 = vmatpush1.msra.mxu0 0.0
        %5570 = vmatprep.subr.mxu0 0.0
        %5571 = vmatpush1.msra.mxu0 0.0
        %5572 = vmatprep.subr.mxu0 0.0
        %5573 = vmatpush1.msra.mxu0 0.0
        %5574 = vmatprep.subr.mxu0 0.0
        %5575 = vmatpush1.msra.mxu0 0.0
        %5576 = vmatprep.subr.mxu0 0.0
        %5577 = vmatpush1.msra.mxu0 0.0
        %5578 = vmatprep.subr.mxu0 0.0
        %5579 = vmatpush1.msra.mxu0 0.0
        %5580 = vmatprep.subr.mxu0 0.0
        %5581 = vmatpush1.msra.mxu0 0.0
        %5582 = vmatprep.subr.mxu0 0.0
        %5583 = vmatpush1.msra.mxu0 0.0
        %5584 = vmatprep.mubr.f32.mxu0 0.0
        %5585 = vmatmul.mubr.f32.gmra.mrb[0].mxu0 %v5518
        %v5586 = vpop.f32.mrb[0].mxu0
        %v5587 = vadd.f32 %v5515, %v5586
        %v5588 = vpop.f32.mrb[0].mxu0
        %5589 = vdwg.mxu0
        %v5590 = vld [vmem:[#allocation43] sm:$0xff]
        %v5591 = vld [vmem:[#allocation43 + $0x8] sm:$0xff]
        %v5592 = vld [vmem:[#allocation43 + $0x10] sm:$0xff]
        %v5593 = vld [vmem:[#allocation43 + $0x18] sm:$0xff]
        %v5594 = vld [vmem:[#allocation43 + $0x20] sm:$0xff]
        %v5595 = vld [vmem:[#allocation43 + $0x28] sm:$0xff]
        %v5596 = vld [vmem:[#allocation43 + $0x30] sm:$0xff]
        %v5597 = vld [vmem:[#allocation43 + $0x38] sm:$0xff]
        %v5598 = vld [vmem:[#allocation45] sm:$0x1]
        %v5600 = vlaneseq
        %v5601 = vshrl.u32 %v5600, 7
        %v5602 = vsub.s32 0, %v5601
        %v5603 = vrot.slane %v5598, %v5602
        %5605 = vmatprep.subr.mxu0 0.0
        %5606 = vmatpush1.msra.mxu0 %v5590
        %5607 = vmatprep.subr.mxu0 0.0
        %5608 = vmatpush1.msra.mxu0 %v5591
        %5609 = vmatprep.subr.mxu0 0.0
        %5610 = vmatpush1.msra.mxu0 %v5592
        %5611 = vmatprep.subr.mxu0 0.0
        %5612 = vmatpush1.msra.mxu0 %v5593
        %5613 = vmatprep.subr.mxu0 0.0
        %5614 = vmatpush1.msra.mxu0 %v5594
        %5615 = vmatprep.subr.mxu0 0.0
        %5616 = vmatpush1.msra.mxu0 %v5595
        %5617 = vmatprep.subr.mxu0 0.0
        %5618 = vmatpush1.msra.mxu0 %v5596
        %5619 = vmatprep.subr.mxu0 0.0
        %5620 = vmatpush1.msra.mxu0 %v5597
        %5621 = vmatprep.subr.mxu0 0.0
        %5622 = vmatpush1.msra.mxu0 0.0
        %5623 = vmatprep.subr.mxu0 0.0
        %5624 = vmatpush1.msra.mxu0 0.0
        %5625 = vmatprep.subr.mxu0 0.0
        %5626 = vmatpush1.msra.mxu0 0.0
        %5627 = vmatprep.subr.mxu0 0.0
        %5628 = vmatpush1.msra.mxu0 0.0
        %5629 = vmatprep.subr.mxu0 0.0
        %5630 = vmatpush1.msra.mxu0 0.0
        %5631 = vmatprep.subr.mxu0 0.0
        %5632 = vmatpush1.msra.mxu0 0.0
        %5633 = vmatprep.subr.mxu0 0.0
        %5634 = vmatpush1.msra.mxu0 0.0
        %5635 = vmatprep.subr.mxu0 0.0
        %5636 = vmatpush1.msra.mxu0 0.0
        %5637 = vmatprep.subr.mxu0 0.0
        %5638 = vmatpush1.msra.mxu0 0.0
        %5639 = vmatprep.subr.mxu0 0.0
        %5640 = vmatpush1.msra.mxu0 0.0
        %5641 = vmatprep.subr.mxu0 0.0
        %5642 = vmatpush1.msra.mxu0 0.0
        %5643 = vmatprep.subr.mxu0 0.0
        %5644 = vmatpush1.msra.mxu0 0.0
        %5645 = vmatprep.subr.mxu0 0.0
        %5646 = vmatpush1.msra.mxu0 0.0
        %5647 = vmatprep.subr.mxu0 0.0
        %5648 = vmatpush1.msra.mxu0 0.0
        %5649 = vmatprep.subr.mxu0 0.0
        %5650 = vmatpush1.msra.mxu0 0.0
        %5651 = vmatprep.subr.mxu0 0.0
        %5652 = vmatpush1.msra.mxu0 0.0
        %5653 = vmatprep.subr.mxu0 0.0
        %5654 = vmatpush1.msra.mxu0 0.0
        %5655 = vmatprep.subr.mxu0 0.0
        %5656 = vmatpush1.msra.mxu0 0.0
        %5657 = vmatprep.subr.mxu0 0.0
        %5658 = vmatpush1.msra.mxu0 0.0
        %5659 = vmatprep.subr.mxu0 0.0
        %5660 = vmatpush1.msra.mxu0 0.0
        %5661 = vmatprep.subr.mxu0 0.0
        %5662 = vmatpush1.msra.mxu0 0.0
        %5663 = vmatprep.subr.mxu0 0.0
        %5664 = vmatpush1.msra.mxu0 0.0
        %5665 = vmatprep.subr.mxu0 0.0
        %5666 = vmatpush1.msra.mxu0 0.0
        %5667 = vmatprep.subr.mxu0 0.0
        %5668 = vmatpush1.msra.mxu0 0.0
        %5669 = vmatprep.mubr.f32.mxu0 0.0
        %5670 = vmatmul.mubr.f32.gmra.mrb[0].mxu0 %v5518
        %v5671 = vpop.f32.mrb[0].mxu0
        %v5672 = vadd.f32 %v5603, %v5671
        %v5673 = vpop.f32.mrb[0].mxu0
        %5674 = vdwg.mxu0
        %v5675 = vld [vmem:[#allocation46] sm:$0xff]
        %v5676 = vld [vmem:[#allocation46 + $0x8] sm:$0xff]
        %v5677 = vld [vmem:[#allocation46 + $0x10] sm:$0xff]
        %v5678 = vld [vmem:[#allocation46 + $0x18] sm:$0xff]
        %v5679 = vld [vmem:[#allocation46 + $0x20] sm:$0xff]
        %v5680 = vld [vmem:[#allocation46 + $0x28] sm:$0xff]
        %v5681 = vld [vmem:[#allocation46 + $0x30] sm:$0xff]
        %v5682 = vld [vmem:[#allocation46 + $0x38] sm:$0xff]
        %v5683 = vld [vmem:[#allocation48] sm:$0x1]
        %v5685 = vlaneseq
        %v5686 = vshrl.u32 %v5685, 7
        %v5687 = vsub.s32 0, %v5686
        %v5688 = vrot.slane %v5683, %v5687
        %5690 = vmatprep.subr.mxu0 0.0
        %5691 = vmatpush1.msra.mxu0 %v5675
        %5692 = vmatprep.subr.mxu0 0.0
        %5693 = vmatpush1.msra.mxu0 %v5676
        %5694 = vmatprep.subr.mxu0 0.0
        %5695 = vmatpush1.msra.mxu0 %v5677
        %5696 = vmatprep.subr.mxu0 0.0
        %5697 = vmatpush1.msra.mxu0 %v5678
        %5698 = vmatprep.subr.mxu0 0.0
        %5699 = vmatpush1.msra.mxu0 %v5679
        %5700 = vmatprep.subr.mxu0 0.0
        %5701 = vmatpush1.msra.mxu0 %v5680
        %5702 = vmatprep.subr.mxu0 0.0
        %5703 = vmatpush1.msra.mxu0 %v5681
        %5704 = vmatprep.subr.mxu0 0.0
        %5705 = vmatpush1.msra.mxu0 %v5682
        %5706 = vmatprep.subr.mxu0 0.0
        %5707 = vmatpush1.msra.mxu0 0.0
        %5708 = vmatprep.subr.mxu0 0.0
        %5709 = vmatpush1.msra.mxu0 0.0
        %5710 = vmatprep.subr.mxu0 0.0
        %5711 = vmatpush1.msra.mxu0 0.0
        %5712 = vmatprep.subr.mxu0 0.0
        %5713 = vmatpush1.msra.mxu0 0.0
        %5714 = vmatprep.subr.mxu0 0.0
        %5715 = vmatpush1.msra.mxu0 0.0
        %5716 = vmatprep.subr.mxu0 0.0
        %5717 = vmatpush1.msra.mxu0 0.0
        %5718 = vmatprep.subr.mxu0 0.0
        %5719 = vmatpush1.msra.mxu0 0.0
        %5720 = vmatprep.subr.mxu0 0.0
        %5721 = vmatpush1.msra.mxu0 0.0
        %5722 = vmatprep.subr.mxu0 0.0
        %5723 = vmatpush1.msra.mxu0 0.0
        %5724 = vmatprep.subr.mxu0 0.0
        %5725 = vmatpush1.msra.mxu0 0.0
        %5726 = vmatprep.subr.mxu0 0.0
        %5727 = vmatpush1.msra.mxu0 0.0
        %5728 = vmatprep.subr.mxu0 0.0
        %5729 = vmatpush1.msra.mxu0 0.0
        %5730 = vmatprep.subr.mxu0 0.0
        %5731 = vmatpush1.msra.mxu0 0.0
        %5732 = vmatprep.subr.mxu0 0.0
        %5733 = vmatpush1.msra.mxu0 0.0
        %5734 = vmatprep.subr.mxu0 0.0
        %5735 = vmatpush1.msra.mxu0 0.0
        %5736 = vmatprep.subr.mxu0 0.0
        %5737 = vmatpush1.msra.mxu0 0.0
        %5738 = vmatprep.subr.mxu0 0.0
        %5739 = vmatpush1.msra.mxu0 0.0
        %5740 = vmatprep.subr.mxu0 0.0
        %5741 = vmatpush1.msra.mxu0 0.0
        %5742 = vmatprep.subr.mxu0 0.0
        %5743 = vmatpush1.msra.mxu0 0.0
        %5744 = vmatprep.subr.mxu0 0.0
        %5745 = vmatpush1.msra.mxu0 0.0
        %5746 = vmatprep.subr.mxu0 0.0
        %5747 = vmatpush1.msra.mxu0 0.0
        %5748 = vmatprep.subr.mxu0 0.0
        %5749 = vmatpush1.msra.mxu0 0.0
        %5750 = vmatprep.subr.mxu0 0.0
        %5751 = vmatpush1.msra.mxu0 0.0
        %5752 = vmatprep.subr.mxu0 0.0
        %5753 = vmatpush1.msra.mxu0 0.0
        %5754 = vmatprep.mubr.f32.mxu0 0.0
        %5755 = vmatmul.mubr.f32.gmra.mrb[0].mxu0 %v5518
        %v5756 = vpop.f32.mrb[0].mxu0
        %v5757 = vadd.f32 %v5688, %v5756
        %v5758 = vpop.f32.mrb[0].mxu0
        %5759 = vdwg.mxu0
        %v5760 = vld [vmem:[#allocation49] sm:$0xff]
        %v5761 = vld [vmem:[#allocation49 + $0x8] sm:$0xff]
        %v5762 = vld [vmem:[#allocation49 + $0x10] sm:$0xff]
        %v5763 = vld [vmem:[#allocation49 + $0x18] sm:$0xff]
        %v5764 = vld [vmem:[#allocation49 + $0x20] sm:$0xff]
        %v5765 = vld [vmem:[#allocation49 + $0x28] sm:$0xff]
        %v5766 = vld [vmem:[#allocation49 + $0x30] sm:$0xff]
        %v5767 = vld [vmem:[#allocation49 + $0x38] sm:$0xff]
        %v5769 = vsel %vm2549, %v5587, 0
        %v5772 = vsel %vm2549, %v5672, 0
        %5774 = vmatprep.subr.mxu0 0.0
        %5775 = vmatpush1.xpose.msra.mxu0 %v5772
        %5776 = vmatprep.subr.mxu0 0.0
        %5777 = vmatpush1.xpose.msra.mxu0 0.0
        %5778 = vmatprep.subr.mxu0 0.0
        %5779 = vmatpush1.xpose.msra.mxu0 0.0
        %5780 = vmatprep.subr.mxu0 0.0
        %5781 = vmatpush1.xpose.msra.mxu0 0.0
        %5782 = vmatprep.subr.mxu0 0.0
        %5783 = vmatpush1.xpose.msra.mxu0 0.0
        %5784 = vmatprep.subr.mxu0 0.0
        %5785 = vmatpush1.xpose.msra.mxu0 0.0
        %5786 = vmatprep.subr.mxu0 0.0
        %5787 = vmatpush1.xpose.msra.mxu0 0.0
        %5788 = vmatprep.subr.mxu0 0.0
        %5789 = vmatpush1.xpose.msra.mxu0 0.0
        %5790 = vmatprep.subr.mxu0 0.0
        %5791 = vmatpush1.xpose.msra.mxu0 0.0
        %5792 = vmatprep.subr.mxu0 0.0
        %5793 = vmatpush1.xpose.msra.mxu0 0.0
        %5794 = vmatprep.subr.mxu0 0.0
        %5795 = vmatpush1.xpose.msra.mxu0 0.0
        %5796 = vmatprep.subr.mxu0 0.0
        %5797 = vmatpush1.xpose.msra.mxu0 0.0
        %5798 = vmatprep.subr.mxu0 0.0
        %5799 = vmatpush1.xpose.msra.mxu0 0.0
        %5800 = vmatprep.subr.mxu0 0.0
        %5801 = vmatpush1.xpose.msra.mxu0 0.0
        %5802 = vmatprep.subr.mxu0 0.0
        %5803 = vmatpush1.xpose.msra.mxu0 0.0
        %5804 = vmatprep.subr.mxu0 0.0
        %5805 = vmatpush1.xpose.msra.mxu0 0.0
        %5806 = vmatprep.subr.mxu0 0.0
        %5807 = vmatpush1.xpose.msra.mxu0 0.0
        %5808 = vmatprep.subr.mxu0 0.0
        %5809 = vmatpush1.xpose.msra.mxu0 0.0
        %5810 = vmatprep.subr.mxu0 0.0
        %5811 = vmatpush1.xpose.msra.mxu0 0.0
        %5812 = vmatprep.subr.mxu0 0.0
        %5813 = vmatpush1.xpose.msra.mxu0 0.0
        %5814 = vmatprep.subr.mxu0 0.0
        %5815 = vmatpush1.xpose.msra.mxu0 0.0
        %5816 = vmatprep.subr.mxu0 0.0
        %5817 = vmatpush1.xpose.msra.mxu0 0.0
        %5818 = vmatprep.subr.mxu0 0.0
        %5819 = vmatpush1.xpose.msra.mxu0 0.0
        %5820 = vmatprep.subr.mxu0 0.0
        %5821 = vmatpush1.xpose.msra.mxu0 0.0
        %5822 = vmatprep.subr.mxu0 0.0
        %5823 = vmatpush1.xpose.msra.mxu0 0.0
        %5824 = vmatprep.subr.mxu0 0.0
        %5825 = vmatpush1.xpose.msra.mxu0 0.0
        %5826 = vmatprep.subr.mxu0 0.0
        %5827 = vmatpush1.xpose.msra.mxu0 0.0
        %5828 = vmatprep.subr.mxu0 0.0
        %5829 = vmatpush1.xpose.msra.mxu0 0.0
        %5830 = vmatprep.subr.mxu0 0.0
        %5831 = vmatpush1.xpose.msra.mxu0 0.0
        %5832 = vmatprep.subr.mxu0 0.0
        %5833 = vmatpush1.xpose.msra.mxu0 0.0
        %5834 = vmatprep.subr.mxu0 0.0
        %5835 = vmatpush1.xpose.msra.mxu0 0.0
        %5836 = vmatprep.subr.mxu0 0.0
        %5837 = vmatpush1.xpose.msra.mxu0 0.0
        %5838 = vmatprep.mubr.f32.mxu0 0.0
        %5839 = vmatmul.mubr.f32.gmra.mrb[0].mxu0 %v5769
        %v5840 = vpop.f32.mrb[0].mxu0
        %v5841 = vadd.f32 0.0, %v5840
        %v5842 = vpop.f32.mrb[0].mxu0
        %5843 = vdwg.mxu0
        %v5844 = vmul.f32 %v5841, 0.25
        %v5845 = vsel %vm2627, %v5844, -inf
        %5846 = vmax.xlane.f32.xlu0 %v5845
        %v5847 = vpop.xlane.xlu0 %5846
        %v5848 = vsub.f32 %v5844, %v5847
        %v5849 = vmul.f32 %v5848, 1.442695
        %v5850 = vpow.pop %v5849
        %v5851 = vsel %vm2627, %v5850, 0.0
        %5852 = vadd.xlane.f32.xlu0 %v5851
        %v5853 = vpop.xlane.xlu0 %5852
        %v5854 = vrcp.pop %v5853
        %v5855 = vmul.f32 %v5850, %v5854
        %v5857 = vsel %vm2627, %v5855, 0
        %5859 = vmatprep.subr.mxu0 0.0
        %5860 = vmatpush1.msra.mxu0 %v5757
        %5861 = vmatprep.subr.mxu0 0.0
        %5862 = vmatpush1.msra.mxu0 0.0
        %5863 = vmatprep.subr.mxu0 0.0
        %5864 = vmatpush1.msra.mxu0 0.0
        %5865 = vmatprep.subr.mxu0 0.0
        %5866 = vmatpush1.msra.mxu0 0.0
        %5867 = vmatprep.subr.mxu0 0.0
        %5868 = vmatpush1.msra.mxu0 0.0
        %5869 = vmatprep.subr.mxu0 0.0
        %5870 = vmatpush1.msra.mxu0 0.0
        %5871 = vmatprep.subr.mxu0 0.0
        %5872 = vmatpush1.msra.mxu0 0.0
        %5873 = vmatprep.subr.mxu0 0.0
        %5874 = vmatpush1.msra.mxu0 0.0
        %5875 = vmatprep.subr.mxu0 0.0
        %5876 = vmatpush1.msra.mxu0 0.0
        %5877 = vmatprep.subr.mxu0 0.0
        %5878 = vmatpush1.msra.mxu0 0.0
        %5879 = vmatprep.subr.mxu0 0.0
        %5880 = vmatpush1.msra.mxu0 0.0
        %5881 = vmatprep.subr.mxu0 0.0
        %5882 = vmatpush1.msra.mxu0 0.0
        %5883 = vmatprep.subr.mxu0 0.0
        %5884 = vmatpush1.msra.mxu0 0.0
        %5885 = vmatprep.subr.mxu0 0.0
        %5886 = vmatpush1.msra.mxu0 0.0
        %5887 = vmatprep.subr.mxu0 0.0
        %5888 = vmatpush1.msra.mxu0 0.0
        %5889 = vmatprep.subr.mxu0 0.0
        %5890 = vmatpush1.msra.mxu0 0.0
        %5891 = vmatprep.subr.mxu0 0.0
        %5892 = vmatpush1.msra.mxu0 0.0
        %5893 = vmatprep.subr.mxu0 0.0
        %5894 = vmatpush1.msra.mxu0 0.0
        %5895 = vmatprep.subr.mxu0 0.0
        %5896 = vmatpush1.msra.mxu0 0.0
        %5897 = vmatprep.subr.mxu0 0.0
        %5898 = vmatpush1.msra.mxu0 0.0
        %5899 = vmatprep.subr.mxu0 0.0
        %5900 = vmatpush1.msra.mxu0 0.0
        %5901 = vmatprep.subr.mxu0 0.0
        %5902 = vmatpush1.msra.mxu0 0.0
        %5903 = vmatprep.subr.mxu0 0.0
        %5904 = vmatpush1.msra.mxu0 0.0
        %5905 = vmatprep.subr.mxu0 0.0
        %5906 = vmatpush1.msra.mxu0 0.0
        %5907 = vmatprep.subr.mxu0 0.0
        %5908 = vmatpush1.msra.mxu0 0.0
        %5909 = vmatprep.subr.mxu0 0.0
        %5910 = vmatpush1.msra.mxu0 0.0
        %5911 = vmatprep.subr.mxu0 0.0
        %5912 = vmatpush1.msra.mxu0 0.0
        %5913 = vmatprep.subr.mxu0 0.0
        %5914 = vmatpush1.msra.mxu0 0.0
        %5915 = vmatprep.subr.mxu0 0.0
        %5916 = vmatpush1.msra.mxu0 0.0
        %5917 = vmatprep.subr.mxu0 0.0
        %5918 = vmatpush1.msra.mxu0 0.0
        %5919 = vmatprep.subr.mxu0 0.0
        %5920 = vmatpush1.msra.mxu0 0.0
        %5921 = vmatprep.subr.mxu0 0.0
        %5922 = vmatpush1.msra.mxu0 0.0
        %5923 = vmatprep.mubr.f32.mxu0 0.0
        %5924 = vmatmul.mubr.f32.gmra.mrb[0].mxu0 %v5857
        %v5925 = vpop.f32.mrb[0].mxu0
        %v5926 = vadd.f32 0.0, %v5925
        %v5927 = vpop.f32.mrb[0].mxu0
        %5928 = vdwg.mxu0
        %5929 = vrot.lane.b32.xlu0 %v5587, 112
        %v5930 = vpop.permute.xlu0 %5929
        %5931 = vrot.lane.b32.xlu0 %v5672, 112
        %v5932 = vpop.permute.xlu0 %5931
        %v5933 = vsel %vm2549, %v5930, 0
        %v5935 = vsel %vm2549, %v5932, 0
        %5937 = vmatprep.subr.mxu0 0.0
        %5938 = vmatpush1.xpose.msra.mxu0 %v5935
        %5939 = vmatprep.subr.mxu0 0.0
        %5940 = vmatpush1.xpose.msra.mxu0 0.0
        %5941 = vmatprep.subr.mxu0 0.0
        %5942 = vmatpush1.xpose.msra.mxu0 0.0
        %5943 = vmatprep.subr.mxu0 0.0
        %5944 = vmatpush1.xpose.msra.mxu0 0.0
        %5945 = vmatprep.subr.mxu0 0.0
        %5946 = vmatpush1.xpose.msra.mxu0 0.0
        %5947 = vmatprep.subr.mxu0 0.0
        %5948 = vmatpush1.xpose.msra.mxu0 0.0
        %5949 = vmatprep.subr.mxu0 0.0
        %5950 = vmatpush1.xpose.msra.mxu0 0.0
        %5951 = vmatprep.subr.mxu0 0.0
        %5952 = vmatpush1.xpose.msra.mxu0 0.0
        %5953 = vmatprep.subr.mxu0 0.0
        %5954 = vmatpush1.xpose.msra.mxu0 0.0
        %5955 = vmatprep.subr.mxu0 0.0
        %5956 = vmatpush1.xpose.msra.mxu0 0.0
        %5957 = vmatprep.subr.mxu0 0.0
        %5958 = vmatpush1.xpose.msra.mxu0 0.0
        %5959 = vmatprep.subr.mxu0 0.0
        %5960 = vmatpush1.xpose.msra.mxu0 0.0
        %5961 = vmatprep.subr.mxu0 0.0
        %5962 = vmatpush1.xpose.msra.mxu0 0.0
        %5963 = vmatprep.subr.mxu0 0.0
        %5964 = vmatpush1.xpose.msra.mxu0 0.0
        %5965 = vmatprep.subr.mxu0 0.0
        %5966 = vmatpush1.xpose.msra.mxu0 0.0
        %5967 = vmatprep.subr.mxu0 0.0
        %5968 = vmatpush1.xpose.msra.mxu0 0.0
        %5969 = vmatprep.subr.mxu0 0.0
        %5970 = vmatpush1.xpose.msra.mxu0 0.0
        %5971 = vmatprep.subr.mxu0 0.0
        %5972 = vmatpush1.xpose.msra.mxu0 0.0
        %5973 = vmatprep.subr.mxu0 0.0
        %5974 = vmatpush1.xpose.msra.mxu0 0.0
        %5975 = vmatprep.subr.mxu0 0.0
        %5976 = vmatpush1.xpose.msra.mxu0 0.0
        %5977 = vmatprep.subr.mxu0 0.0
        %5978 = vmatpush1.xpose.msra.mxu0 0.0
        %5979 = vmatprep.subr.mxu0 0.0
        %5980 = vmatpush1.xpose.msra.mxu0 0.0
        %5981 = vmatprep.subr.mxu0 0.0
        %5982 = vmatpush1.xpose.msra.mxu0 0.0
        %5983 = vmatprep.subr.mxu0 0.0
        %5984 = vmatpush1.xpose.msra.mxu0 0.0
        %5985 = vmatprep.subr.mxu0 0.0
        %5986 = vmatpush1.xpose.msra.mxu0 0.0
        %5987 = vmatprep.subr.mxu0 0.0
        %5988 = vmatpush1.xpose.msra.mxu0 0.0
        %5989 = vmatprep.subr.mxu0 0.0
        %5990 = vmatpush1.xpose.msra.mxu0 0.0
        %5991 = vmatprep.subr.mxu0 0.0
        %5992 = vmatpush1.xpose.msra.mxu0 0.0
        %5993 = vmatprep.subr.mxu0 0.0
        %5994 = vmatpush1.xpose.msra.mxu0 0.0
        %5995 = vmatprep.subr.mxu0 0.0
        %5996 = vmatpush1.xpose.msra.mxu0 0.0
        %5997 = vmatprep.subr.mxu0 0.0
        %5998 = vmatpush1.xpose.msra.mxu0 0.0
        %5999 = vmatprep.subr.mxu0 0.0
        %6000 = vmatpush1.xpose.msra.mxu0 0.0
        %6001 = vmatprep.mubr.f32.mxu0 0.0
        %6002 = vmatmul.mubr.f32.gmra.mrb[0].mxu0 %v5933
        %v6003 = vpop.f32.mrb[0].mxu0
        %v6004 = vadd.f32 0.0, %v6003
        %v6005 = vpop.f32.mrb[0].mxu0
        %6006 = vdwg.mxu0
        %v6007 = vmul.f32 %v6004, 0.25
        %v6008 = vsel %vm2627, %v6007, -inf
        %6009 = vmax.xlane.f32.xlu0 %v6008
        %v6010 = vpop.xlane.xlu0 %6009
        %v6011 = vsub.f32 %v6007, %v6010
        %v6012 = vmul.f32 %v6011, 1.442695
        %v6013 = vpow.pop %v6012
        %v6014 = vsel %vm2627, %v6013, 0.0
        %6015 = vadd.xlane.f32.xlu0 %v6014
        %v6016 = vpop.xlane.xlu0 %6015
        %v6017 = vrcp.pop %v6016
        %v6018 = vmul.f32 %v6013, %v6017
        %6020 = vrot.lane.b32.xlu0 %v5757, 112
        %v6021 = vpop.permute.xlu0 %6020
        %v6024 = vsel %vm2627, %v6018, 0
        %6026 = vmatprep.subr.mxu0 0.0
        %6027 = vmatpush1.msra.mxu0 %v6021
        %6028 = vmatprep.subr.mxu0 0.0
        %6029 = vmatpush1.msra.mxu0 0.0
        %6030 = vmatprep.subr.mxu0 0.0
        %6031 = vmatpush1.msra.mxu0 0.0
        %6032 = vmatprep.subr.mxu0 0.0
        %6033 = vmatpush1.msra.mxu0 0.0
        %6034 = vmatprep.subr.mxu0 0.0
        %6035 = vmatpush1.msra.mxu0 0.0
        %6036 = vmatprep.subr.mxu0 0.0
        %6037 = vmatpush1.msra.mxu0 0.0
        %6038 = vmatprep.subr.mxu0 0.0
        %6039 = vmatpush1.msra.mxu0 0.0
        %6040 = vmatprep.subr.mxu0 0.0
        %6041 = vmatpush1.msra.mxu0 0.0
        %6042 = vmatprep.subr.mxu0 0.0
        %6043 = vmatpush1.msra.mxu0 0.0
        %6044 = vmatprep.subr.mxu0 0.0
        %6045 = vmatpush1.msra.mxu0 0.0
        %6046 = vmatprep.subr.mxu0 0.0
        %6047 = vmatpush1.msra.mxu0 0.0
        %6048 = vmatprep.subr.mxu0 0.0
        %6049 = vmatpush1.msra.mxu0 0.0
        %6050 = vmatprep.subr.mxu0 0.0
        %6051 = vmatpush1.msra.mxu0 0.0
        %6052 = vmatprep.subr.mxu0 0.0
        %6053 = vmatpush1.msra.mxu0 0.0
        %6054 = vmatprep.subr.mxu0 0.0
        %6055 = vmatpush1.msra.mxu0 0.0
        %6056 = vmatprep.subr.mxu0 0.0
        %6057 = vmatpush1.msra.mxu0 0.0
        %6058 = vmatprep.subr.mxu0 0.0
        %6059 = vmatpush1.msra.mxu0 0.0
        %6060 = vmatprep.subr.mxu0 0.0
        %6061 = vmatpush1.msra.mxu0 0.0
        %6062 = vmatprep.subr.mxu0 0.0
        %6063 = vmatpush1.msra.mxu0 0.0
        %6064 = vmatprep.subr.mxu0 0.0
        %6065 = vmatpush1.msra.mxu0 0.0
        %6066 = vmatprep.subr.mxu0 0.0
        %6067 = vmatpush1.msra.mxu0 0.0
        %6068 = vmatprep.subr.mxu0 0.0
        %6069 = vmatpush1.msra.mxu0 0.0
        %6070 = vmatprep.subr.mxu0 0.0
        %6071 = vmatpush1.msra.mxu0 0.0
        %6072 = vmatprep.subr.mxu0 0.0
        %6073 = vmatpush1.msra.mxu0 0.0
        %6074 = vmatprep.subr.mxu0 0.0
        %6075 = vmatpush1.msra.mxu0 0.0
        %6076 = vmatprep.subr.mxu0 0.0
        %6077 = vmatpush1.msra.mxu0 0.0
        %6078 = vmatprep.subr.mxu0 0.0
        %6079 = vmatpush1.msra.mxu0 0.0
        %6080 = vmatprep.subr.mxu0 0.0
        %6081 = vmatpush1.msra.mxu0 0.0
        %6082 = vmatprep.subr.mxu0 0.0
        %6083 = vmatpush1.msra.mxu0 0.0
        %6084 = vmatprep.subr.mxu0 0.0
        %6085 = vmatpush1.msra.mxu0 0.0
        %6086 = vmatprep.subr.mxu0 0.0
        %6087 = vmatpush1.msra.mxu0 0.0
        %6088 = vmatprep.subr.mxu0 0.0
        %6089 = vmatpush1.msra.mxu0 0.0
        %6090 = vmatprep.mubr.f32.mxu0 0.0
        %6091 = vmatmul.mubr.f32.gmra.mrb[0].mxu0 %v6024
        %v6092 = vpop.f32.mrb[0].mxu0
        %v6093 = vadd.f32 0.0, %v6092
        %v6094 = vpop.f32.mrb[0].mxu0
        %6095 = vdwg.mxu0
        %v6097 = vsel %vm2549, %v6093, 0
        %6099 = vmatprep.subr.mxu0 0.0
        %6100 = vmatpush1.msra.mxu0 %v5762
        %6101 = vmatprep.subr.mxu0 0.0
        %6102 = vmatpush1.msra.mxu0 %v5763
        %6103 = vmatprep.subr.mxu0 0.0
        %6104 = vmatpush1.msra.mxu0 0.0
        %6105 = vmatprep.subr.mxu0 0.0
        %6106 = vmatpush1.msra.mxu0 0.0
        %6107 = vmatprep.subr.mxu0 0.0
        %6108 = vmatpush1.msra.mxu0 0.0
        %6109 = vmatprep.subr.mxu0 0.0
        %6110 = vmatpush1.msra.mxu0 0.0
        %6111 = vmatprep.subr.mxu0 0.0
        %6112 = vmatpush1.msra.mxu0 0.0
        %6113 = vmatprep.subr.mxu0 0.0
        %6114 = vmatpush1.msra.mxu0 0.0
        %6115 = vmatprep.subr.mxu0 0.0
        %6116 = vmatpush1.msra.mxu0 0.0
        %6117 = vmatprep.subr.mxu0 0.0
        %6118 = vmatpush1.msra.mxu0 0.0
        %6119 = vmatprep.subr.mxu0 0.0
        %6120 = vmatpush1.msra.mxu0 0.0
        %6121 = vmatprep.subr.mxu0 0.0
        %6122 = vmatpush1.msra.mxu0 0.0
        %6123 = vmatprep.subr.mxu0 0.0
        %6124 = vmatpush1.msra.mxu0 0.0
        %6125 = vmatprep.subr.mxu0 0.0
        %6126 = vmatpush1.msra.mxu0 0.0
        %6127 = vmatprep.subr.mxu0 0.0
        %6128 = vmatpush1.msra.mxu0 0.0
        %6129 = vmatprep.subr.mxu0 0.0
        %6130 = vmatpush1.msra.mxu0 0.0
        %6131 = vmatprep.subr.mxu0 0.0
        %6132 = vmatpush1.msra.mxu0 0.0
        %6133 = vmatprep.subr.mxu0 0.0
        %6134 = vmatpush1.msra.mxu0 0.0
        %6135 = vmatprep.subr.mxu0 0.0
        %6136 = vmatpush1.msra.mxu0 0.0
        %6137 = vmatprep.subr.mxu0 0.0
        %6138 = vmatpush1.msra.mxu0 0.0
        %6139 = vmatprep.subr.mxu0 0.0
        %6140 = vmatpush1.msra.mxu0 0.0
        %6141 = vmatprep.subr.mxu0 0.0
        %6142 = vmatpush1.msra.mxu0 0.0
        %6143 = vmatprep.subr.mxu0 0.0
        %6144 = vmatpush1.msra.mxu0 0.0
        %6145 = vmatprep.subr.mxu0 0.0
        %6146 = vmatpush1.msra.mxu0 0.0
        %6147 = vmatprep.subr.mxu0 0.0
        %6148 = vmatpush1.msra.mxu0 0.0
        %6149 = vmatprep.subr.mxu0 0.0
        %6150 = vmatpush1.msra.mxu0 0.0
        %6151 = vmatprep.subr.mxu0 0.0
        %6152 = vmatpush1.msra.mxu0 0.0
        %6153 = vmatprep.subr.mxu0 0.0
        %6154 = vmatpush1.msra.mxu0 0.0
        %6155 = vmatprep.subr.mxu0 0.0
        %6156 = vmatpush1.msra.mxu0 0.0
        %6157 = vmatprep.subr.mxu0 0.0
        %6158 = vmatpush1.msra.mxu0 0.0
        %6159 = vmatprep.subr.mxu0 0.0
        %6160 = vmatpush1.msra.mxu0 0.0
        %6161 = vmatprep.subr.mxu0 0.0
        %6162 = vmatpush1.msra.mxu0 0.0
        %6163 = vmatprep.mubr.f32.mxu0 0.0
        %6164 = vmatmul.mubr.f32.gmra.mrb[0].mxu0 %v6097
        %v6165 = vpop.f32.mrb[0].mxu0
        %v6166 = vadd.f32 0.0, %v6165
        %v6167 = vpop.f32.mrb[0].mxu0
        %6168 = vdwg.mxu0
        %v6170 = vsel %vm2549, %v5926, 0
        %6172 = vmatprep.subr.mxu0 0.0
        %6173 = vmatpush1.msra.mxu0 %v5760
        %6174 = vmatprep.subr.mxu0 0.0
        %6175 = vmatpush1.msra.mxu0 %v5761
        %6176 = vmatprep.subr.mxu0 0.0
        %6177 = vmatpush1.msra.mxu0 0.0
        %6178 = vmatprep.subr.mxu0 0.0
        %6179 = vmatpush1.msra.mxu0 0.0
        %6180 = vmatprep.subr.mxu0 0.0
        %6181 = vmatpush1.msra.mxu0 0.0
        %6182 = vmatprep.subr.mxu0 0.0
        %6183 = vmatpush1.msra.mxu0 0.0
        %6184 = vmatprep.subr.mxu0 0.0
        %6185 = vmatpush1.msra.mxu0 0.0
        %6186 = vmatprep.subr.mxu0 0.0
        %6187 = vmatpush1.msra.mxu0 0.0
        %6188 = vmatprep.subr.mxu0 0.0
        %6189 = vmatpush1.msra.mxu0 0.0
        %6190 = vmatprep.subr.mxu0 0.0
        %6191 = vmatpush1.msra.mxu0 0.0
        %6192 = vmatprep.subr.mxu0 0.0
        %6193 = vmatpush1.msra.mxu0 0.0
        %6194 = vmatprep.subr.mxu0 0.0
        %6195 = vmatpush1.msra.mxu0 0.0
        %6196 = vmatprep.subr.mxu0 0.0
        %6197 = vmatpush1.msra.mxu0 0.0
        %6198 = vmatprep.subr.mxu0 0.0
        %6199 = vmatpush1.msra.mxu0 0.0
        %6200 = vmatprep.subr.mxu0 0.0
        %6201 = vmatpush1.msra.mxu0 0.0
        %6202 = vmatprep.subr.mxu0 0.0
        %6203 = vmatpush1.msra.mxu0 0.0
        %6204 = vmatprep.subr.mxu0 0.0
        %6205 = vmatpush1.msra.mxu0 0.0
        %6206 = vmatprep.subr.mxu0 0.0
        %6207 = vmatpush1.msra.mxu0 0.0
        %6208 = vmatprep.subr.mxu0 0.0
        %6209 = vmatpush1.msra.mxu0 0.0
        %6210 = vmatprep.subr.mxu0 0.0
        %6211 = vmatpush1.msra.mxu0 0.0
        %6212 = vmatprep.subr.mxu0 0.0
        %6213 = vmatpush1.msra.mxu0 0.0
        %6214 = vmatprep.subr.mxu0 0.0
        %6215 = vmatpush1.msra.mxu0 0.0
        %6216 = vmatprep.subr.mxu0 0.0
        %6217 = vmatpush1.msra.mxu0 0.0
        %6218 = vmatprep.subr.mxu0 0.0
        %6219 = vmatpush1.msra.mxu0 0.0
        %6220 = vmatprep.subr.mxu0 0.0
        %6221 = vmatpush1.msra.mxu0 0.0
        %6222 = vmatprep.subr.mxu0 0.0
        %6223 = vmatpush1.msra.mxu0 0.0
        %6224 = vmatprep.subr.mxu0 0.0
        %6225 = vmatpush1.msra.mxu0 0.0
        %6226 = vmatprep.subr.mxu0 0.0
        %6227 = vmatpush1.msra.mxu0 0.0
        %6228 = vmatprep.subr.mxu0 0.0
        %6229 = vmatpush1.msra.mxu0 0.0
        %6230 = vmatprep.subr.mxu0 0.0
        %6231 = vmatpush1.msra.mxu0 0.0
        %6232 = vmatprep.subr.mxu0 0.0
        %6233 = vmatpush1.msra.mxu0 0.0
        %6234 = vmatprep.subr.mxu0 0.0
        %6235 = vmatpush1.msra.mxu0 0.0
        %6236 = vmatprep.mubr.f32.mxu0 0.0
        %6237 = vmatmul.mubr.f32.gmra.mrb[0].mxu0 %v6170
        %v6238 = vpop.f32.mrb[0].mxu0
        %v6239 = vadd.f32 %v6166, %v6238
        %v6240 = vpop.f32.mrb[0].mxu0
        %6241 = vdwg.mxu0
        %6242 = vrot.lane.b32.xlu0 %v5587, 96
        %v6243 = vpop.permute.xlu0 %6242
        %6244 = vrot.lane.b32.xlu0 %v5672, 96
        %v6245 = vpop.permute.xlu0 %6244
        %v6246 = vsel %vm2549, %v6243, 0
        %v6248 = vsel %vm2549, %v6245, 0
        %6250 = vmatprep.subr.mxu0 0.0
        %6251 = vmatpush1.xpose.msra.mxu0 %v6248
        %6252 = vmatprep.subr.mxu0 0.0
        %6253 = vmatpush1.xpose.msra.mxu0 0.0
        %6254 = vmatprep.subr.mxu0 0.0
        %6255 = vmatpush1.xpose.msra.mxu0 0.0
        %6256 = vmatprep.subr.mxu0 0.0
        %6257 = vmatpush1.xpose.msra.mxu0 0.0
        %6258 = vmatprep.subr.mxu0 0.0
        %6259 = vmatpush1.xpose.msra.mxu0 0.0
        %6260 = vmatprep.subr.mxu0 0.0
        %6261 = vmatpush1.xpose.msra.mxu0 0.0
        %6262 = vmatprep.subr.mxu0 0.0
        %6263 = vmatpush1.xpose.msra.mxu0 0.0
        %6264 = vmatprep.subr.mxu0 0.0
        %6265 = vmatpush1.xpose.msra.mxu0 0.0
        %6266 = vmatprep.subr.mxu0 0.0
        %6267 = vmatpush1.xpose.msra.mxu0 0.0
        %6268 = vmatprep.subr.mxu0 0.0
        %6269 = vmatpush1.xpose.msra.mxu0 0.0
        %6270 = vmatprep.subr.mxu0 0.0
        %6271 = vmatpush1.xpose.msra.mxu0 0.0
        %6272 = vmatprep.subr.mxu0 0.0
        %6273 = vmatpush1.xpose.msra.mxu0 0.0
        %6274 = vmatprep.subr.mxu0 0.0
        %6275 = vmatpush1.xpose.msra.mxu0 0.0
        %6276 = vmatprep.subr.mxu0 0.0
        %6277 = vmatpush1.xpose.msra.mxu0 0.0
        %6278 = vmatprep.subr.mxu0 0.0
        %6279 = vmatpush1.xpose.msra.mxu0 0.0
        %6280 = vmatprep.subr.mxu0 0.0
        %6281 = vmatpush1.xpose.msra.mxu0 0.0
        %6282 = vmatprep.subr.mxu0 0.0
        %6283 = vmatpush1.xpose.msra.mxu0 0.0
        %6284 = vmatprep.subr.mxu0 0.0
        %6285 = vmatpush1.xpose.msra.mxu0 0.0
        %6286 = vmatprep.subr.mxu0 0.0
        %6287 = vmatpush1.xpose.msra.mxu0 0.0
        %6288 = vmatprep.subr.mxu0 0.0
        %6289 = vmatpush1.xpose.msra.mxu0 0.0
        %6290 = vmatprep.subr.mxu0 0.0
        %6291 = vmatpush1.xpose.msra.mxu0 0.0
        %6292 = vmatprep.subr.mxu0 0.0
        %6293 = vmatpush1.xpose.msra.mxu0 0.0
        %6294 = vmatprep.subr.mxu0 0.0
        %6295 = vmatpush1.xpose.msra.mxu0 0.0
        %6296 = vmatprep.subr.mxu0 0.0
        %6297 = vmatpush1.xpose.msra.mxu0 0.0
        %6298 = vmatprep.subr.mxu0 0.0
        %6299 = vmatpush1.xpose.msra.mxu0 0.0
        %6300 = vmatprep.subr.mxu0 0.0
        %6301 = vmatpush1.xpose.msra.mxu0 0.0
        %6302 = vmatprep.subr.mxu0 0.0
        %6303 = vmatpush1.xpose.msra.mxu0 0.0
        %6304 = vmatprep.subr.mxu0 0.0
        %6305 = vmatpush1.xpose.msra.mxu0 0.0
        %6306 = vmatprep.subr.mxu0 0.0
        %6307 = vmatpush1.xpose.msra.mxu0 0.0
        %6308 = vmatprep.subr.mxu0 0.0
        %6309 = vmatpush1.xpose.msra.mxu0 0.0
        %6310 = vmatprep.subr.mxu0 0.0
        %6311 = vmatpush1.xpose.msra.mxu0 0.0
        %6312 = vmatprep.subr.mxu0 0.0
        %6313 = vmatpush1.xpose.msra.mxu0 0.0
        %6314 = vmatprep.mubr.f32.mxu0 0.0
        %6315 = vmatmul.mubr.f32.gmra.mrb[0].mxu0 %v6246
        %v6316 = vpop.f32.mrb[0].mxu0
        %v6317 = vadd.f32 0.0, %v6316
        %v6318 = vpop.f32.mrb[0].mxu0
        %6319 = vdwg.mxu0
        %v6320 = vmul.f32 %v6317, 0.25
        %v6321 = vsel %vm2627, %v6320, -inf
        %6322 = vmax.xlane.f32.xlu0 %v6321
        %v6323 = vpop.xlane.xlu0 %6322
        %v6324 = vsub.f32 %v6320, %v6323
        %v6325 = vmul.f32 %v6324, 1.442695
        %v6326 = vpow.pop %v6325
        %v6327 = vsel %vm2627, %v6326, 0.0
        %6328 = vadd.xlane.f32.xlu0 %v6327
        %v6329 = vpop.xlane.xlu0 %6328
        %v6330 = vrcp.pop %v6329
        %v6331 = vmul.f32 %v6326, %v6330
        %6332 = vrot.lane.b32.xlu0 %v5757, 96
        %v6333 = vpop.permute.xlu0 %6332
        %v6336 = vsel %vm2627, %v6331, 0
        %6338 = vmatprep.subr.mxu0 0.0
        %6339 = vmatpush1.msra.mxu0 %v6333
        %6340 = vmatprep.subr.mxu0 0.0
        %6341 = vmatpush1.msra.mxu0 0.0
        %6342 = vmatprep.subr.mxu0 0.0
        %6343 = vmatpush1.msra.mxu0 0.0
        %6344 = vmatprep.subr.mxu0 0.0
        %6345 = vmatpush1.msra.mxu0 0.0
        %6346 = vmatprep.subr.mxu0 0.0
        %6347 = vmatpush1.msra.mxu0 0.0
        %6348 = vmatprep.subr.mxu0 0.0
        %6349 = vmatpush1.msra.mxu0 0.0
        %6350 = vmatprep.subr.mxu0 0.0
        %6351 = vmatpush1.msra.mxu0 0.0
        %6352 = vmatprep.subr.mxu0 0.0
        %6353 = vmatpush1.msra.mxu0 0.0
        %6354 = vmatprep.subr.mxu0 0.0
        %6355 = vmatpush1.msra.mxu0 0.0
        %6356 = vmatprep.subr.mxu0 0.0
        %6357 = vmatpush1.msra.mxu0 0.0
        %6358 = vmatprep.subr.mxu0 0.0
        %6359 = vmatpush1.msra.mxu0 0.0
        %6360 = vmatprep.subr.mxu0 0.0
        %6361 = vmatpush1.msra.mxu0 0.0
        %6362 = vmatprep.subr.mxu0 0.0
        %6363 = vmatpush1.msra.mxu0 0.0
        %6364 = vmatprep.subr.mxu0 0.0
        %6365 = vmatpush1.msra.mxu0 0.0
        %6366 = vmatprep.subr.mxu0 0.0
        %6367 = vmatpush1.msra.mxu0 0.0
        %6368 = vmatprep.subr.mxu0 0.0
        %6369 = vmatpush1.msra.mxu0 0.0
        %6370 = vmatprep.subr.mxu0 0.0
        %6371 = vmatpush1.msra.mxu0 0.0
        %6372 = vmatprep.subr.mxu0 0.0
        %6373 = vmatpush1.msra.mxu0 0.0
        %6374 = vmatprep.subr.mxu0 0.0
        %6375 = vmatpush1.msra.mxu0 0.0
        %6376 = vmatprep.subr.mxu0 0.0
        %6377 = vmatpush1.msra.mxu0 0.0
        %6378 = vmatprep.subr.mxu0 0.0
        %6379 = vmatpush1.msra.mxu0 0.0
        %6380 = vmatprep.subr.mxu0 0.0
        %6381 = vmatpush1.msra.mxu0 0.0
        %6382 = vmatprep.subr.mxu0 0.0
        %6383 = vmatpush1.msra.mxu0 0.0
        %6384 = vmatprep.subr.mxu0 0.0
        %6385 = vmatpush1.msra.mxu0 0.0
        %6386 = vmatprep.subr.mxu0 0.0
        %6387 = vmatpush1.msra.mxu0 0.0
        %6388 = vmatprep.subr.mxu0 0.0
        %6389 = vmatpush1.msra.mxu0 0.0
        %6390 = vmatprep.subr.mxu0 0.0
        %6391 = vmatpush1.msra.mxu0 0.0
        %6392 = vmatprep.subr.mxu0 0.0
        %6393 = vmatpush1.msra.mxu0 0.0
        %6394 = vmatprep.subr.mxu0 0.0
        %6395 = vmatpush1.msra.mxu0 0.0
        %6396 = vmatprep.subr.mxu0 0.0
        %6397 = vmatpush1.msra.mxu0 0.0
        %6398 = vmatprep.subr.mxu0 0.0
        %6399 = vmatpush1.msra.mxu0 0.0
        %6400 = vmatprep.subr.mxu0 0.0
        %6401 = vmatpush1.msra.mxu0 0.0
        %6402 = vmatprep.mubr.f32.mxu0 0.0
        %6403 = vmatmul.mubr.f32.gmra.mrb[0].mxu0 %v6336
        %v6404 = vpop.f32.mrb[0].mxu0
        %v6405 = vadd.f32 0.0, %v6404
        %v6406 = vpop.f32.mrb[0].mxu0
        %6407 = vdwg.mxu0
        %v6409 = vsel %vm2549, %v6405, 0
        %6411 = vmatprep.subr.mxu0 0.0
        %6412 = vmatpush1.msra.mxu0 %v5764
        %6413 = vmatprep.subr.mxu0 0.0
        %6414 = vmatpush1.msra.mxu0 %v5765
        %6415 = vmatprep.subr.mxu0 0.0
        %6416 = vmatpush1.msra.mxu0 0.0
        %6417 = vmatprep.subr.mxu0 0.0
        %6418 = vmatpush1.msra.mxu0 0.0
        %6419 = vmatprep.subr.mxu0 0.0
        %6420 = vmatpush1.msra.mxu0 0.0
        %6421 = vmatprep.subr.mxu0 0.0
        %6422 = vmatpush1.msra.mxu0 0.0
        %6423 = vmatprep.subr.mxu0 0.0
        %6424 = vmatpush1.msra.mxu0 0.0
        %6425 = vmatprep.subr.mxu0 0.0
        %6426 = vmatpush1.msra.mxu0 0.0
        %6427 = vmatprep.subr.mxu0 0.0
        %6428 = vmatpush1.msra.mxu0 0.0
        %6429 = vmatprep.subr.mxu0 0.0
        %6430 = vmatpush1.msra.mxu0 0.0
        %6431 = vmatprep.subr.mxu0 0.0
        %6432 = vmatpush1.msra.mxu0 0.0
        %6433 = vmatprep.subr.mxu0 0.0
        %6434 = vmatpush1.msra.mxu0 0.0
        %6435 = vmatprep.subr.mxu0 0.0
        %6436 = vmatpush1.msra.mxu0 0.0
        %6437 = vmatprep.subr.mxu0 0.0
        %6438 = vmatpush1.msra.mxu0 0.0
        %6439 = vmatprep.subr.mxu0 0.0
        %6440 = vmatpush1.msra.mxu0 0.0
        %6441 = vmatprep.subr.mxu0 0.0
        %6442 = vmatpush1.msra.mxu0 0.0
        %6443 = vmatprep.subr.mxu0 0.0
        %6444 = vmatpush1.msra.mxu0 0.0
        %6445 = vmatprep.subr.mxu0 0.0
        %6446 = vmatpush1.msra.mxu0 0.0
        %6447 = vmatprep.subr.mxu0 0.0
        %6448 = vmatpush1.msra.mxu0 0.0
        %6449 = vmatprep.subr.mxu0 0.0
        %6450 = vmatpush1.msra.mxu0 0.0
        %6451 = vmatprep.subr.mxu0 0.0
        %6452 = vmatpush1.msra.mxu0 0.0
        %6453 = vmatprep.subr.mxu0 0.0
        %6454 = vmatpush1.msra.mxu0 0.0
        %6455 = vmatprep.subr.mxu0 0.0
        %6456 = vmatpush1.msra.mxu0 0.0
        %6457 = vmatprep.subr.mxu0 0.0
        %6458 = vmatpush1.msra.mxu0 0.0
        %6459 = vmatprep.subr.mxu0 0.0
        %6460 = vmatpush1.msra.mxu0 0.0
        %6461 = vmatprep.subr.mxu0 0.0
        %6462 = vmatpush1.msra.mxu0 0.0
        %6463 = vmatprep.subr.mxu0 0.0
        %6464 = vmatpush1.msra.mxu0 0.0
        %6465 = vmatprep.subr.mxu0 0.0
        %6466 = vmatpush1.msra.mxu0 0.0
        %6467 = vmatprep.subr.mxu0 0.0
        %6468 = vmatpush1.msra.mxu0 0.0
        %6469 = vmatprep.subr.mxu0 0.0
        %6470 = vmatpush1.msra.mxu0 0.0
        %6471 = vmatprep.subr.mxu0 0.0
        %6472 = vmatpush1.msra.mxu0 0.0
        %6473 = vmatprep.subr.mxu0 0.0
        %6474 = vmatpush1.msra.mxu0 0.0
        %6475 = vmatprep.mubr.f32.mxu0 0.0
        %6476 = vmatmul.mubr.f32.gmra.mrb[0].mxu0 %v6409
        %v6477 = vpop.f32.mrb[0].mxu0
        %v6478 = vadd.f32 0.0, %v6477
        %v6479 = vpop.f32.mrb[0].mxu0
        %6480 = vdwg.mxu0
        %v6481 = vadd.f32 %v6239, %v6478
        %6482 = vrot.lane.b32.xlu0 %v5587, 80
        %v6483 = vpop.permute.xlu0 %6482
        %6484 = vrot.lane.b32.xlu0 %v5672, 80
        %v6485 = vpop.permute.xlu0 %6484
        %v6486 = vsel %vm2549, %v6483, 0
        %v6488 = vsel %vm2549, %v6485, 0
        %6490 = vmatprep.subr.mxu0 0.0
        %6491 = vmatpush1.xpose.msra.mxu0 %v6488
        %6492 = vmatprep.subr.mxu0 0.0
        %6493 = vmatpush1.xpose.msra.mxu0 0.0
        %6494 = vmatprep.subr.mxu0 0.0
        %6495 = vmatpush1.xpose.msra.mxu0 0.0
        %6496 = vmatprep.subr.mxu0 0.0
        %6497 = vmatpush1.xpose.msra.mxu0 0.0
        %6498 = vmatprep.subr.mxu0 0.0
        %6499 = vmatpush1.xpose.msra.mxu0 0.0
        %6500 = vmatprep.subr.mxu0 0.0
        %6501 = vmatpush1.xpose.msra.mxu0 0.0
        %6502 = vmatprep.subr.mxu0 0.0
        %6503 = vmatpush1.xpose.msra.mxu0 0.0
        %6504 = vmatprep.subr.mxu0 0.0
        %6505 = vmatpush1.xpose.msra.mxu0 0.0
        %6506 = vmatprep.subr.mxu0 0.0
        %6507 = vmatpush1.xpose.msra.mxu0 0.0
        %6508 = vmatprep.subr.mxu0 0.0
        %6509 = vmatpush1.xpose.msra.mxu0 0.0
        %6510 = vmatprep.subr.mxu0 0.0
        %6511 = vmatpush1.xpose.msra.mxu0 0.0
        %6512 = vmatprep.subr.mxu0 0.0
        %6513 = vmatpush1.xpose.msra.mxu0 0.0
        %6514 = vmatprep.subr.mxu0 0.0
        %6515 = vmatpush1.xpose.msra.mxu0 0.0
        %6516 = vmatprep.subr.mxu0 0.0
        %6517 = vmatpush1.xpose.msra.mxu0 0.0
        %6518 = vmatprep.subr.mxu0 0.0
        %6519 = vmatpush1.xpose.msra.mxu0 0.0
        %6520 = vmatprep.subr.mxu0 0.0
        %6521 = vmatpush1.xpose.msra.mxu0 0.0
        %6522 = vmatprep.subr.mxu0 0.0
        %6523 = vmatpush1.xpose.msra.mxu0 0.0
        %6524 = vmatprep.subr.mxu0 0.0
        %6525 = vmatpush1.xpose.msra.mxu0 0.0
        %6526 = vmatprep.subr.mxu0 0.0
        %6527 = vmatpush1.xpose.msra.mxu0 0.0
        %6528 = vmatprep.subr.mxu0 0.0
        %6529 = vmatpush1.xpose.msra.mxu0 0.0
        %6530 = vmatprep.subr.mxu0 0.0
        %6531 = vmatpush1.xpose.msra.mxu0 0.0
        %6532 = vmatprep.subr.mxu0 0.0
        %6533 = vmatpush1.xpose.msra.mxu0 0.0
        %6534 = vmatprep.subr.mxu0 0.0
        %6535 = vmatpush1.xpose.msra.mxu0 0.0
        %6536 = vmatprep.subr.mxu0 0.0
        %6537 = vmatpush1.xpose.msra.mxu0 0.0
        %6538 = vmatprep.subr.mxu0 0.0
        %6539 = vmatpush1.xpose.msra.mxu0 0.0
        %6540 = vmatprep.subr.mxu0 0.0
        %6541 = vmatpush1.xpose.msra.mxu0 0.0
        %6542 = vmatprep.subr.mxu0 0.0
        %6543 = vmatpush1.xpose.msra.mxu0 0.0
        %6544 = vmatprep.subr.mxu0 0.0
        %6545 = vmatpush1.xpose.msra.mxu0 0.0
        %6546 = vmatprep.subr.mxu0 0.0
        %6547 = vmatpush1.xpose.msra.mxu0 0.0
        %6548 = vmatprep.subr.mxu0 0.0
        %6549 = vmatpush1.xpose.msra.mxu0 0.0
        %6550 = vmatprep.subr.mxu0 0.0
        %6551 = vmatpush1.xpose.msra.mxu0 0.0
        %6552 = vmatprep.subr.mxu0 0.0
        %6553 = vmatpush1.xpose.msra.mxu0 0.0
        %6554 = vmatprep.mubr.f32.mxu0 0.0
        %6555 = vmatmul.mubr.f32.gmra.mrb[0].mxu0 %v6486
        %v6556 = vpop.f32.mrb[0].mxu0
        %v6557 = vadd.f32 0.0, %v6556
        %v6558 = vpop.f32.mrb[0].mxu0
        %6559 = vdwg.mxu0
        %v6560 = vmul.f32 %v6557, 0.25
        %v6561 = vsel %vm2627, %v6560, -inf
        %6562 = vmax.xlane.f32.xlu0 %v6561
        %v6563 = vpop.xlane.xlu0 %6562
        %v6564 = vsub.f32 %v6560, %v6563
        %v6565 = vmul.f32 %v6564, 1.442695
        %v6566 = vpow.pop %v6565
        %v6567 = vsel %vm2627, %v6566, 0.0
        %6568 = vadd.xlane.f32.xlu0 %v6567
        %v6569 = vpop.xlane.xlu0 %6568
        %v6570 = vrcp.pop %v6569
        %v6571 = vmul.f32 %v6566, %v6570
        %6572 = vrot.lane.b32.xlu0 %v5757, 80
        %v6573 = vpop.permute.xlu0 %6572
        %v6576 = vsel %vm2627, %v6571, 0
        %6578 = vmatprep.subr.mxu0 0.0
        %6579 = vmatpush1.msra.mxu0 %v6573
        %6580 = vmatprep.subr.mxu0 0.0
        %6581 = vmatpush1.msra.mxu0 0.0
        %6582 = vmatprep.subr.mxu0 0.0
        %6583 = vmatpush1.msra.mxu0 0.0
        %6584 = vmatprep.subr.mxu0 0.0
        %6585 = vmatpush1.msra.mxu0 0.0
        %6586 = vmatprep.subr.mxu0 0.0
        %6587 = vmatpush1.msra.mxu0 0.0
        %6588 = vmatprep.subr.mxu0 0.0
        %6589 = vmatpush1.msra.mxu0 0.0
        %6590 = vmatprep.subr.mxu0 0.0
        %6591 = vmatpush1.msra.mxu0 0.0
        %6592 = vmatprep.subr.mxu0 0.0
        %6593 = vmatpush1.msra.mxu0 0.0
        %6594 = vmatprep.subr.mxu0 0.0
        %6595 = vmatpush1.msra.mxu0 0.0
        %6596 = vmatprep.subr.mxu0 0.0
        %6597 = vmatpush1.msra.mxu0 0.0
        %6598 = vmatprep.subr.mxu0 0.0
        %6599 = vmatpush1.msra.mxu0 0.0
        %6600 = vmatprep.subr.mxu0 0.0
        %6601 = vmatpush1.msra.mxu0 0.0
        %6602 = vmatprep.subr.mxu0 0.0
        %6603 = vmatpush1.msra.mxu0 0.0
        %6604 = vmatprep.subr.mxu0 0.0
        %6605 = vmatpush1.msra.mxu0 0.0
        %6606 = vmatprep.subr.mxu0 0.0
        %6607 = vmatpush1.msra.mxu0 0.0
        %6608 = vmatprep.subr.mxu0 0.0
        %6609 = vmatpush1.msra.mxu0 0.0
        %6610 = vmatprep.subr.mxu0 0.0
        %6611 = vmatpush1.msra.mxu0 0.0
        %6612 = vmatprep.subr.mxu0 0.0
        %6613 = vmatpush1.msra.mxu0 0.0
        %6614 = vmatprep.subr.mxu0 0.0
        %6615 = vmatpush1.msra.mxu0 0.0
        %6616 = vmatprep.subr.mxu0 0.0
        %6617 = vmatpush1.msra.mxu0 0.0
        %6618 = vmatprep.subr.mxu0 0.0
        %6619 = vmatpush1.msra.mxu0 0.0
        %6620 = vmatprep.subr.mxu0 0.0
        %6621 = vmatpush1.msra.mxu0 0.0
        %6622 = vmatprep.subr.mxu0 0.0
        %6623 = vmatpush1.msra.mxu0 0.0
        %6624 = vmatprep.subr.mxu0 0.0
        %6625 = vmatpush1.msra.mxu0 0.0
        %6626 = vmatprep.subr.mxu0 0.0
        %6627 = vmatpush1.msra.mxu0 0.0
        %6628 = vmatprep.subr.mxu0 0.0
        %6629 = vmatpush1.msra.mxu0 0.0
        %6630 = vmatprep.subr.mxu0 0.0
        %6631 = vmatpush1.msra.mxu0 0.0
        %6632 = vmatprep.subr.mxu0 0.0
        %6633 = vmatpush1.msra.mxu0 0.0
        %6634 = vmatprep.subr.mxu0 0.0
        %6635 = vmatpush1.msra.mxu0 0.0
        %6636 = vmatprep.subr.mxu0 0.0
        %6637 = vmatpush1.msra.mxu0 0.0
        %6638 = vmatprep.subr.mxu0 0.0
        %6639 = vmatpush1.msra.mxu0 0.0
        %6640 = vmatprep.subr.mxu0 0.0
        %6641 = vmatpush1.msra.mxu0 0.0
        %6642 = vmatprep.mubr.f32.mxu0 0.0
        %6643 = vmatmul.mubr.f32.gmra.mrb[0].mxu0 %v6576
        %v6644 = vpop.f32.mrb[0].mxu0
        %v6645 = vadd.f32 0.0, %v6644
        %v6646 = vpop.f32.mrb[0].mxu0
        %6647 = vdwg.mxu0
        %v6649 = vsel %vm2549, %v6645, 0
        %6651 = vmatprep.subr.mxu0 0.0
        %6652 = vmatpush1.msra.mxu0 %v5766
        %6653 = vmatprep.subr.mxu0 0.0
        %6654 = vmatpush1.msra.mxu0 %v5767
        %6655 = vmatprep.subr.mxu0 0.0
        %6656 = vmatpush1.msra.mxu0 0.0
        %6657 = vmatprep.subr.mxu0 0.0
        %6658 = vmatpush1.msra.mxu0 0.0
        %6659 = vmatprep.subr.mxu0 0.0
        %6660 = vmatpush1.msra.mxu0 0.0
        %6661 = vmatprep.subr.mxu0 0.0
        %6662 = vmatpush1.msra.mxu0 0.0
        %6663 = vmatprep.subr.mxu0 0.0
        %6664 = vmatpush1.msra.mxu0 0.0
        %6665 = vmatprep.subr.mxu0 0.0
        %6666 = vmatpush1.msra.mxu0 0.0
        %6667 = vmatprep.subr.mxu0 0.0
        %6668 = vmatpush1.msra.mxu0 0.0
        %6669 = vmatprep.subr.mxu0 0.0
        %6670 = vmatpush1.msra.mxu0 0.0
        %6671 = vmatprep.subr.mxu0 0.0
        %6672 = vmatpush1.msra.mxu0 0.0
        %6673 = vmatprep.subr.mxu0 0.0
        %6674 = vmatpush1.msra.mxu0 0.0
        %6675 = vmatprep.subr.mxu0 0.0
        %6676 = vmatpush1.msra.mxu0 0.0
        %6677 = vmatprep.subr.mxu0 0.0
        %6678 = vmatpush1.msra.mxu0 0.0
        %6679 = vmatprep.subr.mxu0 0.0
        %6680 = vmatpush1.msra.mxu0 0.0
        %6681 = vmatprep.subr.mxu0 0.0
        %6682 = vmatpush1.msra.mxu0 0.0
        %6683 = vmatprep.subr.mxu0 0.0
        %6684 = vmatpush1.msra.mxu0 0.0
        %6685 = vmatprep.subr.mxu0 0.0
        %6686 = vmatpush1.msra.mxu0 0.0
        %6687 = vmatprep.subr.mxu0 0.0
        %6688 = vmatpush1.msra.mxu0 0.0
        %6689 = vmatprep.subr.mxu0 0.0
        %6690 = vmatpush1.msra.mxu0 0.0
        %6691 = vmatprep.subr.mxu0 0.0
        %6692 = vmatpush1.msra.mxu0 0.0
        %6693 = vmatprep.subr.mxu0 0.0
        %6694 = vmatpush1.msra.mxu0 0.0
        %6695 = vmatprep.subr.mxu0 0.0
        %6696 = vmatpush1.msra.mxu0 0.0
        %6697 = vmatprep.subr.mxu0 0.0
        %6698 = vmatpush1.msra.mxu0 0.0
        %6699 = vmatprep.subr.mxu0 0.0
        %6700 = vmatpush1.msra.mxu0 0.0
        %6701 = vmatprep.subr.mxu0 0.0
        %6702 = vmatpush1.msra.mxu0 0.0
        %6703 = vmatprep.subr.mxu0 0.0
        %6704 = vmatpush1.msra.mxu0 0.0
        %6705 = vmatprep.subr.mxu0 0.0
        %6706 = vmatpush1.msra.mxu0 0.0
        %6707 = vmatprep.subr.mxu0 0.0
        %6708 = vmatpush1.msra.mxu0 0.0
        %6709 = vmatprep.subr.mxu0 0.0
        %6710 = vmatpush1.msra.mxu0 0.0
        %6711 = vmatprep.subr.mxu0 0.0
        %6712 = vmatpush1.msra.mxu0 0.0
        %6713 = vmatprep.subr.mxu0 0.0
        %6714 = vmatpush1.msra.mxu0 0.0
        %6715 = vmatprep.mubr.f32.mxu0 0.0
        %6716 = vmatmul.mubr.f32.gmra.mrb[0].mxu0 %v6649
        %v6717 = vpop.f32.mrb[0].mxu0
        %v6718 = vadd.f32 0.0, %v6717
        %v6719 = vpop.f32.mrb[0].mxu0
        %6720 = vdwg.mxu0
        %v6721 = vadd.f32 %v6481, %v6718
        %v6722 = vadd.f32 %v5472, %v6721
        %v6723 = vld [vmem:[#allocation51] sm:$0x1]
        %v6725 = vlaneseq
        %v6726 = vshrl.u32 %v6725, 7
        %v6727 = vsub.s32 0, %v6726
        %v6728 = vrot.slane %v6723, %v6727
        %v6730 = vadd.f32 %v6722, %v6728
        %v6731 = vld [vmem:[#allocation52] sm:$0x1]
        %v6732 = vld [vmem:[#allocation54] sm:$0x1]
        %v6733 = vsel %vm2254, %v6730, 0.0
        %6734 = vadd.xlane.f32.xlu0 %v6733
        %v6735 = vpop.xlane.xlu0 %6734
        %v6736 = vmul.f32 %v6735, %v2258
        %v6737 = vsub.f32 %v6730, %v6736
        %v6738 = vmul.f32 %v6737, %v6737
        %v6739 = vsel %vm2254, %v6738, 0.0
        %6740 = vadd.xlane.f32.xlu0 %v6739
        %v6741 = vpop.xlane.xlu0 %6740
        %v6742 = vmul.f32 %v6741, %v2258
        %v6743 = vadd.f32 %v6742, 1e-05
        %v6744 = vrsqrt.pop %v6743
        %v6745 = vmul.f32 %v6737, %v6744
        %v6747 = vlaneseq
        %v6748 = vshrl.u32 %v6747, 7
        %v6749 = vsub.s32 0, %v6748
        %v6750 = vrot.slane %v6731, %v6749
        %v6752 = vmul.f32 %v6745, %v6750
        %v6754 = vlaneseq
        %v6755 = vshrl.u32 %v6754, 7
        %v6756 = vsub.s32 0, %v6755
        %v6757 = vrot.slane %v6732, %v6756
        %v6759 = vadd.f32 %v6752, %v6757
        %v6760 = vld [vmem:[%s99] sm:$0xff]
        %v6761 = vld [vmem:[%s99 + $0x8] sm:$0xff]
        %v6762 = vld [vmem:[%s99 + $0x10] sm:$0xff]
        %v6763 = vld [vmem:[%s99 + $0x18] sm:$0xff]
        %v6764 = vld [vmem:[%s99 + $0x20] sm:$0xff]
        %v6765 = vld [vmem:[%s99 + $0x28] sm:$0xff]
        %v6766 = vld [vmem:[%s99 + $0x30] sm:$0xff]
        %v6767 = vld [vmem:[%s99 + $0x38] sm:$0xff]
        %v6768 = vld [vmem:[%s101] sm:$0x1]
        %v6770 = vlaneseq
        %v6771 = vshrl.u32 %v6770, 7
        %v6772 = vsub.s32 0, %v6771
        %v6773 = vrot.slane %v6768, %v6772
        %v6776 = vsel %vm2254, %v6759, 0
        %6778 = vmatprep.subr.mxu0 0.0
        %6779 = vmatpush1.msra.mxu0 %v6760
        %6780 = vmatprep.subr.mxu0 0.0
        %6781 = vmatpush1.msra.mxu0 %v6761
        %6782 = vmatprep.subr.mxu0 0.0
        %6783 = vmatpush1.msra.mxu0 %v6762
        %6784 = vmatprep.subr.mxu0 0.0
        %6785 = vmatpush1.msra.mxu0 %v6763
        %6786 = vmatprep.subr.mxu0 0.0
        %6787 = vmatpush1.msra.mxu0 %v6764
        %6788 = vmatprep.subr.mxu0 0.0
        %6789 = vmatpush1.msra.mxu0 %v6765
        %6790 = vmatprep.subr.mxu0 0.0
        %6791 = vmatpush1.msra.mxu0 %v6766
        %6792 = vmatprep.subr.mxu0 0.0
        %6793 = vmatpush1.msra.mxu0 %v6767
        %6794 = vmatprep.subr.mxu0 0.0
        %6795 = vmatpush1.msra.mxu0 0.0
        %6796 = vmatprep.subr.mxu0 0.0
        %6797 = vmatpush1.msra.mxu0 0.0
        %6798 = vmatprep.subr.mxu0 0.0
        %6799 = vmatpush1.msra.mxu0 0.0
        %6800 = vmatprep.subr.mxu0 0.0
        %6801 = vmatpush1.msra.mxu0 0.0
        %6802 = vmatprep.subr.mxu0 0.0
        %6803 = vmatpush1.msra.mxu0 0.0
        %6804 = vmatprep.subr.mxu0 0.0
        %6805 = vmatpush1.msra.mxu0 0.0
        %6806 = vmatprep.subr.mxu0 0.0
        %6807 = vmatpush1.msra.mxu0 0.0
        %6808 = vmatprep.subr.mxu0 0.0
        %6809 = vmatpush1.msra.mxu0 0.0
        %6810 = vmatprep.subr.mxu0 0.0
        %6811 = vmatpush1.msra.mxu0 0.0
        %6812 = vmatprep.subr.mxu0 0.0
        %6813 = vmatpush1.msra.mxu0 0.0
        %6814 = vmatprep.subr.mxu0 0.0
        %6815 = vmatpush1.msra.mxu0 0.0
        %6816 = vmatprep.subr.mxu0 0.0
        %6817 = vmatpush1.msra.mxu0 0.0
        %6818 = vmatprep.subr.mxu0 0.0
        %6819 = vmatpush1.msra.mxu0 0.0
        %6820 = vmatprep.subr.mxu0 0.0
        %6821 = vmatpush1.msra.mxu0 0.0
        %6822 = vmatprep.subr.mxu0 0.0
        %6823 = vmatpush1.msra.mxu0 0.0
        %6824 = vmatprep.subr.mxu0 0.0
        %6825 = vmatpush1.msra.mxu0 0.0
        %6826 = vmatprep.subr.mxu0 0.0
        %6827 = vmatpush1.msra.mxu0 0.0
        %6828 = vmatprep.subr.mxu0 0.0
        %6829 = vmatpush1.msra.mxu0 0.0
        %6830 = vmatprep.subr.mxu0 0.0
        %6831 = vmatpush1.msra.mxu0 0.0
        %6832 = vmatprep.subr.mxu0 0.0
        %6833 = vmatpush1.msra.mxu0 0.0
        %6834 = vmatprep.subr.mxu0 0.0
        %6835 = vmatpush1.msra.mxu0 0.0
        %6836 = vmatprep.subr.mxu0 0.0
        %6837 = vmatpush1.msra.mxu0 0.0
        %6838 = vmatprep.subr.mxu0 0.0
        %6839 = vmatpush1.msra.mxu0 0.0
        %6840 = vmatprep.subr.mxu0 0.0
        %6841 = vmatpush1.msra.mxu0 0.0
        %6842 = vmatprep.mubr.f32.mxu0 0.0
        %6843 = vmatmul.mubr.f32.gmra.mrb[0].mxu0 %v6776
        %v6844 = vpop.f32.mrb[0].mxu0
        %v6845 = vadd.f32 %v6773, %v6844
        %v6846 = vpop.f32.mrb[0].mxu0
        %6847 = vdwg.mxu0
        %v6848 = vmul.f32 %v6845, 0.5
        %v6849 = vmul.f32 %v6845, 0.70710677
        %v6850 = verf.f32.pop %v6849
        %v6851 = vadd.f32 %v6850, 1.0
        %v6852 = vmul.f32 %v6848, %v6851
        %v6853 = vld [vmem:[%s103] sm:$0xff]
        %v6854 = vld [vmem:[%s103 + $0x8] sm:$0xff]
        %v6855 = vld [vmem:[%s103 + $0x10] sm:$0xff]
        %v6856 = vld [vmem:[%s103 + $0x18] sm:$0xff]
        %v6857 = vld [vmem:[%s103 + $0x20] sm:$0xff]
        %v6858 = vld [vmem:[%s103 + $0x28] sm:$0xff]
        %v6859 = vld [vmem:[%s103 + $0x30] sm:$0xff]
        %v6860 = vld [vmem:[%s103 + $0x38] sm:$0xff]
        %v6861 = vld [vmem:[%s103 + $0x40] sm:$0xff]
        %v6862 = vld [vmem:[%s103 + $0x48] sm:$0xff]
        %v6863 = vld [vmem:[%s103 + $0x50] sm:$0xff]
        %v6864 = vld [vmem:[%s103 + $0x58] sm:$0xff]
        %v6865 = vld [vmem:[%s103 + $0x60] sm:$0xff]
        %v6866 = vld [vmem:[%s103 + $0x68] sm:$0xff]
        %v6867 = vld [vmem:[%s103 + $0x70] sm:$0xff]
        %v6868 = vld [vmem:[%s103 + $0x78] sm:$0xff]
        %v6869 = vld [vmem:[%s105] sm:$0x1]
        %v6871 = vlaneseq
        %v6872 = vshrl.u32 %v6871, 7
        %v6873 = vsub.s32 0, %v6872
        %v6874 = vrot.slane %v6869, %v6873
        %6876 = vmatprep.subr.mxu0 0.0
        %6877 = vmatpush1.msra.mxu0 %v6853
        %6878 = vmatprep.subr.mxu0 0.0
        %6879 = vmatpush1.msra.mxu0 %v6854
        %6880 = vmatprep.subr.mxu0 0.0
        %6881 = vmatpush1.msra.mxu0 %v6855
        %6882 = vmatprep.subr.mxu0 0.0
        %6883 = vmatpush1.msra.mxu0 %v6856
        %6884 = vmatprep.subr.mxu0 0.0
        %6885 = vmatpush1.msra.mxu0 %v6857
        %6886 = vmatprep.subr.mxu0 0.0
        %6887 = vmatpush1.msra.mxu0 %v6858
        %6888 = vmatprep.subr.mxu0 0.0
        %6889 = vmatpush1.msra.mxu0 %v6859
        %6890 = vmatprep.subr.mxu0 0.0
        %6891 = vmatpush1.msra.mxu0 %v6860
        %6892 = vmatprep.subr.mxu0 0.0
        %6893 = vmatpush1.msra.mxu0 %v6861
        %6894 = vmatprep.subr.mxu0 0.0
        %6895 = vmatpush1.msra.mxu0 %v6862
        %6896 = vmatprep.subr.mxu0 0.0
        %6897 = vmatpush1.msra.mxu0 %v6863
        %6898 = vmatprep.subr.mxu0 0.0
        %6899 = vmatpush1.msra.mxu0 %v6864
        %6900 = vmatprep.subr.mxu0 0.0
        %6901 = vmatpush1.msra.mxu0 %v6865
        %6902 = vmatprep.subr.mxu0 0.0
        %6903 = vmatpush1.msra.mxu0 %v6866
        %6904 = vmatprep.subr.mxu0 0.0
        %6905 = vmatpush1.msra.mxu0 %v6867
        %6906 = vmatprep.subr.mxu0 0.0
        %6907 = vmatpush1.msra.mxu0 %v6868
        %6908 = vmatprep.subr.mxu0 0.0
        %6909 = vmatpush1.msra.mxu0 0.0
        %6910 = vmatprep.subr.mxu0 0.0
        %6911 = vmatpush1.msra.mxu0 0.0
        %6912 = vmatprep.subr.mxu0 0.0
        %6913 = vmatpush1.msra.mxu0 0.0
        %6914 = vmatprep.subr.mxu0 0.0
        %6915 = vmatpush1.msra.mxu0 0.0
        %6916 = vmatprep.subr.mxu0 0.0
        %6917 = vmatpush1.msra.mxu0 0.0
        %6918 = vmatprep.subr.mxu0 0.0
        %6919 = vmatpush1.msra.mxu0 0.0
        %6920 = vmatprep.subr.mxu0 0.0
        %6921 = vmatpush1.msra.mxu0 0.0
        %6922 = vmatprep.subr.mxu0 0.0
        %6923 = vmatpush1.msra.mxu0 0.0
        %6924 = vmatprep.subr.mxu0 0.0
        %6925 = vmatpush1.msra.mxu0 0.0
        %6926 = vmatprep.subr.mxu0 0.0
        %6927 = vmatpush1.msra.mxu0 0.0
        %6928 = vmatprep.subr.mxu0 0.0
        %6929 = vmatpush1.msra.mxu0 0.0
        %6930 = vmatprep.subr.mxu0 0.0
        %6931 = vmatpush1.msra.mxu0 0.0
        %6932 = vmatprep.subr.mxu0 0.0
        %6933 = vmatpush1.msra.mxu0 0.0
        %6934 = vmatprep.subr.mxu0 0.0
        %6935 = vmatpush1.msra.mxu0 0.0
        %6936 = vmatprep.subr.mxu0 0.0
        %6937 = vmatpush1.msra.mxu0 0.0
        %6938 = vmatprep.subr.mxu0 0.0
        %6939 = vmatpush1.msra.mxu0 0.0
        %6940 = vmatprep.mubr.f32.mxu0 0.0
        %6941 = vmatmul.mubr.f32.gmra.mrb[0].mxu0 %v6852
        %v6942 = vpop.f32.mrb[0].mxu0
        %v6943 = vadd.f32 %v6874, %v6942
        %v6944 = vpop.f32.mrb[0].mxu0
        %6945 = vdwg.mxu0
        %v6946 = vadd.f32 %v6730, %v6943
        %v6947 = vld [vmem:[%s107] sm:$0x1]
        %v6948 = vld [vmem:[%s109] sm:$0x1]
        %vm6949 = vcmask 516096
        %v6950 = vsel %vm6949, %v5467, 0.0
        %6951 = vadd.xlane.f32.xlu0 %v6950
        %v6952 = vpop.xlane.xlu0 %6951
        %v6953 = vmul.f32 %v6952, %v2258
        %v6954 = vsub.f32 %v5467, %v6953
        %v6955 = vmul.f32 %v6954, %v6954
        %v6956 = vsel %vm6949, %v6955, 0.0
        %6957 = vadd.xlane.f32.xlu0 %v6956
        %v6958 = vpop.xlane.xlu0 %6957
        %v6959 = vmul.f32 %v6958, %v2258
        %v6960 = vadd.f32 %v6959, 1e-06
        %v6961 = vrsqrt.pop %v6960
        %v6962 = vmul.f32 %v6954, %v6961
        %v6963 = vmul.f32 %v6962, %v6947
        %v6964 = vadd.f32 %v6963, %v6948
        %v6965 = vld [vmem:[%s111] sm:$0xff]
        %v6966 = vld [vmem:[%s111 + $0x8] sm:$0xff]
        %v6967 = vld [vmem:[%s111 + $0x10] sm:$0xff]
        %v6968 = vld [vmem:[%s111 + $0x18] sm:$0xff]
        %v6969 = vld [vmem:[%s111 + $0x20] sm:$0xff]
        %v6970 = vld [vmem:[%s111 + $0x28] sm:$0xff]
        %v6971 = vld [vmem:[%s111 + $0x30] sm:$0xff]
        %v6972 = vld [vmem:[%s111 + $0x38] sm:$0xff]
        %v6973 = vld [vmem:[#allocation2] sm:$0x1]
        %v6975 = vsel %vm2254, %v6964, 0
        %6977 = vmatprep.subr.mxu0 0.0
        %6978 = vmatpush1.msra.mxu0 %v6965
        %6979 = vmatprep.subr.mxu0 0.0
        %6980 = vmatpush1.msra.mxu0 %v6966
        %6981 = vmatprep.subr.mxu0 0.0
        %6982 = vmatpush1.msra.mxu0 %v6967
        %6983 = vmatprep.subr.mxu0 0.0
        %6984 = vmatpush1.msra.mxu0 %v6968
        %6985 = vmatprep.subr.mxu0 0.0
        %6986 = vmatpush1.msra.mxu0 %v6969
        %6987 = vmatprep.subr.mxu0 0.0
        %6988 = vmatpush1.msra.mxu0 %v6970
        %6989 = vmatprep.subr.mxu0 0.0
        %6990 = vmatpush1.msra.mxu0 %v6971
        %6991 = vmatprep.subr.mxu0 0.0
        %6992 = vmatpush1.msra.mxu0 %v6972
        %6993 = vmatprep.subr.mxu0 0.0
        %6994 = vmatpush1.msra.mxu0 0.0
        %6995 = vmatprep.subr.mxu0 0.0
        %6996 = vmatpush1.msra.mxu0 0.0
        %6997 = vmatprep.subr.mxu0 0.0
        %6998 = vmatpush1.msra.mxu0 0.0
        %6999 = vmatprep.subr.mxu0 0.0
        %7000 = vmatpush1.msra.mxu0 0.0
        %7001 = vmatprep.subr.mxu0 0.0
        %7002 = vmatpush1.msra.mxu0 0.0
        %7003 = vmatprep.subr.mxu0 0.0
        %7004 = vmatpush1.msra.mxu0 0.0
        %7005 = vmatprep.subr.mxu0 0.0
        %7006 = vmatpush1.msra.mxu0 0.0
        %7007 = vmatprep.subr.mxu0 0.0
        %7008 = vmatpush1.msra.mxu0 0.0
        %7009 = vmatprep.subr.mxu0 0.0
        %7010 = vmatpush1.msra.mxu0 0.0
        %7011 = vmatprep.subr.mxu0 0.0
        %7012 = vmatpush1.msra.mxu0 0.0
        %7013 = vmatprep.subr.mxu0 0.0
        %7014 = vmatpush1.msra.mxu0 0.0
        %7015 = vmatprep.subr.mxu0 0.0
        %7016 = vmatpush1.msra.mxu0 0.0
        %7017 = vmatprep.subr.mxu0 0.0
        %7018 = vmatpush1.msra.mxu0 0.0
        %7019 = vmatprep.subr.mxu0 0.0
        %7020 = vmatpush1.msra.mxu0 0.0
        %7021 = vmatprep.subr.mxu0 0.0
        %7022 = vmatpush1.msra.mxu0 0.0
        %7023 = vmatprep.subr.mxu0 0.0
        %7024 = vmatpush1.msra.mxu0 0.0
        %7025 = vmatprep.subr.mxu0 0.0
        %7026 = vmatpush1.msra.mxu0 0.0
        %7027 = vmatprep.subr.mxu0 0.0
        %7028 = vmatpush1.msra.mxu0 0.0
        %7029 = vmatprep.subr.mxu0 0.0
        %7030 = vmatpush1.msra.mxu0 0.0
        %7031 = vmatprep.subr.mxu0 0.0
        %7032 = vmatpush1.msra.mxu0 0.0
        %7033 = vmatprep.subr.mxu0 0.0
        %7034 = vmatpush1.msra.mxu0 0.0
        %7035 = vmatprep.subr.mxu0 0.0
        %7036 = vmatpush1.msra.mxu0 0.0
        %7037 = vmatprep.subr.mxu0 0.0
        %7038 = vmatpush1.msra.mxu0 0.0
        %7039 = vmatprep.subr.mxu0 0.0
        %7040 = vmatpush1.msra.mxu0 0.0
        %7041 = vmatprep.mubr.f32.mxu0 0.0
        %7042 = vmatmul.mubr.f32.gmra.mrb[0].mxu0 %v6975
        %v7043 = vpop.f32.mrb[0].mxu0
        %v7044 = vadd.f32 %v6973, %v7043
        %v7045 = vpop.f32.mrb[0].mxu0
        %7046 = vdwg.mxu0
        %v7047 = vxor.u32 %v7044, 2147483648
        %v7048 = vmul.f32 %v7047, 1.442695
        %v7049 = vpow.pop %v7048
        %v7050 = vadd.f32 %v7049, 1.0
        %v7051 = vrcp.pop %v7050
        %v7052 = vmul.f32 1.0, %v7051
        %v7053 = vld [vmem:[%s115] sm:$0x1]
        %v7054 = vld [vmem:[%s117] sm:$0x1]
        %v7055 = vsel %vm6949, %v6946, 0.0
        %7056 = vadd.xlane.f32.xlu0 %v7055
        %v7057 = vpop.xlane.xlu0 %7056
        %v7058 = vmul.f32 %v7057, %v2258
        %v7059 = vsub.f32 %v6946, %v7058
        %v7060 = vmul.f32 %v7059, %v7059
        %v7061 = vsel %vm6949, %v7060, 0.0
        %7062 = vadd.xlane.f32.xlu0 %v7061
        %v7063 = vpop.xlane.xlu0 %7062
        %v7064 = vmul.f32 %v7063, %v2258
        %v7065 = vadd.f32 %v7064, 1e-06
        %v7066 = vrsqrt.pop %v7065
        %v7067 = vmul.f32 %v7059, %v7066
        %v7068 = vmul.f32 %v7067, %v7053
        %v7069 = vadd.f32 %v7068, %v7054
        %v7070 = vld [vmem:[%s119] sm:$0xff]
        %v7071 = vld [vmem:[%s119 + $0x8] sm:$0xff]
        %v7072 = vld [vmem:[%s119 + $0x10] sm:$0xff]
        %v7073 = vld [vmem:[%s119 + $0x18] sm:$0xff]
        %v7074 = vld [vmem:[%s119 + $0x20] sm:$0xff]
        %v7075 = vld [vmem:[%s119 + $0x28] sm:$0xff]
        %v7076 = vld [vmem:[%s119 + $0x30] sm:$0xff]
        %v7077 = vld [vmem:[%s119 + $0x38] sm:$0xff]
        %v7078 = vld [vmem:[#allocation3] sm:$0x1]
        %v7080 = vsel %vm2254, %v7069, 0
        %7082 = vmatprep.subr.mxu0 0.0
        %7083 = vmatpush1.msra.mxu0 %v7070
        %7084 = vmatprep.subr.mxu0 0.0
        %7085 = vmatpush1.msra.mxu0 %v7071
        %7086 = vmatprep.subr.mxu0 0.0
        %7087 = vmatpush1.msra.mxu0 %v7072
        %7088 = vmatprep.subr.mxu0 0.0
        %7089 = vmatpush1.msra.mxu0 %v7073
        %7090 = vmatprep.subr.mxu0 0.0
        %7091 = vmatpush1.msra.mxu0 %v7074
        %7092 = vmatprep.subr.mxu0 0.0
        %7093 = vmatpush1.msra.mxu0 %v7075
        %7094 = vmatprep.subr.mxu0 0.0
        %7095 = vmatpush1.msra.mxu0 %v7076
        %7096 = vmatprep.subr.mxu0 0.0
        %7097 = vmatpush1.msra.mxu0 %v7077
        %7098 = vmatprep.subr.mxu0 0.0
        %7099 = vmatpush1.msra.mxu0 0.0
        %7100 = vmatprep.subr.mxu0 0.0
        %7101 = vmatpush1.msra.mxu0 0.0
        %7102 = vmatprep.subr.mxu0 0.0
        %7103 = vmatpush1.msra.mxu0 0.0
        %7104 = vmatprep.subr.mxu0 0.0
        %7105 = vmatpush1.msra.mxu0 0.0
        %7106 = vmatprep.subr.mxu0 0.0
        %7107 = vmatpush1.msra.mxu0 0.0
        %7108 = vmatprep.subr.mxu0 0.0
        %7109 = vmatpush1.msra.mxu0 0.0
        %7110 = vmatprep.subr.mxu0 0.0
        %7111 = vmatpush1.msra.mxu0 0.0
        %7112 = vmatprep.subr.mxu0 0.0
        %7113 = vmatpush1.msra.mxu0 0.0
        %7114 = vmatprep.subr.mxu0 0.0
        %7115 = vmatpush1.msra.mxu0 0.0
        %7116 = vmatprep.subr.mxu0 0.0
        %7117 = vmatpush1.msra.mxu0 0.0
        %7118 = vmatprep.subr.mxu0 0.0
        %7119 = vmatpush1.msra.mxu0 0.0
        %7120 = vmatprep.subr.mxu0 0.0
        %7121 = vmatpush1.msra.mxu0 0.0
        %7122 = vmatprep.subr.mxu0 0.0
        %7123 = vmatpush1.msra.mxu0 0.0
        %7124 = vmatprep.subr.mxu0 0.0
        %7125 = vmatpush1.msra.mxu0 0.0
        %7126 = vmatprep.subr.mxu0 0.0
        %7127 = vmatpush1.msra.mxu0 0.0
        %7128 = vmatprep.subr.mxu0 0.0
        %7129 = vmatpush1.msra.mxu0 0.0
        %7130 = vmatprep.subr.mxu0 0.0
        %7131 = vmatpush1.msra.mxu0 0.0
        %7132 = vmatprep.subr.mxu0 0.0
        %7133 = vmatpush1.msra.mxu0 0.0
        %7134 = vmatprep.subr.mxu0 0.0
        %7135 = vmatpush1.msra.mxu0 0.0
        %7136 = vmatprep.subr.mxu0 0.0
        %7137 = vmatpush1.msra.mxu0 0.0
        %7138 = vmatprep.subr.mxu0 0.0
        %7139 = vmatpush1.msra.mxu0 0.0
        %7140 = vmatprep.subr.mxu0 0.0
        %7141 = vmatpush1.msra.mxu0 0.0
        %7142 = vmatprep.subr.mxu0 0.0
        %7143 = vmatpush1.msra.mxu0 0.0
        %7144 = vmatprep.subr.mxu0 0.0
        %7145 = vmatpush1.msra.mxu0 0.0
        %7146 = vmatprep.mubr.f32.mxu0 0.0
        %7147 = vmatmul.mubr.f32.gmra.mrb[0].mxu0 %v7080
        %v7148 = vpop.f32.mrb[0].mxu0
        %v7149 = vadd.f32 %v7078, %v7148
        %v7150 = vpop.f32.mrb[0].mxu0
        %7151 = vdwg.mxu0
        %v7152 = vxor.u32 %v7149, 2147483648
        %v7153 = vmul.f32 %v7152, 1.442695
        %v7154 = vpow.pop %v7153
        %v7155 = vadd.f32 %v7154, 1.0
        %v7156 = vrcp.pop %v7155
        %v7157 = vmul.f32 1.0, %v7156
        %v7158 = vadd.f32 %v7052, %v7157
        %v7159 = vmul.f32 %v7158, 0.5
        %7161 = vset.pattern.permute.xlu0 0
        %7162 = vperm.xlu0 %7161, %v7159
        %v7163 = vpop.permute.xlu0 %7162
        %7165 = vst [vmem:[%s2226] sm:$0x1] %v7163
        %s7166 = sand.u32 %s1457, 1
        %s7167 = scalar_lea.sflag [#allocation6], %s7166
        %s7168 = sand.u32 %s1457, 1
        %s7169 = scalar_lea.vmem [#allocation55], %s7168
        // Predicated region
        $region397: #{tpu_custom_call.1} parent=263 // pred_check
          %p7170 = pneg %p1467
        $region398: #{tpu_custom_call.1} parent=263 // pred_check_branch
          %7172 = sbr.rel (%p7170) target = $region400
        $region399: #{tpu_custom_call.1} parent=263 // pred_region
          %s7174 = ssub.s32 16, 16
          %7175 = vsyncadd %s7167, %s7174
          %s7176 = smul.addr %s158, 16
          %s7177 = scalar_lea.hbm %s123, %s7176
          %s7179 = sshll.u32 %s7169, 4
          %s7180 = int_to_ptr.vmem [resolvable:$true] %s7179
          %7182 = dma.vmem_to_hbm [thread:$0]  %s7180, 16, %s7177, %s7167
        $region400: #{tpu_custom_call.1} parent=263 // pred_fallthru
          _
      $region264: #{tpu_custom_call.1} parent=5 // pred_fallthru
        _
      %p7183 = scmp.le.s32.totalorder 2, %s153
      // Predicated region
      $region401: #{tpu_custom_call.1} parent=5 // pred_check
        %p7184 = pneg %p7183
      $region402: #{tpu_custom_call.1} parent=5 // pred_check_branch
        %7186 = sbr.rel (%p7184) target = $region404
      $region403: #{tpu_custom_call.1} parent=5 // pred_region
        %s7187 = ssub.s32 %s153, 2
        // Predicated region
        $region405: #{tpu_custom_call.1} parent=403 // pred_check
          %p7188 = pneg %p1473
        $region406: #{tpu_custom_call.1} parent=403 // pred_check_branch
          %7190 = sbr.rel (%p7188) target = $region408
        $region407: #{tpu_custom_call.1} parent=403 // pred_region
          %s7191 = sand.u32 %s1458, 1
          %s7192 = scalar_lea.sflag [#allocation6], %s7191
          %s7193 = sand.u32 %s1458, 1
          %s7194 = scalar_lea.vmem [#allocation55], %s7193
          %7195 = dma.done %s7192, 16
        $region408: #{tpu_custom_call.1} parent=403 // pred_fallthru
          _
      $region404: #{tpu_custom_call.1} parent=5 // pred_fallthru
        _
    $region6: #{tpu_custom_call.1} parent=1 // loop_footer
      %s157 = sadd.s32 1, %s153
    $region7: #{tpu_custom_call.1} parent=1 // loop_footer_branch
      %152 = sbr.rel target = $region3
    $region8: #{tpu_custom_call.1} parent=1 // loop_exit
      _
    %7196 = vsyncpa [#allocation5], 1
    %s7197 = scalar_lea.sflag [#allocation5], 1
    %7198 = vsyncpa %s7197, 1
    %7199 = vsyncpa [#allocation8], 1
    %7200 = vsyncpa [#allocation11], 1
    %7201 = vsyncpa [#allocation14], 1
    %7202 = vsyncpa [#allocation17], 1
    %7203 = vsyncpa [#allocation20], 1
    %7204 = vsyncpa [#allocation23], 1
    %7205 = vsyncpa [#allocation26], 1
    %7206 = vsyncpa [#allocation29], 1
    %7207 = vsyncpa [#allocation32], 1
    %7208 = vsyncpa [#allocation35], 1
    %7209 = vsyncpa [#allocation38], 1
    %7210 = vsyncpa [#allocation41], 1
    %7211 = vsyncpa [#allocation44], 1
    %7212 = vsyncpa [#allocation47], 1
    %7213 = vsyncpa [#allocation50], 1
    %7214 = vsyncpa [#allocation53], 1
    %7215 = vsyncpa [#allocation6], 1
    %s7216 = scalar_lea.sflag [#allocation6], 1
    %7217 = vsyncpa %s7216, 1

</llo_original>
